<compile_context>
chip_gen: v6e
topology: v6e:2x2x1
jax: 0.10.0
libtpu: 0.0.40
codegen_flags: <defaults>
</compile_context>

<pallas_src>
import jax
import jax.numpy as jnp
import numpy as np
from jax.experimental import pallas as pl
from jax.experimental.pallas import tpu as pltpu

# --- small synthetic configuration (Block(n_embed, num_heads)) ---
N_EMBED = 128          # lane-dense: multiple of 128
NUM_HEADS = 4
HEAD_SIZE = N_EMBED // NUM_HEADS
SEQ_LEN = 64           # T <= block_size (reference uses tril[:T, :T])
BATCH = 4              # BT = 256 rows -> full MXU row utilization, amortized DMA
LN_EPS = 1e-5          # torch.nn.LayerNorm default


def _layer_norm(x, gamma, beta):
    mu = jnp.mean(x, axis=-1, keepdims=True)
    var = jnp.mean((x - mu) ** 2, axis=-1, keepdims=True)
    return (x - mu) * jax.lax.rsqrt(var + LN_EPS) * gamma + beta


def block_kernel(x_ref, bias_ref, ln1_g_ref, ln1_b_ref, wqkv_ref, wproj_ref,
                 bproj_ref, ln2_g_ref, ln2_b_ref, w1_ref, b1_ref, w2_ref,
                 b2_ref, out_ref, attn_ref):
    B, T, C = x_ref.shape
    BT = B * T

    x = x_ref[...].reshape(BT, C)                          # (B*T, C) f32 slab

    # -------- ln1 + fused QKV projection (one MXU pass; scale in wq) --------
    h_bf = _layer_norm(x, ln1_g_ref[...], ln1_b_ref[...]).astype(jnp.bfloat16)
    qkv = jnp.dot(h_bf, wqkv_ref[...],
                  preferred_element_type=jnp.float32)      # (BT, 3C) f32

    # 128-aligned lane slices of the fused output (tile-aligned -> free).
    q3 = qkv[:, 0 * C:1 * C].astype(jnp.bfloat16).reshape(B, T, C)
    k3 = qkv[:, 1 * C:2 * C].astype(jnp.bfloat16).reshape(B, T, C)
    v3 = qkv[:, 2 * C:3 * C].astype(jnp.bfloat16).reshape(B, T, C)

    bias = bias_ref[...]                                   # (T, T) additive mask

    # Per-head attention, batched over B.  Head outputs are written into the
    # VMEM (B, T, C) f32 accumulator at their lane offsets so the output
    # projection runs as a single full-K (=C) matmul afterwards.
    # TODO(synk): nn.Dropout layers are omitted (eval/inference semantics).
    for hdx in range(NUM_HEADS):
        s = hdx * HEAD_SIZE
        qh = q3[:, :, s:s + HEAD_SIZE]                     # (B, T, hs) bf16
        kh = k3[:, :, s:s + HEAD_SIZE]
        vh = v3[:, :, s:s + HEAD_SIZE]
        scores = jnp.einsum('bqd,bkd->bqk', qh, kh,
                            preferred_element_type=jnp.float32)   # (B, T, T)
        scores = scores + bias
        m = jnp.max(scores, axis=-1, keepdims=True)
        p = jnp.exp(scores - m)
        l = jnp.sum(p, axis=-1, keepdims=True)
        wei = p * pl.reciprocal(l, approx=True)            # divide -> EUP slot
        outh = jnp.einsum('bqk,bkd->bqd', wei.astype(jnp.bfloat16), vh,
                          preferred_element_type=jnp.float32)     # (B, T, hs)
        attn_ref[:, :, s:s + HEAD_SIZE] = outh

    # Single K=C output projection (no per-head K=32 partials / VPU adds).
    sa = jnp.dot(attn_ref[...].reshape(BT, C).astype(jnp.bfloat16),
                 wproj_ref[...],
                 preferred_element_type=jnp.float32) + bproj_ref[...]
    x1 = x + sa                                            # first residual

    # ------------------------ ln2 + feed-forward ----------------------------
    h2 = _layer_norm(x1, ln2_g_ref[...], ln2_b_ref[...]).astype(jnp.bfloat16)
    ff = jnp.dot(h2, w1_ref[...],
                 preferred_element_type=jnp.float32) + b1_ref[...]
    ff = jnp.maximum(ff, 0.0).astype(jnp.bfloat16)         # ReLU
    ff = jnp.dot(ff, w2_ref[...],
                 preferred_element_type=jnp.float32) + b2_ref[...]

    out_ref[...] = (x1 + ff).reshape(B, T, C).astype(out_ref.dtype)


def block_forward(x, params):
    B, T, C = x.shape
    assert C == N_EMBED
    HID = 4 * C
    BT = B * T

    # Fold the C**-0.5 attention scale into wq (in f32, before the bf16 cast)
    # and fuse wq|wk|wv into one (C, 3C) bf16 weight -> one MXU pass in-kernel.
    scale = jnp.float32(C) ** -0.5
    wqkv = jnp.concatenate(
        [params["wq"] * scale, params["wk"], params["wv"]], axis=1
    ).astype(jnp.bfloat16)                                  # (C, 3C)
    wproj = params["wproj"].astype(jnp.bfloat16)
    w1 = params["w1"].astype(jnp.bfloat16)
    w2 = params["w2"].astype(jnp.bfloat16)

    # Trace-time causal additive bias (diagonal never masked -> softmax never
    # sees an all-masked row).
    causal_bias = jnp.asarray(
        np.where(np.tril(np.ones((T, T), dtype=bool)), 0.0, -1e30),
        dtype=jnp.float32)

    weight_args = [causal_bias, params["ln1_g"], params["ln1_b"], wqkv, wproj,
                   params["bproj"], params["ln2_g"], params["ln2_b"],
                   w1, params["b1"], w2, params["b2"]]

    def full_spec(a):
        nd = a.ndim
        # Single grid step -> constant-index weights are simply VMEM-resident.
        return pl.BlockSpec(a.shape, lambda i, _nd=nd: (0,) * _nd)

    in_specs = [pl.BlockSpec((B, T, C), lambda i: (0, 0, 0))] + \
               [full_spec(a) for a in weight_args]
    out_specs = pl.BlockSpec((B, T, C), lambda i: (0, 0, 0))

    flops = (2 * BT * C * 3 * C          # fused qkv projection
             + 4 * B * T * T * C         # scores + wei@v over all heads
             + 2 * BT * C * C            # output projection
             + 4 * BT * C * HID)         # ffn (two matmuls)
    bytes_accessed = (2 * x.size * x.dtype.itemsize
                      + sum(int(a.size) * a.dtype.itemsize for a in weight_args))
    cost = pl.CostEstimate(flops=int(flops),
                           transcendentals=int(B * NUM_HEADS * T * T),
                           bytes_accessed=int(bytes_accessed))

    return pl.pallas_call(
        block_kernel,
        out_shape=jax.ShapeDtypeStruct((B, T, C), x.dtype),
        grid=(1,),
        in_specs=in_specs,
        out_specs=out_specs,
        scratch_shapes=[pltpu.VMEM((B, T, C), jnp.float32)],
        compiler_params=pltpu.CompilerParams(
            dimension_semantics=("arbitrary",)),
        cost_estimate=cost,
    )(x, *weight_args)


def init_params(key):
    ks = jax.random.split(key, 8)

    def lin_w(k, fan_in, fan_out):
        return jax.random.normal(k, (fan_in, fan_out), jnp.float32) * (fan_in ** -0.5)

    return dict(
        ln1_g=jnp.ones((1, N_EMBED), jnp.float32),
        ln1_b=jnp.zeros((1, N_EMBED), jnp.float32),
        # per-head key/query/value weights stacked along output columns
        wq=lin_w(ks[0], N_EMBED, N_EMBED),
        wk=lin_w(ks[1], N_EMBED, N_EMBED),
        wv=lin_w(ks[2], N_EMBED, N_EMBED),
        wproj=lin_w(ks[3], N_EMBED, N_EMBED),
        bproj=jax.random.normal(ks[4], (1, N_EMBED), jnp.float32) * 0.02,
        ln2_g=jnp.ones((1, N_EMBED), jnp.float32),
        ln2_b=jnp.zeros((1, N_EMBED), jnp.float32),
        w1=lin_w(ks[5], N_EMBED, 4 * N_EMBED),
        b1=jax.random.normal(ks[6], (1, 4 * N_EMBED), jnp.float32) * 0.02,
        w2=lin_w(ks[7], 4 * N_EMBED, N_EMBED),
        b2=jnp.zeros((1, N_EMBED), jnp.float32),
    )


def block_reference(x, p):
    """Pure-JAX f32 reference mirroring the PyTorch forward (eval mode)."""
    def ln(h, g, b):
        mu = h.mean(-1, keepdims=True)
        var = ((h - mu) ** 2).mean(-1, keepdims=True)
        return (h - mu) / jnp.sqrt(var + LN_EPS) * g + b

    B, T, C = x.shape
    h = ln(x, p["ln1_g"], p["ln1_b"])
    q = h @ p["wq"]
    k = h @ p["wk"]
    v = h @ p["wv"]
    mask = jnp.tril(jnp.ones((T, T), bool))
    outs = []
    for hdx in range(NUM_HEADS):
        s = hdx * HEAD_SIZE
        wei = q[..., s:s + HEAD_SIZE] @ jnp.swapaxes(k[..., s:s + HEAD_SIZE], -1, -2)
        wei = wei * C ** (-0.5)
        wei = jnp.where(mask, wei, -jnp.inf)
        wei = jax.nn.softmax(wei, axis=-1)
        outs.append(wei @ v[..., s:s + HEAD_SIZE])
    sa = jnp.concatenate(outs, -1) @ p["wproj"] + p["bproj"]
    x1 = x + sa
    h2 = ln(x1, p["ln2_g"], p["ln2_b"])
    ff = jnp.maximum(h2 @ p["w1"] + p["b1"], 0.0) @ p["w2"] + p["b2"]
    return x1 + ff


if __name__ == "__main__":
    key = jax.random.PRNGKey(0)
    k_x, k_p = jax.random.split(key)
    x = jax.random.normal(k_x, (BATCH, SEQ_LEN, N_EMBED), jnp.float32)
    params = init_params(k_p)

    out = block_forward(x, params)
    out = jax.block_until_ready(out)

    ref = block_reference(x, params)
    # Kernel runs its matmuls in bf16 (f32 accumulation) and uses an approx
    # EUP reciprocal for the softmax denominator; compare against the pure-f32
    # reference with a bf16-appropriate tolerance.
    np.testing.assert_allclose(np.asarray(out), np.asarray(ref),
                               rtol=5e-2, atol=5e-2)
    print("KERNEL_OK")
</pallas_src>

<mosaic_0001>
module attributes {stable_mosaic.version = 11 : i64} {
  func.func @block_kernel(%arg0: i32, %arg1: memref<4x64x128xf32, #tpu.memory_space<vmem>>, %arg2: memref<64x64xf32, #tpu.memory_space<vmem>>, %arg3: memref<1x128xf32, #tpu.memory_space<vmem>>, %arg4: memref<1x128xf32, #tpu.memory_space<vmem>>, %arg5: memref<128x384xbf16, #tpu.memory_space<vmem>>, %arg6: memref<128x128xbf16, #tpu.memory_space<vmem>>, %arg7: memref<1x128xf32, #tpu.memory_space<vmem>>, %arg8: memref<1x128xf32, #tpu.memory_space<vmem>>, %arg9: memref<1x128xf32, #tpu.memory_space<vmem>>, %arg10: memref<128x512xbf16, #tpu.memory_space<vmem>>, %arg11: memref<1x512xf32, #tpu.memory_space<vmem>>, %arg12: memref<512x128xbf16, #tpu.memory_space<vmem>>, %arg13: memref<1x128xf32, #tpu.memory_space<vmem>>, %arg14: memref<4x64x128xf32, #tpu.memory_space<vmem>>, %arg15: memref<4x64x128xf32, #tpu.memory_space<vmem>>) attributes {dimension_semantics = [#tpu.dimension_semantics<arbitrary>], iteration_bounds = array<i64: 1>, scalar_prefetch = 0 : i64, scratch_operands = 1 : i64, tpu.core_type = #tpu.core_type<tc>, window_params = [{pipeline_mode = #tpu.pipeline_mode<synchronous>, transform_indices = @transform_0, window_bounds = array<i64: 4, 64, 128>}, {pipeline_mode = #tpu.pipeline_mode<synchronous>, transform_indices = @transform_1, window_bounds = array<i64: 64, 64>}, {pipeline_mode = #tpu.pipeline_mode<synchronous>, transform_indices = @transform_2, window_bounds = array<i64: 1, 128>}, {pipeline_mode = #tpu.pipeline_mode<synchronous>, transform_indices = @transform_3, window_bounds = array<i64: 1, 128>}, {pipeline_mode = #tpu.pipeline_mode<synchronous>, transform_indices = @transform_4, window_bounds = array<i64: 128, 384>}, {pipeline_mode = #tpu.pipeline_mode<synchronous>, transform_indices = @transform_5, window_bounds = array<i64: 128, 128>}, {pipeline_mode = #tpu.pipeline_mode<synchronous>, transform_indices = @transform_6, window_bounds = array<i64: 1, 128>}, {pipeline_mode = #tpu.pipeline_mode<synchronous>, transform_indices = @transform_7, window_bounds = array<i64: 1, 128>}, {pipeline_mode = #tpu.pipeline_mode<synchronous>, transform_indices = @transform_8, window_bounds = array<i64: 1, 128>}, {pipeline_mode = #tpu.pipeline_mode<synchronous>, transform_indices = @transform_9, window_bounds = array<i64: 128, 512>}, {pipeline_mode = #tpu.pipeline_mode<synchronous>, transform_indices = @transform_10, window_bounds = array<i64: 1, 512>}, {pipeline_mode = #tpu.pipeline_mode<synchronous>, transform_indices = @transform_11, window_bounds = array<i64: 512, 128>}, {pipeline_mode = #tpu.pipeline_mode<synchronous>, transform_indices = @transform_12, window_bounds = array<i64: 1, 128>}, {pipeline_mode = #tpu.pipeline_mode<synchronous>, transform_indices = @transform_13, window_bounds = array<i64: 4, 64, 128>}]} {
    %c0 = arith.constant 0 : index
    %c0_0 = arith.constant 0 : index
    %c0_1 = arith.constant 0 : index
    %0 = vector.load %arg1[%c0, %c0_0, %c0_1] : memref<4x64x128xf32, #tpu.memory_space<vmem>>, vector<4x64x128xf32>
    %1 = vector.shape_cast %0 : vector<4x64x128xf32> to vector<256x128xf32>
    %c0_2 = arith.constant 0 : index
    %c0_3 = arith.constant 0 : index
    %2 = vector.load %arg3[%c0_2, %c0_3] : memref<1x128xf32, #tpu.memory_space<vmem>>, vector<1x128xf32>
    %c0_4 = arith.constant 0 : index
    %c0_5 = arith.constant 0 : index
    %3 = vector.load %arg4[%c0_4, %c0_5] : memref<1x128xf32, #tpu.memory_space<vmem>>, vector<1x128xf32>
    %cst = arith.constant dense<0.000000e+00> : vector<256xf32>
    %4 = vector.multi_reduction <add>, %1, %cst [1] : vector<256x128xf32> to vector<256xf32>
    %5 = vector.shape_cast %4 : vector<256xf32> to vector<256x1xf32>
    %cst_6 = arith.constant 1.280000e+02 : f32
    %6 = vector.broadcast %cst_6 : f32 to vector<256x1xf32>
    %7 = arith.divf %5, %6 : vector<256x1xf32>
    %8 = vector.broadcast %7 : vector<256x1xf32> to vector<256x128xf32>
    %9 = arith.subf %1, %8 : vector<256x128xf32>
    %10 = arith.mulf %9, %9 : vector<256x128xf32>
    %cst_7 = arith.constant dense<0.000000e+00> : vector<256xf32>
    %11 = vector.multi_reduction <add>, %10, %cst_7 [1] : vector<256x128xf32> to vector<256xf32>
    %12 = vector.shape_cast %11 : vector<256xf32> to vector<256x1xf32>
    %cst_8 = arith.constant 1.280000e+02 : f32
    %13 = vector.broadcast %cst_8 : f32 to vector<256x1xf32>
    %14 = arith.divf %12, %13 : vector<256x1xf32>
    %15 = vector.broadcast %7 : vector<256x1xf32> to vector<256x128xf32>
    %16 = arith.subf %1, %15 : vector<256x128xf32>
    %cst_9 = arith.constant 9.99999974E-6 : f32
    %17 = vector.broadcast %cst_9 : f32 to vector<256x1xf32>
    %18 = arith.addf %14, %17 : vector<256x1xf32>
    %19 = math.rsqrt %18 : vector<256x1xf32>
    %20 = vector.broadcast %19 : vector<256x1xf32> to vector<256x128xf32>
    %21 = arith.mulf %16, %20 : vector<256x128xf32>
    %22 = vector.broadcast %2 : vector<1x128xf32> to vector<256x128xf32>
    %23 = arith.mulf %21, %22 : vector<256x128xf32>
    %24 = vector.broadcast %3 : vector<1x128xf32> to vector<256x128xf32>
    %25 = arith.addf %23, %24 : vector<256x128xf32>
    %26 = arith.truncf %25 : vector<256x128xf32> to vector<256x128xbf16>
    %c0_10 = arith.constant 0 : index
    %c0_11 = arith.constant 0 : index
    %27 = vector.load %arg5[%c0_10, %c0_11] : memref<128x384xbf16, #tpu.memory_space<vmem>>, vector<128x384xbf16>
    %cst_12 = arith.constant dense<0.000000e+00> : vector<256x384xf32>
    %28 = tpu.matmul %26, %27, %cst_12 {dimension_numbers = #tpu.dot_dimension_numbers<[1], [0], [0], [1], [0, 0, 1, 1], [], []>} : vector<256x128xbf16>, vector<128x384xbf16>, vector<256x384xf32> -> vector<256x384xf32>
    %29 = vector.extract_strided_slice %28 {offsets = [0, 0], sizes = [256, 128], strides = [1, 1]} : vector<256x384xf32> to vector<256x128xf32>
    %30 = arith.truncf %29 : vector<256x128xf32> to vector<256x128xbf16>
    %31 = vector.shape_cast %30 : vector<256x128xbf16> to vector<4x64x128xbf16>
    %32 = vector.extract_strided_slice %28 {offsets = [0, 128], sizes = [256, 128], strides = [1, 1]} : vector<256x384xf32> to vector<256x128xf32>
    %33 = arith.truncf %32 : vector<256x128xf32> to vector<256x128xbf16>
    %34 = vector.shape_cast %33 : vector<256x128xbf16> to vector<4x64x128xbf16>
    %35 = vector.extract_strided_slice %28 {offsets = [0, 256], sizes = [256, 128], strides = [1, 1]} : vector<256x384xf32> to vector<256x128xf32>
    %36 = arith.truncf %35 : vector<256x128xf32> to vector<256x128xbf16>
    %37 = vector.shape_cast %36 : vector<256x128xbf16> to vector<4x64x128xbf16>
    %c0_13 = arith.constant 0 : index
    %c0_14 = arith.constant 0 : index
    %38 = vector.load %arg2[%c0_13, %c0_14] : memref<64x64xf32, #tpu.memory_space<vmem>>, vector<64x64xf32>
    %39 = vector.extract_strided_slice %31 {offsets = [0, 0, 0], sizes = [4, 64, 32], strides = [1, 1, 1]} : vector<4x64x128xbf16> to vector<4x64x32xbf16>
    %40 = vector.extract_strided_slice %34 {offsets = [0, 0, 0], sizes = [4, 64, 32], strides = [1, 1, 1]} : vector<4x64x128xbf16> to vector<4x64x32xbf16>
    %41 = vector.extract_strided_slice %37 {offsets = [0, 0, 0], sizes = [4, 64, 32], strides = [1, 1, 1]} : vector<4x64x128xbf16> to vector<4x64x32xbf16>
    "tpu.trace_start"() <{level = 10 : i32, message = "bqd,bkd->bqk"}> : () -> ()
    %cst_15 = arith.constant dense<0.000000e+00> : vector<4x64x64xf32>
    %42 = tpu.matmul %39, %40, %cst_15 {dimension_numbers = #tpu.dot_dimension_numbers<[2], [2], [1], [1], [0, 0, 0, 1, 1, 1], [0], [0]>} : vector<4x64x32xbf16>, vector<4x64x32xbf16>, vector<4x64x64xf32> -> vector<4x64x64xf32>
    "tpu.trace_stop"() : () -> ()
    %43 = vector.shape_cast %38 : vector<64x64xf32> to vector<1x64x64xf32>
    %44 = vector.broadcast %43 : vector<1x64x64xf32> to vector<4x64x64xf32>
    %45 = arith.addf %42, %44 : vector<4x64x64xf32>
    %cst_16 = arith.constant dense<0xFF800000> : vector<4x64xf32>
    %46 = vector.multi_reduction <maximumf>, %45, %cst_16 [2] : vector<4x64x64xf32> to vector<4x64xf32>
    %47 = vector.shape_cast %46 : vector<4x64xf32> to vector<4x64x1xf32>
    %48 = vector.broadcast %47 : vector<4x64x1xf32> to vector<4x64x64xf32>
    %49 = arith.subf %45, %48 : vector<4x64x64xf32>
    %50 = math.exp %49 : vector<4x64x64xf32>
    %cst_17 = arith.constant dense<0.000000e+00> : vector<4x64xf32>
    %51 = vector.multi_reduction <add>, %50, %cst_17 [2] : vector<4x64x64xf32> to vector<4x64xf32>
    %52 = vector.shape_cast %51 : vector<4x64xf32> to vector<4x64x1xf32>
    %53 = tpu.reciprocal %52 {approx = true} : vector<4x64x1xf32> -> vector<4x64x1xf32>
    %54 = vector.broadcast %53 : vector<4x64x1xf32> to vector<4x64x64xf32>
    %55 = arith.mulf %50, %54 : vector<4x64x64xf32>
    %56 = arith.truncf %55 : vector<4x64x64xf32> to vector<4x64x64xbf16>
    "tpu.trace_start"() <{level = 10 : i32, message = "bqk,bkd->bqd"}> : () -> ()
    %cst_18 = arith.constant dense<0.000000e+00> : vector<4x64x32xf32>
    %57 = tpu.matmul %56, %41, %cst_18 {dimension_numbers = #tpu.dot_dimension_numbers<[2], [1], [1], [2], [0, 0, 0, 1, 1, 2], [0], [0]>} : vector<4x64x64xbf16>, vector<4x64x32xbf16>, vector<4x64x32xf32> -> vector<4x64x32xf32>
    "tpu.trace_stop"() : () -> ()
    %c0_19 = arith.constant 0 : index
    %c0_20 = arith.constant 0 : index
    %c0_21 = arith.constant 0 : index
    %58 = vector.load %arg15[%c0_19, %c0_20, %c0_21] : memref<4x64x128xf32, #tpu.memory_space<vmem>>, vector<4x64x32xf32>
    tpu.vector_store %arg15[%c0_19, %c0_20, %c0_21], %57 {strides = array<i32>} : memref<4x64x128xf32, #tpu.memory_space<vmem>>, vector<4x64x32xf32>,
    %59 = vector.extract_strided_slice %31 {offsets = [0, 0, 32], sizes = [4, 64, 32], strides = [1, 1, 1]} : vector<4x64x128xbf16> to vector<4x64x32xbf16>
    %60 = vector.extract_strided_slice %34 {offsets = [0, 0, 32], sizes = [4, 64, 32], strides = [1, 1, 1]} : vector<4x64x128xbf16> to vector<4x64x32xbf16>
    %61 = vector.extract_strided_slice %37 {offsets = [0, 0, 32], sizes = [4, 64, 32], strides = [1, 1, 1]} : vector<4x64x128xbf16> to vector<4x64x32xbf16>
    "tpu.trace_start"() <{level = 10 : i32, message = "bqd,bkd->bqk"}> : () -> ()
    %cst_22 = arith.constant dense<0.000000e+00> : vector<4x64x64xf32>
    %62 = tpu.matmul %59, %60, %cst_22 {dimension_numbers = #tpu.dot_dimension_numbers<[2], [2], [1], [1], [0, 0, 0, 1, 1, 1], [0], [0]>} : vector<4x64x32xbf16>, vector<4x64x32xbf16>, vector<4x64x64xf32> -> vector<4x64x64xf32>
    "tpu.trace_stop"() : () -> ()
    %63 = vector.shape_cast %38 : vector<64x64xf32> to vector<1x64x64xf32>
    %64 = vector.broadcast %63 : vector<1x64x64xf32> to vector<4x64x64xf32>
    %65 = arith.addf %62, %64 : vector<4x64x64xf32>
    %cst_23 = arith.constant dense<0xFF800000> : vector<4x64xf32>
    %66 = vector.multi_reduction <maximumf>, %65, %cst_23 [2] : vector<4x64x64xf32> to vector<4x64xf32>
    %67 = vector.shape_cast %66 : vector<4x64xf32> to vector<4x64x1xf32>
    %68 = vector.broadcast %67 : vector<4x64x1xf32> to vector<4x64x64xf32>
    %69 = arith.subf %65, %68 : vector<4x64x64xf32>
    %70 = math.exp %69 : vector<4x64x64xf32>
    %cst_24 = arith.constant dense<0.000000e+00> : vector<4x64xf32>
    %71 = vector.multi_reduction <add>, %70, %cst_24 [2] : vector<4x64x64xf32> to vector<4x64xf32>
    %72 = vector.shape_cast %71 : vector<4x64xf32> to vector<4x64x1xf32>
    %73 = tpu.reciprocal %72 {approx = true} : vector<4x64x1xf32> -> vector<4x64x1xf32>
    %74 = vector.broadcast %73 : vector<4x64x1xf32> to vector<4x64x64xf32>
    %75 = arith.mulf %70, %74 : vector<4x64x64xf32>
    %76 = arith.truncf %75 : vector<4x64x64xf32> to vector<4x64x64xbf16>
    "tpu.trace_start"() <{level = 10 : i32, message = "bqk,bkd->bqd"}> : () -> ()
    %cst_25 = arith.constant dense<0.000000e+00> : vector<4x64x32xf32>
    %77 = tpu.matmul %76, %61, %cst_25 {dimension_numbers = #tpu.dot_dimension_numbers<[2], [1], [1], [2], [0, 0, 0, 1, 1, 2], [0], [0]>} : vector<4x64x64xbf16>, vector<4x64x32xbf16>, vector<4x64x32xf32> -> vector<4x64x32xf32>
    "tpu.trace_stop"() : () -> ()
    %c0_26 = arith.constant 0 : index
    %c0_27 = arith.constant 0 : index
    %c32 = arith.constant 32 : index
    %78 = vector.load %arg15[%c0_26, %c0_27, %c32] : memref<4x64x128xf32, #tpu.memory_space<vmem>>, vector<4x64x32xf32>
    tpu.vector_store %arg15[%c0_26, %c0_27, %c32], %77 {strides = array<i32>} : memref<4x64x128xf32, #tpu.memory_space<vmem>>, vector<4x64x32xf32>,
    %79 = vector.extract_strided_slice %31 {offsets = [0, 0, 64], sizes = [4, 64, 32], strides = [1, 1, 1]} : vector<4x64x128xbf16> to vector<4x64x32xbf16>
    %80 = vector.extract_strided_slice %34 {offsets = [0, 0, 64], sizes = [4, 64, 32], strides = [1, 1, 1]} : vector<4x64x128xbf16> to vector<4x64x32xbf16>
    %81 = vector.extract_strided_slice %37 {offsets = [0, 0, 64], sizes = [4, 64, 32], strides = [1, 1, 1]} : vector<4x64x128xbf16> to vector<4x64x32xbf16>
    "tpu.trace_start"() <{level = 10 : i32, message = "bqd,bkd->bqk"}> : () -> ()
    %cst_28 = arith.constant dense<0.000000e+00> : vector<4x64x64xf32>
    %82 = tpu.matmul %79, %80, %cst_28 {dimension_numbers = #tpu.dot_dimension_numbers<[2], [2], [1], [1], [0, 0, 0, 1, 1, 1], [0], [0]>} : vector<4x64x32xbf16>, vector<4x64x32xbf16>, vector<4x64x64xf32> -> vector<4x64x64xf32>
    "tpu.trace_stop"() : () -> ()
    %83 = vector.shape_cast %38 : vector<64x64xf32> to vector<1x64x64xf32>
    %84 = vector.broadcast %83 : vector<1x64x64xf32> to vector<4x64x64xf32>
    %85 = arith.addf %82, %84 : vector<4x64x64xf32>
    %cst_29 = arith.constant dense<0xFF800000> : vector<4x64xf32>
    %86 = vector.multi_reduction <maximumf>, %85, %cst_29 [2] : vector<4x64x64xf32> to vector<4x64xf32>
    %87 = vector.shape_cast %86 : vector<4x64xf32> to vector<4x64x1xf32>
    %88 = vector.broadcast %87 : vector<4x64x1xf32> to vector<4x64x64xf32>
    %89 = arith.subf %85, %88 : vector<4x64x64xf32>
    %90 = math.exp %89 : vector<4x64x64xf32>
    %cst_30 = arith.constant dense<0.000000e+00> : vector<4x64xf32>
    %91 = vector.multi_reduction <add>, %90, %cst_30 [2] : vector<4x64x64xf32> to vector<4x64xf32>
    %92 = vector.shape_cast %91 : vector<4x64xf32> to vector<4x64x1xf32>
    %93 = tpu.reciprocal %92 {approx = true} : vector<4x64x1xf32> -> vector<4x64x1xf32>
    %94 = vector.broadcast %93 : vector<4x64x1xf32> to vector<4x64x64xf32>
    %95 = arith.mulf %90, %94 : vector<4x64x64xf32>
    %96 = arith.truncf %95 : vector<4x64x64xf32> to vector<4x64x64xbf16>
    "tpu.trace_start"() <{level = 10 : i32, message = "bqk,bkd->bqd"}> : () -> ()
    %cst_31 = arith.constant dense<0.000000e+00> : vector<4x64x32xf32>
    %97 = tpu.matmul %96, %81, %cst_31 {dimension_numbers = #tpu.dot_dimension_numbers<[2], [1], [1], [2], [0, 0, 0, 1, 1, 2], [0], [0]>} : vector<4x64x64xbf16>, vector<4x64x32xbf16>, vector<4x64x32xf32> -> vector<4x64x32xf32>
    "tpu.trace_stop"() : () -> ()
    %c0_32 = arith.constant 0 : index
    %c0_33 = arith.constant 0 : index
    %c64 = arith.constant 64 : index
    %98 = vector.load %arg15[%c0_32, %c0_33, %c64] : memref<4x64x128xf32, #tpu.memory_space<vmem>>, vector<4x64x32xf32>
    tpu.vector_store %arg15[%c0_32, %c0_33, %c64], %97 {strides = array<i32>} : memref<4x64x128xf32, #tpu.memory_space<vmem>>, vector<4x64x32xf32>,
    %99 = vector.extract_strided_slice %31 {offsets = [0, 0, 96], sizes = [4, 64, 32], strides = [1, 1, 1]} : vector<4x64x128xbf16> to vector<4x64x32xbf16>
    %100 = vector.extract_strided_slice %34 {offsets = [0, 0, 96], sizes = [4, 64, 32], strides = [1, 1, 1]} : vector<4x64x128xbf16> to vector<4x64x32xbf16>
    %101 = vector.extract_strided_slice %37 {offsets = [0, 0, 96], sizes = [4, 64, 32], strides = [1, 1, 1]} : vector<4x64x128xbf16> to vector<4x64x32xbf16>
    "tpu.trace_start"() <{level = 10 : i32, message = "bqd,bkd->bqk"}> : () -> ()
    %cst_34 = arith.constant dense<0.000000e+00> : vector<4x64x64xf32>
    %102 = tpu.matmul %99, %100, %cst_34 {dimension_numbers = #tpu.dot_dimension_numbers<[2], [2], [1], [1], [0, 0, 0, 1, 1, 1], [0], [0]>} : vector<4x64x32xbf16>, vector<4x64x32xbf16>, vector<4x64x64xf32> -> vector<4x64x64xf32>
    "tpu.trace_stop"() : () -> ()
    %103 = vector.shape_cast %38 : vector<64x64xf32> to vector<1x64x64xf32>
    %104 = vector.broadcast %103 : vector<1x64x64xf32> to vector<4x64x64xf32>
    %105 = arith.addf %102, %104 : vector<4x64x64xf32>
    %cst_35 = arith.constant dense<0xFF800000> : vector<4x64xf32>
    %106 = vector.multi_reduction <maximumf>, %105, %cst_35 [2] : vector<4x64x64xf32> to vector<4x64xf32>
    %107 = vector.shape_cast %106 : vector<4x64xf32> to vector<4x64x1xf32>
    %108 = vector.broadcast %107 : vector<4x64x1xf32> to vector<4x64x64xf32>
    %109 = arith.subf %105, %108 : vector<4x64x64xf32>
    %110 = math.exp %109 : vector<4x64x64xf32>
    %cst_36 = arith.constant dense<0.000000e+00> : vector<4x64xf32>
    %111 = vector.multi_reduction <add>, %110, %cst_36 [2] : vector<4x64x64xf32> to vector<4x64xf32>
    %112 = vector.shape_cast %111 : vector<4x64xf32> to vector<4x64x1xf32>
    %113 = tpu.reciprocal %112 {approx = true} : vector<4x64x1xf32> -> vector<4x64x1xf32>
    %114 = vector.broadcast %113 : vector<4x64x1xf32> to vector<4x64x64xf32>
    %115 = arith.mulf %110, %114 : vector<4x64x64xf32>
    %116 = arith.truncf %115 : vector<4x64x64xf32> to vector<4x64x64xbf16>
    "tpu.trace_start"() <{level = 10 : i32, message = "bqk,bkd->bqd"}> : () -> ()
    %cst_37 = arith.constant dense<0.000000e+00> : vector<4x64x32xf32>
    %117 = tpu.matmul %116, %101, %cst_37 {dimension_numbers = #tpu.dot_dimension_numbers<[2], [1], [1], [2], [0, 0, 0, 1, 1, 2], [0], [0]>} : vector<4x64x64xbf16>, vector<4x64x32xbf16>, vector<4x64x32xf32> -> vector<4x64x32xf32>
    "tpu.trace_stop"() : () -> ()
    %c0_38 = arith.constant 0 : index
    %c0_39 = arith.constant 0 : index
    %c96 = arith.constant 96 : index
    %118 = vector.load %arg15[%c0_38, %c0_39, %c96] : memref<4x64x128xf32, #tpu.memory_space<vmem>>, vector<4x64x32xf32>
    tpu.vector_store %arg15[%c0_38, %c0_39, %c96], %117 {strides = array<i32>} : memref<4x64x128xf32, #tpu.memory_space<vmem>>, vector<4x64x32xf32>,
    %c0_40 = arith.constant 0 : index
    %c0_41 = arith.constant 0 : index
    %c0_42 = arith.constant 0 : index
    %119 = vector.load %arg15[%c0_40, %c0_41, %c0_42] : memref<4x64x128xf32, #tpu.memory_space<vmem>>, vector<4x64x128xf32>
    %120 = vector.shape_cast %119 : vector<4x64x128xf32> to vector<256x128xf32>
    %121 = arith.truncf %120 : vector<256x128xf32> to vector<256x128xbf16>
    %c0_43 = arith.constant 0 : index
    %c0_44 = arith.constant 0 : index
    %122 = vector.load %arg6[%c0_43, %c0_44] : memref<128x128xbf16, #tpu.memory_space<vmem>>, vector<128x128xbf16>
    %cst_45 = arith.constant dense<0.000000e+00> : vector<256x128xf32>
    %123 = tpu.matmul %121, %122, %cst_45 {dimension_numbers = #tpu.dot_dimension_numbers<[1], [0], [0], [1], [0, 0, 1, 1], [], []>} : vector<256x128xbf16>, vector<128x128xbf16>, vector<256x128xf32> -> vector<256x128xf32>
    %c0_46 = arith.constant 0 : index
    %c0_47 = arith.constant 0 : index
    %124 = vector.load %arg7[%c0_46, %c0_47] : memref<1x128xf32, #tpu.memory_space<vmem>>, vector<1x128xf32>
    %125 = vector.broadcast %124 : vector<1x128xf32> to vector<256x128xf32>
    %126 = arith.addf %123, %125 : vector<256x128xf32>
    %127 = arith.addf %1, %126 : vector<256x128xf32>
    %c0_48 = arith.constant 0 : index
    %c0_49 = arith.constant 0 : index
    %128 = vector.load %arg8[%c0_48, %c0_49] : memref<1x128xf32, #tpu.memory_space<vmem>>, vector<1x128xf32>
    %c0_50 = arith.constant 0 : index
    %c0_51 = arith.constant 0 : index
    %129 = vector.load %arg9[%c0_50, %c0_51] : memref<1x128xf32, #tpu.memory_space<vmem>>, vector<1x128xf32>
    %cst_52 = arith.constant dense<0.000000e+00> : vector<256xf32>
    %130 = vector.multi_reduction <add>, %127, %cst_52 [1] : vector<256x128xf32> to vector<256xf32>
    %131 = vector.shape_cast %130 : vector<256xf32> to vector<256x1xf32>
    %cst_53 = arith.constant 1.280000e+02 : f32
    %132 = vector.broadcast %cst_53 : f32 to vector<256x1xf32>
    %133 = arith.divf %131, %132 : vector<256x1xf32>
    %134 = vector.broadcast %133 : vector<256x1xf32> to vector<256x128xf32>
    %135 = arith.subf %127, %134 : vector<256x128xf32>
    %136 = arith.mulf %135, %135 : vector<256x128xf32>
    %cst_54 = arith.constant dense<0.000000e+00> : vector<256xf32>
    %137 = vector.multi_reduction <add>, %136, %cst_54 [1] : vector<256x128xf32> to vector<256xf32>
    %138 = vector.shape_cast %137 : vector<256xf32> to vector<256x1xf32>
    %cst_55 = arith.constant 1.280000e+02 : f32
    %139 = vector.broadcast %cst_55 : f32 to vector<256x1xf32>
    %140 = arith.divf %138, %139 : vector<256x1xf32>
    %141 = vector.broadcast %133 : vector<256x1xf32> to vector<256x128xf32>
    %142 = arith.subf %127, %141 : vector<256x128xf32>
    %cst_56 = arith.constant 9.99999974E-6 : f32
    %143 = vector.broadcast %cst_56 : f32 to vector<256x1xf32>
    %144 = arith.addf %140, %143 : vector<256x1xf32>
    %145 = math.rsqrt %144 : vector<256x1xf32>
    %146 = vector.broadcast %145 : vector<256x1xf32> to vector<256x128xf32>
    %147 = arith.mulf %142, %146 : vector<256x128xf32>
    %148 = vector.broadcast %128 : vector<1x128xf32> to vector<256x128xf32>
    %149 = arith.mulf %147, %148 : vector<256x128xf32>
    %150 = vector.broadcast %129 : vector<1x128xf32> to vector<256x128xf32>
    %151 = arith.addf %149, %150 : vector<256x128xf32>
    %152 = arith.truncf %151 : vector<256x128xf32> to vector<256x128xbf16>
    %c0_57 = arith.constant 0 : index
    %c0_58 = arith.constant 0 : index
    %153 = vector.load %arg10[%c0_57, %c0_58] : memref<128x512xbf16, #tpu.memory_space<vmem>>, vector<128x512xbf16>
    %cst_59 = arith.constant dense<0.000000e+00> : vector<256x512xf32>
    %154 = tpu.matmul %152, %153, %cst_59 {dimension_numbers = #tpu.dot_dimension_numbers<[1], [0], [0], [1], [0, 0, 1, 1], [], []>} : vector<256x128xbf16>, vector<128x512xbf16>, vector<256x512xf32> -> vector<256x512xf32>
    %c0_60 = arith.constant 0 : index
    %c0_61 = arith.constant 0 : index
    %155 = vector.load %arg11[%c0_60, %c0_61] : memref<1x512xf32, #tpu.memory_space<vmem>>, vector<1x512xf32>
    %156 = vector.broadcast %155 : vector<1x512xf32> to vector<256x512xf32>
    %157 = arith.addf %154, %156 : vector<256x512xf32>
    %cst_62 = arith.constant 0.000000e+00 : f32
    %158 = vector.broadcast %cst_62 : f32 to vector<256x512xf32>
    %159 = arith.maximumf %157, %158 : vector<256x512xf32>
    %160 = arith.truncf %159 : vector<256x512xf32> to vector<256x512xbf16>
    %c0_63 = arith.constant 0 : index
    %c0_64 = arith.constant 0 : index
    %161 = vector.load %arg12[%c0_63, %c0_64] : memref<512x128xbf16, #tpu.memory_space<vmem>>, vector<512x128xbf16>
    %cst_65 = arith.constant dense<0.000000e+00> : vector<256x128xf32>
    %162 = tpu.matmul %160, %161, %cst_65 {dimension_numbers = #tpu.dot_dimension_numbers<[1], [0], [0], [1], [0, 0, 1, 1], [], []>} : vector<256x512xbf16>, vector<512x128xbf16>, vector<256x128xf32> -> vector<256x128xf32>
    %c0_66 = arith.constant 0 : index
    %c0_67 = arith.constant 0 : index
    %163 = vector.load %arg13[%c0_66, %c0_67] : memref<1x128xf32, #tpu.memory_space<vmem>>, vector<1x128xf32>
    %164 = vector.broadcast %163 : vector<1x128xf32> to vector<256x128xf32>
    %165 = arith.addf %162, %164 : vector<256x128xf32>
    %166 = arith.addf %127, %165 : vector<256x128xf32>
    %167 = vector.shape_cast %166 : vector<256x128xf32> to vector<4x64x128xf32>
    %c0_68 = arith.constant 0 : index
    %c0_69 = arith.constant 0 : index
    %c0_70 = arith.constant 0 : index
    %168 = vector.load %arg14[%c0_68, %c0_69, %c0_70] : memref<4x64x128xf32, #tpu.memory_space<vmem>>, vector<4x64x128xf32>
    tpu.vector_store %arg14[%c0_68, %c0_69, %c0_70], %167 {strides = array<i32>} : memref<4x64x128xf32, #tpu.memory_space<vmem>>, vector<4x64x128xf32>,
    return
  }
  func.func @transform_0(%arg0: i32) -> (i32, i32, i32) {
    %c0_i32 = arith.constant 0 : i32
    %c0_i32_0 = arith.constant 0 : i32
    %c0_i32_1 = arith.constant 0 : i32
    %c0_i32_2 = arith.constant 0 : i32
    return %c0_i32, %c0_i32_0, %c0_i32_1 : i32, i32, i32
  }
  func.func @transform_1(%arg0: i32) -> (i32, i32) {
    %c0_i32 = arith.constant 0 : i32
    %c0_i32_0 = arith.constant 0 : i32
    %c0_i32_1 = arith.constant 0 : i32
    return %c0_i32, %c0_i32_0 : i32, i32
  }
  func.func @transform_2(%arg0: i32) -> (i32, i32) {
    %c0_i32 = arith.constant 0 : i32
    %c0_i32_0 = arith.constant 0 : i32
    %c0_i32_1 = arith.constant 0 : i32
    return %c0_i32, %c0_i32_0 : i32, i32
  }
  func.func @transform_3(%arg0: i32) -> (i32, i32) {
    %c0_i32 = arith.constant 0 : i32
    %c0_i32_0 = arith.constant 0 : i32
    %c0_i32_1 = arith.constant 0 : i32
    return %c0_i32, %c0_i32_0 : i32, i32
  }
  func.func @transform_4(%arg0: i32) -> (i32, i32) {
    %c0_i32 = arith.constant 0 : i32
    %c0_i32_0 = arith.constant 0 : i32
    %c0_i32_1 = arith.constant 0 : i32
    return %c0_i32, %c0_i32_0 : i32, i32
  }
  func.func @transform_5(%arg0: i32) -> (i32, i32) {
    %c0_i32 = arith.constant 0 : i32
    %c0_i32_0 = arith.constant 0 : i32
    %c0_i32_1 = arith.constant 0 : i32
    return %c0_i32, %c0_i32_0 : i32, i32
  }
  func.func @transform_6(%arg0: i32) -> (i32, i32) {
    %c0_i32 = arith.constant 0 : i32
    %c0_i32_0 = arith.constant 0 : i32
    %c0_i32_1 = arith.constant 0 : i32
    return %c0_i32, %c0_i32_0 : i32, i32
  }
  func.func @transform_7(%arg0: i32) -> (i32, i32) {
    %c0_i32 = arith.constant 0 : i32
    %c0_i32_0 = arith.constant 0 : i32
    %c0_i32_1 = arith.constant 0 : i32
    return %c0_i32, %c0_i32_0 : i32, i32
  }
  func.func @transform_8(%arg0: i32) -> (i32, i32) {
    %c0_i32 = arith.constant 0 : i32
    %c0_i32_0 = arith.constant 0 : i32
    %c0_i32_1 = arith.constant 0 : i32
    return %c0_i32, %c0_i32_0 : i32, i32
  }
  func.func @transform_9(%arg0: i32) -> (i32, i32) {
    %c0_i32 = arith.constant 0 : i32
    %c0_i32_0 = arith.constant 0 : i32
    %c0_i32_1 = arith.constant 0 : i32
    return %c0_i32, %c0_i32_0 : i32, i32
  }
  func.func @transform_10(%arg0: i32) -> (i32, i32) {
    %c0_i32 = arith.constant 0 : i32
    %c0_i32_0 = arith.constant 0 : i32
    %c0_i32_1 = arith.constant 0 : i32
    return %c0_i32, %c0_i32_0 : i32, i32
  }
  func.func @transform_11(%arg0: i32) -> (i32, i32) {
    %c0_i32 = arith.constant 0 : i32
    %c0_i32_0 = arith.constant 0 : i32
    %c0_i32_1 = arith.constant 0 : i32
    return %c0_i32, %c0_i32_0 : i32, i32
  }
  func.func @transform_12(%arg0: i32) -> (i32, i32) {
    %c0_i32 = arith.constant 0 : i32
    %c0_i32_0 = arith.constant 0 : i32
    %c0_i32_1 = arith.constant 0 : i32
    return %c0_i32, %c0_i32_0 : i32, i32
  }
  func.func @transform_13(%arg0: i32) -> (i32, i32, i32) {
    %c0_i32 = arith.constant 0 : i32
    %c0_i32_0 = arith.constant 0 : i32
    %c0_i32_1 = arith.constant 0 : i32
    %c0_i32_2 = arith.constant 0 : i32
    return %c0_i32, %c0_i32_0, %c0_i32_1 : i32, i32, i32
  }
}

</mosaic_0001>

<llo_original>
// kernel: tpu_custom_call.1
$region0: #{tpu_custom_call.1}
  #allocation0 [shape = 'u32[]', space=smem, size = 0x4, offset = 0x4, fixed_abs, tag = 'smem constant byte address 0x4 - core index']
  #allocation1 [shape = 'u32[144,128]{1,0:T(1,128)}', space=vmem, size = 0x12000, scoped, tag = 'internal scratch']
  #allocation2 [shape = 'f32[4,64,128]{2,1,0:T(8,128)}', space=vmem, size = 0x20000, scoped, tag = 'scratch operand']
  %s0 = inlined_call_operand.hbm [shape: f32[4,64,128], index: 0, kind: input, shape index: {}]
  %s1 = inlined_call_operand.hbm [shape: f32[64,64], index: 1, kind: input, shape index: {}]
  %s2 = inlined_call_operand.vmem [shape: f32[1,128], index: 2, kind: input, shape index: {}]
  %s3 = inlined_call_operand.vmem [shape: f32[1,128], index: 3, kind: input, shape index: {}]
  %s4 = inlined_call_operand.hbm [shape: bf16[128,384], index: 4, kind: input, shape index: {}]
  %s5 = inlined_call_operand.hbm [shape: bf16[128,128], index: 5, kind: input, shape index: {}]
  %s6 = inlined_call_operand.vmem [shape: f32[1,128], index: 6, kind: input, shape index: {}]
  %s7 = inlined_call_operand.vmem [shape: f32[1,128], index: 7, kind: input, shape index: {}]
  %s8 = inlined_call_operand.vmem [shape: f32[1,128], index: 8, kind: input, shape index: {}]
  %s9 = inlined_call_operand.hbm [shape: bf16[128,512], index: 9, kind: input, shape index: {}]
  %s10 = inlined_call_operand.vmem [shape: f32[1,512], index: 10, kind: input, shape index: {}]
  %s11 = inlined_call_operand.hbm [shape: bf16[512,128], index: 11, kind: input, shape index: {}]
  %s12 = inlined_call_operand.vmem [shape: f32[1,128], index: 12, kind: input, shape index: {}]
  %s13 = inlined_call_operand.hbm [shape: f32[4,64,128], index: 13, kind: output, shape index: {}]
  %s14 = sld [smem:[#allocation0]]
  $region86: #{tpu_custom_call.1} parent=0
    _
  %s16 = ssub.s32 1, %s14
  %s17 = scalar_select 0, %s16, %s14
  $region1: #{tpu_custom_call.1} parent=0
    #allocation3 [shape = 'u8[131072]{0}', space=vmem, size = 0x20000, scoped, tag = 'input window, operand 0, single buffered']
    #allocation4 [shape = 's32[1]{0}', space=sflag, size = 0x4, scoped, tag = 'scoped memory for tpu_custom_call.1']
    #allocation5 [shape = 's32[1]{0}', space=sflag, size = 0x4, scoped, tag = 'scoped memory for tpu_custom_call.1']
    #allocation6 [shape = 'u8[32768]{0}', space=vmem, size = 0x8000, scoped, tag = 'input window, operand 1, single buffered']
    #allocation7 [shape = 's32[1]{0}', space=sflag, size = 0x4, scoped, tag = 'scoped memory for tpu_custom_call.1']
    #allocation8 [shape = 'u8[98304]{0}', space=vmem, size = 0x18000, scoped, tag = 'input window, operand 4, single buffered']
    #allocation9 [shape = 'u8[32768]{0}', space=vmem, size = 0x8000, scoped, tag = 'input window, operand 5, single buffered']
    #allocation10 [shape = 's32[1]{0}', space=sflag, size = 0x4, scoped, tag = 'scoped memory for tpu_custom_call.1']
    #allocation11 [shape = 'u8[131072]{0}', space=vmem, size = 0x20000, scoped, tag = 'input window, operand 9, single buffered']
    #allocation12 [shape = 'u8[131072]{0}', space=vmem, size = 0x20000, scoped, tag = 'input window, operand 11, single buffered']
    #allocation13 [shape = 's32[1]{0}', space=sflag, size = 0x4, scoped, tag = 'scoped memory for tpu_custom_call.1']
    #allocation14 [shape = 'u8[131072]{0}', space=vmem, size = 0x20000, scoped, tag = 'output window, operand 0, single buffered']
    %18 = vsyncpa [#allocation4], 0
    %19 = vsyncpa [#allocation7], 0
    %20 = vsyncpa [#allocation10], 0
    %21 = vsyncpa [#allocation13], 0
    %22 = vsyncpa [#allocation5], 0
    // Predicated region
    $region2: #{tpu_custom_call.1} parent=1 // pred_check
      _
    $region3: #{tpu_custom_call.1} parent=1 // pred_check_branch
      %24 = sbr.rel (0) target = $region5
    $region4: #{tpu_custom_call.1} parent=1 // pred_region
      %s26 = ssub.s32 4096, 4096
      %27 = vsyncadd [#allocation4], %s26
      %s28 = sshll.u32 [#allocation3], 4
      %s29 = int_to_ptr.vmem [resolvable:$true] %s28
      %34 = dma.hbm_to_vmem [thread:$0]  %s0, 4096, %s29, [#allocation4], 128, 128, 8
    $region5: #{tpu_custom_call.1} parent=1 // pred_fallthru
      _
    // Predicated region
    $region6: #{tpu_custom_call.1} parent=1 // pred_check
      _
    $region7: #{tpu_custom_call.1} parent=1 // pred_check_branch
      %36 = sbr.rel (0) target = $region9
    $region8: #{tpu_custom_call.1} parent=1 // pred_region
      %s38 = ssub.s32 1024, 1024
      %39 = vsyncadd [#allocation7], %s38
      %s40 = sshll.u32 [#allocation6], 4
      %s41 = int_to_ptr.vmem [resolvable:$true] %s40
      %46 = dma.hbm_to_vmem [thread:$0]  %s1, 1024, %s41, [#allocation7], 128, 128, 8
    $region9: #{tpu_custom_call.1} parent=1 // pred_fallthru
      _
    // Predicated region
    $region10: #{tpu_custom_call.1} parent=1 // pred_check
      _
    $region11: #{tpu_custom_call.1} parent=1 // pred_check_branch
      %48 = sbr.rel (0) target = $region13
    $region12: #{tpu_custom_call.1} parent=1 // pred_region
      _
    $region13: #{tpu_custom_call.1} parent=1 // pred_fallthru
      _
    // Predicated region
    $region14: #{tpu_custom_call.1} parent=1 // pred_check
      _
    $region15: #{tpu_custom_call.1} parent=1 // pred_check_branch
      %50 = sbr.rel (0) target = $region17
    $region16: #{tpu_custom_call.1} parent=1 // pred_region
      _
    $region17: #{tpu_custom_call.1} parent=1 // pred_fallthru
      _
    // Predicated region
    $region18: #{tpu_custom_call.1} parent=1 // pred_check
      _
    $region19: #{tpu_custom_call.1} parent=1 // pred_check_branch
      %52 = sbr.rel (0) target = $region21
    $region20: #{tpu_custom_call.1} parent=1 // pred_region
      %s54 = ssub.s32 3072, 3072
      %55 = vsyncadd [#allocation7], %s54
      %s56 = sshll.u32 [#allocation8], 4
      %s57 = int_to_ptr.vmem [resolvable:$true] %s56
      %62 = dma.hbm_to_vmem [thread:$0]  %s4, 3072, %s57, [#allocation7], 192, 192, 12
    $region21: #{tpu_custom_call.1} parent=1 // pred_fallthru
      _
    // Predicated region
    $region22: #{tpu_custom_call.1} parent=1 // pred_check
      _
    $region23: #{tpu_custom_call.1} parent=1 // pred_check_branch
      %64 = sbr.rel (0) target = $region25
    $region24: #{tpu_custom_call.1} parent=1 // pred_region
      %s66 = ssub.s32 1024, 1024
      %67 = vsyncadd [#allocation10], %s66
      %s68 = sshll.u32 [#allocation9], 4
      %s69 = int_to_ptr.vmem [resolvable:$true] %s68
      %74 = dma.hbm_to_vmem [thread:$0]  %s5, 1024, %s69, [#allocation10], 64, 64, 4
    $region25: #{tpu_custom_call.1} parent=1 // pred_fallthru
      _
    // Predicated region
    $region26: #{tpu_custom_call.1} parent=1 // pred_check
      _
    $region27: #{tpu_custom_call.1} parent=1 // pred_check_branch
      %76 = sbr.rel (0) target = $region29
    $region28: #{tpu_custom_call.1} parent=1 // pred_region
      _
    $region29: #{tpu_custom_call.1} parent=1 // pred_fallthru
      _
    // Predicated region
    $region30: #{tpu_custom_call.1} parent=1 // pred_check
      _
    $region31: #{tpu_custom_call.1} parent=1 // pred_check_branch
      %78 = sbr.rel (0) target = $region33
    $region32: #{tpu_custom_call.1} parent=1 // pred_region
      _
    $region33: #{tpu_custom_call.1} parent=1 // pred_fallthru
      _
    // Predicated region
    $region34: #{tpu_custom_call.1} parent=1 // pred_check
      _
    $region35: #{tpu_custom_call.1} parent=1 // pred_check_branch
      %80 = sbr.rel (0) target = $region37
    $region36: #{tpu_custom_call.1} parent=1 // pred_region
      _
    $region37: #{tpu_custom_call.1} parent=1 // pred_fallthru
      _
    // Predicated region
    $region38: #{tpu_custom_call.1} parent=1 // pred_check
      _
    $region39: #{tpu_custom_call.1} parent=1 // pred_check_branch
      %82 = sbr.rel (0) target = $region41
    $region40: #{tpu_custom_call.1} parent=1 // pred_region
      %s84 = ssub.s32 4096, 4096
      %85 = vsyncadd [#allocation10], %s84
      %s86 = sshll.u32 [#allocation11], 4
      %s87 = int_to_ptr.vmem [resolvable:$true] %s86
      %92 = dma.hbm_to_vmem [thread:$0]  %s9, 4096, %s87, [#allocation10], 256, 256, 16
    $region41: #{tpu_custom_call.1} parent=1 // pred_fallthru
      _
    // Predicated region
    $region42: #{tpu_custom_call.1} parent=1 // pred_check
      _
    $region43: #{tpu_custom_call.1} parent=1 // pred_check_branch
      %94 = sbr.rel (0) target = $region45
    $region44: #{tpu_custom_call.1} parent=1 // pred_region
      _
    $region45: #{tpu_custom_call.1} parent=1 // pred_fallthru
      _
    // Predicated region
    $region46: #{tpu_custom_call.1} parent=1 // pred_check
      _
    $region47: #{tpu_custom_call.1} parent=1 // pred_check_branch
      %96 = sbr.rel (0) target = $region49
    $region48: #{tpu_custom_call.1} parent=1 // pred_region
      %s98 = ssub.s32 4096, 4096
      %99 = vsyncadd [#allocation13], %s98
      %s100 = sshll.u32 [#allocation12], 4
      %s101 = int_to_ptr.vmem [resolvable:$true] %s100
      %106 = dma.hbm_to_vmem [thread:$0]  %s11, 4096, %s101, [#allocation13], 64, 64, 4
    $region49: #{tpu_custom_call.1} parent=1 // pred_fallthru
      _
    // Predicated region
    $region50: #{tpu_custom_call.1} parent=1 // pred_check
      _
    $region51: #{tpu_custom_call.1} parent=1 // pred_check_branch
      %108 = sbr.rel (0) target = $region53
    $region52: #{tpu_custom_call.1} parent=1 // pred_region
      _
    $region53: #{tpu_custom_call.1} parent=1 // pred_fallthru
      _
    // Predicated region
    $region54: #{tpu_custom_call.1} parent=1 // pred_check
      _
    $region55: #{tpu_custom_call.1} parent=1 // pred_check_branch
      %110 = sbr.rel (0) target = $region57
    $region56: #{tpu_custom_call.1} parent=1 // pred_region
      %111 = dma.done [#allocation4], 4096
    $region57: #{tpu_custom_call.1} parent=1 // pred_fallthru
      _
    // Predicated region
    $region58: #{tpu_custom_call.1} parent=1 // pred_check
      _
    $region59: #{tpu_custom_call.1} parent=1 // pred_check_branch
      %113 = sbr.rel (0) target = $region61
    $region60: #{tpu_custom_call.1} parent=1 // pred_region
      %114 = dma.done [#allocation7], 1024
    $region61: #{tpu_custom_call.1} parent=1 // pred_fallthru
      _
    // Predicated region
    $region62: #{tpu_custom_call.1} parent=1 // pred_check
      _
    $region63: #{tpu_custom_call.1} parent=1 // pred_check_branch
      %116 = sbr.rel (0) target = $region65
    $region64: #{tpu_custom_call.1} parent=1 // pred_region
      %117 = dma.done [#allocation7], 3072
    $region65: #{tpu_custom_call.1} parent=1 // pred_fallthru
      _
    // Predicated region
    $region66: #{tpu_custom_call.1} parent=1 // pred_check
      _
    $region67: #{tpu_custom_call.1} parent=1 // pred_check_branch
      %119 = sbr.rel (0) target = $region69
    $region68: #{tpu_custom_call.1} parent=1 // pred_region
      %120 = dma.done [#allocation10], 1024
    $region69: #{tpu_custom_call.1} parent=1 // pred_fallthru
      _
    // Predicated region
    $region70: #{tpu_custom_call.1} parent=1 // pred_check
      _
    $region71: #{tpu_custom_call.1} parent=1 // pred_check_branch
      %122 = sbr.rel (0) target = $region73
    $region72: #{tpu_custom_call.1} parent=1 // pred_region
      %123 = dma.done [#allocation10], 4096
    $region73: #{tpu_custom_call.1} parent=1 // pred_fallthru
      _
    // Predicated region
    $region74: #{tpu_custom_call.1} parent=1 // pred_check
      _
    $region75: #{tpu_custom_call.1} parent=1 // pred_check_branch
      %125 = sbr.rel (0) target = $region77
    $region76: #{tpu_custom_call.1} parent=1 // pred_region
      %126 = dma.done [#allocation13], 4096
    $region77: #{tpu_custom_call.1} parent=1 // pred_fallthru
      _
    %v128 = vld [vmem:[#allocation3] sm:$0xff]
    %v129 = vld [vmem:[#allocation3 + $0x8] sm:$0xff]
    %v130 = vld [vmem:[#allocation3 + $0x10] sm:$0xff]
    %v131 = vld [vmem:[#allocation3 + $0x18] sm:$0xff]
    %v132 = vld [vmem:[#allocation3 + $0x20] sm:$0xff]
    %v133 = vld [vmem:[#allocation3 + $0x28] sm:$0xff]
    %v134 = vld [vmem:[#allocation3 + $0x30] sm:$0xff]
    %v135 = vld [vmem:[#allocation3 + $0x38] sm:$0xff]
    %v136 = vld [vmem:[#allocation3 + $0x40] sm:$0xff]
    %v137 = vld [vmem:[#allocation3 + $0x48] sm:$0xff]
    %v138 = vld [vmem:[#allocation3 + $0x50] sm:$0xff]
    %v139 = vld [vmem:[#allocation3 + $0x58] sm:$0xff]
    %v140 = vld [vmem:[#allocation3 + $0x60] sm:$0xff]
    %v141 = vld [vmem:[#allocation3 + $0x68] sm:$0xff]
    %v142 = vld [vmem:[#allocation3 + $0x70] sm:$0xff]
    %v143 = vld [vmem:[#allocation3 + $0x78] sm:$0xff]
    %v144 = vld [vmem:[#allocation3 + $0x80] sm:$0xff]
    %v145 = vld [vmem:[#allocation3 + $0x88] sm:$0xff]
    %v146 = vld [vmem:[#allocation3 + $0x90] sm:$0xff]
    %v147 = vld [vmem:[#allocation3 + $0x98] sm:$0xff]
    %v148 = vld [vmem:[#allocation3 + $0xa0] sm:$0xff]
    %v149 = vld [vmem:[#allocation3 + $0xa8] sm:$0xff]
    %v150 = vld [vmem:[#allocation3 + $0xb0] sm:$0xff]
    %v151 = vld [vmem:[#allocation3 + $0xb8] sm:$0xff]
    %v152 = vld [vmem:[#allocation3 + $0xc0] sm:$0xff]
    %v153 = vld [vmem:[#allocation3 + $0xc8] sm:$0xff]
    %v154 = vld [vmem:[#allocation3 + $0xd0] sm:$0xff]
    %v155 = vld [vmem:[#allocation3 + $0xd8] sm:$0xff]
    %v156 = vld [vmem:[#allocation3 + $0xe0] sm:$0xff]
    %v157 = vld [vmem:[#allocation3 + $0xe8] sm:$0xff]
    %v158 = vld [vmem:[#allocation3 + $0xf0] sm:$0xff]
    %v159 = vld [vmem:[#allocation3 + $0xf8] sm:$0xff]
    %v160 = vld [vmem:[%s2] sm:$0x1]
    %v161 = vld [vmem:[%s3] sm:$0x1]
    %162 = vadd.xlane.f32.xlu0 %v128
    %v163 = vpop.xlane.xlu0 %162
    %164 = vadd.xlane.f32.xlu0 %v129
    %v165 = vpop.xlane.xlu0 %164
    %166 = vadd.xlane.f32.xlu0 %v130
    %v167 = vpop.xlane.xlu0 %166
    %168 = vadd.xlane.f32.xlu0 %v131
    %v169 = vpop.xlane.xlu0 %168
    %170 = vadd.xlane.f32.xlu0 %v132
    %v171 = vpop.xlane.xlu0 %170
    %172 = vadd.xlane.f32.xlu0 %v133
    %v173 = vpop.xlane.xlu0 %172
    %174 = vadd.xlane.f32.xlu0 %v134
    %v175 = vpop.xlane.xlu0 %174
    %176 = vadd.xlane.f32.xlu0 %v135
    %v177 = vpop.xlane.xlu0 %176
    %178 = vadd.xlane.f32.xlu0 %v136
    %v179 = vpop.xlane.xlu0 %178
    %180 = vadd.xlane.f32.xlu0 %v137
    %v181 = vpop.xlane.xlu0 %180
    %182 = vadd.xlane.f32.xlu0 %v138
    %v183 = vpop.xlane.xlu0 %182
    %184 = vadd.xlane.f32.xlu0 %v139
    %v185 = vpop.xlane.xlu0 %184
    %186 = vadd.xlane.f32.xlu0 %v140
    %v187 = vpop.xlane.xlu0 %186
    %188 = vadd.xlane.f32.xlu0 %v141
    %v189 = vpop.xlane.xlu0 %188
    %190 = vadd.xlane.f32.xlu0 %v142
    %v191 = vpop.xlane.xlu0 %190
    %192 = vadd.xlane.f32.xlu0 %v143
    %v193 = vpop.xlane.xlu0 %192
    %194 = vadd.xlane.f32.xlu0 %v144
    %v195 = vpop.xlane.xlu0 %194
    %196 = vadd.xlane.f32.xlu0 %v145
    %v197 = vpop.xlane.xlu0 %196
    %198 = vadd.xlane.f32.xlu0 %v146
    %v199 = vpop.xlane.xlu0 %198
    %200 = vadd.xlane.f32.xlu0 %v147
    %v201 = vpop.xlane.xlu0 %200
    %202 = vadd.xlane.f32.xlu0 %v148
    %v203 = vpop.xlane.xlu0 %202
    %204 = vadd.xlane.f32.xlu0 %v149
    %v205 = vpop.xlane.xlu0 %204
    %206 = vadd.xlane.f32.xlu0 %v150
    %v207 = vpop.xlane.xlu0 %206
    %208 = vadd.xlane.f32.xlu0 %v151
    %v209 = vpop.xlane.xlu0 %208
    %210 = vadd.xlane.f32.xlu0 %v152
    %v211 = vpop.xlane.xlu0 %210
    %212 = vadd.xlane.f32.xlu0 %v153
    %v213 = vpop.xlane.xlu0 %212
    %214 = vadd.xlane.f32.xlu0 %v154
    %v215 = vpop.xlane.xlu0 %214
    %216 = vadd.xlane.f32.xlu0 %v155
    %v217 = vpop.xlane.xlu0 %216
    %218 = vadd.xlane.f32.xlu0 %v156
    %v219 = vpop.xlane.xlu0 %218
    %220 = vadd.xlane.f32.xlu0 %v157
    %v221 = vpop.xlane.xlu0 %220
    %222 = vadd.xlane.f32.xlu0 %v158
    %v223 = vpop.xlane.xlu0 %222
    %224 = vadd.xlane.f32.xlu0 %v159
    %v225 = vpop.xlane.xlu0 %224
    %v226 = vrcp.pop 128.0
    %v227 = vmul.f32 %v163, %v226
    %v228 = vmul.f32 %v165, %v226
    %v229 = vmul.f32 %v167, %v226
    %v230 = vmul.f32 %v169, %v226
    %v231 = vmul.f32 %v171, %v226
    %v232 = vmul.f32 %v173, %v226
    %v233 = vmul.f32 %v175, %v226
    %v234 = vmul.f32 %v177, %v226
    %v235 = vmul.f32 %v179, %v226
    %v236 = vmul.f32 %v181, %v226
    %v237 = vmul.f32 %v183, %v226
    %v238 = vmul.f32 %v185, %v226
    %v239 = vmul.f32 %v187, %v226
    %v240 = vmul.f32 %v189, %v226
    %v241 = vmul.f32 %v191, %v226
    %v242 = vmul.f32 %v193, %v226
    %v243 = vmul.f32 %v195, %v226
    %v244 = vmul.f32 %v197, %v226
    %v245 = vmul.f32 %v199, %v226
    %v246 = vmul.f32 %v201, %v226
    %v247 = vmul.f32 %v203, %v226
    %v248 = vmul.f32 %v205, %v226
    %v249 = vmul.f32 %v207, %v226
    %v250 = vmul.f32 %v209, %v226
    %v251 = vmul.f32 %v211, %v226
    %v252 = vmul.f32 %v213, %v226
    %v253 = vmul.f32 %v215, %v226
    %v254 = vmul.f32 %v217, %v226
    %v255 = vmul.f32 %v219, %v226
    %v256 = vmul.f32 %v221, %v226
    %v257 = vmul.f32 %v223, %v226
    %v258 = vmul.f32 %v225, %v226
    %v259 = vsub.f32 %v128, %v227
    %v260 = vsub.f32 %v129, %v228
    %v261 = vsub.f32 %v130, %v229
    %v262 = vsub.f32 %v131, %v230
    %v263 = vsub.f32 %v132, %v231
    %v264 = vsub.f32 %v133, %v232
    %v265 = vsub.f32 %v134, %v233
    %v266 = vsub.f32 %v135, %v234
    %v267 = vsub.f32 %v136, %v235
    %v268 = vsub.f32 %v137, %v236
    %v269 = vsub.f32 %v138, %v237
    %v270 = vsub.f32 %v139, %v238
    %v271 = vsub.f32 %v140, %v239
    %v272 = vsub.f32 %v141, %v240
    %v273 = vsub.f32 %v142, %v241
    %v274 = vsub.f32 %v143, %v242
    %v275 = vsub.f32 %v144, %v243
    %v276 = vsub.f32 %v145, %v244
    %v277 = vsub.f32 %v146, %v245
    %v278 = vsub.f32 %v147, %v246
    %v279 = vsub.f32 %v148, %v247
    %v280 = vsub.f32 %v149, %v248
    %v281 = vsub.f32 %v150, %v249
    %v282 = vsub.f32 %v151, %v250
    %v283 = vsub.f32 %v152, %v251
    %v284 = vsub.f32 %v153, %v252
    %v285 = vsub.f32 %v154, %v253
    %v286 = vsub.f32 %v155, %v254
    %v287 = vsub.f32 %v156, %v255
    %v288 = vsub.f32 %v157, %v256
    %v289 = vsub.f32 %v158, %v257
    %v290 = vsub.f32 %v159, %v258
    %v291 = vmul.f32 %v259, %v259
    %v292 = vmul.f32 %v260, %v260
    %v293 = vmul.f32 %v261, %v261
    %v294 = vmul.f32 %v262, %v262
    %v295 = vmul.f32 %v263, %v263
    %v296 = vmul.f32 %v264, %v264
    %v297 = vmul.f32 %v265, %v265
    %v298 = vmul.f32 %v266, %v266
    %v299 = vmul.f32 %v267, %v267
    %v300 = vmul.f32 %v268, %v268
    %v301 = vmul.f32 %v269, %v269
    %v302 = vmul.f32 %v270, %v270
    %v303 = vmul.f32 %v271, %v271
    %v304 = vmul.f32 %v272, %v272
    %v305 = vmul.f32 %v273, %v273
    %v306 = vmul.f32 %v274, %v274
    %v307 = vmul.f32 %v275, %v275
    %v308 = vmul.f32 %v276, %v276
    %v309 = vmul.f32 %v277, %v277
    %v310 = vmul.f32 %v278, %v278
    %v311 = vmul.f32 %v279, %v279
    %v312 = vmul.f32 %v280, %v280
    %v313 = vmul.f32 %v281, %v281
    %v314 = vmul.f32 %v282, %v282
    %v315 = vmul.f32 %v283, %v283
    %v316 = vmul.f32 %v284, %v284
    %v317 = vmul.f32 %v285, %v285
    %v318 = vmul.f32 %v286, %v286
    %v319 = vmul.f32 %v287, %v287
    %v320 = vmul.f32 %v288, %v288
    %v321 = vmul.f32 %v289, %v289
    %v322 = vmul.f32 %v290, %v290
    %323 = vadd.xlane.f32.xlu0 %v291
    %v324 = vpop.xlane.xlu0 %323
    %325 = vadd.xlane.f32.xlu0 %v292
    %v326 = vpop.xlane.xlu0 %325
    %327 = vadd.xlane.f32.xlu0 %v293
    %v328 = vpop.xlane.xlu0 %327
    %329 = vadd.xlane.f32.xlu0 %v294
    %v330 = vpop.xlane.xlu0 %329
    %331 = vadd.xlane.f32.xlu0 %v295
    %v332 = vpop.xlane.xlu0 %331
    %333 = vadd.xlane.f32.xlu0 %v296
    %v334 = vpop.xlane.xlu0 %333
    %335 = vadd.xlane.f32.xlu0 %v297
    %v336 = vpop.xlane.xlu0 %335
    %337 = vadd.xlane.f32.xlu0 %v298
    %v338 = vpop.xlane.xlu0 %337
    %339 = vadd.xlane.f32.xlu0 %v299
    %v340 = vpop.xlane.xlu0 %339
    %341 = vadd.xlane.f32.xlu0 %v300
    %v342 = vpop.xlane.xlu0 %341
    %343 = vadd.xlane.f32.xlu0 %v301
    %v344 = vpop.xlane.xlu0 %343
    %345 = vadd.xlane.f32.xlu0 %v302
    %v346 = vpop.xlane.xlu0 %345
    %347 = vadd.xlane.f32.xlu0 %v303
    %v348 = vpop.xlane.xlu0 %347
    %349 = vadd.xlane.f32.xlu0 %v304
    %v350 = vpop.xlane.xlu0 %349
    %351 = vadd.xlane.f32.xlu0 %v305
    %v352 = vpop.xlane.xlu0 %351
    %353 = vadd.xlane.f32.xlu0 %v306
    %v354 = vpop.xlane.xlu0 %353
    %355 = vadd.xlane.f32.xlu0 %v307
    %v356 = vpop.xlane.xlu0 %355
    %357 = vadd.xlane.f32.xlu0 %v308
    %v358 = vpop.xlane.xlu0 %357
    %359 = vadd.xlane.f32.xlu0 %v309
    %v360 = vpop.xlane.xlu0 %359
    %361 = vadd.xlane.f32.xlu0 %v310
    %v362 = vpop.xlane.xlu0 %361
    %363 = vadd.xlane.f32.xlu0 %v311
    %v364 = vpop.xlane.xlu0 %363
    %365 = vadd.xlane.f32.xlu0 %v312
    %v366 = vpop.xlane.xlu0 %365
    %367 = vadd.xlane.f32.xlu0 %v313
    %v368 = vpop.xlane.xlu0 %367
    %369 = vadd.xlane.f32.xlu0 %v314
    %v370 = vpop.xlane.xlu0 %369
    %371 = vadd.xlane.f32.xlu0 %v315
    %v372 = vpop.xlane.xlu0 %371
    %373 = vadd.xlane.f32.xlu0 %v316
    %v374 = vpop.xlane.xlu0 %373
    %375 = vadd.xlane.f32.xlu0 %v317
    %v376 = vpop.xlane.xlu0 %375
    %377 = vadd.xlane.f32.xlu0 %v318
    %v378 = vpop.xlane.xlu0 %377
    %379 = vadd.xlane.f32.xlu0 %v319
    %v380 = vpop.xlane.xlu0 %379
    %381 = vadd.xlane.f32.xlu0 %v320
    %v382 = vpop.xlane.xlu0 %381
    %383 = vadd.xlane.f32.xlu0 %v321
    %v384 = vpop.xlane.xlu0 %383
    %385 = vadd.xlane.f32.xlu0 %v322
    %v386 = vpop.xlane.xlu0 %385
    %v387 = vmul.f32 %v324, %v226
    %v388 = vmul.f32 %v326, %v226
    %v389 = vmul.f32 %v328, %v226
    %v390 = vmul.f32 %v330, %v226
    %v391 = vmul.f32 %v332, %v226
    %v392 = vmul.f32 %v334, %v226
    %v393 = vmul.f32 %v336, %v226
    %v394 = vmul.f32 %v338, %v226
    %v395 = vmul.f32 %v340, %v226
    %v396 = vmul.f32 %v342, %v226
    %v397 = vmul.f32 %v344, %v226
    %v398 = vmul.f32 %v346, %v226
    %v399 = vmul.f32 %v348, %v226
    %v400 = vmul.f32 %v350, %v226
    %v401 = vmul.f32 %v352, %v226
    %v402 = vmul.f32 %v354, %v226
    %v403 = vmul.f32 %v356, %v226
    %v404 = vmul.f32 %v358, %v226
    %v405 = vmul.f32 %v360, %v226
    %v406 = vmul.f32 %v362, %v226
    %v407 = vmul.f32 %v364, %v226
    %v408 = vmul.f32 %v366, %v226
    %v409 = vmul.f32 %v368, %v226
    %v410 = vmul.f32 %v370, %v226
    %v411 = vmul.f32 %v372, %v226
    %v412 = vmul.f32 %v374, %v226
    %v413 = vmul.f32 %v376, %v226
    %v414 = vmul.f32 %v378, %v226
    %v415 = vmul.f32 %v380, %v226
    %v416 = vmul.f32 %v382, %v226
    %v417 = vmul.f32 %v384, %v226
    %v418 = vmul.f32 %v386, %v226
    %v419 = vadd.f32 %v387, 1e-05
    %v420 = vadd.f32 %v388, 1e-05
    %v421 = vadd.f32 %v389, 1e-05
    %v422 = vadd.f32 %v390, 1e-05
    %v423 = vadd.f32 %v391, 1e-05
    %v424 = vadd.f32 %v392, 1e-05
    %v425 = vadd.f32 %v393, 1e-05
    %v426 = vadd.f32 %v394, 1e-05
    %v427 = vadd.f32 %v395, 1e-05
    %v428 = vadd.f32 %v396, 1e-05
    %v429 = vadd.f32 %v397, 1e-05
    %v430 = vadd.f32 %v398, 1e-05
    %v431 = vadd.f32 %v399, 1e-05
    %v432 = vadd.f32 %v400, 1e-05
    %v433 = vadd.f32 %v401, 1e-05
    %v434 = vadd.f32 %v402, 1e-05
    %v435 = vadd.f32 %v403, 1e-05
    %v436 = vadd.f32 %v404, 1e-05
    %v437 = vadd.f32 %v405, 1e-05
    %v438 = vadd.f32 %v406, 1e-05
    %v439 = vadd.f32 %v407, 1e-05
    %v440 = vadd.f32 %v408, 1e-05
    %v441 = vadd.f32 %v409, 1e-05
    %v442 = vadd.f32 %v410, 1e-05
    %v443 = vadd.f32 %v411, 1e-05
    %v444 = vadd.f32 %v412, 1e-05
    %v445 = vadd.f32 %v413, 1e-05
    %v446 = vadd.f32 %v414, 1e-05
    %v447 = vadd.f32 %v415, 1e-05
    %v448 = vadd.f32 %v416, 1e-05
    %v449 = vadd.f32 %v417, 1e-05
    %v450 = vadd.f32 %v418, 1e-05
    %v451 = vrsqrt.pop %v419
    %v452 = vrsqrt.pop %v420
    %v453 = vrsqrt.pop %v421
    %v454 = vrsqrt.pop %v422
    %v455 = vrsqrt.pop %v423
    %v456 = vrsqrt.pop %v424
    %v457 = vrsqrt.pop %v425
    %v458 = vrsqrt.pop %v426
    %v459 = vrsqrt.pop %v427
    %v460 = vrsqrt.pop %v428
    %v461 = vrsqrt.pop %v429
    %v462 = vrsqrt.pop %v430
    %v463 = vrsqrt.pop %v431
    %v464 = vrsqrt.pop %v432
    %v465 = vrsqrt.pop %v433
    %v466 = vrsqrt.pop %v434
    %v467 = vrsqrt.pop %v435
    %v468 = vrsqrt.pop %v436
    %v469 = vrsqrt.pop %v437
    %v470 = vrsqrt.pop %v438
    %v471 = vrsqrt.pop %v439
    %v472 = vrsqrt.pop %v440
    %v473 = vrsqrt.pop %v441
    %v474 = vrsqrt.pop %v442
    %v475 = vrsqrt.pop %v443
    %v476 = vrsqrt.pop %v444
    %v477 = vrsqrt.pop %v445
    %v478 = vrsqrt.pop %v446
    %v479 = vrsqrt.pop %v447
    %v480 = vrsqrt.pop %v448
    %v481 = vrsqrt.pop %v449
    %v482 = vrsqrt.pop %v450
    %v483 = vmul.f32 %v259, %v451
    %v484 = vmul.f32 %v260, %v452
    %v485 = vmul.f32 %v261, %v453
    %v486 = vmul.f32 %v262, %v454
    %v487 = vmul.f32 %v263, %v455
    %v488 = vmul.f32 %v264, %v456
    %v489 = vmul.f32 %v265, %v457
    %v490 = vmul.f32 %v266, %v458
    %v491 = vmul.f32 %v267, %v459
    %v492 = vmul.f32 %v268, %v460
    %v493 = vmul.f32 %v269, %v461
    %v494 = vmul.f32 %v270, %v462
    %v495 = vmul.f32 %v271, %v463
    %v496 = vmul.f32 %v272, %v464
    %v497 = vmul.f32 %v273, %v465
    %v498 = vmul.f32 %v274, %v466
    %v499 = vmul.f32 %v275, %v467
    %v500 = vmul.f32 %v276, %v468
    %v501 = vmul.f32 %v277, %v469
    %v502 = vmul.f32 %v278, %v470
    %v503 = vmul.f32 %v279, %v471
    %v504 = vmul.f32 %v280, %v472
    %v505 = vmul.f32 %v281, %v473
    %v506 = vmul.f32 %v282, %v474
    %v507 = vmul.f32 %v283, %v475
    %v508 = vmul.f32 %v284, %v476
    %v509 = vmul.f32 %v285, %v477
    %v510 = vmul.f32 %v286, %v478
    %v511 = vmul.f32 %v287, %v479
    %v512 = vmul.f32 %v288, %v480
    %v513 = vmul.f32 %v289, %v481
    %v514 = vmul.f32 %v290, %v482
    %v516 = vlaneseq
    %v517 = vshrl.u32 %v516, 7
    %v518 = vsub.s32 0, %v517
    %v519 = vrot.slane %v160, %v518
    %v521 = vmul.f32 %v483, %v519
    %v522 = vmul.f32 %v484, %v519
    %v523 = vmul.f32 %v485, %v519
    %v524 = vmul.f32 %v486, %v519
    %v525 = vmul.f32 %v487, %v519
    %v526 = vmul.f32 %v488, %v519
    %v527 = vmul.f32 %v489, %v519
    %v528 = vmul.f32 %v490, %v519
    %v529 = vmul.f32 %v491, %v519
    %v530 = vmul.f32 %v492, %v519
    %v531 = vmul.f32 %v493, %v519
    %v532 = vmul.f32 %v494, %v519
    %v533 = vmul.f32 %v495, %v519
    %v534 = vmul.f32 %v496, %v519
    %v535 = vmul.f32 %v497, %v519
    %v536 = vmul.f32 %v498, %v519
    %v537 = vmul.f32 %v499, %v519
    %v538 = vmul.f32 %v500, %v519
    %v539 = vmul.f32 %v501, %v519
    %v540 = vmul.f32 %v502, %v519
    %v541 = vmul.f32 %v503, %v519
    %v542 = vmul.f32 %v504, %v519
    %v543 = vmul.f32 %v505, %v519
    %v544 = vmul.f32 %v506, %v519
    %v545 = vmul.f32 %v507, %v519
    %v546 = vmul.f32 %v508, %v519
    %v547 = vmul.f32 %v509, %v519
    %v548 = vmul.f32 %v510, %v519
    %v549 = vmul.f32 %v511, %v519
    %v550 = vmul.f32 %v512, %v519
    %v551 = vmul.f32 %v513, %v519
    %v552 = vmul.f32 %v514, %v519
    %v554 = vlaneseq
    %v555 = vshrl.u32 %v554, 7
    %v556 = vsub.s32 0, %v555
    %v557 = vrot.slane %v161, %v556
    %v559 = vadd.f32 %v521, %v557
    %v560 = vadd.f32 %v522, %v557
    %v561 = vadd.f32 %v523, %v557
    %v562 = vadd.f32 %v524, %v557
    %v563 = vadd.f32 %v525, %v557
    %v564 = vadd.f32 %v526, %v557
    %v565 = vadd.f32 %v527, %v557
    %v566 = vadd.f32 %v528, %v557
    %v567 = vadd.f32 %v529, %v557
    %v568 = vadd.f32 %v530, %v557
    %v569 = vadd.f32 %v531, %v557
    %v570 = vadd.f32 %v532, %v557
    %v571 = vadd.f32 %v533, %v557
    %v572 = vadd.f32 %v534, %v557
    %v573 = vadd.f32 %v535, %v557
    %v574 = vadd.f32 %v536, %v557
    %v575 = vadd.f32 %v537, %v557
    %v576 = vadd.f32 %v538, %v557
    %v577 = vadd.f32 %v539, %v557
    %v578 = vadd.f32 %v540, %v557
    %v579 = vadd.f32 %v541, %v557
    %v580 = vadd.f32 %v542, %v557
    %v581 = vadd.f32 %v543, %v557
    %v582 = vadd.f32 %v544, %v557
    %v583 = vadd.f32 %v545, %v557
    %v584 = vadd.f32 %v546, %v557
    %v585 = vadd.f32 %v547, %v557
    %v586 = vadd.f32 %v548, %v557
    %v587 = vadd.f32 %v549, %v557
    %v588 = vadd.f32 %v550, %v557
    %v589 = vadd.f32 %v551, %v557
    %v590 = vadd.f32 %v552, %v557
    %v591 = vpack.c.bf16 %v560, %v559
    %v592 = vpack.c.bf16 %v562, %v561
    %v593 = vpack.c.bf16 %v564, %v563
    %v594 = vpack.c.bf16 %v566, %v565
    %v595 = vpack.c.bf16 %v568, %v567
    %v596 = vpack.c.bf16 %v570, %v569
    %v597 = vpack.c.bf16 %v572, %v571
    %v598 = vpack.c.bf16 %v574, %v573
    %v599 = vpack.c.bf16 %v576, %v575
    %v600 = vpack.c.bf16 %v578, %v577
    %v601 = vpack.c.bf16 %v580, %v579
    %v602 = vpack.c.bf16 %v582, %v581
    %v603 = vpack.c.bf16 %v584, %v583
    %v604 = vpack.c.bf16 %v586, %v585
    %v605 = vpack.c.bf16 %v588, %v587
    %v606 = vpack.c.bf16 %v590, %v589
    %v607 = vld [vmem:[#allocation8] sm:$0xff]
    %v608 = vld [vmem:[#allocation8 + $0x8] sm:$0xf]
    %v609 = vld [vmem:[#allocation8 + $0xc] sm:$0xff]
    %v610 = vld [vmem:[#allocation8 + $0x14] sm:$0xf]
    %v611 = vld [vmem:[#allocation8 + $0x18] sm:$0xff]
    %v612 = vld [vmem:[#allocation8 + $0x20] sm:$0xf]
    %v613 = vld [vmem:[#allocation8 + $0x24] sm:$0xff]
    %v614 = vld [vmem:[#allocation8 + $0x2c] sm:$0xf]
    %v615 = vld [vmem:[#allocation8 + $0x30] sm:$0xff]
    %v616 = vld [vmem:[#allocation8 + $0x38] sm:$0xf]
    %v617 = vld [vmem:[#allocation8 + $0x3c] sm:$0xff]
    %v618 = vld [vmem:[#allocation8 + $0x44] sm:$0xf]
    %v619 = vld [vmem:[#allocation8 + $0x48] sm:$0xff]
    %v620 = vld [vmem:[#allocation8 + $0x50] sm:$0xf]
    %v621 = vld [vmem:[#allocation8 + $0x54] sm:$0xff]
    %v622 = vld [vmem:[#allocation8 + $0x5c] sm:$0xf]
    %v623 = vld [vmem:[#allocation8 + $0x60] sm:$0xff]
    %v624 = vld [vmem:[#allocation8 + $0x68] sm:$0xf]
    %v625 = vld [vmem:[#allocation8 + $0x6c] sm:$0xff]
    %v626 = vld [vmem:[#allocation8 + $0x74] sm:$0xf]
    %v627 = vld [vmem:[#allocation8 + $0x78] sm:$0xff]
    %v628 = vld [vmem:[#allocation8 + $0x80] sm:$0xf]
    %v629 = vld [vmem:[#allocation8 + $0x84] sm:$0xff]
    %v630 = vld [vmem:[#allocation8 + $0x8c] sm:$0xf]
    %v631 = vld [vmem:[#allocation8 + $0x90] sm:$0xff]
    %v632 = vld [vmem:[#allocation8 + $0x98] sm:$0xf]
    %v633 = vld [vmem:[#allocation8 + $0x9c] sm:$0xff]
    %v634 = vld [vmem:[#allocation8 + $0xa4] sm:$0xf]
    %v635 = vld [vmem:[#allocation8 + $0xa8] sm:$0xff]
    %v636 = vld [vmem:[#allocation8 + $0xb0] sm:$0xf]
    %v637 = vld [vmem:[#allocation8 + $0xb4] sm:$0xff]
    %v638 = vld [vmem:[#allocation8 + $0xbc] sm:$0xf]
    %v671 = vunpack.c.l.b16 %v607
    %v672 = vunpack.c.h.b16 %v607
    %v673 = vunpack.c.l.b16 %v608
    %v674 = vunpack.c.l.b16 %v609
    %v675 = vunpack.c.h.b16 %v609
    %v676 = vunpack.c.l.b16 %v610
    %v677 = vunpack.c.l.b16 %v611
    %v678 = vunpack.c.h.b16 %v611
    %v679 = vunpack.c.l.b16 %v612
    %v680 = vunpack.c.l.b16 %v613
    %v681 = vunpack.c.h.b16 %v613
    %v682 = vunpack.c.l.b16 %v614
    %v683 = vunpack.c.l.b16 %v615
    %v684 = vunpack.c.h.b16 %v615
    %v685 = vunpack.c.l.b16 %v616
    %v686 = vunpack.c.l.b16 %v617
    %v687 = vunpack.c.h.b16 %v617
    %v688 = vunpack.c.l.b16 %v618
    %v689 = vunpack.c.l.b16 %v619
    %v690 = vunpack.c.h.b16 %v619
    %v691 = vunpack.c.l.b16 %v620
    %v692 = vunpack.c.l.b16 %v621
    %v693 = vunpack.c.h.b16 %v621
    %v694 = vunpack.c.l.b16 %v622
    %v695 = vunpack.c.l.b16 %v623
    %v696 = vunpack.c.h.b16 %v623
    %v697 = vunpack.c.l.b16 %v624
    %v698 = vunpack.c.l.b16 %v625
    %v699 = vunpack.c.h.b16 %v625
    %v700 = vunpack.c.l.b16 %v626
    %v701 = vunpack.c.l.b16 %v627
    %v702 = vunpack.c.h.b16 %v627
    %v703 = vunpack.c.l.b16 %v628
    %v704 = vunpack.c.l.b16 %v629
    %v705 = vunpack.c.h.b16 %v629
    %v706 = vunpack.c.l.b16 %v630
    %v707 = vunpack.c.l.b16 %v631
    %v708 = vunpack.c.h.b16 %v631
    %v709 = vunpack.c.l.b16 %v632
    %v710 = vunpack.c.l.b16 %v633
    %v711 = vunpack.c.h.b16 %v633
    %v712 = vunpack.c.l.b16 %v634
    %v713 = vunpack.c.l.b16 %v635
    %v714 = vunpack.c.h.b16 %v635
    %v715 = vunpack.c.l.b16 %v636
    %v716 = vunpack.c.l.b16 %v637
    %v717 = vunpack.c.h.b16 %v637
    %v718 = vunpack.c.l.b16 %v638
    %v719 = vpack.c.b16 %v674, %v671
    %v720 = vpack.c.b16 %v675, %v672
    %v721 = vpack.c.b16 %v676, %v673
    %v722 = vpack.c.b16 %v680, %v677
    %v723 = vpack.c.b16 %v681, %v678
    %v724 = vpack.c.b16 %v682, %v679
    %v725 = vpack.c.b16 %v686, %v683
    %v726 = vpack.c.b16 %v687, %v684
    %v727 = vpack.c.b16 %v688, %v685
    %v728 = vpack.c.b16 %v692, %v689
    %v729 = vpack.c.b16 %v693, %v690
    %v730 = vpack.c.b16 %v694, %v691
    %v731 = vpack.c.b16 %v698, %v695
    %v732 = vpack.c.b16 %v699, %v696
    %v733 = vpack.c.b16 %v700, %v697
    %v734 = vpack.c.b16 %v704, %v701
    %v735 = vpack.c.b16 %v705, %v702
    %v736 = vpack.c.b16 %v706, %v703
    %v737 = vpack.c.b16 %v710, %v707
    %v738 = vpack.c.b16 %v711, %v708
    %v739 = vpack.c.b16 %v712, %v709
    %v740 = vpack.c.b16 %v716, %v713
    %v741 = vpack.c.b16 %v717, %v714
    %v742 = vpack.c.b16 %v718, %v715
    %767 = vmatprep.subr.bf16.mxu0 %v741
    %768 = vmatpush1.bf16.msra.mxu0 %v740
    %769 = vmatprep.subr.bf16.mxu0 %v738
    %770 = vmatpush1.bf16.msra.mxu0 %v737
    %771 = vmatprep.subr.bf16.mxu0 %v735
    %772 = vmatpush1.bf16.msra.mxu0 %v734
    %773 = vmatprep.subr.bf16.mxu0 %v732
    %774 = vmatpush1.bf16.msra.mxu0 %v731
    %775 = vmatprep.subr.bf16.mxu0 %v729
    %776 = vmatpush1.bf16.msra.mxu0 %v728
    %777 = vmatprep.subr.bf16.mxu0 %v726
    %778 = vmatpush1.bf16.msra.mxu0 %v725
    %779 = vmatprep.subr.bf16.mxu0 %v723
    %780 = vmatpush1.bf16.msra.mxu0 %v722
    %781 = vmatprep.subr.bf16.mxu0 %v720
    %782 = vmatpush1.bf16.msra.mxu0 %v719
    %783 = vmatprep.subr.bf16.mxu0 0
    %784 = vmatpush2.bf16.msra.mxu0 0
    %785 = vmatprep.subr.bf16.mxu0 0
    %786 = vmatpush2.bf16.msra.mxu0 0
    %787 = vmatprep.subr.bf16.mxu0 0
    %788 = vmatpush2.bf16.msra.mxu0 0
    %789 = vmatprep.subr.bf16.mxu0 0
    %790 = vmatpush2.bf16.msra.mxu0 0
    %791 = vmatprep.subr.bf16.mxu0 0
    %792 = vmatpush2.bf16.msra.mxu0 0
    %793 = vmatprep.subr.bf16.mxu0 0
    %794 = vmatpush2.bf16.msra.mxu0 0
    %795 = vmatprep.subr.bf16.mxu0 0
    %796 = vmatpush2.bf16.msra.mxu0 0
    %797 = vmatprep.subr.bf16.mxu0 0
    %798 = vmatpush2.bf16.msra.mxu0 0
    %799 = vmatprep.mubr.bf16.mxu0 0
    %800 = vmatmul.mubr.bf16.gmra.mxu0 %v591
    %v801 = vpop.f32.mrf.mxu0
    %v802 = vadd.f32 0.0, %v801
    %v803 = vpop.f32.mrf.mxu0
    %v804 = vadd.f32 0.0, %v803
    %v805 = vpop.f32.mrf.mxu0
    %v806 = vadd.f32 0.0, %v805
    %v807 = vpop.f32.mrf.mxu0
    %v808 = vadd.f32 0.0, %v807
    %809 = vmatprep.mubr.bf16.mxu0 0
    %810 = vmatmul.mubr.bf16.gmra.mxu0 %v592
    %v811 = vpop.f32.mrf.mxu0
    %v812 = vadd.f32 0.0, %v811
    %v813 = vpop.f32.mrf.mxu0
    %v814 = vadd.f32 0.0, %v813
    %v815 = vpop.f32.mrf.mxu0
    %v816 = vadd.f32 0.0, %v815
    %v817 = vpop.f32.mrf.mxu0
    %v818 = vadd.f32 0.0, %v817
    %819 = vmatprep.mubr.bf16.mxu0 0
    %820 = vmatmul.mubr.bf16.gmra.mxu0 %v593
    %v821 = vpop.f32.mrf.mxu0
    %v822 = vadd.f32 0.0, %v821
    %v823 = vpop.f32.mrf.mxu0
    %v824 = vadd.f32 0.0, %v823
    %v825 = vpop.f32.mrf.mxu0
    %v826 = vadd.f32 0.0, %v825
    %v827 = vpop.f32.mrf.mxu0
    %v828 = vadd.f32 0.0, %v827
    %829 = vmatprep.mubr.bf16.mxu0 0
    %830 = vmatmul.mubr.bf16.gmra.mxu0 %v594
    %v831 = vpop.f32.mrf.mxu0
    %v832 = vadd.f32 0.0, %v831
    %v833 = vpop.f32.mrf.mxu0
    %v834 = vadd.f32 0.0, %v833
    %v835 = vpop.f32.mrf.mxu0
    %v836 = vadd.f32 0.0, %v835
    %v837 = vpop.f32.mrf.mxu0
    %v838 = vadd.f32 0.0, %v837
    %839 = vmatprep.mubr.bf16.mxu0 0
    %840 = vmatmul.mubr.bf16.gmra.mxu0 %v595
    %v841 = vpop.f32.mrf.mxu0
    %v842 = vadd.f32 0.0, %v841
    %v843 = vpop.f32.mrf.mxu0
    %v844 = vadd.f32 0.0, %v843
    %v845 = vpop.f32.mrf.mxu0
    %v846 = vadd.f32 0.0, %v845
    %v847 = vpop.f32.mrf.mxu0
    %v848 = vadd.f32 0.0, %v847
    %849 = vmatprep.mubr.bf16.mxu0 0
    %850 = vmatmul.mubr.bf16.gmra.mxu0 %v596
    %v851 = vpop.f32.mrf.mxu0
    %v852 = vadd.f32 0.0, %v851
    %v853 = vpop.f32.mrf.mxu0
    %v854 = vadd.f32 0.0, %v853
    %v855 = vpop.f32.mrf.mxu0
    %v856 = vadd.f32 0.0, %v855
    %v857 = vpop.f32.mrf.mxu0
    %v858 = vadd.f32 0.0, %v857
    %859 = vmatprep.mubr.bf16.mxu0 0
    %860 = vmatmul.mubr.bf16.gmra.mxu0 %v597
    %v861 = vpop.f32.mrf.mxu0
    %v862 = vadd.f32 0.0, %v861
    %v863 = vpop.f32.mrf.mxu0
    %v864 = vadd.f32 0.0, %v863
    %v865 = vpop.f32.mrf.mxu0
    %v866 = vadd.f32 0.0, %v865
    %v867 = vpop.f32.mrf.mxu0
    %v868 = vadd.f32 0.0, %v867
    %869 = vmatprep.mubr.bf16.mxu0 0
    %870 = vmatmul.mubr.bf16.gmra.mxu0 %v598
    %v871 = vpop.f32.mrf.mxu0
    %v872 = vadd.f32 0.0, %v871
    %v873 = vpop.f32.mrf.mxu0
    %v874 = vadd.f32 0.0, %v873
    %v875 = vpop.f32.mrf.mxu0
    %v876 = vadd.f32 0.0, %v875
    %v877 = vpop.f32.mrf.mxu0
    %v878 = vadd.f32 0.0, %v877
    %879 = vmatprep.mubr.bf16.mxu0 0
    %880 = vmatmul.mubr.bf16.gmra.mxu0 %v599
    %v881 = vpop.f32.mrf.mxu0
    %v882 = vadd.f32 0.0, %v881
    %v883 = vpop.f32.mrf.mxu0
    %v884 = vadd.f32 0.0, %v883
    %v885 = vpop.f32.mrf.mxu0
    %v886 = vadd.f32 0.0, %v885
    %v887 = vpop.f32.mrf.mxu0
    %v888 = vadd.f32 0.0, %v887
    %889 = vmatprep.mubr.bf16.mxu0 0
    %890 = vmatmul.mubr.bf16.gmra.mxu0 %v600
    %v891 = vpop.f32.mrf.mxu0
    %v892 = vadd.f32 0.0, %v891
    %v893 = vpop.f32.mrf.mxu0
    %v894 = vadd.f32 0.0, %v893
    %v895 = vpop.f32.mrf.mxu0
    %v896 = vadd.f32 0.0, %v895
    %v897 = vpop.f32.mrf.mxu0
    %v898 = vadd.f32 0.0, %v897
    %899 = vmatprep.mubr.bf16.mxu0 0
    %900 = vmatmul.mubr.bf16.gmra.mxu0 %v601
    %v901 = vpop.f32.mrf.mxu0
    %v902 = vadd.f32 0.0, %v901
    %v903 = vpop.f32.mrf.mxu0
    %v904 = vadd.f32 0.0, %v903
    %v905 = vpop.f32.mrf.mxu0
    %v906 = vadd.f32 0.0, %v905
    %v907 = vpop.f32.mrf.mxu0
    %v908 = vadd.f32 0.0, %v907
    %909 = vmatprep.mubr.bf16.mxu0 0
    %910 = vmatmul.mubr.bf16.gmra.mxu0 %v602
    %v911 = vpop.f32.mrf.mxu0
    %v912 = vadd.f32 0.0, %v911
    %v913 = vpop.f32.mrf.mxu0
    %v914 = vadd.f32 0.0, %v913
    %v915 = vpop.f32.mrf.mxu0
    %v916 = vadd.f32 0.0, %v915
    %v917 = vpop.f32.mrf.mxu0
    %v918 = vadd.f32 0.0, %v917
    %919 = vmatprep.mubr.bf16.mxu0 0
    %920 = vmatmul.mubr.bf16.gmra.mxu0 %v603
    %v921 = vpop.f32.mrf.mxu0
    %v922 = vadd.f32 0.0, %v921
    %v923 = vpop.f32.mrf.mxu0
    %v924 = vadd.f32 0.0, %v923
    %v925 = vpop.f32.mrf.mxu0
    %v926 = vadd.f32 0.0, %v925
    %v927 = vpop.f32.mrf.mxu0
    %v928 = vadd.f32 0.0, %v927
    %929 = vmatprep.mubr.bf16.mxu0 0
    %930 = vmatmul.mubr.bf16.gmra.mxu0 %v604
    %v931 = vpop.f32.mrf.mxu0
    %v932 = vadd.f32 0.0, %v931
    %v933 = vpop.f32.mrf.mxu0
    %v934 = vadd.f32 0.0, %v933
    %v935 = vpop.f32.mrf.mxu0
    %v936 = vadd.f32 0.0, %v935
    %v937 = vpop.f32.mrf.mxu0
    %v938 = vadd.f32 0.0, %v937
    %939 = vmatprep.mubr.bf16.mxu0 0
    %940 = vmatmul.mubr.bf16.gmra.mxu0 %v605
    %v941 = vpop.f32.mrf.mxu0
    %v942 = vadd.f32 0.0, %v941
    %v943 = vpop.f32.mrf.mxu0
    %v944 = vadd.f32 0.0, %v943
    %v945 = vpop.f32.mrf.mxu0
    %v946 = vadd.f32 0.0, %v945
    %v947 = vpop.f32.mrf.mxu0
    %v948 = vadd.f32 0.0, %v947
    %949 = vmatprep.mubr.bf16.mxu0 0
    %950 = vmatmul.mubr.bf16.gmra.mxu0 %v606
    %v951 = vpop.f32.mrf.mxu0
    %v952 = vadd.f32 0.0, %v951
    %v953 = vpop.f32.mrf.mxu0
    %v954 = vadd.f32 0.0, %v953
    %v955 = vpop.f32.mrf.mxu0
    %v956 = vadd.f32 0.0, %v955
    %v957 = vpop.f32.mrf.mxu0
    %v958 = vadd.f32 0.0, %v957
    %959 = vdwg.mxu0
    %960 = vmatprep.subr.bf16.mxu0 0
    %961 = vmatpush1.bf16.msra.mxu0 %v742
    %962 = vmatprep.subr.bf16.mxu0 0
    %963 = vmatpush1.bf16.msra.mxu0 %v739
    %964 = vmatprep.subr.bf16.mxu0 0
    %965 = vmatpush1.bf16.msra.mxu0 %v736
    %966 = vmatprep.subr.bf16.mxu0 0
    %967 = vmatpush1.bf16.msra.mxu0 %v733
    %968 = vmatprep.subr.bf16.mxu0 0
    %969 = vmatpush1.bf16.msra.mxu0 %v730
    %970 = vmatprep.subr.bf16.mxu0 0
    %971 = vmatpush1.bf16.msra.mxu0 %v727
    %972 = vmatprep.subr.bf16.mxu0 0
    %973 = vmatpush1.bf16.msra.mxu0 %v724
    %974 = vmatprep.subr.bf16.mxu0 0
    %975 = vmatpush1.bf16.msra.mxu0 %v721
    %976 = vmatprep.subr.bf16.mxu0 0
    %977 = vmatpush2.bf16.msra.mxu0 0
    %978 = vmatprep.subr.bf16.mxu0 0
    %979 = vmatpush2.bf16.msra.mxu0 0
    %980 = vmatprep.subr.bf16.mxu0 0
    %981 = vmatpush2.bf16.msra.mxu0 0
    %982 = vmatprep.subr.bf16.mxu0 0
    %983 = vmatpush2.bf16.msra.mxu0 0
    %984 = vmatprep.subr.bf16.mxu0 0
    %985 = vmatpush2.bf16.msra.mxu0 0
    %986 = vmatprep.subr.bf16.mxu0 0
    %987 = vmatpush2.bf16.msra.mxu0 0
    %988 = vmatprep.subr.bf16.mxu0 0
    %989 = vmatpush2.bf16.msra.mxu0 0
    %990 = vmatprep.subr.bf16.mxu0 0
    %991 = vmatpush2.bf16.msra.mxu0 0
    %992 = vmatprep.mubr.bf16.mxu0 0
    %993 = vmatmul.mubr.bf16.gmra.mxu0 %v591
    %v994 = vpop.f32.mrf.mxu0
    %v995 = vadd.f32 0.0, %v994
    %v996 = vpop.f32.mrf.mxu0
    %v997 = vpop.f32.mrf.mxu0
    %v998 = vadd.f32 0.0, %v997
    %v999 = vpop.f32.mrf.mxu0
    %1000 = vmatprep.mubr.bf16.mxu0 0
    %1001 = vmatmul.mubr.bf16.gmra.mxu0 %v592
    %v1002 = vpop.f32.mrf.mxu0
    %v1003 = vadd.f32 0.0, %v1002
    %v1004 = vpop.f32.mrf.mxu0
    %v1005 = vpop.f32.mrf.mxu0
    %v1006 = vadd.f32 0.0, %v1005
    %v1007 = vpop.f32.mrf.mxu0
    %1008 = vmatprep.mubr.bf16.mxu0 0
    %1009 = vmatmul.mubr.bf16.gmra.mxu0 %v593
    %v1010 = vpop.f32.mrf.mxu0
    %v1011 = vadd.f32 0.0, %v1010
    %v1012 = vpop.f32.mrf.mxu0
    %v1013 = vpop.f32.mrf.mxu0
    %v1014 = vadd.f32 0.0, %v1013
    %v1015 = vpop.f32.mrf.mxu0
    %1016 = vmatprep.mubr.bf16.mxu0 0
    %1017 = vmatmul.mubr.bf16.gmra.mxu0 %v594
    %v1018 = vpop.f32.mrf.mxu0
    %v1019 = vadd.f32 0.0, %v1018
    %v1020 = vpop.f32.mrf.mxu0
    %v1021 = vpop.f32.mrf.mxu0
    %v1022 = vadd.f32 0.0, %v1021
    %v1023 = vpop.f32.mrf.mxu0
    %1024 = vmatprep.mubr.bf16.mxu0 0
    %1025 = vmatmul.mubr.bf16.gmra.mxu0 %v595
    %v1026 = vpop.f32.mrf.mxu0
    %v1027 = vadd.f32 0.0, %v1026
    %v1028 = vpop.f32.mrf.mxu0
    %v1029 = vpop.f32.mrf.mxu0
    %v1030 = vadd.f32 0.0, %v1029
    %v1031 = vpop.f32.mrf.mxu0
    %1032 = vmatprep.mubr.bf16.mxu0 0
    %1033 = vmatmul.mubr.bf16.gmra.mxu0 %v596
    %v1034 = vpop.f32.mrf.mxu0
    %v1035 = vadd.f32 0.0, %v1034
    %v1036 = vpop.f32.mrf.mxu0
    %v1037 = vpop.f32.mrf.mxu0
    %v1038 = vadd.f32 0.0, %v1037
    %v1039 = vpop.f32.mrf.mxu0
    %1040 = vmatprep.mubr.bf16.mxu0 0
    %1041 = vmatmul.mubr.bf16.gmra.mxu0 %v597
    %v1042 = vpop.f32.mrf.mxu0
    %v1043 = vadd.f32 0.0, %v1042
    %v1044 = vpop.f32.mrf.mxu0
    %v1045 = vpop.f32.mrf.mxu0
    %v1046 = vadd.f32 0.0, %v1045
    %v1047 = vpop.f32.mrf.mxu0
    %1048 = vmatprep.mubr.bf16.mxu0 0
    %1049 = vmatmul.mubr.bf16.gmra.mxu0 %v598
    %v1050 = vpop.f32.mrf.mxu0
    %v1051 = vadd.f32 0.0, %v1050
    %v1052 = vpop.f32.mrf.mxu0
    %v1053 = vpop.f32.mrf.mxu0
    %v1054 = vadd.f32 0.0, %v1053
    %v1055 = vpop.f32.mrf.mxu0
    %1056 = vmatprep.mubr.bf16.mxu0 0
    %1057 = vmatmul.mubr.bf16.gmra.mxu0 %v599
    %v1058 = vpop.f32.mrf.mxu0
    %v1059 = vadd.f32 0.0, %v1058
    %v1060 = vpop.f32.mrf.mxu0
    %v1061 = vpop.f32.mrf.mxu0
    %v1062 = vadd.f32 0.0, %v1061
    %v1063 = vpop.f32.mrf.mxu0
    %1064 = vmatprep.mubr.bf16.mxu0 0
    %1065 = vmatmul.mubr.bf16.gmra.mxu0 %v600
    %v1066 = vpop.f32.mrf.mxu0
    %v1067 = vadd.f32 0.0, %v1066
    %v1068 = vpop.f32.mrf.mxu0
    %v1069 = vpop.f32.mrf.mxu0
    %v1070 = vadd.f32 0.0, %v1069
    %v1071 = vpop.f32.mrf.mxu0
    %1072 = vmatprep.mubr.bf16.mxu0 0
    %1073 = vmatmul.mubr.bf16.gmra.mxu0 %v601
    %v1074 = vpop.f32.mrf.mxu0
    %v1075 = vadd.f32 0.0, %v1074
    %v1076 = vpop.f32.mrf.mxu0
    %v1077 = vpop.f32.mrf.mxu0
    %v1078 = vadd.f32 0.0, %v1077
    %v1079 = vpop.f32.mrf.mxu0
    %1080 = vmatprep.mubr.bf16.mxu0 0
    %1081 = vmatmul.mubr.bf16.gmra.mxu0 %v602
    %v1082 = vpop.f32.mrf.mxu0
    %v1083 = vadd.f32 0.0, %v1082
    %v1084 = vpop.f32.mrf.mxu0
    %v1085 = vpop.f32.mrf.mxu0
    %v1086 = vadd.f32 0.0, %v1085
    %v1087 = vpop.f32.mrf.mxu0
    %1088 = vmatprep.mubr.bf16.mxu0 0
    %1089 = vmatmul.mubr.bf16.gmra.mxu0 %v603
    %v1090 = vpop.f32.mrf.mxu0
    %v1091 = vadd.f32 0.0, %v1090
    %v1092 = vpop.f32.mrf.mxu0
    %v1093 = vpop.f32.mrf.mxu0
    %v1094 = vadd.f32 0.0, %v1093
    %v1095 = vpop.f32.mrf.mxu0
    %1096 = vmatprep.mubr.bf16.mxu0 0
    %1097 = vmatmul.mubr.bf16.gmra.mxu0 %v604
    %v1098 = vpop.f32.mrf.mxu0
    %v1099 = vadd.f32 0.0, %v1098
    %v1100 = vpop.f32.mrf.mxu0
    %v1101 = vpop.f32.mrf.mxu0
    %v1102 = vadd.f32 0.0, %v1101
    %v1103 = vpop.f32.mrf.mxu0
    %1104 = vmatprep.mubr.bf16.mxu0 0
    %1105 = vmatmul.mubr.bf16.gmra.mxu0 %v605
    %v1106 = vpop.f32.mrf.mxu0
    %v1107 = vadd.f32 0.0, %v1106
    %v1108 = vpop.f32.mrf.mxu0
    %v1109 = vpop.f32.mrf.mxu0
    %v1110 = vadd.f32 0.0, %v1109
    %v1111 = vpop.f32.mrf.mxu0
    %1112 = vmatprep.mubr.bf16.mxu0 0
    %1113 = vmatmul.mubr.bf16.gmra.mxu0 %v606
    %v1114 = vpop.f32.mrf.mxu0
    %v1115 = vadd.f32 0.0, %v1114
    %v1116 = vpop.f32.mrf.mxu0
    %v1117 = vpop.f32.mrf.mxu0
    %v1118 = vadd.f32 0.0, %v1117
    %v1119 = vpop.f32.mrf.mxu0
    %1120 = vdwg.mxu0
    %v1121 = vpack.c.bf16 %v806, %v802
    %v1122 = vpack.c.bf16 %v816, %v812
    %v1123 = vpack.c.bf16 %v826, %v822
    %v1124 = vpack.c.bf16 %v836, %v832
    %v1125 = vpack.c.bf16 %v846, %v842
    %v1126 = vpack.c.bf16 %v856, %v852
    %v1127 = vpack.c.bf16 %v866, %v862
    %v1128 = vpack.c.bf16 %v876, %v872
    %v1129 = vpack.c.bf16 %v886, %v882
    %v1130 = vpack.c.bf16 %v896, %v892
    %v1131 = vpack.c.bf16 %v906, %v902
    %v1132 = vpack.c.bf16 %v916, %v912
    %v1133 = vpack.c.bf16 %v926, %v922
    %v1134 = vpack.c.bf16 %v936, %v932
    %v1135 = vpack.c.bf16 %v946, %v942
    %v1136 = vpack.c.bf16 %v956, %v952
    %v1137 = vpack.c.bf16 %v808, %v804
    %v1138 = vpack.c.bf16 %v818, %v814
    %v1139 = vpack.c.bf16 %v828, %v824
    %v1140 = vpack.c.bf16 %v838, %v834
    %v1141 = vpack.c.bf16 %v848, %v844
    %v1142 = vpack.c.bf16 %v858, %v854
    %v1143 = vpack.c.bf16 %v868, %v864
    %v1144 = vpack.c.bf16 %v878, %v874
    %v1145 = vpack.c.bf16 %v888, %v884
    %v1146 = vpack.c.bf16 %v898, %v894
    %v1147 = vpack.c.bf16 %v908, %v904
    %v1148 = vpack.c.bf16 %v918, %v914
    %v1149 = vpack.c.bf16 %v928, %v924
    %v1150 = vpack.c.bf16 %v938, %v934
    %v1151 = vpack.c.bf16 %v948, %v944
    %v1152 = vpack.c.bf16 %v958, %v954
    %v1153 = vpack.c.bf16 %v998, %v995
    %v1154 = vpack.c.bf16 %v1006, %v1003
    %v1155 = vpack.c.bf16 %v1014, %v1011
    %v1156 = vpack.c.bf16 %v1022, %v1019
    %v1157 = vpack.c.bf16 %v1030, %v1027
    %v1158 = vpack.c.bf16 %v1038, %v1035
    %v1159 = vpack.c.bf16 %v1046, %v1043
    %v1160 = vpack.c.bf16 %v1054, %v1051
    %v1161 = vpack.c.bf16 %v1062, %v1059
    %v1162 = vpack.c.bf16 %v1070, %v1067
    %v1163 = vpack.c.bf16 %v1078, %v1075
    %v1164 = vpack.c.bf16 %v1086, %v1083
    %v1165 = vpack.c.bf16 %v1094, %v1091
    %v1166 = vpack.c.bf16 %v1102, %v1099
    %v1167 = vpack.c.bf16 %v1110, %v1107
    %v1168 = vpack.c.bf16 %v1118, %v1115
    %v1169 = vld [vmem:[#allocation6] sm:$0xff]
    %v1170 = vld [vmem:[#allocation6 + $0x8] sm:$0xff]
    %v1171 = vld [vmem:[#allocation6 + $0x10] sm:$0xff]
    %v1172 = vld [vmem:[#allocation6 + $0x18] sm:$0xff]
    %v1173 = vld [vmem:[#allocation6 + $0x20] sm:$0xff]
    %v1174 = vld [vmem:[#allocation6 + $0x28] sm:$0xff]
    %v1175 = vld [vmem:[#allocation6 + $0x30] sm:$0xff]
    %v1176 = vld [vmem:[#allocation6 + $0x38] sm:$0xff]
    %vm1177 = vcmask 261120
    %v1179 = vsel %vm1177, %v1121, 0
    %v1182 = vsel %vm1177, %v1122, 0
    %v1185 = vsel %vm1177, %v1123, 0
    %v1188 = vsel %vm1177, %v1124, 0
    %v1191 = vsel %vm1177, %v1137, 0
    %v1194 = vsel %vm1177, %v1138, 0
    %v1197 = vsel %vm1177, %v1139, 0
    %v1200 = vsel %vm1177, %v1140, 0
    %1202 = vmatprep.subr.bf16.mxu0 0
    %1203 = vmatpush1.bf16.xpose.msra.mxu0 0
    %1204 = vmatprep.subr.bf16.mxu0 0
    %1205 = vmatpush1.bf16.xpose.msra.mxu0 0
    %1206 = vmatprep.subr.bf16.mxu0 0
    %1207 = vmatpush1.bf16.xpose.msra.mxu0 0
    %1208 = vmatprep.subr.bf16.mxu0 0
    %1209 = vmatpush1.bf16.xpose.msra.mxu0 0
    %1210 = vmatprep.subr.bf16.mxu0 0
    %1211 = vmatpush1.bf16.xpose.msra.mxu0 %v1200
    %1212 = vmatprep.subr.bf16.mxu0 0
    %1213 = vmatpush1.bf16.xpose.msra.mxu0 %v1197
    %1214 = vmatprep.subr.bf16.mxu0 0
    %1215 = vmatpush1.bf16.xpose.msra.mxu0 %v1194
    %1216 = vmatprep.subr.bf16.mxu0 0
    %1217 = vmatpush1.bf16.xpose.msra.mxu0 %v1191
    %1218 = vmatprep.subr.bf16.mxu0 0
    %1219 = vmatpush2.bf16.xpose.msra.mxu0 0
    %1220 = vmatprep.subr.bf16.mxu0 0
    %1221 = vmatpush2.bf16.xpose.msra.mxu0 0
    %1222 = vmatprep.subr.bf16.mxu0 0
    %1223 = vmatpush2.bf16.xpose.msra.mxu0 0
    %1224 = vmatprep.subr.bf16.mxu0 0
    %1225 = vmatpush2.bf16.xpose.msra.mxu0 0
    %1226 = vmatprep.subr.bf16.mxu0 0
    %1227 = vmatpush2.bf16.xpose.msra.mxu0 0
    %1228 = vmatprep.subr.bf16.mxu0 0
    %1229 = vmatpush2.bf16.xpose.msra.mxu0 0
    %1230 = vmatprep.subr.bf16.mxu0 0
    %1231 = vmatpush2.bf16.xpose.msra.mxu0 0
    %1232 = vmatprep.subr.bf16.mxu0 0
    %1233 = vmatpush2.bf16.xpose.msra.mxu0 0
    %1234 = vmatprep.mubr.bf16.mxu0 0
    %1235 = vmatmul.mubr.bf16.gmra.mxu0 %v1179
    %v1236 = vpop.f32.mrf.mxu0
    %v1237 = vadd.f32 %v1169, %v1236
    %v1238 = vpop.f32.mrf.mxu0
    %v1239 = vpop.f32.mrf.mxu0
    %v1240 = vadd.f32 %v1170, %v1239
    %v1241 = vpop.f32.mrf.mxu0
    %1242 = vmatprep.mubr.bf16.mxu0 0
    %1243 = vmatmul.mubr.bf16.gmra.mxu0 %v1182
    %v1244 = vpop.f32.mrf.mxu0
    %v1245 = vadd.f32 %v1171, %v1244
    %v1246 = vpop.f32.mrf.mxu0
    %v1247 = vpop.f32.mrf.mxu0
    %v1248 = vadd.f32 %v1172, %v1247
    %v1249 = vpop.f32.mrf.mxu0
    %1250 = vmatprep.mubr.bf16.mxu0 0
    %1251 = vmatmul.mubr.bf16.gmra.mxu0 %v1185
    %v1252 = vpop.f32.mrf.mxu0
    %v1253 = vadd.f32 %v1173, %v1252
    %v1254 = vpop.f32.mrf.mxu0
    %v1255 = vpop.f32.mrf.mxu0
    %v1256 = vadd.f32 %v1174, %v1255
    %v1257 = vpop.f32.mrf.mxu0
    %1258 = vmatprep.mubr.bf16.mxu0 0
    %1259 = vmatmul.mubr.bf16.gmra.mxu0 %v1188
    %v1260 = vpop.f32.mrf.mxu0
    %v1261 = vadd.f32 %v1175, %v1260
    %v1262 = vpop.f32.mrf.mxu0
    %v1263 = vpop.f32.mrf.mxu0
    %v1264 = vadd.f32 %v1176, %v1263
    %v1265 = vpop.f32.mrf.mxu0
    %1266 = vdwg.mxu0
    %v1268 = vsel %vm1177, %v1125, 0
    %v1271 = vsel %vm1177, %v1126, 0
    %v1274 = vsel %vm1177, %v1127, 0
    %v1277 = vsel %vm1177, %v1128, 0
    %v1280 = vsel %vm1177, %v1141, 0
    %v1283 = vsel %vm1177, %v1142, 0
    %v1286 = vsel %vm1177, %v1143, 0
    %v1289 = vsel %vm1177, %v1144, 0
    %1291 = vmatprep.subr.bf16.mxu0 0
    %1292 = vmatpush1.bf16.xpose.msra.mxu0 0
    %1293 = vmatprep.subr.bf16.mxu0 0
    %1294 = vmatpush1.bf16.xpose.msra.mxu0 0
    %1295 = vmatprep.subr.bf16.mxu0 0
    %1296 = vmatpush1.bf16.xpose.msra.mxu0 0
    %1297 = vmatprep.subr.bf16.mxu0 0
    %1298 = vmatpush1.bf16.xpose.msra.mxu0 0
    %1299 = vmatprep.subr.bf16.mxu0 0
    %1300 = vmatpush1.bf16.xpose.msra.mxu0 %v1289
    %1301 = vmatprep.subr.bf16.mxu0 0
    %1302 = vmatpush1.bf16.xpose.msra.mxu0 %v1286
    %1303 = vmatprep.subr.bf16.mxu0 0
    %1304 = vmatpush1.bf16.xpose.msra.mxu0 %v1283
    %1305 = vmatprep.subr.bf16.mxu0 0
    %1306 = vmatpush1.bf16.xpose.msra.mxu0 %v1280
    %1307 = vmatprep.subr.bf16.mxu0 0
    %1308 = vmatpush2.bf16.xpose.msra.mxu0 0
    %1309 = vmatprep.subr.bf16.mxu0 0
    %1310 = vmatpush2.bf16.xpose.msra.mxu0 0
    %1311 = vmatprep.subr.bf16.mxu0 0
    %1312 = vmatpush2.bf16.xpose.msra.mxu0 0
    %1313 = vmatprep.subr.bf16.mxu0 0
    %1314 = vmatpush2.bf16.xpose.msra.mxu0 0
    %1315 = vmatprep.subr.bf16.mxu0 0
    %1316 = vmatpush2.bf16.xpose.msra.mxu0 0
    %1317 = vmatprep.subr.bf16.mxu0 0
    %1318 = vmatpush2.bf16.xpose.msra.mxu0 0
    %1319 = vmatprep.subr.bf16.mxu0 0
    %1320 = vmatpush2.bf16.xpose.msra.mxu0 0
    %1321 = vmatprep.subr.bf16.mxu0 0
    %1322 = vmatpush2.bf16.xpose.msra.mxu0 0
    %1323 = vmatprep.mubr.bf16.mxu0 0
    %1324 = vmatmul.mubr.bf16.gmra.mxu0 %v1268
    %v1325 = vpop.f32.mrf.mxu0
    %v1326 = vadd.f32 %v1169, %v1325
    %v1327 = vpop.f32.mrf.mxu0
    %v1328 = vpop.f32.mrf.mxu0
    %v1329 = vadd.f32 %v1170, %v1328
    %v1330 = vpop.f32.mrf.mxu0
    %1331 = vmatprep.mubr.bf16.mxu0 0
    %1332 = vmatmul.mubr.bf16.gmra.mxu0 %v1271
    %v1333 = vpop.f32.mrf.mxu0
    %v1334 = vadd.f32 %v1171, %v1333
    %v1335 = vpop.f32.mrf.mxu0
    %v1336 = vpop.f32.mrf.mxu0
    %v1337 = vadd.f32 %v1172, %v1336
    %v1338 = vpop.f32.mrf.mxu0
    %1339 = vmatprep.mubr.bf16.mxu0 0
    %1340 = vmatmul.mubr.bf16.gmra.mxu0 %v1274
    %v1341 = vpop.f32.mrf.mxu0
    %v1342 = vadd.f32 %v1173, %v1341
    %v1343 = vpop.f32.mrf.mxu0
    %v1344 = vpop.f32.mrf.mxu0
    %v1345 = vadd.f32 %v1174, %v1344
    %v1346 = vpop.f32.mrf.mxu0
    %1347 = vmatprep.mubr.bf16.mxu0 0
    %1348 = vmatmul.mubr.bf16.gmra.mxu0 %v1277
    %v1349 = vpop.f32.mrf.mxu0
    %v1350 = vadd.f32 %v1175, %v1349
    %v1351 = vpop.f32.mrf.mxu0
    %v1352 = vpop.f32.mrf.mxu0
    %v1353 = vadd.f32 %v1176, %v1352
    %v1354 = vpop.f32.mrf.mxu0
    %1355 = vdwg.mxu0
    %v1357 = vsel %vm1177, %v1129, 0
    %v1360 = vsel %vm1177, %v1130, 0
    %v1363 = vsel %vm1177, %v1131, 0
    %v1366 = vsel %vm1177, %v1132, 0
    %v1369 = vsel %vm1177, %v1145, 0
    %v1372 = vsel %vm1177, %v1146, 0
    %v1375 = vsel %vm1177, %v1147, 0
    %v1378 = vsel %vm1177, %v1148, 0
    %1380 = vmatprep.subr.bf16.mxu0 0
    %1381 = vmatpush1.bf16.xpose.msra.mxu0 0
    %1382 = vmatprep.subr.bf16.mxu0 0
    %1383 = vmatpush1.bf16.xpose.msra.mxu0 0
    %1384 = vmatprep.subr.bf16.mxu0 0
    %1385 = vmatpush1.bf16.xpose.msra.mxu0 0
    %1386 = vmatprep.subr.bf16.mxu0 0
    %1387 = vmatpush1.bf16.xpose.msra.mxu0 0
    %1388 = vmatprep.subr.bf16.mxu0 0
    %1389 = vmatpush1.bf16.xpose.msra.mxu0 %v1378
    %1390 = vmatprep.subr.bf16.mxu0 0
    %1391 = vmatpush1.bf16.xpose.msra.mxu0 %v1375
    %1392 = vmatprep.subr.bf16.mxu0 0
    %1393 = vmatpush1.bf16.xpose.msra.mxu0 %v1372
    %1394 = vmatprep.subr.bf16.mxu0 0
    %1395 = vmatpush1.bf16.xpose.msra.mxu0 %v1369
    %1396 = vmatprep.subr.bf16.mxu0 0
    %1397 = vmatpush2.bf16.xpose.msra.mxu0 0
    %1398 = vmatprep.subr.bf16.mxu0 0
    %1399 = vmatpush2.bf16.xpose.msra.mxu0 0
    %1400 = vmatprep.subr.bf16.mxu0 0
    %1401 = vmatpush2.bf16.xpose.msra.mxu0 0
    %1402 = vmatprep.subr.bf16.mxu0 0
    %1403 = vmatpush2.bf16.xpose.msra.mxu0 0
    %1404 = vmatprep.subr.bf16.mxu0 0
    %1405 = vmatpush2.bf16.xpose.msra.mxu0 0
    %1406 = vmatprep.subr.bf16.mxu0 0
    %1407 = vmatpush2.bf16.xpose.msra.mxu0 0
    %1408 = vmatprep.subr.bf16.mxu0 0
    %1409 = vmatpush2.bf16.xpose.msra.mxu0 0
    %1410 = vmatprep.subr.bf16.mxu0 0
    %1411 = vmatpush2.bf16.xpose.msra.mxu0 0
    %1412 = vmatprep.mubr.bf16.mxu0 0
    %1413 = vmatmul.mubr.bf16.gmra.mxu0 %v1357
    %v1414 = vpop.f32.mrf.mxu0
    %v1415 = vadd.f32 %v1169, %v1414
    %v1416 = vpop.f32.mrf.mxu0
    %v1417 = vpop.f32.mrf.mxu0
    %v1418 = vadd.f32 %v1170, %v1417
    %v1419 = vpop.f32.mrf.mxu0
    %1420 = vmatprep.mubr.bf16.mxu0 0
    %1421 = vmatmul.mubr.bf16.gmra.mxu0 %v1360
    %v1422 = vpop.f32.mrf.mxu0
    %v1423 = vadd.f32 %v1171, %v1422
    %v1424 = vpop.f32.mrf.mxu0
    %v1425 = vpop.f32.mrf.mxu0
    %v1426 = vadd.f32 %v1172, %v1425
    %v1427 = vpop.f32.mrf.mxu0
    %1428 = vmatprep.mubr.bf16.mxu0 0
    %1429 = vmatmul.mubr.bf16.gmra.mxu0 %v1363
    %v1430 = vpop.f32.mrf.mxu0
    %v1431 = vadd.f32 %v1173, %v1430
    %v1432 = vpop.f32.mrf.mxu0
    %v1433 = vpop.f32.mrf.mxu0
    %v1434 = vadd.f32 %v1174, %v1433
    %v1435 = vpop.f32.mrf.mxu0
    %1436 = vmatprep.mubr.bf16.mxu0 0
    %1437 = vmatmul.mubr.bf16.gmra.mxu0 %v1366
    %v1438 = vpop.f32.mrf.mxu0
    %v1439 = vadd.f32 %v1175, %v1438
    %v1440 = vpop.f32.mrf.mxu0
    %v1441 = vpop.f32.mrf.mxu0
    %v1442 = vadd.f32 %v1176, %v1441
    %v1443 = vpop.f32.mrf.mxu0
    %1444 = vdwg.mxu0
    %v1446 = vsel %vm1177, %v1133, 0
    %v1449 = vsel %vm1177, %v1134, 0
    %v1452 = vsel %vm1177, %v1135, 0
    %v1455 = vsel %vm1177, %v1136, 0
    %v1458 = vsel %vm1177, %v1149, 0
    %v1461 = vsel %vm1177, %v1150, 0
    %v1464 = vsel %vm1177, %v1151, 0
    %v1467 = vsel %vm1177, %v1152, 0
    %1469 = vmatprep.subr.bf16.mxu0 0
    %1470 = vmatpush1.bf16.xpose.msra.mxu0 0
    %1471 = vmatprep.subr.bf16.mxu0 0
    %1472 = vmatpush1.bf16.xpose.msra.mxu0 0
    %1473 = vmatprep.subr.bf16.mxu0 0
    %1474 = vmatpush1.bf16.xpose.msra.mxu0 0
    %1475 = vmatprep.subr.bf16.mxu0 0
    %1476 = vmatpush1.bf16.xpose.msra.mxu0 0
    %1477 = vmatprep.subr.bf16.mxu0 0
    %1478 = vmatpush1.bf16.xpose.msra.mxu0 %v1467
    %1479 = vmatprep.subr.bf16.mxu0 0
    %1480 = vmatpush1.bf16.xpose.msra.mxu0 %v1464
    %1481 = vmatprep.subr.bf16.mxu0 0
    %1482 = vmatpush1.bf16.xpose.msra.mxu0 %v1461
    %1483 = vmatprep.subr.bf16.mxu0 0
    %1484 = vmatpush1.bf16.xpose.msra.mxu0 %v1458
    %1485 = vmatprep.subr.bf16.mxu0 0
    %1486 = vmatpush2.bf16.xpose.msra.mxu0 0
    %1487 = vmatprep.subr.bf16.mxu0 0
    %1488 = vmatpush2.bf16.xpose.msra.mxu0 0
    %1489 = vmatprep.subr.bf16.mxu0 0
    %1490 = vmatpush2.bf16.xpose.msra.mxu0 0
    %1491 = vmatprep.subr.bf16.mxu0 0
    %1492 = vmatpush2.bf16.xpose.msra.mxu0 0
    %1493 = vmatprep.subr.bf16.mxu0 0
    %1494 = vmatpush2.bf16.xpose.msra.mxu0 0
    %1495 = vmatprep.subr.bf16.mxu0 0
    %1496 = vmatpush2.bf16.xpose.msra.mxu0 0
    %1497 = vmatprep.subr.bf16.mxu0 0
    %1498 = vmatpush2.bf16.xpose.msra.mxu0 0
    %1499 = vmatprep.subr.bf16.mxu0 0
    %1500 = vmatpush2.bf16.xpose.msra.mxu0 0
    %1501 = vmatprep.mubr.bf16.mxu0 0
    %1502 = vmatmul.mubr.bf16.gmra.mxu0 %v1446
    %v1503 = vpop.f32.mrf.mxu0
    %v1504 = vadd.f32 %v1169, %v1503
    %v1505 = vpop.f32.mrf.mxu0
    %v1506 = vpop.f32.mrf.mxu0
    %v1507 = vadd.f32 %v1170, %v1506
    %v1508 = vpop.f32.mrf.mxu0
    %1509 = vmatprep.mubr.bf16.mxu0 0
    %1510 = vmatmul.mubr.bf16.gmra.mxu0 %v1449
    %v1511 = vpop.f32.mrf.mxu0
    %v1512 = vadd.f32 %v1171, %v1511
    %v1513 = vpop.f32.mrf.mxu0
    %v1514 = vpop.f32.mrf.mxu0
    %v1515 = vadd.f32 %v1172, %v1514
    %v1516 = vpop.f32.mrf.mxu0
    %1517 = vmatprep.mubr.bf16.mxu0 0
    %1518 = vmatmul.mubr.bf16.gmra.mxu0 %v1452
    %v1519 = vpop.f32.mrf.mxu0
    %v1520 = vadd.f32 %v1173, %v1519
    %v1521 = vpop.f32.mrf.mxu0
    %v1522 = vpop.f32.mrf.mxu0
    %v1523 = vadd.f32 %v1174, %v1522
    %v1524 = vpop.f32.mrf.mxu0
    %1525 = vmatprep.mubr.bf16.mxu0 0
    %1526 = vmatmul.mubr.bf16.gmra.mxu0 %v1455
    %v1527 = vpop.f32.mrf.mxu0
    %v1528 = vadd.f32 %v1175, %v1527
    %v1529 = vpop.f32.mrf.mxu0
    %v1530 = vpop.f32.mrf.mxu0
    %v1531 = vadd.f32 %v1176, %v1530
    %v1532 = vpop.f32.mrf.mxu0
    %1533 = vdwg.mxu0
    %vm1534 = vcmask 523264
    %v1535 = vsel %vm1534, %v1237, -inf
    %1536 = vmax.xlane.f32.xlu0 %v1535
    %v1537 = vpop.xlane.xlu0 %1536
    %v1538 = vsel %vm1534, %v1240, -inf
    %1539 = vmax.xlane.f32.xlu0 %v1538
    %v1540 = vpop.xlane.xlu0 %1539
    %v1541 = vsel %vm1534, %v1245, -inf
    %1542 = vmax.xlane.f32.xlu0 %v1541
    %v1543 = vpop.xlane.xlu0 %1542
    %v1544 = vsel %vm1534, %v1248, -inf
    %1545 = vmax.xlane.f32.xlu0 %v1544
    %v1546 = vpop.xlane.xlu0 %1545
    %v1547 = vsel %vm1534, %v1253, -inf
    %1548 = vmax.xlane.f32.xlu0 %v1547
    %v1549 = vpop.xlane.xlu0 %1548
    %v1550 = vsel %vm1534, %v1256, -inf
    %1551 = vmax.xlane.f32.xlu0 %v1550
    %v1552 = vpop.xlane.xlu0 %1551
    %v1553 = vsel %vm1534, %v1261, -inf
    %1554 = vmax.xlane.f32.xlu0 %v1553
    %v1555 = vpop.xlane.xlu0 %1554
    %v1556 = vsel %vm1534, %v1264, -inf
    %1557 = vmax.xlane.f32.xlu0 %v1556
    %v1558 = vpop.xlane.xlu0 %1557
    %v1559 = vsel %vm1534, %v1326, -inf
    %1560 = vmax.xlane.f32.xlu0 %v1559
    %v1561 = vpop.xlane.xlu0 %1560
    %v1562 = vsel %vm1534, %v1329, -inf
    %1563 = vmax.xlane.f32.xlu0 %v1562
    %v1564 = vpop.xlane.xlu0 %1563
    %v1565 = vsel %vm1534, %v1334, -inf
    %1566 = vmax.xlane.f32.xlu0 %v1565
    %v1567 = vpop.xlane.xlu0 %1566
    %v1568 = vsel %vm1534, %v1337, -inf
    %1569 = vmax.xlane.f32.xlu0 %v1568
    %v1570 = vpop.xlane.xlu0 %1569
    %v1571 = vsel %vm1534, %v1342, -inf
    %1572 = vmax.xlane.f32.xlu0 %v1571
    %v1573 = vpop.xlane.xlu0 %1572
    %v1574 = vsel %vm1534, %v1345, -inf
    %1575 = vmax.xlane.f32.xlu0 %v1574
    %v1576 = vpop.xlane.xlu0 %1575
    %v1577 = vsel %vm1534, %v1350, -inf
    %1578 = vmax.xlane.f32.xlu0 %v1577
    %v1579 = vpop.xlane.xlu0 %1578
    %v1580 = vsel %vm1534, %v1353, -inf
    %1581 = vmax.xlane.f32.xlu0 %v1580
    %v1582 = vpop.xlane.xlu0 %1581
    %v1583 = vsel %vm1534, %v1415, -inf
    %1584 = vmax.xlane.f32.xlu0 %v1583
    %v1585 = vpop.xlane.xlu0 %1584
    %v1586 = vsel %vm1534, %v1418, -inf
    %1587 = vmax.xlane.f32.xlu0 %v1586
    %v1588 = vpop.xlane.xlu0 %1587
    %v1589 = vsel %vm1534, %v1423, -inf
    %1590 = vmax.xlane.f32.xlu0 %v1589
    %v1591 = vpop.xlane.xlu0 %1590
    %v1592 = vsel %vm1534, %v1426, -inf
    %1593 = vmax.xlane.f32.xlu0 %v1592
    %v1594 = vpop.xlane.xlu0 %1593
    %v1595 = vsel %vm1534, %v1431, -inf
    %1596 = vmax.xlane.f32.xlu0 %v1595
    %v1597 = vpop.xlane.xlu0 %1596
    %v1598 = vsel %vm1534, %v1434, -inf
    %1599 = vmax.xlane.f32.xlu0 %v1598
    %v1600 = vpop.xlane.xlu0 %1599
    %v1601 = vsel %vm1534, %v1439, -inf
    %1602 = vmax.xlane.f32.xlu0 %v1601
    %v1603 = vpop.xlane.xlu0 %1602
    %v1604 = vsel %vm1534, %v1442, -inf
    %1605 = vmax.xlane.f32.xlu0 %v1604
    %v1606 = vpop.xlane.xlu0 %1605
    %v1607 = vsel %vm1534, %v1504, -inf
    %1608 = vmax.xlane.f32.xlu0 %v1607
    %v1609 = vpop.xlane.xlu0 %1608
    %v1610 = vsel %vm1534, %v1507, -inf
    %1611 = vmax.xlane.f32.xlu0 %v1610
    %v1612 = vpop.xlane.xlu0 %1611
    %v1613 = vsel %vm1534, %v1512, -inf
    %1614 = vmax.xlane.f32.xlu0 %v1613
    %v1615 = vpop.xlane.xlu0 %1614
    %v1616 = vsel %vm1534, %v1515, -inf
    %1617 = vmax.xlane.f32.xlu0 %v1616
    %v1618 = vpop.xlane.xlu0 %1617
    %v1619 = vsel %vm1534, %v1520, -inf
    %1620 = vmax.xlane.f32.xlu0 %v1619
    %v1621 = vpop.xlane.xlu0 %1620
    %v1622 = vsel %vm1534, %v1523, -inf
    %1623 = vmax.xlane.f32.xlu0 %v1622
    %v1624 = vpop.xlane.xlu0 %1623
    %v1625 = vsel %vm1534, %v1528, -inf
    %1626 = vmax.xlane.f32.xlu0 %v1625
    %v1627 = vpop.xlane.xlu0 %1626
    %v1628 = vsel %vm1534, %v1531, -inf
    %1629 = vmax.xlane.f32.xlu0 %v1628
    %v1630 = vpop.xlane.xlu0 %1629
    %v1631 = vsub.f32 %v1237, %v1537
    %v1632 = vsub.f32 %v1240, %v1540
    %v1633 = vsub.f32 %v1245, %v1543
    %v1634 = vsub.f32 %v1248, %v1546
    %v1635 = vsub.f32 %v1253, %v1549
    %v1636 = vsub.f32 %v1256, %v1552
    %v1637 = vsub.f32 %v1261, %v1555
    %v1638 = vsub.f32 %v1264, %v1558
    %v1639 = vsub.f32 %v1326, %v1561
    %v1640 = vsub.f32 %v1329, %v1564
    %v1641 = vsub.f32 %v1334, %v1567
    %v1642 = vsub.f32 %v1337, %v1570
    %v1643 = vsub.f32 %v1342, %v1573
    %v1644 = vsub.f32 %v1345, %v1576
    %v1645 = vsub.f32 %v1350, %v1579
    %v1646 = vsub.f32 %v1353, %v1582
    %v1647 = vsub.f32 %v1415, %v1585
    %v1648 = vsub.f32 %v1418, %v1588
    %v1649 = vsub.f32 %v1423, %v1591
    %v1650 = vsub.f32 %v1426, %v1594
    %v1651 = vsub.f32 %v1431, %v1597
    %v1652 = vsub.f32 %v1434, %v1600
    %v1653 = vsub.f32 %v1439, %v1603
    %v1654 = vsub.f32 %v1442, %v1606
    %v1655 = vsub.f32 %v1504, %v1609
    %v1656 = vsub.f32 %v1507, %v1612
    %v1657 = vsub.f32 %v1512, %v1615
    %v1658 = vsub.f32 %v1515, %v1618
    %v1659 = vsub.f32 %v1520, %v1621
    %v1660 = vsub.f32 %v1523, %v1624
    %v1661 = vsub.f32 %v1528, %v1627
    %v1662 = vsub.f32 %v1531, %v1630
    %v1663 = vmul.f32 %v1631, 1.442695
    %v1664 = vpow.pop %v1663
    %v1665 = vmul.f32 %v1632, 1.442695
    %v1666 = vpow.pop %v1665
    %v1667 = vmul.f32 %v1633, 1.442695
    %v1668 = vpow.pop %v1667
    %v1669 = vmul.f32 %v1634, 1.442695
    %v1670 = vpow.pop %v1669
    %v1671 = vmul.f32 %v1635, 1.442695
    %v1672 = vpow.pop %v1671
    %v1673 = vmul.f32 %v1636, 1.442695
    %v1674 = vpow.pop %v1673
    %v1675 = vmul.f32 %v1637, 1.442695
    %v1676 = vpow.pop %v1675
    %v1677 = vmul.f32 %v1638, 1.442695
    %v1678 = vpow.pop %v1677
    %v1679 = vmul.f32 %v1639, 1.442695
    %v1680 = vpow.pop %v1679
    %v1681 = vmul.f32 %v1640, 1.442695
    %v1682 = vpow.pop %v1681
    %v1683 = vmul.f32 %v1641, 1.442695
    %v1684 = vpow.pop %v1683
    %v1685 = vmul.f32 %v1642, 1.442695
    %v1686 = vpow.pop %v1685
    %v1687 = vmul.f32 %v1643, 1.442695
    %v1688 = vpow.pop %v1687
    %v1689 = vmul.f32 %v1644, 1.442695
    %v1690 = vpow.pop %v1689
    %v1691 = vmul.f32 %v1645, 1.442695
    %v1692 = vpow.pop %v1691
    %v1693 = vmul.f32 %v1646, 1.442695
    %v1694 = vpow.pop %v1693
    %v1695 = vmul.f32 %v1647, 1.442695
    %v1696 = vpow.pop %v1695
    %v1697 = vmul.f32 %v1648, 1.442695
    %v1698 = vpow.pop %v1697
    %v1699 = vmul.f32 %v1649, 1.442695
    %v1700 = vpow.pop %v1699
    %v1701 = vmul.f32 %v1650, 1.442695
    %v1702 = vpow.pop %v1701
    %v1703 = vmul.f32 %v1651, 1.442695
    %v1704 = vpow.pop %v1703
    %v1705 = vmul.f32 %v1652, 1.442695
    %v1706 = vpow.pop %v1705
    %v1707 = vmul.f32 %v1653, 1.442695
    %v1708 = vpow.pop %v1707
    %v1709 = vmul.f32 %v1654, 1.442695
    %v1710 = vpow.pop %v1709
    %v1711 = vmul.f32 %v1655, 1.442695
    %v1712 = vpow.pop %v1711
    %v1713 = vmul.f32 %v1656, 1.442695
    %v1714 = vpow.pop %v1713
    %v1715 = vmul.f32 %v1657, 1.442695
    %v1716 = vpow.pop %v1715
    %v1717 = vmul.f32 %v1658, 1.442695
    %v1718 = vpow.pop %v1717
    %v1719 = vmul.f32 %v1659, 1.442695
    %v1720 = vpow.pop %v1719
    %v1721 = vmul.f32 %v1660, 1.442695
    %v1722 = vpow.pop %v1721
    %v1723 = vmul.f32 %v1661, 1.442695
    %v1724 = vpow.pop %v1723
    %v1725 = vmul.f32 %v1662, 1.442695
    %v1726 = vpow.pop %v1725
    %v1727 = vsel %vm1534, %v1664, 0.0
    %1728 = vadd.xlane.f32.xlu0 %v1727
    %v1729 = vpop.xlane.xlu0 %1728
    %v1730 = vsel %vm1534, %v1666, 0.0
    %1731 = vadd.xlane.f32.xlu0 %v1730
    %v1732 = vpop.xlane.xlu0 %1731
    %v1733 = vsel %vm1534, %v1668, 0.0
    %1734 = vadd.xlane.f32.xlu0 %v1733
    %v1735 = vpop.xlane.xlu0 %1734
    %v1736 = vsel %vm1534, %v1670, 0.0
    %1737 = vadd.xlane.f32.xlu0 %v1736
    %v1738 = vpop.xlane.xlu0 %1737
    %v1739 = vsel %vm1534, %v1672, 0.0
    %1740 = vadd.xlane.f32.xlu0 %v1739
    %v1741 = vpop.xlane.xlu0 %1740
    %v1742 = vsel %vm1534, %v1674, 0.0
    %1743 = vadd.xlane.f32.xlu0 %v1742
    %v1744 = vpop.xlane.xlu0 %1743
    %v1745 = vsel %vm1534, %v1676, 0.0
    %1746 = vadd.xlane.f32.xlu0 %v1745
    %v1747 = vpop.xlane.xlu0 %1746
    %v1748 = vsel %vm1534, %v1678, 0.0
    %1749 = vadd.xlane.f32.xlu0 %v1748
    %v1750 = vpop.xlane.xlu0 %1749
    %v1751 = vsel %vm1534, %v1680, 0.0
    %1752 = vadd.xlane.f32.xlu0 %v1751
    %v1753 = vpop.xlane.xlu0 %1752
    %v1754 = vsel %vm1534, %v1682, 0.0
    %1755 = vadd.xlane.f32.xlu0 %v1754
    %v1756 = vpop.xlane.xlu0 %1755
    %v1757 = vsel %vm1534, %v1684, 0.0
    %1758 = vadd.xlane.f32.xlu0 %v1757
    %v1759 = vpop.xlane.xlu0 %1758
    %v1760 = vsel %vm1534, %v1686, 0.0
    %1761 = vadd.xlane.f32.xlu0 %v1760
    %v1762 = vpop.xlane.xlu0 %1761
    %v1763 = vsel %vm1534, %v1688, 0.0
    %1764 = vadd.xlane.f32.xlu0 %v1763
    %v1765 = vpop.xlane.xlu0 %1764
    %v1766 = vsel %vm1534, %v1690, 0.0
    %1767 = vadd.xlane.f32.xlu0 %v1766
    %v1768 = vpop.xlane.xlu0 %1767
    %v1769 = vsel %vm1534, %v1692, 0.0
    %1770 = vadd.xlane.f32.xlu0 %v1769
    %v1771 = vpop.xlane.xlu0 %1770
    %v1772 = vsel %vm1534, %v1694, 0.0
    %1773 = vadd.xlane.f32.xlu0 %v1772
    %v1774 = vpop.xlane.xlu0 %1773
    %v1775 = vsel %vm1534, %v1696, 0.0
    %1776 = vadd.xlane.f32.xlu0 %v1775
    %v1777 = vpop.xlane.xlu0 %1776
    %v1778 = vsel %vm1534, %v1698, 0.0
    %1779 = vadd.xlane.f32.xlu0 %v1778
    %v1780 = vpop.xlane.xlu0 %1779
    %v1781 = vsel %vm1534, %v1700, 0.0
    %1782 = vadd.xlane.f32.xlu0 %v1781
    %v1783 = vpop.xlane.xlu0 %1782
    %v1784 = vsel %vm1534, %v1702, 0.0
    %1785 = vadd.xlane.f32.xlu0 %v1784
    %v1786 = vpop.xlane.xlu0 %1785
    %v1787 = vsel %vm1534, %v1704, 0.0
    %1788 = vadd.xlane.f32.xlu0 %v1787
    %v1789 = vpop.xlane.xlu0 %1788
    %v1790 = vsel %vm1534, %v1706, 0.0
    %1791 = vadd.xlane.f32.xlu0 %v1790
    %v1792 = vpop.xlane.xlu0 %1791
    %v1793 = vsel %vm1534, %v1708, 0.0
    %1794 = vadd.xlane.f32.xlu0 %v1793
    %v1795 = vpop.xlane.xlu0 %1794
    %v1796 = vsel %vm1534, %v1710, 0.0
    %1797 = vadd.xlane.f32.xlu0 %v1796
    %v1798 = vpop.xlane.xlu0 %1797
    %v1799 = vsel %vm1534, %v1712, 0.0
    %1800 = vadd.xlane.f32.xlu0 %v1799
    %v1801 = vpop.xlane.xlu0 %1800
    %v1802 = vsel %vm1534, %v1714, 0.0
    %1803 = vadd.xlane.f32.xlu0 %v1802
    %v1804 = vpop.xlane.xlu0 %1803
    %v1805 = vsel %vm1534, %v1716, 0.0
    %1806 = vadd.xlane.f32.xlu0 %v1805
    %v1807 = vpop.xlane.xlu0 %1806
    %v1808 = vsel %vm1534, %v1718, 0.0
    %1809 = vadd.xlane.f32.xlu0 %v1808
    %v1810 = vpop.xlane.xlu0 %1809
    %v1811 = vsel %vm1534, %v1720, 0.0
    %1812 = vadd.xlane.f32.xlu0 %v1811
    %v1813 = vpop.xlane.xlu0 %1812
    %v1814 = vsel %vm1534, %v1722, 0.0
    %1815 = vadd.xlane.f32.xlu0 %v1814
    %v1816 = vpop.xlane.xlu0 %1815
    %v1817 = vsel %vm1534, %v1724, 0.0
    %1818 = vadd.xlane.f32.xlu0 %v1817
    %v1819 = vpop.xlane.xlu0 %1818
    %v1820 = vsel %vm1534, %v1726, 0.0
    %1821 = vadd.xlane.f32.xlu0 %v1820
    %v1822 = vpop.xlane.xlu0 %1821
    %v1823 = vrcp.pop %v1729
    %v1824 = vrcp.pop %v1732
    %v1825 = vrcp.pop %v1735
    %v1826 = vrcp.pop %v1738
    %v1827 = vrcp.pop %v1741
    %v1828 = vrcp.pop %v1744
    %v1829 = vrcp.pop %v1747
    %v1830 = vrcp.pop %v1750
    %v1831 = vrcp.pop %v1753
    %v1832 = vrcp.pop %v1756
    %v1833 = vrcp.pop %v1759
    %v1834 = vrcp.pop %v1762
    %v1835 = vrcp.pop %v1765
    %v1836 = vrcp.pop %v1768
    %v1837 = vrcp.pop %v1771
    %v1838 = vrcp.pop %v1774
    %v1839 = vrcp.pop %v1777
    %v1840 = vrcp.pop %v1780
    %v1841 = vrcp.pop %v1783
    %v1842 = vrcp.pop %v1786
    %v1843 = vrcp.pop %v1789
    %v1844 = vrcp.pop %v1792
    %v1845 = vrcp.pop %v1795
    %v1846 = vrcp.pop %v1798
    %v1847 = vrcp.pop %v1801
    %v1848 = vrcp.pop %v1804
    %v1849 = vrcp.pop %v1807
    %v1850 = vrcp.pop %v1810
    %v1851 = vrcp.pop %v1813
    %v1852 = vrcp.pop %v1816
    %v1853 = vrcp.pop %v1819
    %v1854 = vrcp.pop %v1822
    %v1855 = vmul.f32 %v1664, %v1823
    %v1856 = vmul.f32 %v1666, %v1824
    %v1857 = vmul.f32 %v1668, %v1825
    %v1858 = vmul.f32 %v1670, %v1826
    %v1859 = vmul.f32 %v1672, %v1827
    %v1860 = vmul.f32 %v1674, %v1828
    %v1861 = vmul.f32 %v1676, %v1829
    %v1862 = vmul.f32 %v1678, %v1830
    %v1863 = vmul.f32 %v1680, %v1831
    %v1864 = vmul.f32 %v1682, %v1832
    %v1865 = vmul.f32 %v1684, %v1833
    %v1866 = vmul.f32 %v1686, %v1834
    %v1867 = vmul.f32 %v1688, %v1835
    %v1868 = vmul.f32 %v1690, %v1836
    %v1869 = vmul.f32 %v1692, %v1837
    %v1870 = vmul.f32 %v1694, %v1838
    %v1871 = vmul.f32 %v1696, %v1839
    %v1872 = vmul.f32 %v1698, %v1840
    %v1873 = vmul.f32 %v1700, %v1841
    %v1874 = vmul.f32 %v1702, %v1842
    %v1875 = vmul.f32 %v1704, %v1843
    %v1876 = vmul.f32 %v1706, %v1844
    %v1877 = vmul.f32 %v1708, %v1845
    %v1878 = vmul.f32 %v1710, %v1846
    %v1879 = vmul.f32 %v1712, %v1847
    %v1880 = vmul.f32 %v1714, %v1848
    %v1881 = vmul.f32 %v1716, %v1849
    %v1882 = vmul.f32 %v1718, %v1850
    %v1883 = vmul.f32 %v1720, %v1851
    %v1884 = vmul.f32 %v1722, %v1852
    %v1885 = vmul.f32 %v1724, %v1853
    %v1886 = vmul.f32 %v1726, %v1854
    %v1887 = vpack.c.bf16 %v1856, %v1855
    %v1888 = vpack.c.bf16 %v1858, %v1857
    %v1889 = vpack.c.bf16 %v1860, %v1859
    %v1890 = vpack.c.bf16 %v1862, %v1861
    %v1891 = vpack.c.bf16 %v1864, %v1863
    %v1892 = vpack.c.bf16 %v1866, %v1865
    %v1893 = vpack.c.bf16 %v1868, %v1867
    %v1894 = vpack.c.bf16 %v1870, %v1869
    %v1895 = vpack.c.bf16 %v1872, %v1871
    %v1896 = vpack.c.bf16 %v1874, %v1873
    %v1897 = vpack.c.bf16 %v1876, %v1875
    %v1898 = vpack.c.bf16 %v1878, %v1877
    %v1899 = vpack.c.bf16 %v1880, %v1879
    %v1900 = vpack.c.bf16 %v1882, %v1881
    %v1901 = vpack.c.bf16 %v1884, %v1883
    %v1902 = vpack.c.bf16 %v1886, %v1885
    %v1904 = vsel %vm1534, %v1887, 0
    %v1907 = vsel %vm1534, %v1888, 0
    %v1910 = vsel %vm1534, %v1889, 0
    %v1913 = vsel %vm1534, %v1890, 0
    %1915 = vmatprep.subr.bf16.mxu0 0
    %1916 = vmatpush1.bf16.msra.mxu0 0
    %1917 = vmatprep.subr.bf16.mxu0 0
    %1918 = vmatpush1.bf16.msra.mxu0 0
    %1919 = vmatprep.subr.bf16.mxu0 0
    %1920 = vmatpush1.bf16.msra.mxu0 0
    %1921 = vmatprep.subr.bf16.mxu0 0
    %1922 = vmatpush1.bf16.msra.mxu0 0
    %1923 = vmatprep.subr.bf16.mxu0 0
    %1924 = vmatpush1.bf16.msra.mxu0 %v1156
    %1925 = vmatprep.subr.bf16.mxu0 0
    %1926 = vmatpush1.bf16.msra.mxu0 %v1155
    %1927 = vmatprep.subr.bf16.mxu0 0
    %1928 = vmatpush1.bf16.msra.mxu0 %v1154
    %1929 = vmatprep.subr.bf16.mxu0 0
    %1930 = vmatpush1.bf16.msra.mxu0 %v1153
    %1931 = vmatprep.subr.bf16.mxu0 0
    %1932 = vmatpush2.bf16.msra.mxu0 0
    %1933 = vmatprep.subr.bf16.mxu0 0
    %1934 = vmatpush2.bf16.msra.mxu0 0
    %1935 = vmatprep.subr.bf16.mxu0 0
    %1936 = vmatpush2.bf16.msra.mxu0 0
    %1937 = vmatprep.subr.bf16.mxu0 0
    %1938 = vmatpush2.bf16.msra.mxu0 0
    %1939 = vmatprep.subr.bf16.mxu0 0
    %1940 = vmatpush2.bf16.msra.mxu0 0
    %1941 = vmatprep.subr.bf16.mxu0 0
    %1942 = vmatpush2.bf16.msra.mxu0 0
    %1943 = vmatprep.subr.bf16.mxu0 0
    %1944 = vmatpush2.bf16.msra.mxu0 0
    %1945 = vmatprep.subr.bf16.mxu0 0
    %1946 = vmatpush2.bf16.msra.mxu0 0
    %1947 = vmatprep.mubr.bf16.mxu0 0
    %1948 = vmatmul.mubr.bf16.gmra.mxu0 %v1904
    %v1949 = vpop.f32.mrf.mxu0
    %v1950 = vadd.f32 0.0, %v1949
    %v1951 = vpop.f32.mrf.mxu0
    %v1952 = vpop.f32.mrf.mxu0
    %v1953 = vadd.f32 0.0, %v1952
    %v1954 = vpop.f32.mrf.mxu0
    %1955 = vmatprep.mubr.bf16.mxu0 0
    %1956 = vmatmul.mubr.bf16.gmra.mxu0 %v1907
    %v1957 = vpop.f32.mrf.mxu0
    %v1958 = vadd.f32 0.0, %v1957
    %v1959 = vpop.f32.mrf.mxu0
    %v1960 = vpop.f32.mrf.mxu0
    %v1961 = vadd.f32 0.0, %v1960
    %v1962 = vpop.f32.mrf.mxu0
    %1963 = vmatprep.mubr.bf16.mxu0 0
    %1964 = vmatmul.mubr.bf16.gmra.mxu0 %v1910
    %v1965 = vpop.f32.mrf.mxu0
    %v1966 = vadd.f32 0.0, %v1965
    %v1967 = vpop.f32.mrf.mxu0
    %v1968 = vpop.f32.mrf.mxu0
    %v1969 = vadd.f32 0.0, %v1968
    %v1970 = vpop.f32.mrf.mxu0
    %1971 = vmatprep.mubr.bf16.mxu0 0
    %1972 = vmatmul.mubr.bf16.gmra.mxu0 %v1913
    %v1973 = vpop.f32.mrf.mxu0
    %v1974 = vadd.f32 0.0, %v1973
    %v1975 = vpop.f32.mrf.mxu0
    %v1976 = vpop.f32.mrf.mxu0
    %v1977 = vadd.f32 0.0, %v1976
    %v1978 = vpop.f32.mrf.mxu0
    %1979 = vdwg.mxu0
    %v1981 = vsel %vm1534, %v1891, 0
    %v1984 = vsel %vm1534, %v1892, 0
    %v1987 = vsel %vm1534, %v1893, 0
    %v1990 = vsel %vm1534, %v1894, 0
    %1992 = vmatprep.subr.bf16.mxu0 0
    %1993 = vmatpush1.bf16.msra.mxu0 0
    %1994 = vmatprep.subr.bf16.mxu0 0
    %1995 = vmatpush1.bf16.msra.mxu0 0
    %1996 = vmatprep.subr.bf16.mxu0 0
    %1997 = vmatpush1.bf16.msra.mxu0 0
    %1998 = vmatprep.subr.bf16.mxu0 0
    %1999 = vmatpush1.bf16.msra.mxu0 0
    %2000 = vmatprep.subr.bf16.mxu0 0
    %2001 = vmatpush1.bf16.msra.mxu0 %v1160
    %2002 = vmatprep.subr.bf16.mxu0 0
    %2003 = vmatpush1.bf16.msra.mxu0 %v1159
    %2004 = vmatprep.subr.bf16.mxu0 0
    %2005 = vmatpush1.bf16.msra.mxu0 %v1158
    %2006 = vmatprep.subr.bf16.mxu0 0
    %2007 = vmatpush1.bf16.msra.mxu0 %v1157
    %2008 = vmatprep.subr.bf16.mxu0 0
    %2009 = vmatpush2.bf16.msra.mxu0 0
    %2010 = vmatprep.subr.bf16.mxu0 0
    %2011 = vmatpush2.bf16.msra.mxu0 0
    %2012 = vmatprep.subr.bf16.mxu0 0
    %2013 = vmatpush2.bf16.msra.mxu0 0
    %2014 = vmatprep.subr.bf16.mxu0 0
    %2015 = vmatpush2.bf16.msra.mxu0 0
    %2016 = vmatprep.subr.bf16.mxu0 0
    %2017 = vmatpush2.bf16.msra.mxu0 0
    %2018 = vmatprep.subr.bf16.mxu0 0
    %2019 = vmatpush2.bf16.msra.mxu0 0
    %2020 = vmatprep.subr.bf16.mxu0 0
    %2021 = vmatpush2.bf16.msra.mxu0 0
    %2022 = vmatprep.subr.bf16.mxu0 0
    %2023 = vmatpush2.bf16.msra.mxu0 0
    %2024 = vmatprep.mubr.bf16.mxu0 0
    %2025 = vmatmul.mubr.bf16.gmra.mxu0 %v1981
    %v2026 = vpop.f32.mrf.mxu0
    %v2027 = vadd.f32 0.0, %v2026
    %v2028 = vpop.f32.mrf.mxu0
    %v2029 = vpop.f32.mrf.mxu0
    %v2030 = vadd.f32 0.0, %v2029
    %v2031 = vpop.f32.mrf.mxu0
    %2032 = vmatprep.mubr.bf16.mxu0 0
    %2033 = vmatmul.mubr.bf16.gmra.mxu0 %v1984
    %v2034 = vpop.f32.mrf.mxu0
    %v2035 = vadd.f32 0.0, %v2034
    %v2036 = vpop.f32.mrf.mxu0
    %v2037 = vpop.f32.mrf.mxu0
    %v2038 = vadd.f32 0.0, %v2037
    %v2039 = vpop.f32.mrf.mxu0
    %2040 = vmatprep.mubr.bf16.mxu0 0
    %2041 = vmatmul.mubr.bf16.gmra.mxu0 %v1987
    %v2042 = vpop.f32.mrf.mxu0
    %v2043 = vadd.f32 0.0, %v2042
    %v2044 = vpop.f32.mrf.mxu0
    %v2045 = vpop.f32.mrf.mxu0
    %v2046 = vadd.f32 0.0, %v2045
    %v2047 = vpop.f32.mrf.mxu0
    %2048 = vmatprep.mubr.bf16.mxu0 0
    %2049 = vmatmul.mubr.bf16.gmra.mxu0 %v1990
    %v2050 = vpop.f32.mrf.mxu0
    %v2051 = vadd.f32 0.0, %v2050
    %v2052 = vpop.f32.mrf.mxu0
    %v2053 = vpop.f32.mrf.mxu0
    %v2054 = vadd.f32 0.0, %v2053
    %v2055 = vpop.f32.mrf.mxu0
    %2056 = vdwg.mxu0
    %v2058 = vsel %vm1534, %v1895, 0
    %v2061 = vsel %vm1534, %v1896, 0
    %v2064 = vsel %vm1534, %v1897, 0
    %v2067 = vsel %vm1534, %v1898, 0
    %2069 = vmatprep.subr.bf16.mxu0 0
    %2070 = vmatpush1.bf16.msra.mxu0 0
    %2071 = vmatprep.subr.bf16.mxu0 0
    %2072 = vmatpush1.bf16.msra.mxu0 0
    %2073 = vmatprep.subr.bf16.mxu0 0
    %2074 = vmatpush1.bf16.msra.mxu0 0
    %2075 = vmatprep.subr.bf16.mxu0 0
    %2076 = vmatpush1.bf16.msra.mxu0 0
    %2077 = vmatprep.subr.bf16.mxu0 0
    %2078 = vmatpush1.bf16.msra.mxu0 %v1164
    %2079 = vmatprep.subr.bf16.mxu0 0
    %2080 = vmatpush1.bf16.msra.mxu0 %v1163
    %2081 = vmatprep.subr.bf16.mxu0 0
    %2082 = vmatpush1.bf16.msra.mxu0 %v1162
    %2083 = vmatprep.subr.bf16.mxu0 0
    %2084 = vmatpush1.bf16.msra.mxu0 %v1161
    %2085 = vmatprep.subr.bf16.mxu0 0
    %2086 = vmatpush2.bf16.msra.mxu0 0
    %2087 = vmatprep.subr.bf16.mxu0 0
    %2088 = vmatpush2.bf16.msra.mxu0 0
    %2089 = vmatprep.subr.bf16.mxu0 0
    %2090 = vmatpush2.bf16.msra.mxu0 0
    %2091 = vmatprep.subr.bf16.mxu0 0
    %2092 = vmatpush2.bf16.msra.mxu0 0
    %2093 = vmatprep.subr.bf16.mxu0 0
    %2094 = vmatpush2.bf16.msra.mxu0 0
    %2095 = vmatprep.subr.bf16.mxu0 0
    %2096 = vmatpush2.bf16.msra.mxu0 0
    %2097 = vmatprep.subr.bf16.mxu0 0
    %2098 = vmatpush2.bf16.msra.mxu0 0
    %2099 = vmatprep.subr.bf16.mxu0 0
    %2100 = vmatpush2.bf16.msra.mxu0 0
    %2101 = vmatprep.mubr.bf16.mxu0 0
    %2102 = vmatmul.mubr.bf16.gmra.mxu0 %v2058
    %v2103 = vpop.f32.mrf.mxu0
    %v2104 = vadd.f32 0.0, %v2103
    %v2105 = vpop.f32.mrf.mxu0
    %v2106 = vpop.f32.mrf.mxu0
    %v2107 = vadd.f32 0.0, %v2106
    %v2108 = vpop.f32.mrf.mxu0
    %2109 = vmatprep.mubr.bf16.mxu0 0
    %2110 = vmatmul.mubr.bf16.gmra.mxu0 %v2061
    %v2111 = vpop.f32.mrf.mxu0
    %v2112 = vadd.f32 0.0, %v2111
    %v2113 = vpop.f32.mrf.mxu0
    %v2114 = vpop.f32.mrf.mxu0
    %v2115 = vadd.f32 0.0, %v2114
    %v2116 = vpop.f32.mrf.mxu0
    %2117 = vmatprep.mubr.bf16.mxu0 0
    %2118 = vmatmul.mubr.bf16.gmra.mxu0 %v2064
    %v2119 = vpop.f32.mrf.mxu0
    %v2120 = vadd.f32 0.0, %v2119
    %v2121 = vpop.f32.mrf.mxu0
    %v2122 = vpop.f32.mrf.mxu0
    %v2123 = vadd.f32 0.0, %v2122
    %v2124 = vpop.f32.mrf.mxu0
    %2125 = vmatprep.mubr.bf16.mxu0 0
    %2126 = vmatmul.mubr.bf16.gmra.mxu0 %v2067
    %v2127 = vpop.f32.mrf.mxu0
    %v2128 = vadd.f32 0.0, %v2127
    %v2129 = vpop.f32.mrf.mxu0
    %v2130 = vpop.f32.mrf.mxu0
    %v2131 = vadd.f32 0.0, %v2130
    %v2132 = vpop.f32.mrf.mxu0
    %2133 = vdwg.mxu0
    %v2135 = vsel %vm1534, %v1899, 0
    %v2138 = vsel %vm1534, %v1900, 0
    %v2141 = vsel %vm1534, %v1901, 0
    %v2144 = vsel %vm1534, %v1902, 0
    %2146 = vmatprep.subr.bf16.mxu0 0
    %2147 = vmatpush1.bf16.msra.mxu0 0
    %2148 = vmatprep.subr.bf16.mxu0 0
    %2149 = vmatpush1.bf16.msra.mxu0 0
    %2150 = vmatprep.subr.bf16.mxu0 0
    %2151 = vmatpush1.bf16.msra.mxu0 0
    %2152 = vmatprep.subr.bf16.mxu0 0
    %2153 = vmatpush1.bf16.msra.mxu0 0
    %2154 = vmatprep.subr.bf16.mxu0 0
    %2155 = vmatpush1.bf16.msra.mxu0 %v1168
    %2156 = vmatprep.subr.bf16.mxu0 0
    %2157 = vmatpush1.bf16.msra.mxu0 %v1167
    %2158 = vmatprep.subr.bf16.mxu0 0
    %2159 = vmatpush1.bf16.msra.mxu0 %v1166
    %2160 = vmatprep.subr.bf16.mxu0 0
    %2161 = vmatpush1.bf16.msra.mxu0 %v1165
    %2162 = vmatprep.subr.bf16.mxu0 0
    %2163 = vmatpush2.bf16.msra.mxu0 0
    %2164 = vmatprep.subr.bf16.mxu0 0
    %2165 = vmatpush2.bf16.msra.mxu0 0
    %2166 = vmatprep.subr.bf16.mxu0 0
    %2167 = vmatpush2.bf16.msra.mxu0 0
    %2168 = vmatprep.subr.bf16.mxu0 0
    %2169 = vmatpush2.bf16.msra.mxu0 0
    %2170 = vmatprep.subr.bf16.mxu0 0
    %2171 = vmatpush2.bf16.msra.mxu0 0
    %2172 = vmatprep.subr.bf16.mxu0 0
    %2173 = vmatpush2.bf16.msra.mxu0 0
    %2174 = vmatprep.subr.bf16.mxu0 0
    %2175 = vmatpush2.bf16.msra.mxu0 0
    %2176 = vmatprep.subr.bf16.mxu0 0
    %2177 = vmatpush2.bf16.msra.mxu0 0
    %2178 = vmatprep.mubr.bf16.mxu0 0
    %2179 = vmatmul.mubr.bf16.gmra.mxu0 %v2135
    %v2180 = vpop.f32.mrf.mxu0
    %v2181 = vadd.f32 0.0, %v2180
    %v2182 = vpop.f32.mrf.mxu0
    %v2183 = vpop.f32.mrf.mxu0
    %v2184 = vadd.f32 0.0, %v2183
    %v2185 = vpop.f32.mrf.mxu0
    %2186 = vmatprep.mubr.bf16.mxu0 0
    %2187 = vmatmul.mubr.bf16.gmra.mxu0 %v2138
    %v2188 = vpop.f32.mrf.mxu0
    %v2189 = vadd.f32 0.0, %v2188
    %v2190 = vpop.f32.mrf.mxu0
    %v2191 = vpop.f32.mrf.mxu0
    %v2192 = vadd.f32 0.0, %v2191
    %v2193 = vpop.f32.mrf.mxu0
    %2194 = vmatprep.mubr.bf16.mxu0 0
    %2195 = vmatmul.mubr.bf16.gmra.mxu0 %v2141
    %v2196 = vpop.f32.mrf.mxu0
    %v2197 = vadd.f32 0.0, %v2196
    %v2198 = vpop.f32.mrf.mxu0
    %v2199 = vpop.f32.mrf.mxu0
    %v2200 = vadd.f32 0.0, %v2199
    %v2201 = vpop.f32.mrf.mxu0
    %2202 = vmatprep.mubr.bf16.mxu0 0
    %2203 = vmatmul.mubr.bf16.gmra.mxu0 %v2144
    %v2204 = vpop.f32.mrf.mxu0
    %v2205 = vadd.f32 0.0, %v2204
    %v2206 = vpop.f32.mrf.mxu0
    %v2207 = vpop.f32.mrf.mxu0
    %v2208 = vadd.f32 0.0, %v2207
    %v2209 = vpop.f32.mrf.mxu0
    %2210 = vdwg.mxu0
    %2211 = vst.msk [vmem:[#allocation2] sm:$0xff] %vm1177, %v1950
    %2212 = vst.msk [vmem:[#allocation2 + $0x8] sm:$0xff] %vm1177, %v1953
    %2213 = vst.msk [vmem:[#allocation2 + $0x10] sm:$0xff] %vm1177, %v1958
    %2214 = vst.msk [vmem:[#allocation2 + $0x18] sm:$0xff] %vm1177, %v1961
    %2215 = vst.msk [vmem:[#allocation2 + $0x20] sm:$0xff] %vm1177, %v1966
    %2216 = vst.msk [vmem:[#allocation2 + $0x28] sm:$0xff] %vm1177, %v1969
    %2217 = vst.msk [vmem:[#allocation2 + $0x30] sm:$0xff] %vm1177, %v1974
    %2218 = vst.msk [vmem:[#allocation2 + $0x38] sm:$0xff] %vm1177, %v1977
    %2219 = vst.msk [vmem:[#allocation2 + $0x40] sm:$0xff] %vm1177, %v2027
    %2220 = vst.msk [vmem:[#allocation2 + $0x48] sm:$0xff] %vm1177, %v2030
    %2221 = vst.msk [vmem:[#allocation2 + $0x50] sm:$0xff] %vm1177, %v2035
    %2222 = vst.msk [vmem:[#allocation2 + $0x58] sm:$0xff] %vm1177, %v2038
    %2223 = vst.msk [vmem:[#allocation2 + $0x60] sm:$0xff] %vm1177, %v2043
    %2224 = vst.msk [vmem:[#allocation2 + $0x68] sm:$0xff] %vm1177, %v2046
    %2225 = vst.msk [vmem:[#allocation2 + $0x70] sm:$0xff] %vm1177, %v2051
    %2226 = vst.msk [vmem:[#allocation2 + $0x78] sm:$0xff] %vm1177, %v2054
    %2227 = vst.msk [vmem:[#allocation2 + $0x80] sm:$0xff] %vm1177, %v2104
    %2228 = vst.msk [vmem:[#allocation2 + $0x88] sm:$0xff] %vm1177, %v2107
    %2229 = vst.msk [vmem:[#allocation2 + $0x90] sm:$0xff] %vm1177, %v2112
    %2230 = vst.msk [vmem:[#allocation2 + $0x98] sm:$0xff] %vm1177, %v2115
    %2231 = vst.msk [vmem:[#allocation2 + $0xa0] sm:$0xff] %vm1177, %v2120
    %2232 = vst.msk [vmem:[#allocation2 + $0xa8] sm:$0xff] %vm1177, %v2123
    %2233 = vst.msk [vmem:[#allocation2 + $0xb0] sm:$0xff] %vm1177, %v2128
    %2234 = vst.msk [vmem:[#allocation2 + $0xb8] sm:$0xff] %vm1177, %v2131
    %2235 = vst.msk [vmem:[#allocation2 + $0xc0] sm:$0xff] %vm1177, %v2181
    %2236 = vst.msk [vmem:[#allocation2 + $0xc8] sm:$0xff] %vm1177, %v2184
    %2237 = vst.msk [vmem:[#allocation2 + $0xd0] sm:$0xff] %vm1177, %v2189
    %2238 = vst.msk [vmem:[#allocation2 + $0xd8] sm:$0xff] %vm1177, %v2192
    %2239 = vst.msk [vmem:[#allocation2 + $0xe0] sm:$0xff] %vm1177, %v2197
    %2240 = vst.msk [vmem:[#allocation2 + $0xe8] sm:$0xff] %vm1177, %v2200
    %2241 = vst.msk [vmem:[#allocation2 + $0xf0] sm:$0xff] %vm1177, %v2205
    %2242 = vst.msk [vmem:[#allocation2 + $0xf8] sm:$0xff] %vm1177, %v2208
    %2247 = vrot.lane.b32.xlu0 %v1121, 96
    %v2248 = vpop.permute.xlu0 %2247
    %2249 = vrot.lane.b32.xlu0 %v1122, 96
    %v2250 = vpop.permute.xlu0 %2249
    %2251 = vrot.lane.b32.xlu0 %v1123, 96
    %v2252 = vpop.permute.xlu0 %2251
    %2253 = vrot.lane.b32.xlu0 %v1124, 96
    %v2254 = vpop.permute.xlu0 %2253
    %2259 = vrot.lane.b32.xlu0 %v1137, 96
    %v2260 = vpop.permute.xlu0 %2259
    %2261 = vrot.lane.b32.xlu0 %v1138, 96
    %v2262 = vpop.permute.xlu0 %2261
    %2263 = vrot.lane.b32.xlu0 %v1139, 96
    %v2264 = vpop.permute.xlu0 %2263
    %2265 = vrot.lane.b32.xlu0 %v1140, 96
    %v2266 = vpop.permute.xlu0 %2265
    %v2268 = vsel %vm1177, %v2248, 0
    %v2271 = vsel %vm1177, %v2250, 0
    %v2274 = vsel %vm1177, %v2252, 0
    %v2277 = vsel %vm1177, %v2254, 0
    %v2280 = vsel %vm1177, %v2260, 0
    %v2283 = vsel %vm1177, %v2262, 0
    %v2286 = vsel %vm1177, %v2264, 0
    %v2289 = vsel %vm1177, %v2266, 0
    %2291 = vmatprep.subr.bf16.mxu0 0
    %2292 = vmatpush1.bf16.xpose.msra.mxu0 0
    %2293 = vmatprep.subr.bf16.mxu0 0
    %2294 = vmatpush1.bf16.xpose.msra.mxu0 0
    %2295 = vmatprep.subr.bf16.mxu0 0
    %2296 = vmatpush1.bf16.xpose.msra.mxu0 0
    %2297 = vmatprep.subr.bf16.mxu0 0
    %2298 = vmatpush1.bf16.xpose.msra.mxu0 0
    %2299 = vmatprep.subr.bf16.mxu0 0
    %2300 = vmatpush1.bf16.xpose.msra.mxu0 %v2289
    %2301 = vmatprep.subr.bf16.mxu0 0
    %2302 = vmatpush1.bf16.xpose.msra.mxu0 %v2286
    %2303 = vmatprep.subr.bf16.mxu0 0
    %2304 = vmatpush1.bf16.xpose.msra.mxu0 %v2283
    %2305 = vmatprep.subr.bf16.mxu0 0
    %2306 = vmatpush1.bf16.xpose.msra.mxu0 %v2280
    %2307 = vmatprep.subr.bf16.mxu0 0
    %2308 = vmatpush2.bf16.xpose.msra.mxu0 0
    %2309 = vmatprep.subr.bf16.mxu0 0
    %2310 = vmatpush2.bf16.xpose.msra.mxu0 0
    %2311 = vmatprep.subr.bf16.mxu0 0
    %2312 = vmatpush2.bf16.xpose.msra.mxu0 0
    %2313 = vmatprep.subr.bf16.mxu0 0
    %2314 = vmatpush2.bf16.xpose.msra.mxu0 0
    %2315 = vmatprep.subr.bf16.mxu0 0
    %2316 = vmatpush2.bf16.xpose.msra.mxu0 0
    %2317 = vmatprep.subr.bf16.mxu0 0
    %2318 = vmatpush2.bf16.xpose.msra.mxu0 0
    %2319 = vmatprep.subr.bf16.mxu0 0
    %2320 = vmatpush2.bf16.xpose.msra.mxu0 0
    %2321 = vmatprep.subr.bf16.mxu0 0
    %2322 = vmatpush2.bf16.xpose.msra.mxu0 0
    %2323 = vmatprep.mubr.bf16.mxu0 0
    %2324 = vmatmul.mubr.bf16.gmra.mxu0 %v2268
    %v2325 = vpop.f32.mrf.mxu0
    %v2326 = vadd.f32 %v1169, %v2325
    %v2327 = vpop.f32.mrf.mxu0
    %v2328 = vpop.f32.mrf.mxu0
    %v2329 = vadd.f32 %v1170, %v2328
    %v2330 = vpop.f32.mrf.mxu0
    %2331 = vmatprep.mubr.bf16.mxu0 0
    %2332 = vmatmul.mubr.bf16.gmra.mxu0 %v2271
    %v2333 = vpop.f32.mrf.mxu0
    %v2334 = vadd.f32 %v1171, %v2333
    %v2335 = vpop.f32.mrf.mxu0
    %v2336 = vpop.f32.mrf.mxu0
    %v2337 = vadd.f32 %v1172, %v2336
    %v2338 = vpop.f32.mrf.mxu0
    %2339 = vmatprep.mubr.bf16.mxu0 0
    %2340 = vmatmul.mubr.bf16.gmra.mxu0 %v2274
    %v2341 = vpop.f32.mrf.mxu0
    %v2342 = vadd.f32 %v1173, %v2341
    %v2343 = vpop.f32.mrf.mxu0
    %v2344 = vpop.f32.mrf.mxu0
    %v2345 = vadd.f32 %v1174, %v2344
    %v2346 = vpop.f32.mrf.mxu0
    %2347 = vmatprep.mubr.bf16.mxu0 0
    %2348 = vmatmul.mubr.bf16.gmra.mxu0 %v2277
    %v2349 = vpop.f32.mrf.mxu0
    %v2350 = vadd.f32 %v1175, %v2349
    %v2351 = vpop.f32.mrf.mxu0
    %v2352 = vpop.f32.mrf.mxu0
    %v2353 = vadd.f32 %v1176, %v2352
    %v2354 = vpop.f32.mrf.mxu0
    %2355 = vdwg.mxu0
    %2360 = vrot.lane.b32.xlu0 %v1125, 96
    %v2361 = vpop.permute.xlu0 %2360
    %2362 = vrot.lane.b32.xlu0 %v1126, 96
    %v2363 = vpop.permute.xlu0 %2362
    %2364 = vrot.lane.b32.xlu0 %v1127, 96
    %v2365 = vpop.permute.xlu0 %2364
    %2366 = vrot.lane.b32.xlu0 %v1128, 96
    %v2367 = vpop.permute.xlu0 %2366
    %2372 = vrot.lane.b32.xlu0 %v1141, 96
    %v2373 = vpop.permute.xlu0 %2372
    %2374 = vrot.lane.b32.xlu0 %v1142, 96
    %v2375 = vpop.permute.xlu0 %2374
    %2376 = vrot.lane.b32.xlu0 %v1143, 96
    %v2377 = vpop.permute.xlu0 %2376
    %2378 = vrot.lane.b32.xlu0 %v1144, 96
    %v2379 = vpop.permute.xlu0 %2378
    %v2381 = vsel %vm1177, %v2361, 0
    %v2384 = vsel %vm1177, %v2363, 0
    %v2387 = vsel %vm1177, %v2365, 0
    %v2390 = vsel %vm1177, %v2367, 0
    %v2393 = vsel %vm1177, %v2373, 0
    %v2396 = vsel %vm1177, %v2375, 0
    %v2399 = vsel %vm1177, %v2377, 0
    %v2402 = vsel %vm1177, %v2379, 0
    %2404 = vmatprep.subr.bf16.mxu0 0
    %2405 = vmatpush1.bf16.xpose.msra.mxu0 0
    %2406 = vmatprep.subr.bf16.mxu0 0
    %2407 = vmatpush1.bf16.xpose.msra.mxu0 0
    %2408 = vmatprep.subr.bf16.mxu0 0
    %2409 = vmatpush1.bf16.xpose.msra.mxu0 0
    %2410 = vmatprep.subr.bf16.mxu0 0
    %2411 = vmatpush1.bf16.xpose.msra.mxu0 0
    %2412 = vmatprep.subr.bf16.mxu0 0
    %2413 = vmatpush1.bf16.xpose.msra.mxu0 %v2402
    %2414 = vmatprep.subr.bf16.mxu0 0
    %2415 = vmatpush1.bf16.xpose.msra.mxu0 %v2399
    %2416 = vmatprep.subr.bf16.mxu0 0
    %2417 = vmatpush1.bf16.xpose.msra.mxu0 %v2396
    %2418 = vmatprep.subr.bf16.mxu0 0
    %2419 = vmatpush1.bf16.xpose.msra.mxu0 %v2393
    %2420 = vmatprep.subr.bf16.mxu0 0
    %2421 = vmatpush2.bf16.xpose.msra.mxu0 0
    %2422 = vmatprep.subr.bf16.mxu0 0
    %2423 = vmatpush2.bf16.xpose.msra.mxu0 0
    %2424 = vmatprep.subr.bf16.mxu0 0
    %2425 = vmatpush2.bf16.xpose.msra.mxu0 0
    %2426 = vmatprep.subr.bf16.mxu0 0
    %2427 = vmatpush2.bf16.xpose.msra.mxu0 0
    %2428 = vmatprep.subr.bf16.mxu0 0
    %2429 = vmatpush2.bf16.xpose.msra.mxu0 0
    %2430 = vmatprep.subr.bf16.mxu0 0
    %2431 = vmatpush2.bf16.xpose.msra.mxu0 0
    %2432 = vmatprep.subr.bf16.mxu0 0
    %2433 = vmatpush2.bf16.xpose.msra.mxu0 0
    %2434 = vmatprep.subr.bf16.mxu0 0
    %2435 = vmatpush2.bf16.xpose.msra.mxu0 0
    %2436 = vmatprep.mubr.bf16.mxu0 0
    %2437 = vmatmul.mubr.bf16.gmra.mxu0 %v2381
    %v2438 = vpop.f32.mrf.mxu0
    %v2439 = vadd.f32 %v1169, %v2438
    %v2440 = vpop.f32.mrf.mxu0
    %v2441 = vpop.f32.mrf.mxu0
    %v2442 = vadd.f32 %v1170, %v2441
    %v2443 = vpop.f32.mrf.mxu0
    %2444 = vmatprep.mubr.bf16.mxu0 0
    %2445 = vmatmul.mubr.bf16.gmra.mxu0 %v2384
    %v2446 = vpop.f32.mrf.mxu0
    %v2447 = vadd.f32 %v1171, %v2446
    %v2448 = vpop.f32.mrf.mxu0
    %v2449 = vpop.f32.mrf.mxu0
    %v2450 = vadd.f32 %v1172, %v2449
    %v2451 = vpop.f32.mrf.mxu0
    %2452 = vmatprep.mubr.bf16.mxu0 0
    %2453 = vmatmul.mubr.bf16.gmra.mxu0 %v2387
    %v2454 = vpop.f32.mrf.mxu0
    %v2455 = vadd.f32 %v1173, %v2454
    %v2456 = vpop.f32.mrf.mxu0
    %v2457 = vpop.f32.mrf.mxu0
    %v2458 = vadd.f32 %v1174, %v2457
    %v2459 = vpop.f32.mrf.mxu0
    %2460 = vmatprep.mubr.bf16.mxu0 0
    %2461 = vmatmul.mubr.bf16.gmra.mxu0 %v2390
    %v2462 = vpop.f32.mrf.mxu0
    %v2463 = vadd.f32 %v1175, %v2462
    %v2464 = vpop.f32.mrf.mxu0
    %v2465 = vpop.f32.mrf.mxu0
    %v2466 = vadd.f32 %v1176, %v2465
    %v2467 = vpop.f32.mrf.mxu0
    %2468 = vdwg.mxu0
    %2473 = vrot.lane.b32.xlu0 %v1129, 96
    %v2474 = vpop.permute.xlu0 %2473
    %2475 = vrot.lane.b32.xlu0 %v1130, 96
    %v2476 = vpop.permute.xlu0 %2475
    %2477 = vrot.lane.b32.xlu0 %v1131, 96
    %v2478 = vpop.permute.xlu0 %2477
    %2479 = vrot.lane.b32.xlu0 %v1132, 96
    %v2480 = vpop.permute.xlu0 %2479
    %2485 = vrot.lane.b32.xlu0 %v1145, 96
    %v2486 = vpop.permute.xlu0 %2485
    %2487 = vrot.lane.b32.xlu0 %v1146, 96
    %v2488 = vpop.permute.xlu0 %2487
    %2489 = vrot.lane.b32.xlu0 %v1147, 96
    %v2490 = vpop.permute.xlu0 %2489
    %2491 = vrot.lane.b32.xlu0 %v1148, 96
    %v2492 = vpop.permute.xlu0 %2491
    %v2494 = vsel %vm1177, %v2474, 0
    %v2497 = vsel %vm1177, %v2476, 0
    %v2500 = vsel %vm1177, %v2478, 0
    %v2503 = vsel %vm1177, %v2480, 0
    %v2506 = vsel %vm1177, %v2486, 0
    %v2509 = vsel %vm1177, %v2488, 0
    %v2512 = vsel %vm1177, %v2490, 0
    %v2515 = vsel %vm1177, %v2492, 0
    %2517 = vmatprep.subr.bf16.mxu0 0
    %2518 = vmatpush1.bf16.xpose.msra.mxu0 0
    %2519 = vmatprep.subr.bf16.mxu0 0
    %2520 = vmatpush1.bf16.xpose.msra.mxu0 0
    %2521 = vmatprep.subr.bf16.mxu0 0
    %2522 = vmatpush1.bf16.xpose.msra.mxu0 0
    %2523 = vmatprep.subr.bf16.mxu0 0
    %2524 = vmatpush1.bf16.xpose.msra.mxu0 0
    %2525 = vmatprep.subr.bf16.mxu0 0
    %2526 = vmatpush1.bf16.xpose.msra.mxu0 %v2515
    %2527 = vmatprep.subr.bf16.mxu0 0
    %2528 = vmatpush1.bf16.xpose.msra.mxu0 %v2512
    %2529 = vmatprep.subr.bf16.mxu0 0
    %2530 = vmatpush1.bf16.xpose.msra.mxu0 %v2509
    %2531 = vmatprep.subr.bf16.mxu0 0
    %2532 = vmatpush1.bf16.xpose.msra.mxu0 %v2506
    %2533 = vmatprep.subr.bf16.mxu0 0
    %2534 = vmatpush2.bf16.xpose.msra.mxu0 0
    %2535 = vmatprep.subr.bf16.mxu0 0
    %2536 = vmatpush2.bf16.xpose.msra.mxu0 0
    %2537 = vmatprep.subr.bf16.mxu0 0
    %2538 = vmatpush2.bf16.xpose.msra.mxu0 0
    %2539 = vmatprep.subr.bf16.mxu0 0
    %2540 = vmatpush2.bf16.xpose.msra.mxu0 0
    %2541 = vmatprep.subr.bf16.mxu0 0
    %2542 = vmatpush2.bf16.xpose.msra.mxu0 0
    %2543 = vmatprep.subr.bf16.mxu0 0
    %2544 = vmatpush2.bf16.xpose.msra.mxu0 0
    %2545 = vmatprep.subr.bf16.mxu0 0
    %2546 = vmatpush2.bf16.xpose.msra.mxu0 0
    %2547 = vmatprep.subr.bf16.mxu0 0
    %2548 = vmatpush2.bf16.xpose.msra.mxu0 0
    %2549 = vmatprep.mubr.bf16.mxu0 0
    %2550 = vmatmul.mubr.bf16.gmra.mxu0 %v2494
    %v2551 = vpop.f32.mrf.mxu0
    %v2552 = vadd.f32 %v1169, %v2551
    %v2553 = vpop.f32.mrf.mxu0
    %v2554 = vpop.f32.mrf.mxu0
    %v2555 = vadd.f32 %v1170, %v2554
    %v2556 = vpop.f32.mrf.mxu0
    %2557 = vmatprep.mubr.bf16.mxu0 0
    %2558 = vmatmul.mubr.bf16.gmra.mxu0 %v2497
    %v2559 = vpop.f32.mrf.mxu0
    %v2560 = vadd.f32 %v1171, %v2559
    %v2561 = vpop.f32.mrf.mxu0
    %v2562 = vpop.f32.mrf.mxu0
    %v2563 = vadd.f32 %v1172, %v2562
    %v2564 = vpop.f32.mrf.mxu0
    %2565 = vmatprep.mubr.bf16.mxu0 0
    %2566 = vmatmul.mubr.bf16.gmra.mxu0 %v2500
    %v2567 = vpop.f32.mrf.mxu0
    %v2568 = vadd.f32 %v1173, %v2567
    %v2569 = vpop.f32.mrf.mxu0
    %v2570 = vpop.f32.mrf.mxu0
    %v2571 = vadd.f32 %v1174, %v2570
    %v2572 = vpop.f32.mrf.mxu0
    %2573 = vmatprep.mubr.bf16.mxu0 0
    %2574 = vmatmul.mubr.bf16.gmra.mxu0 %v2503
    %v2575 = vpop.f32.mrf.mxu0
    %v2576 = vadd.f32 %v1175, %v2575
    %v2577 = vpop.f32.mrf.mxu0
    %v2578 = vpop.f32.mrf.mxu0
    %v2579 = vadd.f32 %v1176, %v2578
    %v2580 = vpop.f32.mrf.mxu0
    %2581 = vdwg.mxu0
    %2586 = vrot.lane.b32.xlu0 %v1133, 96
    %v2587 = vpop.permute.xlu0 %2586
    %2588 = vrot.lane.b32.xlu0 %v1134, 96
    %v2589 = vpop.permute.xlu0 %2588
    %2590 = vrot.lane.b32.xlu0 %v1135, 96
    %v2591 = vpop.permute.xlu0 %2590
    %2592 = vrot.lane.b32.xlu0 %v1136, 96
    %v2593 = vpop.permute.xlu0 %2592
    %2598 = vrot.lane.b32.xlu0 %v1149, 96
    %v2599 = vpop.permute.xlu0 %2598
    %2600 = vrot.lane.b32.xlu0 %v1150, 96
    %v2601 = vpop.permute.xlu0 %2600
    %2602 = vrot.lane.b32.xlu0 %v1151, 96
    %v2603 = vpop.permute.xlu0 %2602
    %2604 = vrot.lane.b32.xlu0 %v1152, 96
    %v2605 = vpop.permute.xlu0 %2604
    %v2607 = vsel %vm1177, %v2587, 0
    %v2610 = vsel %vm1177, %v2589, 0
    %v2613 = vsel %vm1177, %v2591, 0
    %v2616 = vsel %vm1177, %v2593, 0
    %v2619 = vsel %vm1177, %v2599, 0
    %v2622 = vsel %vm1177, %v2601, 0
    %v2625 = vsel %vm1177, %v2603, 0
    %v2628 = vsel %vm1177, %v2605, 0
    %2630 = vmatprep.subr.bf16.mxu0 0
    %2631 = vmatpush1.bf16.xpose.msra.mxu0 0
    %2632 = vmatprep.subr.bf16.mxu0 0
    %2633 = vmatpush1.bf16.xpose.msra.mxu0 0
    %2634 = vmatprep.subr.bf16.mxu0 0
    %2635 = vmatpush1.bf16.xpose.msra.mxu0 0
    %2636 = vmatprep.subr.bf16.mxu0 0
    %2637 = vmatpush1.bf16.xpose.msra.mxu0 0
    %2638 = vmatprep.subr.bf16.mxu0 0
    %2639 = vmatpush1.bf16.xpose.msra.mxu0 %v2628
    %2640 = vmatprep.subr.bf16.mxu0 0
    %2641 = vmatpush1.bf16.xpose.msra.mxu0 %v2625
    %2642 = vmatprep.subr.bf16.mxu0 0
    %2643 = vmatpush1.bf16.xpose.msra.mxu0 %v2622
    %2644 = vmatprep.subr.bf16.mxu0 0
    %2645 = vmatpush1.bf16.xpose.msra.mxu0 %v2619
    %2646 = vmatprep.subr.bf16.mxu0 0
    %2647 = vmatpush2.bf16.xpose.msra.mxu0 0
    %2648 = vmatprep.subr.bf16.mxu0 0
    %2649 = vmatpush2.bf16.xpose.msra.mxu0 0
    %2650 = vmatprep.subr.bf16.mxu0 0
    %2651 = vmatpush2.bf16.xpose.msra.mxu0 0
    %2652 = vmatprep.subr.bf16.mxu0 0
    %2653 = vmatpush2.bf16.xpose.msra.mxu0 0
    %2654 = vmatprep.subr.bf16.mxu0 0
    %2655 = vmatpush2.bf16.xpose.msra.mxu0 0
    %2656 = vmatprep.subr.bf16.mxu0 0
    %2657 = vmatpush2.bf16.xpose.msra.mxu0 0
    %2658 = vmatprep.subr.bf16.mxu0 0
    %2659 = vmatpush2.bf16.xpose.msra.mxu0 0
    %2660 = vmatprep.subr.bf16.mxu0 0
    %2661 = vmatpush2.bf16.xpose.msra.mxu0 0
    %2662 = vmatprep.mubr.bf16.mxu0 0
    %2663 = vmatmul.mubr.bf16.gmra.mxu0 %v2607
    %v2664 = vpop.f32.mrf.mxu0
    %v2665 = vadd.f32 %v1169, %v2664
    %v2666 = vpop.f32.mrf.mxu0
    %v2667 = vpop.f32.mrf.mxu0
    %v2668 = vadd.f32 %v1170, %v2667
    %v2669 = vpop.f32.mrf.mxu0
    %2670 = vmatprep.mubr.bf16.mxu0 0
    %2671 = vmatmul.mubr.bf16.gmra.mxu0 %v2610
    %v2672 = vpop.f32.mrf.mxu0
    %v2673 = vadd.f32 %v1171, %v2672
    %v2674 = vpop.f32.mrf.mxu0
    %v2675 = vpop.f32.mrf.mxu0
    %v2676 = vadd.f32 %v1172, %v2675
    %v2677 = vpop.f32.mrf.mxu0
    %2678 = vmatprep.mubr.bf16.mxu0 0
    %2679 = vmatmul.mubr.bf16.gmra.mxu0 %v2613
    %v2680 = vpop.f32.mrf.mxu0
    %v2681 = vadd.f32 %v1173, %v2680
    %v2682 = vpop.f32.mrf.mxu0
    %v2683 = vpop.f32.mrf.mxu0
    %v2684 = vadd.f32 %v1174, %v2683
    %v2685 = vpop.f32.mrf.mxu0
    %2686 = vmatprep.mubr.bf16.mxu0 0
    %2687 = vmatmul.mubr.bf16.gmra.mxu0 %v2616
    %v2688 = vpop.f32.mrf.mxu0
    %v2689 = vadd.f32 %v1175, %v2688
    %v2690 = vpop.f32.mrf.mxu0
    %v2691 = vpop.f32.mrf.mxu0
    %v2692 = vadd.f32 %v1176, %v2691
    %v2693 = vpop.f32.mrf.mxu0
    %2694 = vdwg.mxu0
    %v2695 = vsel %vm1534, %v2326, -inf
    %2696 = vmax.xlane.f32.xlu0 %v2695
    %v2697 = vpop.xlane.xlu0 %2696
    %v2698 = vsel %vm1534, %v2329, -inf
    %2699 = vmax.xlane.f32.xlu0 %v2698
    %v2700 = vpop.xlane.xlu0 %2699
    %v2701 = vsel %vm1534, %v2334, -inf
    %2702 = vmax.xlane.f32.xlu0 %v2701
    %v2703 = vpop.xlane.xlu0 %2702
    %v2704 = vsel %vm1534, %v2337, -inf
    %2705 = vmax.xlane.f32.xlu0 %v2704
    %v2706 = vpop.xlane.xlu0 %2705
    %v2707 = vsel %vm1534, %v2342, -inf
    %2708 = vmax.xlane.f32.xlu0 %v2707
    %v2709 = vpop.xlane.xlu0 %2708
    %v2710 = vsel %vm1534, %v2345, -inf
    %2711 = vmax.xlane.f32.xlu0 %v2710
    %v2712 = vpop.xlane.xlu0 %2711
    %v2713 = vsel %vm1534, %v2350, -inf
    %2714 = vmax.xlane.f32.xlu0 %v2713
    %v2715 = vpop.xlane.xlu0 %2714
    %v2716 = vsel %vm1534, %v2353, -inf
    %2717 = vmax.xlane.f32.xlu0 %v2716
    %v2718 = vpop.xlane.xlu0 %2717
    %v2719 = vsel %vm1534, %v2439, -inf
    %2720 = vmax.xlane.f32.xlu0 %v2719
    %v2721 = vpop.xlane.xlu0 %2720
    %v2722 = vsel %vm1534, %v2442, -inf
    %2723 = vmax.xlane.f32.xlu0 %v2722
    %v2724 = vpop.xlane.xlu0 %2723
    %v2725 = vsel %vm1534, %v2447, -inf
    %2726 = vmax.xlane.f32.xlu0 %v2725
    %v2727 = vpop.xlane.xlu0 %2726
    %v2728 = vsel %vm1534, %v2450, -inf
    %2729 = vmax.xlane.f32.xlu0 %v2728
    %v2730 = vpop.xlane.xlu0 %2729
    %v2731 = vsel %vm1534, %v2455, -inf
    %2732 = vmax.xlane.f32.xlu0 %v2731
    %v2733 = vpop.xlane.xlu0 %2732
    %v2734 = vsel %vm1534, %v2458, -inf
    %2735 = vmax.xlane.f32.xlu0 %v2734
    %v2736 = vpop.xlane.xlu0 %2735
    %v2737 = vsel %vm1534, %v2463, -inf
    %2738 = vmax.xlane.f32.xlu0 %v2737
    %v2739 = vpop.xlane.xlu0 %2738
    %v2740 = vsel %vm1534, %v2466, -inf
    %2741 = vmax.xlane.f32.xlu0 %v2740
    %v2742 = vpop.xlane.xlu0 %2741
    %v2743 = vsel %vm1534, %v2552, -inf
    %2744 = vmax.xlane.f32.xlu0 %v2743
    %v2745 = vpop.xlane.xlu0 %2744
    %v2746 = vsel %vm1534, %v2555, -inf
    %2747 = vmax.xlane.f32.xlu0 %v2746
    %v2748 = vpop.xlane.xlu0 %2747
    %v2749 = vsel %vm1534, %v2560, -inf
    %2750 = vmax.xlane.f32.xlu0 %v2749
    %v2751 = vpop.xlane.xlu0 %2750
    %v2752 = vsel %vm1534, %v2563, -inf
    %2753 = vmax.xlane.f32.xlu0 %v2752
    %v2754 = vpop.xlane.xlu0 %2753
    %v2755 = vsel %vm1534, %v2568, -inf
    %2756 = vmax.xlane.f32.xlu0 %v2755
    %v2757 = vpop.xlane.xlu0 %2756
    %v2758 = vsel %vm1534, %v2571, -inf
    %2759 = vmax.xlane.f32.xlu0 %v2758
    %v2760 = vpop.xlane.xlu0 %2759
    %v2761 = vsel %vm1534, %v2576, -inf
    %2762 = vmax.xlane.f32.xlu0 %v2761
    %v2763 = vpop.xlane.xlu0 %2762
    %v2764 = vsel %vm1534, %v2579, -inf
    %2765 = vmax.xlane.f32.xlu0 %v2764
    %v2766 = vpop.xlane.xlu0 %2765
    %v2767 = vsel %vm1534, %v2665, -inf
    %2768 = vmax.xlane.f32.xlu0 %v2767
    %v2769 = vpop.xlane.xlu0 %2768
    %v2770 = vsel %vm1534, %v2668, -inf
    %2771 = vmax.xlane.f32.xlu0 %v2770
    %v2772 = vpop.xlane.xlu0 %2771
    %v2773 = vsel %vm1534, %v2673, -inf
    %2774 = vmax.xlane.f32.xlu0 %v2773
    %v2775 = vpop.xlane.xlu0 %2774
    %v2776 = vsel %vm1534, %v2676, -inf
    %2777 = vmax.xlane.f32.xlu0 %v2776
    %v2778 = vpop.xlane.xlu0 %2777
    %v2779 = vsel %vm1534, %v2681, -inf
    %2780 = vmax.xlane.f32.xlu0 %v2779
    %v2781 = vpop.xlane.xlu0 %2780
    %v2782 = vsel %vm1534, %v2684, -inf
    %2783 = vmax.xlane.f32.xlu0 %v2782
    %v2784 = vpop.xlane.xlu0 %2783
    %v2785 = vsel %vm1534, %v2689, -inf
    %2786 = vmax.xlane.f32.xlu0 %v2785
    %v2787 = vpop.xlane.xlu0 %2786
    %v2788 = vsel %vm1534, %v2692, -inf
    %2789 = vmax.xlane.f32.xlu0 %v2788
    %v2790 = vpop.xlane.xlu0 %2789
    %v2791 = vsub.f32 %v2326, %v2697
    %v2792 = vsub.f32 %v2329, %v2700
    %v2793 = vsub.f32 %v2334, %v2703
    %v2794 = vsub.f32 %v2337, %v2706
    %v2795 = vsub.f32 %v2342, %v2709
    %v2796 = vsub.f32 %v2345, %v2712
    %v2797 = vsub.f32 %v2350, %v2715
    %v2798 = vsub.f32 %v2353, %v2718
    %v2799 = vsub.f32 %v2439, %v2721
    %v2800 = vsub.f32 %v2442, %v2724
    %v2801 = vsub.f32 %v2447, %v2727
    %v2802 = vsub.f32 %v2450, %v2730
    %v2803 = vsub.f32 %v2455, %v2733
    %v2804 = vsub.f32 %v2458, %v2736
    %v2805 = vsub.f32 %v2463, %v2739
    %v2806 = vsub.f32 %v2466, %v2742
    %v2807 = vsub.f32 %v2552, %v2745
    %v2808 = vsub.f32 %v2555, %v2748
    %v2809 = vsub.f32 %v2560, %v2751
    %v2810 = vsub.f32 %v2563, %v2754
    %v2811 = vsub.f32 %v2568, %v2757
    %v2812 = vsub.f32 %v2571, %v2760
    %v2813 = vsub.f32 %v2576, %v2763
    %v2814 = vsub.f32 %v2579, %v2766
    %v2815 = vsub.f32 %v2665, %v2769
    %v2816 = vsub.f32 %v2668, %v2772
    %v2817 = vsub.f32 %v2673, %v2775
    %v2818 = vsub.f32 %v2676, %v2778
    %v2819 = vsub.f32 %v2681, %v2781
    %v2820 = vsub.f32 %v2684, %v2784
    %v2821 = vsub.f32 %v2689, %v2787
    %v2822 = vsub.f32 %v2692, %v2790
    %v2823 = vmul.f32 %v2791, 1.442695
    %v2824 = vpow.pop %v2823
    %v2825 = vmul.f32 %v2792, 1.442695
    %v2826 = vpow.pop %v2825
    %v2827 = vmul.f32 %v2793, 1.442695
    %v2828 = vpow.pop %v2827
    %v2829 = vmul.f32 %v2794, 1.442695
    %v2830 = vpow.pop %v2829
    %v2831 = vmul.f32 %v2795, 1.442695
    %v2832 = vpow.pop %v2831
    %v2833 = vmul.f32 %v2796, 1.442695
    %v2834 = vpow.pop %v2833
    %v2835 = vmul.f32 %v2797, 1.442695
    %v2836 = vpow.pop %v2835
    %v2837 = vmul.f32 %v2798, 1.442695
    %v2838 = vpow.pop %v2837
    %v2839 = vmul.f32 %v2799, 1.442695
    %v2840 = vpow.pop %v2839
    %v2841 = vmul.f32 %v2800, 1.442695
    %v2842 = vpow.pop %v2841
    %v2843 = vmul.f32 %v2801, 1.442695
    %v2844 = vpow.pop %v2843
    %v2845 = vmul.f32 %v2802, 1.442695
    %v2846 = vpow.pop %v2845
    %v2847 = vmul.f32 %v2803, 1.442695
    %v2848 = vpow.pop %v2847
    %v2849 = vmul.f32 %v2804, 1.442695
    %v2850 = vpow.pop %v2849
    %v2851 = vmul.f32 %v2805, 1.442695
    %v2852 = vpow.pop %v2851
    %v2853 = vmul.f32 %v2806, 1.442695
    %v2854 = vpow.pop %v2853
    %v2855 = vmul.f32 %v2807, 1.442695
    %v2856 = vpow.pop %v2855
    %v2857 = vmul.f32 %v2808, 1.442695
    %v2858 = vpow.pop %v2857
    %v2859 = vmul.f32 %v2809, 1.442695
    %v2860 = vpow.pop %v2859
    %v2861 = vmul.f32 %v2810, 1.442695
    %v2862 = vpow.pop %v2861
    %v2863 = vmul.f32 %v2811, 1.442695
    %v2864 = vpow.pop %v2863
    %v2865 = vmul.f32 %v2812, 1.442695
    %v2866 = vpow.pop %v2865
    %v2867 = vmul.f32 %v2813, 1.442695
    %v2868 = vpow.pop %v2867
    %v2869 = vmul.f32 %v2814, 1.442695
    %v2870 = vpow.pop %v2869
    %v2871 = vmul.f32 %v2815, 1.442695
    %v2872 = vpow.pop %v2871
    %v2873 = vmul.f32 %v2816, 1.442695
    %v2874 = vpow.pop %v2873
    %v2875 = vmul.f32 %v2817, 1.442695
    %v2876 = vpow.pop %v2875
    %v2877 = vmul.f32 %v2818, 1.442695
    %v2878 = vpow.pop %v2877
    %v2879 = vmul.f32 %v2819, 1.442695
    %v2880 = vpow.pop %v2879
    %v2881 = vmul.f32 %v2820, 1.442695
    %v2882 = vpow.pop %v2881
    %v2883 = vmul.f32 %v2821, 1.442695
    %v2884 = vpow.pop %v2883
    %v2885 = vmul.f32 %v2822, 1.442695
    %v2886 = vpow.pop %v2885
    %v2887 = vsel %vm1534, %v2824, 0.0
    %2888 = vadd.xlane.f32.xlu0 %v2887
    %v2889 = vpop.xlane.xlu0 %2888
    %v2890 = vsel %vm1534, %v2826, 0.0
    %2891 = vadd.xlane.f32.xlu0 %v2890
    %v2892 = vpop.xlane.xlu0 %2891
    %v2893 = vsel %vm1534, %v2828, 0.0
    %2894 = vadd.xlane.f32.xlu0 %v2893
    %v2895 = vpop.xlane.xlu0 %2894
    %v2896 = vsel %vm1534, %v2830, 0.0
    %2897 = vadd.xlane.f32.xlu0 %v2896
    %v2898 = vpop.xlane.xlu0 %2897
    %v2899 = vsel %vm1534, %v2832, 0.0
    %2900 = vadd.xlane.f32.xlu0 %v2899
    %v2901 = vpop.xlane.xlu0 %2900
    %v2902 = vsel %vm1534, %v2834, 0.0
    %2903 = vadd.xlane.f32.xlu0 %v2902
    %v2904 = vpop.xlane.xlu0 %2903
    %v2905 = vsel %vm1534, %v2836, 0.0
    %2906 = vadd.xlane.f32.xlu0 %v2905
    %v2907 = vpop.xlane.xlu0 %2906
    %v2908 = vsel %vm1534, %v2838, 0.0
    %2909 = vadd.xlane.f32.xlu0 %v2908
    %v2910 = vpop.xlane.xlu0 %2909
    %v2911 = vsel %vm1534, %v2840, 0.0
    %2912 = vadd.xlane.f32.xlu0 %v2911
    %v2913 = vpop.xlane.xlu0 %2912
    %v2914 = vsel %vm1534, %v2842, 0.0
    %2915 = vadd.xlane.f32.xlu0 %v2914
    %v2916 = vpop.xlane.xlu0 %2915
    %v2917 = vsel %vm1534, %v2844, 0.0
    %2918 = vadd.xlane.f32.xlu0 %v2917
    %v2919 = vpop.xlane.xlu0 %2918
    %v2920 = vsel %vm1534, %v2846, 0.0
    %2921 = vadd.xlane.f32.xlu0 %v2920
    %v2922 = vpop.xlane.xlu0 %2921
    %v2923 = vsel %vm1534, %v2848, 0.0
    %2924 = vadd.xlane.f32.xlu0 %v2923
    %v2925 = vpop.xlane.xlu0 %2924
    %v2926 = vsel %vm1534, %v2850, 0.0
    %2927 = vadd.xlane.f32.xlu0 %v2926
    %v2928 = vpop.xlane.xlu0 %2927
    %v2929 = vsel %vm1534, %v2852, 0.0
    %2930 = vadd.xlane.f32.xlu0 %v2929
    %v2931 = vpop.xlane.xlu0 %2930
    %v2932 = vsel %vm1534, %v2854, 0.0
    %2933 = vadd.xlane.f32.xlu0 %v2932
    %v2934 = vpop.xlane.xlu0 %2933
    %v2935 = vsel %vm1534, %v2856, 0.0
    %2936 = vadd.xlane.f32.xlu0 %v2935
    %v2937 = vpop.xlane.xlu0 %2936
    %v2938 = vsel %vm1534, %v2858, 0.0
    %2939 = vadd.xlane.f32.xlu0 %v2938
    %v2940 = vpop.xlane.xlu0 %2939
    %v2941 = vsel %vm1534, %v2860, 0.0
    %2942 = vadd.xlane.f32.xlu0 %v2941
    %v2943 = vpop.xlane.xlu0 %2942
    %v2944 = vsel %vm1534, %v2862, 0.0
    %2945 = vadd.xlane.f32.xlu0 %v2944
    %v2946 = vpop.xlane.xlu0 %2945
    %v2947 = vsel %vm1534, %v2864, 0.0
    %2948 = vadd.xlane.f32.xlu0 %v2947
    %v2949 = vpop.xlane.xlu0 %2948
    %v2950 = vsel %vm1534, %v2866, 0.0
    %2951 = vadd.xlane.f32.xlu0 %v2950
    %v2952 = vpop.xlane.xlu0 %2951
    %v2953 = vsel %vm1534, %v2868, 0.0
    %2954 = vadd.xlane.f32.xlu0 %v2953
    %v2955 = vpop.xlane.xlu0 %2954
    %v2956 = vsel %vm1534, %v2870, 0.0
    %2957 = vadd.xlane.f32.xlu0 %v2956
    %v2958 = vpop.xlane.xlu0 %2957
    %v2959 = vsel %vm1534, %v2872, 0.0
    %2960 = vadd.xlane.f32.xlu0 %v2959
    %v2961 = vpop.xlane.xlu0 %2960
    %v2962 = vsel %vm1534, %v2874, 0.0
    %2963 = vadd.xlane.f32.xlu0 %v2962
    %v2964 = vpop.xlane.xlu0 %2963
    %v2965 = vsel %vm1534, %v2876, 0.0
    %2966 = vadd.xlane.f32.xlu0 %v2965
    %v2967 = vpop.xlane.xlu0 %2966
    %v2968 = vsel %vm1534, %v2878, 0.0
    %2969 = vadd.xlane.f32.xlu0 %v2968
    %v2970 = vpop.xlane.xlu0 %2969
    %v2971 = vsel %vm1534, %v2880, 0.0
    %2972 = vadd.xlane.f32.xlu0 %v2971
    %v2973 = vpop.xlane.xlu0 %2972
    %v2974 = vsel %vm1534, %v2882, 0.0
    %2975 = vadd.xlane.f32.xlu0 %v2974
    %v2976 = vpop.xlane.xlu0 %2975
    %v2977 = vsel %vm1534, %v2884, 0.0
    %2978 = vadd.xlane.f32.xlu0 %v2977
    %v2979 = vpop.xlane.xlu0 %2978
    %v2980 = vsel %vm1534, %v2886, 0.0
    %2981 = vadd.xlane.f32.xlu0 %v2980
    %v2982 = vpop.xlane.xlu0 %2981
    %v2983 = vrcp.pop %v2889
    %v2984 = vrcp.pop %v2892
    %v2985 = vrcp.pop %v2895
    %v2986 = vrcp.pop %v2898
    %v2987 = vrcp.pop %v2901
    %v2988 = vrcp.pop %v2904
    %v2989 = vrcp.pop %v2907
    %v2990 = vrcp.pop %v2910
    %v2991 = vrcp.pop %v2913
    %v2992 = vrcp.pop %v2916
    %v2993 = vrcp.pop %v2919
    %v2994 = vrcp.pop %v2922
    %v2995 = vrcp.pop %v2925
    %v2996 = vrcp.pop %v2928
    %v2997 = vrcp.pop %v2931
    %v2998 = vrcp.pop %v2934
    %v2999 = vrcp.pop %v2937
    %v3000 = vrcp.pop %v2940
    %v3001 = vrcp.pop %v2943
    %v3002 = vrcp.pop %v2946
    %v3003 = vrcp.pop %v2949
    %v3004 = vrcp.pop %v2952
    %v3005 = vrcp.pop %v2955
    %v3006 = vrcp.pop %v2958
    %v3007 = vrcp.pop %v2961
    %v3008 = vrcp.pop %v2964
    %v3009 = vrcp.pop %v2967
    %v3010 = vrcp.pop %v2970
    %v3011 = vrcp.pop %v2973
    %v3012 = vrcp.pop %v2976
    %v3013 = vrcp.pop %v2979
    %v3014 = vrcp.pop %v2982
    %v3015 = vmul.f32 %v2824, %v2983
    %v3016 = vmul.f32 %v2826, %v2984
    %v3017 = vmul.f32 %v2828, %v2985
    %v3018 = vmul.f32 %v2830, %v2986
    %v3019 = vmul.f32 %v2832, %v2987
    %v3020 = vmul.f32 %v2834, %v2988
    %v3021 = vmul.f32 %v2836, %v2989
    %v3022 = vmul.f32 %v2838, %v2990
    %v3023 = vmul.f32 %v2840, %v2991
    %v3024 = vmul.f32 %v2842, %v2992
    %v3025 = vmul.f32 %v2844, %v2993
    %v3026 = vmul.f32 %v2846, %v2994
    %v3027 = vmul.f32 %v2848, %v2995
    %v3028 = vmul.f32 %v2850, %v2996
    %v3029 = vmul.f32 %v2852, %v2997
    %v3030 = vmul.f32 %v2854, %v2998
    %v3031 = vmul.f32 %v2856, %v2999
    %v3032 = vmul.f32 %v2858, %v3000
    %v3033 = vmul.f32 %v2860, %v3001
    %v3034 = vmul.f32 %v2862, %v3002
    %v3035 = vmul.f32 %v2864, %v3003
    %v3036 = vmul.f32 %v2866, %v3004
    %v3037 = vmul.f32 %v2868, %v3005
    %v3038 = vmul.f32 %v2870, %v3006
    %v3039 = vmul.f32 %v2872, %v3007
    %v3040 = vmul.f32 %v2874, %v3008
    %v3041 = vmul.f32 %v2876, %v3009
    %v3042 = vmul.f32 %v2878, %v3010
    %v3043 = vmul.f32 %v2880, %v3011
    %v3044 = vmul.f32 %v2882, %v3012
    %v3045 = vmul.f32 %v2884, %v3013
    %v3046 = vmul.f32 %v2886, %v3014
    %v3047 = vpack.c.bf16 %v3016, %v3015
    %v3048 = vpack.c.bf16 %v3018, %v3017
    %v3049 = vpack.c.bf16 %v3020, %v3019
    %v3050 = vpack.c.bf16 %v3022, %v3021
    %v3051 = vpack.c.bf16 %v3024, %v3023
    %v3052 = vpack.c.bf16 %v3026, %v3025
    %v3053 = vpack.c.bf16 %v3028, %v3027
    %v3054 = vpack.c.bf16 %v3030, %v3029
    %v3055 = vpack.c.bf16 %v3032, %v3031
    %v3056 = vpack.c.bf16 %v3034, %v3033
    %v3057 = vpack.c.bf16 %v3036, %v3035
    %v3058 = vpack.c.bf16 %v3038, %v3037
    %v3059 = vpack.c.bf16 %v3040, %v3039
    %v3060 = vpack.c.bf16 %v3042, %v3041
    %v3061 = vpack.c.bf16 %v3044, %v3043
    %v3062 = vpack.c.bf16 %v3046, %v3045
    %3067 = vrot.lane.b32.xlu0 %v1153, 96
    %v3068 = vpop.permute.xlu0 %3067
    %3069 = vrot.lane.b32.xlu0 %v1154, 96
    %v3070 = vpop.permute.xlu0 %3069
    %3071 = vrot.lane.b32.xlu0 %v1155, 96
    %v3072 = vpop.permute.xlu0 %3071
    %3073 = vrot.lane.b32.xlu0 %v1156, 96
    %v3074 = vpop.permute.xlu0 %3073
    %v3080 = vsel %vm1534, %v3047, 0
    %v3083 = vsel %vm1534, %v3048, 0
    %v3086 = vsel %vm1534, %v3049, 0
    %v3089 = vsel %vm1534, %v3050, 0
    %3091 = vmatprep.subr.bf16.mxu0 0
    %3092 = vmatpush1.bf16.msra.mxu0 0
    %3093 = vmatprep.subr.bf16.mxu0 0
    %3094 = vmatpush1.bf16.msra.mxu0 0
    %3095 = vmatprep.subr.bf16.mxu0 0
    %3096 = vmatpush1.bf16.msra.mxu0 0
    %3097 = vmatprep.subr.bf16.mxu0 0
    %3098 = vmatpush1.bf16.msra.mxu0 0
    %3099 = vmatprep.subr.bf16.mxu0 0
    %3100 = vmatpush1.bf16.msra.mxu0 %v3074
    %3101 = vmatprep.subr.bf16.mxu0 0
    %3102 = vmatpush1.bf16.msra.mxu0 %v3072
    %3103 = vmatprep.subr.bf16.mxu0 0
    %3104 = vmatpush1.bf16.msra.mxu0 %v3070
    %3105 = vmatprep.subr.bf16.mxu0 0
    %3106 = vmatpush1.bf16.msra.mxu0 %v3068
    %3107 = vmatprep.subr.bf16.mxu0 0
    %3108 = vmatpush2.bf16.msra.mxu0 0
    %3109 = vmatprep.subr.bf16.mxu0 0
    %3110 = vmatpush2.bf16.msra.mxu0 0
    %3111 = vmatprep.subr.bf16.mxu0 0
    %3112 = vmatpush2.bf16.msra.mxu0 0
    %3113 = vmatprep.subr.bf16.mxu0 0
    %3114 = vmatpush2.bf16.msra.mxu0 0
    %3115 = vmatprep.subr.bf16.mxu0 0
    %3116 = vmatpush2.bf16.msra.mxu0 0
    %3117 = vmatprep.subr.bf16.mxu0 0
    %3118 = vmatpush2.bf16.msra.mxu0 0
    %3119 = vmatprep.subr.bf16.mxu0 0
    %3120 = vmatpush2.bf16.msra.mxu0 0
    %3121 = vmatprep.subr.bf16.mxu0 0
    %3122 = vmatpush2.bf16.msra.mxu0 0
    %3123 = vmatprep.mubr.bf16.mxu0 0
    %3124 = vmatmul.mubr.bf16.gmra.mxu0 %v3080
    %v3125 = vpop.f32.mrf.mxu0
    %v3126 = vadd.f32 0.0, %v3125
    %v3127 = vpop.f32.mrf.mxu0
    %v3128 = vpop.f32.mrf.mxu0
    %v3129 = vadd.f32 0.0, %v3128
    %v3130 = vpop.f32.mrf.mxu0
    %3131 = vmatprep.mubr.bf16.mxu0 0
    %3132 = vmatmul.mubr.bf16.gmra.mxu0 %v3083
    %v3133 = vpop.f32.mrf.mxu0
    %v3134 = vadd.f32 0.0, %v3133
    %v3135 = vpop.f32.mrf.mxu0
    %v3136 = vpop.f32.mrf.mxu0
    %v3137 = vadd.f32 0.0, %v3136
    %v3138 = vpop.f32.mrf.mxu0
    %3139 = vmatprep.mubr.bf16.mxu0 0
    %3140 = vmatmul.mubr.bf16.gmra.mxu0 %v3086
    %v3141 = vpop.f32.mrf.mxu0
    %v3142 = vadd.f32 0.0, %v3141
    %v3143 = vpop.f32.mrf.mxu0
    %v3144 = vpop.f32.mrf.mxu0
    %v3145 = vadd.f32 0.0, %v3144
    %v3146 = vpop.f32.mrf.mxu0
    %3147 = vmatprep.mubr.bf16.mxu0 0
    %3148 = vmatmul.mubr.bf16.gmra.mxu0 %v3089
    %v3149 = vpop.f32.mrf.mxu0
    %v3150 = vadd.f32 0.0, %v3149
    %v3151 = vpop.f32.mrf.mxu0
    %v3152 = vpop.f32.mrf.mxu0
    %v3153 = vadd.f32 0.0, %v3152
    %v3154 = vpop.f32.mrf.mxu0
    %3155 = vdwg.mxu0
    %3160 = vrot.lane.b32.xlu0 %v1157, 96
    %v3161 = vpop.permute.xlu0 %3160
    %3162 = vrot.lane.b32.xlu0 %v1158, 96
    %v3163 = vpop.permute.xlu0 %3162
    %3164 = vrot.lane.b32.xlu0 %v1159, 96
    %v3165 = vpop.permute.xlu0 %3164
    %3166 = vrot.lane.b32.xlu0 %v1160, 96
    %v3167 = vpop.permute.xlu0 %3166
    %v3173 = vsel %vm1534, %v3051, 0
    %v3176 = vsel %vm1534, %v3052, 0
    %v3179 = vsel %vm1534, %v3053, 0
    %v3182 = vsel %vm1534, %v3054, 0
    %3184 = vmatprep.subr.bf16.mxu0 0
    %3185 = vmatpush1.bf16.msra.mxu0 0
    %3186 = vmatprep.subr.bf16.mxu0 0
    %3187 = vmatpush1.bf16.msra.mxu0 0
    %3188 = vmatprep.subr.bf16.mxu0 0
    %3189 = vmatpush1.bf16.msra.mxu0 0
    %3190 = vmatprep.subr.bf16.mxu0 0
    %3191 = vmatpush1.bf16.msra.mxu0 0
    %3192 = vmatprep.subr.bf16.mxu0 0
    %3193 = vmatpush1.bf16.msra.mxu0 %v3167
    %3194 = vmatprep.subr.bf16.mxu0 0
    %3195 = vmatpush1.bf16.msra.mxu0 %v3165
    %3196 = vmatprep.subr.bf16.mxu0 0
    %3197 = vmatpush1.bf16.msra.mxu0 %v3163
    %3198 = vmatprep.subr.bf16.mxu0 0
    %3199 = vmatpush1.bf16.msra.mxu0 %v3161
    %3200 = vmatprep.subr.bf16.mxu0 0
    %3201 = vmatpush2.bf16.msra.mxu0 0
    %3202 = vmatprep.subr.bf16.mxu0 0
    %3203 = vmatpush2.bf16.msra.mxu0 0
    %3204 = vmatprep.subr.bf16.mxu0 0
    %3205 = vmatpush2.bf16.msra.mxu0 0
    %3206 = vmatprep.subr.bf16.mxu0 0
    %3207 = vmatpush2.bf16.msra.mxu0 0
    %3208 = vmatprep.subr.bf16.mxu0 0
    %3209 = vmatpush2.bf16.msra.mxu0 0
    %3210 = vmatprep.subr.bf16.mxu0 0
    %3211 = vmatpush2.bf16.msra.mxu0 0
    %3212 = vmatprep.subr.bf16.mxu0 0
    %3213 = vmatpush2.bf16.msra.mxu0 0
    %3214 = vmatprep.subr.bf16.mxu0 0
    %3215 = vmatpush2.bf16.msra.mxu0 0
    %3216 = vmatprep.mubr.bf16.mxu0 0
    %3217 = vmatmul.mubr.bf16.gmra.mxu0 %v3173
    %v3218 = vpop.f32.mrf.mxu0
    %v3219 = vadd.f32 0.0, %v3218
    %v3220 = vpop.f32.mrf.mxu0
    %v3221 = vpop.f32.mrf.mxu0
    %v3222 = vadd.f32 0.0, %v3221
    %v3223 = vpop.f32.mrf.mxu0
    %3224 = vmatprep.mubr.bf16.mxu0 0
    %3225 = vmatmul.mubr.bf16.gmra.mxu0 %v3176
    %v3226 = vpop.f32.mrf.mxu0
    %v3227 = vadd.f32 0.0, %v3226
    %v3228 = vpop.f32.mrf.mxu0
    %v3229 = vpop.f32.mrf.mxu0
    %v3230 = vadd.f32 0.0, %v3229
    %v3231 = vpop.f32.mrf.mxu0
    %3232 = vmatprep.mubr.bf16.mxu0 0
    %3233 = vmatmul.mubr.bf16.gmra.mxu0 %v3179
    %v3234 = vpop.f32.mrf.mxu0
    %v3235 = vadd.f32 0.0, %v3234
    %v3236 = vpop.f32.mrf.mxu0
    %v3237 = vpop.f32.mrf.mxu0
    %v3238 = vadd.f32 0.0, %v3237
    %v3239 = vpop.f32.mrf.mxu0
    %3240 = vmatprep.mubr.bf16.mxu0 0
    %3241 = vmatmul.mubr.bf16.gmra.mxu0 %v3182
    %v3242 = vpop.f32.mrf.mxu0
    %v3243 = vadd.f32 0.0, %v3242
    %v3244 = vpop.f32.mrf.mxu0
    %v3245 = vpop.f32.mrf.mxu0
    %v3246 = vadd.f32 0.0, %v3245
    %v3247 = vpop.f32.mrf.mxu0
    %3248 = vdwg.mxu0
    %3253 = vrot.lane.b32.xlu0 %v1161, 96
    %v3254 = vpop.permute.xlu0 %3253
    %3255 = vrot.lane.b32.xlu0 %v1162, 96
    %v3256 = vpop.permute.xlu0 %3255
    %3257 = vrot.lane.b32.xlu0 %v1163, 96
    %v3258 = vpop.permute.xlu0 %3257
    %3259 = vrot.lane.b32.xlu0 %v1164, 96
    %v3260 = vpop.permute.xlu0 %3259
    %v3266 = vsel %vm1534, %v3055, 0
    %v3269 = vsel %vm1534, %v3056, 0
    %v3272 = vsel %vm1534, %v3057, 0
    %v3275 = vsel %vm1534, %v3058, 0
    %3277 = vmatprep.subr.bf16.mxu0 0
    %3278 = vmatpush1.bf16.msra.mxu0 0
    %3279 = vmatprep.subr.bf16.mxu0 0
    %3280 = vmatpush1.bf16.msra.mxu0 0
    %3281 = vmatprep.subr.bf16.mxu0 0
    %3282 = vmatpush1.bf16.msra.mxu0 0
    %3283 = vmatprep.subr.bf16.mxu0 0
    %3284 = vmatpush1.bf16.msra.mxu0 0
    %3285 = vmatprep.subr.bf16.mxu0 0
    %3286 = vmatpush1.bf16.msra.mxu0 %v3260
    %3287 = vmatprep.subr.bf16.mxu0 0
    %3288 = vmatpush1.bf16.msra.mxu0 %v3258
    %3289 = vmatprep.subr.bf16.mxu0 0
    %3290 = vmatpush1.bf16.msra.mxu0 %v3256
    %3291 = vmatprep.subr.bf16.mxu0 0
    %3292 = vmatpush1.bf16.msra.mxu0 %v3254
    %3293 = vmatprep.subr.bf16.mxu0 0
    %3294 = vmatpush2.bf16.msra.mxu0 0
    %3295 = vmatprep.subr.bf16.mxu0 0
    %3296 = vmatpush2.bf16.msra.mxu0 0
    %3297 = vmatprep.subr.bf16.mxu0 0
    %3298 = vmatpush2.bf16.msra.mxu0 0
    %3299 = vmatprep.subr.bf16.mxu0 0
    %3300 = vmatpush2.bf16.msra.mxu0 0
    %3301 = vmatprep.subr.bf16.mxu0 0
    %3302 = vmatpush2.bf16.msra.mxu0 0
    %3303 = vmatprep.subr.bf16.mxu0 0
    %3304 = vmatpush2.bf16.msra.mxu0 0
    %3305 = vmatprep.subr.bf16.mxu0 0
    %3306 = vmatpush2.bf16.msra.mxu0 0
    %3307 = vmatprep.subr.bf16.mxu0 0
    %3308 = vmatpush2.bf16.msra.mxu0 0
    %3309 = vmatprep.mubr.bf16.mxu0 0
    %3310 = vmatmul.mubr.bf16.gmra.mxu0 %v3266
    %v3311 = vpop.f32.mrf.mxu0
    %v3312 = vadd.f32 0.0, %v3311
    %v3313 = vpop.f32.mrf.mxu0
    %v3314 = vpop.f32.mrf.mxu0
    %v3315 = vadd.f32 0.0, %v3314
    %v3316 = vpop.f32.mrf.mxu0
    %3317 = vmatprep.mubr.bf16.mxu0 0
    %3318 = vmatmul.mubr.bf16.gmra.mxu0 %v3269
    %v3319 = vpop.f32.mrf.mxu0
    %v3320 = vadd.f32 0.0, %v3319
    %v3321 = vpop.f32.mrf.mxu0
    %v3322 = vpop.f32.mrf.mxu0
    %v3323 = vadd.f32 0.0, %v3322
    %v3324 = vpop.f32.mrf.mxu0
    %3325 = vmatprep.mubr.bf16.mxu0 0
    %3326 = vmatmul.mubr.bf16.gmra.mxu0 %v3272
    %v3327 = vpop.f32.mrf.mxu0
    %v3328 = vadd.f32 0.0, %v3327
    %v3329 = vpop.f32.mrf.mxu0
    %v3330 = vpop.f32.mrf.mxu0
    %v3331 = vadd.f32 0.0, %v3330
    %v3332 = vpop.f32.mrf.mxu0
    %3333 = vmatprep.mubr.bf16.mxu0 0
    %3334 = vmatmul.mubr.bf16.gmra.mxu0 %v3275
    %v3335 = vpop.f32.mrf.mxu0
    %v3336 = vadd.f32 0.0, %v3335
    %v3337 = vpop.f32.mrf.mxu0
    %v3338 = vpop.f32.mrf.mxu0
    %v3339 = vadd.f32 0.0, %v3338
    %v3340 = vpop.f32.mrf.mxu0
    %3341 = vdwg.mxu0
    %3346 = vrot.lane.b32.xlu0 %v1165, 96
    %v3347 = vpop.permute.xlu0 %3346
    %3348 = vrot.lane.b32.xlu0 %v1166, 96
    %v3349 = vpop.permute.xlu0 %3348
    %3350 = vrot.lane.b32.xlu0 %v1167, 96
    %v3351 = vpop.permute.xlu0 %3350
    %3352 = vrot.lane.b32.xlu0 %v1168, 96
    %v3353 = vpop.permute.xlu0 %3352
    %v3359 = vsel %vm1534, %v3059, 0
    %v3362 = vsel %vm1534, %v3060, 0
    %v3365 = vsel %vm1534, %v3061, 0
    %v3368 = vsel %vm1534, %v3062, 0
    %3370 = vmatprep.subr.bf16.mxu0 0
    %3371 = vmatpush1.bf16.msra.mxu0 0
    %3372 = vmatprep.subr.bf16.mxu0 0
    %3373 = vmatpush1.bf16.msra.mxu0 0
    %3374 = vmatprep.subr.bf16.mxu0 0
    %3375 = vmatpush1.bf16.msra.mxu0 0
    %3376 = vmatprep.subr.bf16.mxu0 0
    %3377 = vmatpush1.bf16.msra.mxu0 0
    %3378 = vmatprep.subr.bf16.mxu0 0
    %3379 = vmatpush1.bf16.msra.mxu0 %v3353
    %3380 = vmatprep.subr.bf16.mxu0 0
    %3381 = vmatpush1.bf16.msra.mxu0 %v3351
    %3382 = vmatprep.subr.bf16.mxu0 0
    %3383 = vmatpush1.bf16.msra.mxu0 %v3349
    %3384 = vmatprep.subr.bf16.mxu0 0
    %3385 = vmatpush1.bf16.msra.mxu0 %v3347
    %3386 = vmatprep.subr.bf16.mxu0 0
    %3387 = vmatpush2.bf16.msra.mxu0 0
    %3388 = vmatprep.subr.bf16.mxu0 0
    %3389 = vmatpush2.bf16.msra.mxu0 0
    %3390 = vmatprep.subr.bf16.mxu0 0
    %3391 = vmatpush2.bf16.msra.mxu0 0
    %3392 = vmatprep.subr.bf16.mxu0 0
    %3393 = vmatpush2.bf16.msra.mxu0 0
    %3394 = vmatprep.subr.bf16.mxu0 0
    %3395 = vmatpush2.bf16.msra.mxu0 0
    %3396 = vmatprep.subr.bf16.mxu0 0
    %3397 = vmatpush2.bf16.msra.mxu0 0
    %3398 = vmatprep.subr.bf16.mxu0 0
    %3399 = vmatpush2.bf16.msra.mxu0 0
    %3400 = vmatprep.subr.bf16.mxu0 0
    %3401 = vmatpush2.bf16.msra.mxu0 0
    %3402 = vmatprep.mubr.bf16.mxu0 0
    %3403 = vmatmul.mubr.bf16.gmra.mxu0 %v3359
    %v3404 = vpop.f32.mrf.mxu0
    %v3405 = vadd.f32 0.0, %v3404
    %v3406 = vpop.f32.mrf.mxu0
    %v3407 = vpop.f32.mrf.mxu0
    %v3408 = vadd.f32 0.0, %v3407
    %v3409 = vpop.f32.mrf.mxu0
    %3410 = vmatprep.mubr.bf16.mxu0 0
    %3411 = vmatmul.mubr.bf16.gmra.mxu0 %v3362
    %v3412 = vpop.f32.mrf.mxu0
    %v3413 = vadd.f32 0.0, %v3412
    %v3414 = vpop.f32.mrf.mxu0
    %v3415 = vpop.f32.mrf.mxu0
    %v3416 = vadd.f32 0.0, %v3415
    %v3417 = vpop.f32.mrf.mxu0
    %3418 = vmatprep.mubr.bf16.mxu0 0
    %3419 = vmatmul.mubr.bf16.gmra.mxu0 %v3365
    %v3420 = vpop.f32.mrf.mxu0
    %v3421 = vadd.f32 0.0, %v3420
    %v3422 = vpop.f32.mrf.mxu0
    %v3423 = vpop.f32.mrf.mxu0
    %v3424 = vadd.f32 0.0, %v3423
    %v3425 = vpop.f32.mrf.mxu0
    %3426 = vmatprep.mubr.bf16.mxu0 0
    %3427 = vmatmul.mubr.bf16.gmra.mxu0 %v3368
    %v3428 = vpop.f32.mrf.mxu0
    %v3429 = vadd.f32 0.0, %v3428
    %v3430 = vpop.f32.mrf.mxu0
    %v3431 = vpop.f32.mrf.mxu0
    %v3432 = vadd.f32 0.0, %v3431
    %v3433 = vpop.f32.mrf.mxu0
    %3434 = vdwg.mxu0
    %3467 = vrot.lane.b32.xlu0 %v3126, 32
    %v3468 = vpop.permute.xlu0 %3467
    %3469 = vrot.lane.b32.xlu0 %v3129, 32
    %v3470 = vpop.permute.xlu0 %3469
    %3471 = vrot.lane.b32.xlu0 %v3134, 32
    %v3472 = vpop.permute.xlu0 %3471
    %3473 = vrot.lane.b32.xlu0 %v3137, 32
    %v3474 = vpop.permute.xlu0 %3473
    %3475 = vrot.lane.b32.xlu0 %v3142, 32
    %v3476 = vpop.permute.xlu0 %3475
    %3477 = vrot.lane.b32.xlu0 %v3145, 32
    %v3478 = vpop.permute.xlu0 %3477
    %3479 = vrot.lane.b32.xlu0 %v3150, 32
    %v3480 = vpop.permute.xlu0 %3479
    %3481 = vrot.lane.b32.xlu0 %v3153, 32
    %v3482 = vpop.permute.xlu0 %3481
    %3483 = vrot.lane.b32.xlu0 %v3219, 32
    %v3484 = vpop.permute.xlu0 %3483
    %3485 = vrot.lane.b32.xlu0 %v3222, 32
    %v3486 = vpop.permute.xlu0 %3485
    %3487 = vrot.lane.b32.xlu0 %v3227, 32
    %v3488 = vpop.permute.xlu0 %3487
    %3489 = vrot.lane.b32.xlu0 %v3230, 32
    %v3490 = vpop.permute.xlu0 %3489
    %3491 = vrot.lane.b32.xlu0 %v3235, 32
    %v3492 = vpop.permute.xlu0 %3491
    %3493 = vrot.lane.b32.xlu0 %v3238, 32
    %v3494 = vpop.permute.xlu0 %3493
    %3495 = vrot.lane.b32.xlu0 %v3243, 32
    %v3496 = vpop.permute.xlu0 %3495
    %3497 = vrot.lane.b32.xlu0 %v3246, 32
    %v3498 = vpop.permute.xlu0 %3497
    %3499 = vrot.lane.b32.xlu0 %v3312, 32
    %v3500 = vpop.permute.xlu0 %3499
    %3501 = vrot.lane.b32.xlu0 %v3315, 32
    %v3502 = vpop.permute.xlu0 %3501
    %3503 = vrot.lane.b32.xlu0 %v3320, 32
    %v3504 = vpop.permute.xlu0 %3503
    %3505 = vrot.lane.b32.xlu0 %v3323, 32
    %v3506 = vpop.permute.xlu0 %3505
    %3507 = vrot.lane.b32.xlu0 %v3328, 32
    %v3508 = vpop.permute.xlu0 %3507
    %3509 = vrot.lane.b32.xlu0 %v3331, 32
    %v3510 = vpop.permute.xlu0 %3509
    %3511 = vrot.lane.b32.xlu0 %v3336, 32
    %v3512 = vpop.permute.xlu0 %3511
    %3513 = vrot.lane.b32.xlu0 %v3339, 32
    %v3514 = vpop.permute.xlu0 %3513
    %3515 = vrot.lane.b32.xlu0 %v3405, 32
    %v3516 = vpop.permute.xlu0 %3515
    %3517 = vrot.lane.b32.xlu0 %v3408, 32
    %v3518 = vpop.permute.xlu0 %3517
    %3519 = vrot.lane.b32.xlu0 %v3413, 32
    %v3520 = vpop.permute.xlu0 %3519
    %3521 = vrot.lane.b32.xlu0 %v3416, 32
    %v3522 = vpop.permute.xlu0 %3521
    %3523 = vrot.lane.b32.xlu0 %v3421, 32
    %v3524 = vpop.permute.xlu0 %3523
    %3525 = vrot.lane.b32.xlu0 %v3424, 32
    %v3526 = vpop.permute.xlu0 %3525
    %3527 = vrot.lane.b32.xlu0 %v3429, 32
    %v3528 = vpop.permute.xlu0 %3527
    %3529 = vrot.lane.b32.xlu0 %v3432, 32
    %v3530 = vpop.permute.xlu0 %3529
    %vm3563 = vcmask 523520
    %3564 = vst.msk [vmem:[#allocation2] sm:$0xff] %vm3563, %v3468
    %3565 = vst.msk [vmem:[#allocation2 + $0x8] sm:$0xff] %vm3563, %v3470
    %3566 = vst.msk [vmem:[#allocation2 + $0x10] sm:$0xff] %vm3563, %v3472
    %3567 = vst.msk [vmem:[#allocation2 + $0x18] sm:$0xff] %vm3563, %v3474
    %3568 = vst.msk [vmem:[#allocation2 + $0x20] sm:$0xff] %vm3563, %v3476
    %3569 = vst.msk [vmem:[#allocation2 + $0x28] sm:$0xff] %vm3563, %v3478
    %3570 = vst.msk [vmem:[#allocation2 + $0x30] sm:$0xff] %vm3563, %v3480
    %3571 = vst.msk [vmem:[#allocation2 + $0x38] sm:$0xff] %vm3563, %v3482
    %3572 = vst.msk [vmem:[#allocation2 + $0x40] sm:$0xff] %vm3563, %v3484
    %3573 = vst.msk [vmem:[#allocation2 + $0x48] sm:$0xff] %vm3563, %v3486
    %3574 = vst.msk [vmem:[#allocation2 + $0x50] sm:$0xff] %vm3563, %v3488
    %3575 = vst.msk [vmem:[#allocation2 + $0x58] sm:$0xff] %vm3563, %v3490
    %3576 = vst.msk [vmem:[#allocation2 + $0x60] sm:$0xff] %vm3563, %v3492
    %3577 = vst.msk [vmem:[#allocation2 + $0x68] sm:$0xff] %vm3563, %v3494
    %3578 = vst.msk [vmem:[#allocation2 + $0x70] sm:$0xff] %vm3563, %v3496
    %3579 = vst.msk [vmem:[#allocation2 + $0x78] sm:$0xff] %vm3563, %v3498
    %3580 = vst.msk [vmem:[#allocation2 + $0x80] sm:$0xff] %vm3563, %v3500
    %3581 = vst.msk [vmem:[#allocation2 + $0x88] sm:$0xff] %vm3563, %v3502
    %3582 = vst.msk [vmem:[#allocation2 + $0x90] sm:$0xff] %vm3563, %v3504
    %3583 = vst.msk [vmem:[#allocation2 + $0x98] sm:$0xff] %vm3563, %v3506
    %3584 = vst.msk [vmem:[#allocation2 + $0xa0] sm:$0xff] %vm3563, %v3508
    %3585 = vst.msk [vmem:[#allocation2 + $0xa8] sm:$0xff] %vm3563, %v3510
    %3586 = vst.msk [vmem:[#allocation2 + $0xb0] sm:$0xff] %vm3563, %v3512
    %3587 = vst.msk [vmem:[#allocation2 + $0xb8] sm:$0xff] %vm3563, %v3514
    %3588 = vst.msk [vmem:[#allocation2 + $0xc0] sm:$0xff] %vm3563, %v3516
    %3589 = vst.msk [vmem:[#allocation2 + $0xc8] sm:$0xff] %vm3563, %v3518
    %3590 = vst.msk [vmem:[#allocation2 + $0xd0] sm:$0xff] %vm3563, %v3520
    %3591 = vst.msk [vmem:[#allocation2 + $0xd8] sm:$0xff] %vm3563, %v3522
    %3592 = vst.msk [vmem:[#allocation2 + $0xe0] sm:$0xff] %vm3563, %v3524
    %3593 = vst.msk [vmem:[#allocation2 + $0xe8] sm:$0xff] %vm3563, %v3526
    %3594 = vst.msk [vmem:[#allocation2 + $0xf0] sm:$0xff] %vm3563, %v3528
    %3595 = vst.msk [vmem:[#allocation2 + $0xf8] sm:$0xff] %vm3563, %v3530
    %3596 = vrot.lane.b32.xlu0 %v1121, 64
    %v3597 = vpop.permute.xlu0 %3596
    %3598 = vrot.lane.b32.xlu0 %v1122, 64
    %v3599 = vpop.permute.xlu0 %3598
    %3600 = vrot.lane.b32.xlu0 %v1123, 64
    %v3601 = vpop.permute.xlu0 %3600
    %3602 = vrot.lane.b32.xlu0 %v1124, 64
    %v3603 = vpop.permute.xlu0 %3602
    %3604 = vrot.lane.b32.xlu0 %v1137, 64
    %v3605 = vpop.permute.xlu0 %3604
    %3606 = vrot.lane.b32.xlu0 %v1138, 64
    %v3607 = vpop.permute.xlu0 %3606
    %3608 = vrot.lane.b32.xlu0 %v1139, 64
    %v3609 = vpop.permute.xlu0 %3608
    %3610 = vrot.lane.b32.xlu0 %v1140, 64
    %v3611 = vpop.permute.xlu0 %3610
    %v3613 = vsel %vm1177, %v3597, 0
    %v3616 = vsel %vm1177, %v3599, 0
    %v3619 = vsel %vm1177, %v3601, 0
    %v3622 = vsel %vm1177, %v3603, 0
    %v3625 = vsel %vm1177, %v3605, 0
    %v3628 = vsel %vm1177, %v3607, 0
    %v3631 = vsel %vm1177, %v3609, 0
    %v3634 = vsel %vm1177, %v3611, 0
    %3636 = vmatprep.subr.bf16.mxu0 0
    %3637 = vmatpush1.bf16.xpose.msra.mxu0 0
    %3638 = vmatprep.subr.bf16.mxu0 0
    %3639 = vmatpush1.bf16.xpose.msra.mxu0 0
    %3640 = vmatprep.subr.bf16.mxu0 0
    %3641 = vmatpush1.bf16.xpose.msra.mxu0 0
    %3642 = vmatprep.subr.bf16.mxu0 0
    %3643 = vmatpush1.bf16.xpose.msra.mxu0 0
    %3644 = vmatprep.subr.bf16.mxu0 0
    %3645 = vmatpush1.bf16.xpose.msra.mxu0 %v3634
    %3646 = vmatprep.subr.bf16.mxu0 0
    %3647 = vmatpush1.bf16.xpose.msra.mxu0 %v3631
    %3648 = vmatprep.subr.bf16.mxu0 0
    %3649 = vmatpush1.bf16.xpose.msra.mxu0 %v3628
    %3650 = vmatprep.subr.bf16.mxu0 0
    %3651 = vmatpush1.bf16.xpose.msra.mxu0 %v3625
    %3652 = vmatprep.subr.bf16.mxu0 0
    %3653 = vmatpush2.bf16.xpose.msra.mxu0 0
    %3654 = vmatprep.subr.bf16.mxu0 0
    %3655 = vmatpush2.bf16.xpose.msra.mxu0 0
    %3656 = vmatprep.subr.bf16.mxu0 0
    %3657 = vmatpush2.bf16.xpose.msra.mxu0 0
    %3658 = vmatprep.subr.bf16.mxu0 0
    %3659 = vmatpush2.bf16.xpose.msra.mxu0 0
    %3660 = vmatprep.subr.bf16.mxu0 0
    %3661 = vmatpush2.bf16.xpose.msra.mxu0 0
    %3662 = vmatprep.subr.bf16.mxu0 0
    %3663 = vmatpush2.bf16.xpose.msra.mxu0 0
    %3664 = vmatprep.subr.bf16.mxu0 0
    %3665 = vmatpush2.bf16.xpose.msra.mxu0 0
    %3666 = vmatprep.subr.bf16.mxu0 0
    %3667 = vmatpush2.bf16.xpose.msra.mxu0 0
    %3668 = vmatprep.mubr.bf16.mxu0 0
    %3669 = vmatmul.mubr.bf16.gmra.mxu0 %v3613
    %v3670 = vpop.f32.mrf.mxu0
    %v3671 = vadd.f32 %v1169, %v3670
    %v3672 = vpop.f32.mrf.mxu0
    %v3673 = vpop.f32.mrf.mxu0
    %v3674 = vadd.f32 %v1170, %v3673
    %v3675 = vpop.f32.mrf.mxu0
    %3676 = vmatprep.mubr.bf16.mxu0 0
    %3677 = vmatmul.mubr.bf16.gmra.mxu0 %v3616
    %v3678 = vpop.f32.mrf.mxu0
    %v3679 = vadd.f32 %v1171, %v3678
    %v3680 = vpop.f32.mrf.mxu0
    %v3681 = vpop.f32.mrf.mxu0
    %v3682 = vadd.f32 %v1172, %v3681
    %v3683 = vpop.f32.mrf.mxu0
    %3684 = vmatprep.mubr.bf16.mxu0 0
    %3685 = vmatmul.mubr.bf16.gmra.mxu0 %v3619
    %v3686 = vpop.f32.mrf.mxu0
    %v3687 = vadd.f32 %v1173, %v3686
    %v3688 = vpop.f32.mrf.mxu0
    %v3689 = vpop.f32.mrf.mxu0
    %v3690 = vadd.f32 %v1174, %v3689
    %v3691 = vpop.f32.mrf.mxu0
    %3692 = vmatprep.mubr.bf16.mxu0 0
    %3693 = vmatmul.mubr.bf16.gmra.mxu0 %v3622
    %v3694 = vpop.f32.mrf.mxu0
    %v3695 = vadd.f32 %v1175, %v3694
    %v3696 = vpop.f32.mrf.mxu0
    %v3697 = vpop.f32.mrf.mxu0
    %v3698 = vadd.f32 %v1176, %v3697
    %v3699 = vpop.f32.mrf.mxu0
    %3700 = vdwg.mxu0
    %3701 = vrot.lane.b32.xlu0 %v1125, 64
    %v3702 = vpop.permute.xlu0 %3701
    %3703 = vrot.lane.b32.xlu0 %v1126, 64
    %v3704 = vpop.permute.xlu0 %3703
    %3705 = vrot.lane.b32.xlu0 %v1127, 64
    %v3706 = vpop.permute.xlu0 %3705
    %3707 = vrot.lane.b32.xlu0 %v1128, 64
    %v3708 = vpop.permute.xlu0 %3707
    %3709 = vrot.lane.b32.xlu0 %v1141, 64
    %v3710 = vpop.permute.xlu0 %3709
    %3711 = vrot.lane.b32.xlu0 %v1142, 64
    %v3712 = vpop.permute.xlu0 %3711
    %3713 = vrot.lane.b32.xlu0 %v1143, 64
    %v3714 = vpop.permute.xlu0 %3713
    %3715 = vrot.lane.b32.xlu0 %v1144, 64
    %v3716 = vpop.permute.xlu0 %3715
    %v3718 = vsel %vm1177, %v3702, 0
    %v3721 = vsel %vm1177, %v3704, 0
    %v3724 = vsel %vm1177, %v3706, 0
    %v3727 = vsel %vm1177, %v3708, 0
    %v3730 = vsel %vm1177, %v3710, 0
    %v3733 = vsel %vm1177, %v3712, 0
    %v3736 = vsel %vm1177, %v3714, 0
    %v3739 = vsel %vm1177, %v3716, 0
    %3741 = vmatprep.subr.bf16.mxu0 0
    %3742 = vmatpush1.bf16.xpose.msra.mxu0 0
    %3743 = vmatprep.subr.bf16.mxu0 0
    %3744 = vmatpush1.bf16.xpose.msra.mxu0 0
    %3745 = vmatprep.subr.bf16.mxu0 0
    %3746 = vmatpush1.bf16.xpose.msra.mxu0 0
    %3747 = vmatprep.subr.bf16.mxu0 0
    %3748 = vmatpush1.bf16.xpose.msra.mxu0 0
    %3749 = vmatprep.subr.bf16.mxu0 0
    %3750 = vmatpush1.bf16.xpose.msra.mxu0 %v3739
    %3751 = vmatprep.subr.bf16.mxu0 0
    %3752 = vmatpush1.bf16.xpose.msra.mxu0 %v3736
    %3753 = vmatprep.subr.bf16.mxu0 0
    %3754 = vmatpush1.bf16.xpose.msra.mxu0 %v3733
    %3755 = vmatprep.subr.bf16.mxu0 0
    %3756 = vmatpush1.bf16.xpose.msra.mxu0 %v3730
    %3757 = vmatprep.subr.bf16.mxu0 0
    %3758 = vmatpush2.bf16.xpose.msra.mxu0 0
    %3759 = vmatprep.subr.bf16.mxu0 0
    %3760 = vmatpush2.bf16.xpose.msra.mxu0 0
    %3761 = vmatprep.subr.bf16.mxu0 0
    %3762 = vmatpush2.bf16.xpose.msra.mxu0 0
    %3763 = vmatprep.subr.bf16.mxu0 0
    %3764 = vmatpush2.bf16.xpose.msra.mxu0 0
    %3765 = vmatprep.subr.bf16.mxu0 0
    %3766 = vmatpush2.bf16.xpose.msra.mxu0 0
    %3767 = vmatprep.subr.bf16.mxu0 0
    %3768 = vmatpush2.bf16.xpose.msra.mxu0 0
    %3769 = vmatprep.subr.bf16.mxu0 0
    %3770 = vmatpush2.bf16.xpose.msra.mxu0 0
    %3771 = vmatprep.subr.bf16.mxu0 0
    %3772 = vmatpush2.bf16.xpose.msra.mxu0 0
    %3773 = vmatprep.mubr.bf16.mxu0 0
    %3774 = vmatmul.mubr.bf16.gmra.mxu0 %v3718
    %v3775 = vpop.f32.mrf.mxu0
    %v3776 = vadd.f32 %v1169, %v3775
    %v3777 = vpop.f32.mrf.mxu0
    %v3778 = vpop.f32.mrf.mxu0
    %v3779 = vadd.f32 %v1170, %v3778
    %v3780 = vpop.f32.mrf.mxu0
    %3781 = vmatprep.mubr.bf16.mxu0 0
    %3782 = vmatmul.mubr.bf16.gmra.mxu0 %v3721
    %v3783 = vpop.f32.mrf.mxu0
    %v3784 = vadd.f32 %v1171, %v3783
    %v3785 = vpop.f32.mrf.mxu0
    %v3786 = vpop.f32.mrf.mxu0
    %v3787 = vadd.f32 %v1172, %v3786
    %v3788 = vpop.f32.mrf.mxu0
    %3789 = vmatprep.mubr.bf16.mxu0 0
    %3790 = vmatmul.mubr.bf16.gmra.mxu0 %v3724
    %v3791 = vpop.f32.mrf.mxu0
    %v3792 = vadd.f32 %v1173, %v3791
    %v3793 = vpop.f32.mrf.mxu0
    %v3794 = vpop.f32.mrf.mxu0
    %v3795 = vadd.f32 %v1174, %v3794
    %v3796 = vpop.f32.mrf.mxu0
    %3797 = vmatprep.mubr.bf16.mxu0 0
    %3798 = vmatmul.mubr.bf16.gmra.mxu0 %v3727
    %v3799 = vpop.f32.mrf.mxu0
    %v3800 = vadd.f32 %v1175, %v3799
    %v3801 = vpop.f32.mrf.mxu0
    %v3802 = vpop.f32.mrf.mxu0
    %v3803 = vadd.f32 %v1176, %v3802
    %v3804 = vpop.f32.mrf.mxu0
    %3805 = vdwg.mxu0
    %3806 = vrot.lane.b32.xlu0 %v1129, 64
    %v3807 = vpop.permute.xlu0 %3806
    %3808 = vrot.lane.b32.xlu0 %v1130, 64
    %v3809 = vpop.permute.xlu0 %3808
    %3810 = vrot.lane.b32.xlu0 %v1131, 64
    %v3811 = vpop.permute.xlu0 %3810
    %3812 = vrot.lane.b32.xlu0 %v1132, 64
    %v3813 = vpop.permute.xlu0 %3812
    %3814 = vrot.lane.b32.xlu0 %v1145, 64
    %v3815 = vpop.permute.xlu0 %3814
    %3816 = vrot.lane.b32.xlu0 %v1146, 64
    %v3817 = vpop.permute.xlu0 %3816
    %3818 = vrot.lane.b32.xlu0 %v1147, 64
    %v3819 = vpop.permute.xlu0 %3818
    %3820 = vrot.lane.b32.xlu0 %v1148, 64
    %v3821 = vpop.permute.xlu0 %3820
    %v3823 = vsel %vm1177, %v3807, 0
    %v3826 = vsel %vm1177, %v3809, 0
    %v3829 = vsel %vm1177, %v3811, 0
    %v3832 = vsel %vm1177, %v3813, 0
    %v3835 = vsel %vm1177, %v3815, 0
    %v3838 = vsel %vm1177, %v3817, 0
    %v3841 = vsel %vm1177, %v3819, 0
    %v3844 = vsel %vm1177, %v3821, 0
    %3846 = vmatprep.subr.bf16.mxu0 0
    %3847 = vmatpush1.bf16.xpose.msra.mxu0 0
    %3848 = vmatprep.subr.bf16.mxu0 0
    %3849 = vmatpush1.bf16.xpose.msra.mxu0 0
    %3850 = vmatprep.subr.bf16.mxu0 0
    %3851 = vmatpush1.bf16.xpose.msra.mxu0 0
    %3852 = vmatprep.subr.bf16.mxu0 0
    %3853 = vmatpush1.bf16.xpose.msra.mxu0 0
    %3854 = vmatprep.subr.bf16.mxu0 0
    %3855 = vmatpush1.bf16.xpose.msra.mxu0 %v3844
    %3856 = vmatprep.subr.bf16.mxu0 0
    %3857 = vmatpush1.bf16.xpose.msra.mxu0 %v3841
    %3858 = vmatprep.subr.bf16.mxu0 0
    %3859 = vmatpush1.bf16.xpose.msra.mxu0 %v3838
    %3860 = vmatprep.subr.bf16.mxu0 0
    %3861 = vmatpush1.bf16.xpose.msra.mxu0 %v3835
    %3862 = vmatprep.subr.bf16.mxu0 0
    %3863 = vmatpush2.bf16.xpose.msra.mxu0 0
    %3864 = vmatprep.subr.bf16.mxu0 0
    %3865 = vmatpush2.bf16.xpose.msra.mxu0 0
    %3866 = vmatprep.subr.bf16.mxu0 0
    %3867 = vmatpush2.bf16.xpose.msra.mxu0 0
    %3868 = vmatprep.subr.bf16.mxu0 0
    %3869 = vmatpush2.bf16.xpose.msra.mxu0 0
    %3870 = vmatprep.subr.bf16.mxu0 0
    %3871 = vmatpush2.bf16.xpose.msra.mxu0 0
    %3872 = vmatprep.subr.bf16.mxu0 0
    %3873 = vmatpush2.bf16.xpose.msra.mxu0 0
    %3874 = vmatprep.subr.bf16.mxu0 0
    %3875 = vmatpush2.bf16.xpose.msra.mxu0 0
    %3876 = vmatprep.subr.bf16.mxu0 0
    %3877 = vmatpush2.bf16.xpose.msra.mxu0 0
    %3878 = vmatprep.mubr.bf16.mxu0 0
    %3879 = vmatmul.mubr.bf16.gmra.mxu0 %v3823
    %v3880 = vpop.f32.mrf.mxu0
    %v3881 = vadd.f32 %v1169, %v3880
    %v3882 = vpop.f32.mrf.mxu0
    %v3883 = vpop.f32.mrf.mxu0
    %v3884 = vadd.f32 %v1170, %v3883
    %v3885 = vpop.f32.mrf.mxu0
    %3886 = vmatprep.mubr.bf16.mxu0 0
    %3887 = vmatmul.mubr.bf16.gmra.mxu0 %v3826
    %v3888 = vpop.f32.mrf.mxu0
    %v3889 = vadd.f32 %v1171, %v3888
    %v3890 = vpop.f32.mrf.mxu0
    %v3891 = vpop.f32.mrf.mxu0
    %v3892 = vadd.f32 %v1172, %v3891
    %v3893 = vpop.f32.mrf.mxu0
    %3894 = vmatprep.mubr.bf16.mxu0 0
    %3895 = vmatmul.mubr.bf16.gmra.mxu0 %v3829
    %v3896 = vpop.f32.mrf.mxu0
    %v3897 = vadd.f32 %v1173, %v3896
    %v3898 = vpop.f32.mrf.mxu0
    %v3899 = vpop.f32.mrf.mxu0
    %v3900 = vadd.f32 %v1174, %v3899
    %v3901 = vpop.f32.mrf.mxu0
    %3902 = vmatprep.mubr.bf16.mxu0 0
    %3903 = vmatmul.mubr.bf16.gmra.mxu0 %v3832
    %v3904 = vpop.f32.mrf.mxu0
    %v3905 = vadd.f32 %v1175, %v3904
    %v3906 = vpop.f32.mrf.mxu0
    %v3907 = vpop.f32.mrf.mxu0
    %v3908 = vadd.f32 %v1176, %v3907
    %v3909 = vpop.f32.mrf.mxu0
    %3910 = vdwg.mxu0
    %3911 = vrot.lane.b32.xlu0 %v1133, 64
    %v3912 = vpop.permute.xlu0 %3911
    %3913 = vrot.lane.b32.xlu0 %v1134, 64
    %v3914 = vpop.permute.xlu0 %3913
    %3915 = vrot.lane.b32.xlu0 %v1135, 64
    %v3916 = vpop.permute.xlu0 %3915
    %3917 = vrot.lane.b32.xlu0 %v1136, 64
    %v3918 = vpop.permute.xlu0 %3917
    %3919 = vrot.lane.b32.xlu0 %v1149, 64
    %v3920 = vpop.permute.xlu0 %3919
    %3921 = vrot.lane.b32.xlu0 %v1150, 64
    %v3922 = vpop.permute.xlu0 %3921
    %3923 = vrot.lane.b32.xlu0 %v1151, 64
    %v3924 = vpop.permute.xlu0 %3923
    %3925 = vrot.lane.b32.xlu0 %v1152, 64
    %v3926 = vpop.permute.xlu0 %3925
    %v3928 = vsel %vm1177, %v3912, 0
    %v3931 = vsel %vm1177, %v3914, 0
    %v3934 = vsel %vm1177, %v3916, 0
    %v3937 = vsel %vm1177, %v3918, 0
    %v3940 = vsel %vm1177, %v3920, 0
    %v3943 = vsel %vm1177, %v3922, 0
    %v3946 = vsel %vm1177, %v3924, 0
    %v3949 = vsel %vm1177, %v3926, 0
    %3951 = vmatprep.subr.bf16.mxu0 0
    %3952 = vmatpush1.bf16.xpose.msra.mxu0 0
    %3953 = vmatprep.subr.bf16.mxu0 0
    %3954 = vmatpush1.bf16.xpose.msra.mxu0 0
    %3955 = vmatprep.subr.bf16.mxu0 0
    %3956 = vmatpush1.bf16.xpose.msra.mxu0 0
    %3957 = vmatprep.subr.bf16.mxu0 0
    %3958 = vmatpush1.bf16.xpose.msra.mxu0 0
    %3959 = vmatprep.subr.bf16.mxu0 0
    %3960 = vmatpush1.bf16.xpose.msra.mxu0 %v3949
    %3961 = vmatprep.subr.bf16.mxu0 0
    %3962 = vmatpush1.bf16.xpose.msra.mxu0 %v3946
    %3963 = vmatprep.subr.bf16.mxu0 0
    %3964 = vmatpush1.bf16.xpose.msra.mxu0 %v3943
    %3965 = vmatprep.subr.bf16.mxu0 0
    %3966 = vmatpush1.bf16.xpose.msra.mxu0 %v3940
    %3967 = vmatprep.subr.bf16.mxu0 0
    %3968 = vmatpush2.bf16.xpose.msra.mxu0 0
    %3969 = vmatprep.subr.bf16.mxu0 0
    %3970 = vmatpush2.bf16.xpose.msra.mxu0 0
    %3971 = vmatprep.subr.bf16.mxu0 0
    %3972 = vmatpush2.bf16.xpose.msra.mxu0 0
    %3973 = vmatprep.subr.bf16.mxu0 0
    %3974 = vmatpush2.bf16.xpose.msra.mxu0 0
    %3975 = vmatprep.subr.bf16.mxu0 0
    %3976 = vmatpush2.bf16.xpose.msra.mxu0 0
    %3977 = vmatprep.subr.bf16.mxu0 0
    %3978 = vmatpush2.bf16.xpose.msra.mxu0 0
    %3979 = vmatprep.subr.bf16.mxu0 0
    %3980 = vmatpush2.bf16.xpose.msra.mxu0 0
    %3981 = vmatprep.subr.bf16.mxu0 0
    %3982 = vmatpush2.bf16.xpose.msra.mxu0 0
    %3983 = vmatprep.mubr.bf16.mxu0 0
    %3984 = vmatmul.mubr.bf16.gmra.mxu0 %v3928
    %v3985 = vpop.f32.mrf.mxu0
    %v3986 = vadd.f32 %v1169, %v3985
    %v3987 = vpop.f32.mrf.mxu0
    %v3988 = vpop.f32.mrf.mxu0
    %v3989 = vadd.f32 %v1170, %v3988
    %v3990 = vpop.f32.mrf.mxu0
    %3991 = vmatprep.mubr.bf16.mxu0 0
    %3992 = vmatmul.mubr.bf16.gmra.mxu0 %v3931
    %v3993 = vpop.f32.mrf.mxu0
    %v3994 = vadd.f32 %v1171, %v3993
    %v3995 = vpop.f32.mrf.mxu0
    %v3996 = vpop.f32.mrf.mxu0
    %v3997 = vadd.f32 %v1172, %v3996
    %v3998 = vpop.f32.mrf.mxu0
    %3999 = vmatprep.mubr.bf16.mxu0 0
    %4000 = vmatmul.mubr.bf16.gmra.mxu0 %v3934
    %v4001 = vpop.f32.mrf.mxu0
    %v4002 = vadd.f32 %v1173, %v4001
    %v4003 = vpop.f32.mrf.mxu0
    %v4004 = vpop.f32.mrf.mxu0
    %v4005 = vadd.f32 %v1174, %v4004
    %v4006 = vpop.f32.mrf.mxu0
    %4007 = vmatprep.mubr.bf16.mxu0 0
    %4008 = vmatmul.mubr.bf16.gmra.mxu0 %v3937
    %v4009 = vpop.f32.mrf.mxu0
    %v4010 = vadd.f32 %v1175, %v4009
    %v4011 = vpop.f32.mrf.mxu0
    %v4012 = vpop.f32.mrf.mxu0
    %v4013 = vadd.f32 %v1176, %v4012
    %v4014 = vpop.f32.mrf.mxu0
    %4015 = vdwg.mxu0
    %v4016 = vsel %vm1534, %v3671, -inf
    %4017 = vmax.xlane.f32.xlu0 %v4016
    %v4018 = vpop.xlane.xlu0 %4017
    %v4019 = vsel %vm1534, %v3674, -inf
    %4020 = vmax.xlane.f32.xlu0 %v4019
    %v4021 = vpop.xlane.xlu0 %4020
    %v4022 = vsel %vm1534, %v3679, -inf
    %4023 = vmax.xlane.f32.xlu0 %v4022
    %v4024 = vpop.xlane.xlu0 %4023
    %v4025 = vsel %vm1534, %v3682, -inf
    %4026 = vmax.xlane.f32.xlu0 %v4025
    %v4027 = vpop.xlane.xlu0 %4026
    %v4028 = vsel %vm1534, %v3687, -inf
    %4029 = vmax.xlane.f32.xlu0 %v4028
    %v4030 = vpop.xlane.xlu0 %4029
    %v4031 = vsel %vm1534, %v3690, -inf
    %4032 = vmax.xlane.f32.xlu0 %v4031
    %v4033 = vpop.xlane.xlu0 %4032
    %v4034 = vsel %vm1534, %v3695, -inf
    %4035 = vmax.xlane.f32.xlu0 %v4034
    %v4036 = vpop.xlane.xlu0 %4035
    %v4037 = vsel %vm1534, %v3698, -inf
    %4038 = vmax.xlane.f32.xlu0 %v4037
    %v4039 = vpop.xlane.xlu0 %4038
    %v4040 = vsel %vm1534, %v3776, -inf
    %4041 = vmax.xlane.f32.xlu0 %v4040
    %v4042 = vpop.xlane.xlu0 %4041
    %v4043 = vsel %vm1534, %v3779, -inf
    %4044 = vmax.xlane.f32.xlu0 %v4043
    %v4045 = vpop.xlane.xlu0 %4044
    %v4046 = vsel %vm1534, %v3784, -inf
    %4047 = vmax.xlane.f32.xlu0 %v4046
    %v4048 = vpop.xlane.xlu0 %4047
    %v4049 = vsel %vm1534, %v3787, -inf
    %4050 = vmax.xlane.f32.xlu0 %v4049
    %v4051 = vpop.xlane.xlu0 %4050
    %v4052 = vsel %vm1534, %v3792, -inf
    %4053 = vmax.xlane.f32.xlu0 %v4052
    %v4054 = vpop.xlane.xlu0 %4053
    %v4055 = vsel %vm1534, %v3795, -inf
    %4056 = vmax.xlane.f32.xlu0 %v4055
    %v4057 = vpop.xlane.xlu0 %4056
    %v4058 = vsel %vm1534, %v3800, -inf
    %4059 = vmax.xlane.f32.xlu0 %v4058
    %v4060 = vpop.xlane.xlu0 %4059
    %v4061 = vsel %vm1534, %v3803, -inf
    %4062 = vmax.xlane.f32.xlu0 %v4061
    %v4063 = vpop.xlane.xlu0 %4062
    %v4064 = vsel %vm1534, %v3881, -inf
    %4065 = vmax.xlane.f32.xlu0 %v4064
    %v4066 = vpop.xlane.xlu0 %4065
    %v4067 = vsel %vm1534, %v3884, -inf
    %4068 = vmax.xlane.f32.xlu0 %v4067
    %v4069 = vpop.xlane.xlu0 %4068
    %v4070 = vsel %vm1534, %v3889, -inf
    %4071 = vmax.xlane.f32.xlu0 %v4070
    %v4072 = vpop.xlane.xlu0 %4071
    %v4073 = vsel %vm1534, %v3892, -inf
    %4074 = vmax.xlane.f32.xlu0 %v4073
    %v4075 = vpop.xlane.xlu0 %4074
    %v4076 = vsel %vm1534, %v3897, -inf
    %4077 = vmax.xlane.f32.xlu0 %v4076
    %v4078 = vpop.xlane.xlu0 %4077
    %v4079 = vsel %vm1534, %v3900, -inf
    %4080 = vmax.xlane.f32.xlu0 %v4079
    %v4081 = vpop.xlane.xlu0 %4080
    %v4082 = vsel %vm1534, %v3905, -inf
    %4083 = vmax.xlane.f32.xlu0 %v4082
    %v4084 = vpop.xlane.xlu0 %4083
    %v4085 = vsel %vm1534, %v3908, -inf
    %4086 = vmax.xlane.f32.xlu0 %v4085
    %v4087 = vpop.xlane.xlu0 %4086
    %v4088 = vsel %vm1534, %v3986, -inf
    %4089 = vmax.xlane.f32.xlu0 %v4088
    %v4090 = vpop.xlane.xlu0 %4089
    %v4091 = vsel %vm1534, %v3989, -inf
    %4092 = vmax.xlane.f32.xlu0 %v4091
    %v4093 = vpop.xlane.xlu0 %4092
    %v4094 = vsel %vm1534, %v3994, -inf
    %4095 = vmax.xlane.f32.xlu0 %v4094
    %v4096 = vpop.xlane.xlu0 %4095
    %v4097 = vsel %vm1534, %v3997, -inf
    %4098 = vmax.xlane.f32.xlu0 %v4097
    %v4099 = vpop.xlane.xlu0 %4098
    %v4100 = vsel %vm1534, %v4002, -inf
    %4101 = vmax.xlane.f32.xlu0 %v4100
    %v4102 = vpop.xlane.xlu0 %4101
    %v4103 = vsel %vm1534, %v4005, -inf
    %4104 = vmax.xlane.f32.xlu0 %v4103
    %v4105 = vpop.xlane.xlu0 %4104
    %v4106 = vsel %vm1534, %v4010, -inf
    %4107 = vmax.xlane.f32.xlu0 %v4106
    %v4108 = vpop.xlane.xlu0 %4107
    %v4109 = vsel %vm1534, %v4013, -inf
    %4110 = vmax.xlane.f32.xlu0 %v4109
    %v4111 = vpop.xlane.xlu0 %4110
    %v4112 = vsub.f32 %v3671, %v4018
    %v4113 = vsub.f32 %v3674, %v4021
    %v4114 = vsub.f32 %v3679, %v4024
    %v4115 = vsub.f32 %v3682, %v4027
    %v4116 = vsub.f32 %v3687, %v4030
    %v4117 = vsub.f32 %v3690, %v4033
    %v4118 = vsub.f32 %v3695, %v4036
    %v4119 = vsub.f32 %v3698, %v4039
    %v4120 = vsub.f32 %v3776, %v4042
    %v4121 = vsub.f32 %v3779, %v4045
    %v4122 = vsub.f32 %v3784, %v4048
    %v4123 = vsub.f32 %v3787, %v4051
    %v4124 = vsub.f32 %v3792, %v4054
    %v4125 = vsub.f32 %v3795, %v4057
    %v4126 = vsub.f32 %v3800, %v4060
    %v4127 = vsub.f32 %v3803, %v4063
    %v4128 = vsub.f32 %v3881, %v4066
    %v4129 = vsub.f32 %v3884, %v4069
    %v4130 = vsub.f32 %v3889, %v4072
    %v4131 = vsub.f32 %v3892, %v4075
    %v4132 = vsub.f32 %v3897, %v4078
    %v4133 = vsub.f32 %v3900, %v4081
    %v4134 = vsub.f32 %v3905, %v4084
    %v4135 = vsub.f32 %v3908, %v4087
    %v4136 = vsub.f32 %v3986, %v4090
    %v4137 = vsub.f32 %v3989, %v4093
    %v4138 = vsub.f32 %v3994, %v4096
    %v4139 = vsub.f32 %v3997, %v4099
    %v4140 = vsub.f32 %v4002, %v4102
    %v4141 = vsub.f32 %v4005, %v4105
    %v4142 = vsub.f32 %v4010, %v4108
    %v4143 = vsub.f32 %v4013, %v4111
    %v4144 = vmul.f32 %v4112, 1.442695
    %v4145 = vpow.pop %v4144
    %v4146 = vmul.f32 %v4113, 1.442695
    %v4147 = vpow.pop %v4146
    %v4148 = vmul.f32 %v4114, 1.442695
    %v4149 = vpow.pop %v4148
    %v4150 = vmul.f32 %v4115, 1.442695
    %v4151 = vpow.pop %v4150
    %v4152 = vmul.f32 %v4116, 1.442695
    %v4153 = vpow.pop %v4152
    %v4154 = vmul.f32 %v4117, 1.442695
    %v4155 = vpow.pop %v4154
    %v4156 = vmul.f32 %v4118, 1.442695
    %v4157 = vpow.pop %v4156
    %v4158 = vmul.f32 %v4119, 1.442695
    %v4159 = vpow.pop %v4158
    %v4160 = vmul.f32 %v4120, 1.442695
    %v4161 = vpow.pop %v4160
    %v4162 = vmul.f32 %v4121, 1.442695
    %v4163 = vpow.pop %v4162
    %v4164 = vmul.f32 %v4122, 1.442695
    %v4165 = vpow.pop %v4164
    %v4166 = vmul.f32 %v4123, 1.442695
    %v4167 = vpow.pop %v4166
    %v4168 = vmul.f32 %v4124, 1.442695
    %v4169 = vpow.pop %v4168
    %v4170 = vmul.f32 %v4125, 1.442695
    %v4171 = vpow.pop %v4170
    %v4172 = vmul.f32 %v4126, 1.442695
    %v4173 = vpow.pop %v4172
    %v4174 = vmul.f32 %v4127, 1.442695
    %v4175 = vpow.pop %v4174
    %v4176 = vmul.f32 %v4128, 1.442695
    %v4177 = vpow.pop %v4176
    %v4178 = vmul.f32 %v4129, 1.442695
    %v4179 = vpow.pop %v4178
    %v4180 = vmul.f32 %v4130, 1.442695
    %v4181 = vpow.pop %v4180
    %v4182 = vmul.f32 %v4131, 1.442695
    %v4183 = vpow.pop %v4182
    %v4184 = vmul.f32 %v4132, 1.442695
    %v4185 = vpow.pop %v4184
    %v4186 = vmul.f32 %v4133, 1.442695
    %v4187 = vpow.pop %v4186
    %v4188 = vmul.f32 %v4134, 1.442695
    %v4189 = vpow.pop %v4188
    %v4190 = vmul.f32 %v4135, 1.442695
    %v4191 = vpow.pop %v4190
    %v4192 = vmul.f32 %v4136, 1.442695
    %v4193 = vpow.pop %v4192
    %v4194 = vmul.f32 %v4137, 1.442695
    %v4195 = vpow.pop %v4194
    %v4196 = vmul.f32 %v4138, 1.442695
    %v4197 = vpow.pop %v4196
    %v4198 = vmul.f32 %v4139, 1.442695
    %v4199 = vpow.pop %v4198
    %v4200 = vmul.f32 %v4140, 1.442695
    %v4201 = vpow.pop %v4200
    %v4202 = vmul.f32 %v4141, 1.442695
    %v4203 = vpow.pop %v4202
    %v4204 = vmul.f32 %v4142, 1.442695
    %v4205 = vpow.pop %v4204
    %v4206 = vmul.f32 %v4143, 1.442695
    %v4207 = vpow.pop %v4206
    %v4208 = vsel %vm1534, %v4145, 0.0
    %4209 = vadd.xlane.f32.xlu0 %v4208
    %v4210 = vpop.xlane.xlu0 %4209
    %v4211 = vsel %vm1534, %v4147, 0.0
    %4212 = vadd.xlane.f32.xlu0 %v4211
    %v4213 = vpop.xlane.xlu0 %4212
    %v4214 = vsel %vm1534, %v4149, 0.0
    %4215 = vadd.xlane.f32.xlu0 %v4214
    %v4216 = vpop.xlane.xlu0 %4215
    %v4217 = vsel %vm1534, %v4151, 0.0
    %4218 = vadd.xlane.f32.xlu0 %v4217
    %v4219 = vpop.xlane.xlu0 %4218
    %v4220 = vsel %vm1534, %v4153, 0.0
    %4221 = vadd.xlane.f32.xlu0 %v4220
    %v4222 = vpop.xlane.xlu0 %4221
    %v4223 = vsel %vm1534, %v4155, 0.0
    %4224 = vadd.xlane.f32.xlu0 %v4223
    %v4225 = vpop.xlane.xlu0 %4224
    %v4226 = vsel %vm1534, %v4157, 0.0
    %4227 = vadd.xlane.f32.xlu0 %v4226
    %v4228 = vpop.xlane.xlu0 %4227
    %v4229 = vsel %vm1534, %v4159, 0.0
    %4230 = vadd.xlane.f32.xlu0 %v4229
    %v4231 = vpop.xlane.xlu0 %4230
    %v4232 = vsel %vm1534, %v4161, 0.0
    %4233 = vadd.xlane.f32.xlu0 %v4232
    %v4234 = vpop.xlane.xlu0 %4233
    %v4235 = vsel %vm1534, %v4163, 0.0
    %4236 = vadd.xlane.f32.xlu0 %v4235
    %v4237 = vpop.xlane.xlu0 %4236
    %v4238 = vsel %vm1534, %v4165, 0.0
    %4239 = vadd.xlane.f32.xlu0 %v4238
    %v4240 = vpop.xlane.xlu0 %4239
    %v4241 = vsel %vm1534, %v4167, 0.0
    %4242 = vadd.xlane.f32.xlu0 %v4241
    %v4243 = vpop.xlane.xlu0 %4242
    %v4244 = vsel %vm1534, %v4169, 0.0
    %4245 = vadd.xlane.f32.xlu0 %v4244
    %v4246 = vpop.xlane.xlu0 %4245
    %v4247 = vsel %vm1534, %v4171, 0.0
    %4248 = vadd.xlane.f32.xlu0 %v4247
    %v4249 = vpop.xlane.xlu0 %4248
    %v4250 = vsel %vm1534, %v4173, 0.0
    %4251 = vadd.xlane.f32.xlu0 %v4250
    %v4252 = vpop.xlane.xlu0 %4251
    %v4253 = vsel %vm1534, %v4175, 0.0
    %4254 = vadd.xlane.f32.xlu0 %v4253
    %v4255 = vpop.xlane.xlu0 %4254
    %v4256 = vsel %vm1534, %v4177, 0.0
    %4257 = vadd.xlane.f32.xlu0 %v4256
    %v4258 = vpop.xlane.xlu0 %4257
    %v4259 = vsel %vm1534, %v4179, 0.0
    %4260 = vadd.xlane.f32.xlu0 %v4259
    %v4261 = vpop.xlane.xlu0 %4260
    %v4262 = vsel %vm1534, %v4181, 0.0
    %4263 = vadd.xlane.f32.xlu0 %v4262
    %v4264 = vpop.xlane.xlu0 %4263
    %v4265 = vsel %vm1534, %v4183, 0.0
    %4266 = vadd.xlane.f32.xlu0 %v4265
    %v4267 = vpop.xlane.xlu0 %4266
    %v4268 = vsel %vm1534, %v4185, 0.0
    %4269 = vadd.xlane.f32.xlu0 %v4268
    %v4270 = vpop.xlane.xlu0 %4269
    %v4271 = vsel %vm1534, %v4187, 0.0
    %4272 = vadd.xlane.f32.xlu0 %v4271
    %v4273 = vpop.xlane.xlu0 %4272
    %v4274 = vsel %vm1534, %v4189, 0.0
    %4275 = vadd.xlane.f32.xlu0 %v4274
    %v4276 = vpop.xlane.xlu0 %4275
    %v4277 = vsel %vm1534, %v4191, 0.0
    %4278 = vadd.xlane.f32.xlu0 %v4277
    %v4279 = vpop.xlane.xlu0 %4278
    %v4280 = vsel %vm1534, %v4193, 0.0
    %4281 = vadd.xlane.f32.xlu0 %v4280
    %v4282 = vpop.xlane.xlu0 %4281
    %v4283 = vsel %vm1534, %v4195, 0.0
    %4284 = vadd.xlane.f32.xlu0 %v4283
    %v4285 = vpop.xlane.xlu0 %4284
    %v4286 = vsel %vm1534, %v4197, 0.0
    %4287 = vadd.xlane.f32.xlu0 %v4286
    %v4288 = vpop.xlane.xlu0 %4287
    %v4289 = vsel %vm1534, %v4199, 0.0
    %4290 = vadd.xlane.f32.xlu0 %v4289
    %v4291 = vpop.xlane.xlu0 %4290
    %v4292 = vsel %vm1534, %v4201, 0.0
    %4293 = vadd.xlane.f32.xlu0 %v4292
    %v4294 = vpop.xlane.xlu0 %4293
    %v4295 = vsel %vm1534, %v4203, 0.0
    %4296 = vadd.xlane.f32.xlu0 %v4295
    %v4297 = vpop.xlane.xlu0 %4296
    %v4298 = vsel %vm1534, %v4205, 0.0
    %4299 = vadd.xlane.f32.xlu0 %v4298
    %v4300 = vpop.xlane.xlu0 %4299
    %v4301 = vsel %vm1534, %v4207, 0.0
    %4302 = vadd.xlane.f32.xlu0 %v4301
    %v4303 = vpop.xlane.xlu0 %4302
    %v4304 = vrcp.pop %v4210
    %v4305 = vrcp.pop %v4213
    %v4306 = vrcp.pop %v4216
    %v4307 = vrcp.pop %v4219
    %v4308 = vrcp.pop %v4222
    %v4309 = vrcp.pop %v4225
    %v4310 = vrcp.pop %v4228
    %v4311 = vrcp.pop %v4231
    %v4312 = vrcp.pop %v4234
    %v4313 = vrcp.pop %v4237
    %v4314 = vrcp.pop %v4240
    %v4315 = vrcp.pop %v4243
    %v4316 = vrcp.pop %v4246
    %v4317 = vrcp.pop %v4249
    %v4318 = vrcp.pop %v4252
    %v4319 = vrcp.pop %v4255
    %v4320 = vrcp.pop %v4258
    %v4321 = vrcp.pop %v4261
    %v4322 = vrcp.pop %v4264
    %v4323 = vrcp.pop %v4267
    %v4324 = vrcp.pop %v4270
    %v4325 = vrcp.pop %v4273
    %v4326 = vrcp.pop %v4276
    %v4327 = vrcp.pop %v4279
    %v4328 = vrcp.pop %v4282
    %v4329 = vrcp.pop %v4285
    %v4330 = vrcp.pop %v4288
    %v4331 = vrcp.pop %v4291
    %v4332 = vrcp.pop %v4294
    %v4333 = vrcp.pop %v4297
    %v4334 = vrcp.pop %v4300
    %v4335 = vrcp.pop %v4303
    %v4336 = vmul.f32 %v4145, %v4304
    %v4337 = vmul.f32 %v4147, %v4305
    %v4338 = vmul.f32 %v4149, %v4306
    %v4339 = vmul.f32 %v4151, %v4307
    %v4340 = vmul.f32 %v4153, %v4308
    %v4341 = vmul.f32 %v4155, %v4309
    %v4342 = vmul.f32 %v4157, %v4310
    %v4343 = vmul.f32 %v4159, %v4311
    %v4344 = vmul.f32 %v4161, %v4312
    %v4345 = vmul.f32 %v4163, %v4313
    %v4346 = vmul.f32 %v4165, %v4314
    %v4347 = vmul.f32 %v4167, %v4315
    %v4348 = vmul.f32 %v4169, %v4316
    %v4349 = vmul.f32 %v4171, %v4317
    %v4350 = vmul.f32 %v4173, %v4318
    %v4351 = vmul.f32 %v4175, %v4319
    %v4352 = vmul.f32 %v4177, %v4320
    %v4353 = vmul.f32 %v4179, %v4321
    %v4354 = vmul.f32 %v4181, %v4322
    %v4355 = vmul.f32 %v4183, %v4323
    %v4356 = vmul.f32 %v4185, %v4324
    %v4357 = vmul.f32 %v4187, %v4325
    %v4358 = vmul.f32 %v4189, %v4326
    %v4359 = vmul.f32 %v4191, %v4327
    %v4360 = vmul.f32 %v4193, %v4328
    %v4361 = vmul.f32 %v4195, %v4329
    %v4362 = vmul.f32 %v4197, %v4330
    %v4363 = vmul.f32 %v4199, %v4331
    %v4364 = vmul.f32 %v4201, %v4332
    %v4365 = vmul.f32 %v4203, %v4333
    %v4366 = vmul.f32 %v4205, %v4334
    %v4367 = vmul.f32 %v4207, %v4335
    %v4368 = vpack.c.bf16 %v4337, %v4336
    %v4369 = vpack.c.bf16 %v4339, %v4338
    %v4370 = vpack.c.bf16 %v4341, %v4340
    %v4371 = vpack.c.bf16 %v4343, %v4342
    %v4372 = vpack.c.bf16 %v4345, %v4344
    %v4373 = vpack.c.bf16 %v4347, %v4346
    %v4374 = vpack.c.bf16 %v4349, %v4348
    %v4375 = vpack.c.bf16 %v4351, %v4350
    %v4376 = vpack.c.bf16 %v4353, %v4352
    %v4377 = vpack.c.bf16 %v4355, %v4354
    %v4378 = vpack.c.bf16 %v4357, %v4356
    %v4379 = vpack.c.bf16 %v4359, %v4358
    %v4380 = vpack.c.bf16 %v4361, %v4360
    %v4381 = vpack.c.bf16 %v4363, %v4362
    %v4382 = vpack.c.bf16 %v4365, %v4364
    %v4383 = vpack.c.bf16 %v4367, %v4366
    %4384 = vrot.lane.b32.xlu0 %v1153, 64
    %v4385 = vpop.permute.xlu0 %4384
    %4386 = vrot.lane.b32.xlu0 %v1154, 64
    %v4387 = vpop.permute.xlu0 %4386
    %4388 = vrot.lane.b32.xlu0 %v1155, 64
    %v4389 = vpop.permute.xlu0 %4388
    %4390 = vrot.lane.b32.xlu0 %v1156, 64
    %v4391 = vpop.permute.xlu0 %4390
    %v4397 = vsel %vm1534, %v4368, 0
    %v4400 = vsel %vm1534, %v4369, 0
    %v4403 = vsel %vm1534, %v4370, 0
    %v4406 = vsel %vm1534, %v4371, 0
    %4408 = vmatprep.subr.bf16.mxu0 0
    %4409 = vmatpush1.bf16.msra.mxu0 0
    %4410 = vmatprep.subr.bf16.mxu0 0
    %4411 = vmatpush1.bf16.msra.mxu0 0
    %4412 = vmatprep.subr.bf16.mxu0 0
    %4413 = vmatpush1.bf16.msra.mxu0 0
    %4414 = vmatprep.subr.bf16.mxu0 0
    %4415 = vmatpush1.bf16.msra.mxu0 0
    %4416 = vmatprep.subr.bf16.mxu0 0
    %4417 = vmatpush1.bf16.msra.mxu0 %v4391
    %4418 = vmatprep.subr.bf16.mxu0 0
    %4419 = vmatpush1.bf16.msra.mxu0 %v4389
    %4420 = vmatprep.subr.bf16.mxu0 0
    %4421 = vmatpush1.bf16.msra.mxu0 %v4387
    %4422 = vmatprep.subr.bf16.mxu0 0
    %4423 = vmatpush1.bf16.msra.mxu0 %v4385
    %4424 = vmatprep.subr.bf16.mxu0 0
    %4425 = vmatpush2.bf16.msra.mxu0 0
    %4426 = vmatprep.subr.bf16.mxu0 0
    %4427 = vmatpush2.bf16.msra.mxu0 0
    %4428 = vmatprep.subr.bf16.mxu0 0
    %4429 = vmatpush2.bf16.msra.mxu0 0
    %4430 = vmatprep.subr.bf16.mxu0 0
    %4431 = vmatpush2.bf16.msra.mxu0 0
    %4432 = vmatprep.subr.bf16.mxu0 0
    %4433 = vmatpush2.bf16.msra.mxu0 0
    %4434 = vmatprep.subr.bf16.mxu0 0
    %4435 = vmatpush2.bf16.msra.mxu0 0
    %4436 = vmatprep.subr.bf16.mxu0 0
    %4437 = vmatpush2.bf16.msra.mxu0 0
    %4438 = vmatprep.subr.bf16.mxu0 0
    %4439 = vmatpush2.bf16.msra.mxu0 0
    %4440 = vmatprep.mubr.bf16.mxu0 0
    %4441 = vmatmul.mubr.bf16.gmra.mxu0 %v4397
    %v4442 = vpop.f32.mrf.mxu0
    %v4443 = vadd.f32 0.0, %v4442
    %v4444 = vpop.f32.mrf.mxu0
    %v4445 = vpop.f32.mrf.mxu0
    %v4446 = vadd.f32 0.0, %v4445
    %v4447 = vpop.f32.mrf.mxu0
    %4448 = vmatprep.mubr.bf16.mxu0 0
    %4449 = vmatmul.mubr.bf16.gmra.mxu0 %v4400
    %v4450 = vpop.f32.mrf.mxu0
    %v4451 = vadd.f32 0.0, %v4450
    %v4452 = vpop.f32.mrf.mxu0
    %v4453 = vpop.f32.mrf.mxu0
    %v4454 = vadd.f32 0.0, %v4453
    %v4455 = vpop.f32.mrf.mxu0
    %4456 = vmatprep.mubr.bf16.mxu0 0
    %4457 = vmatmul.mubr.bf16.gmra.mxu0 %v4403
    %v4458 = vpop.f32.mrf.mxu0
    %v4459 = vadd.f32 0.0, %v4458
    %v4460 = vpop.f32.mrf.mxu0
    %v4461 = vpop.f32.mrf.mxu0
    %v4462 = vadd.f32 0.0, %v4461
    %v4463 = vpop.f32.mrf.mxu0
    %4464 = vmatprep.mubr.bf16.mxu0 0
    %4465 = vmatmul.mubr.bf16.gmra.mxu0 %v4406
    %v4466 = vpop.f32.mrf.mxu0
    %v4467 = vadd.f32 0.0, %v4466
    %v4468 = vpop.f32.mrf.mxu0
    %v4469 = vpop.f32.mrf.mxu0
    %v4470 = vadd.f32 0.0, %v4469
    %v4471 = vpop.f32.mrf.mxu0
    %4472 = vdwg.mxu0
    %4473 = vrot.lane.b32.xlu0 %v1157, 64
    %v4474 = vpop.permute.xlu0 %4473
    %4475 = vrot.lane.b32.xlu0 %v1158, 64
    %v4476 = vpop.permute.xlu0 %4475
    %4477 = vrot.lane.b32.xlu0 %v1159, 64
    %v4478 = vpop.permute.xlu0 %4477
    %4479 = vrot.lane.b32.xlu0 %v1160, 64
    %v4480 = vpop.permute.xlu0 %4479
    %v4486 = vsel %vm1534, %v4372, 0
    %v4489 = vsel %vm1534, %v4373, 0
    %v4492 = vsel %vm1534, %v4374, 0
    %v4495 = vsel %vm1534, %v4375, 0
    %4497 = vmatprep.subr.bf16.mxu0 0
    %4498 = vmatpush1.bf16.msra.mxu0 0
    %4499 = vmatprep.subr.bf16.mxu0 0
    %4500 = vmatpush1.bf16.msra.mxu0 0
    %4501 = vmatprep.subr.bf16.mxu0 0
    %4502 = vmatpush1.bf16.msra.mxu0 0
    %4503 = vmatprep.subr.bf16.mxu0 0
    %4504 = vmatpush1.bf16.msra.mxu0 0
    %4505 = vmatprep.subr.bf16.mxu0 0
    %4506 = vmatpush1.bf16.msra.mxu0 %v4480
    %4507 = vmatprep.subr.bf16.mxu0 0
    %4508 = vmatpush1.bf16.msra.mxu0 %v4478
    %4509 = vmatprep.subr.bf16.mxu0 0
    %4510 = vmatpush1.bf16.msra.mxu0 %v4476
    %4511 = vmatprep.subr.bf16.mxu0 0
    %4512 = vmatpush1.bf16.msra.mxu0 %v4474
    %4513 = vmatprep.subr.bf16.mxu0 0
    %4514 = vmatpush2.bf16.msra.mxu0 0
    %4515 = vmatprep.subr.bf16.mxu0 0
    %4516 = vmatpush2.bf16.msra.mxu0 0
    %4517 = vmatprep.subr.bf16.mxu0 0
    %4518 = vmatpush2.bf16.msra.mxu0 0
    %4519 = vmatprep.subr.bf16.mxu0 0
    %4520 = vmatpush2.bf16.msra.mxu0 0
    %4521 = vmatprep.subr.bf16.mxu0 0
    %4522 = vmatpush2.bf16.msra.mxu0 0
    %4523 = vmatprep.subr.bf16.mxu0 0
    %4524 = vmatpush2.bf16.msra.mxu0 0
    %4525 = vmatprep.subr.bf16.mxu0 0
    %4526 = vmatpush2.bf16.msra.mxu0 0
    %4527 = vmatprep.subr.bf16.mxu0 0
    %4528 = vmatpush2.bf16.msra.mxu0 0
    %4529 = vmatprep.mubr.bf16.mxu0 0
    %4530 = vmatmul.mubr.bf16.gmra.mxu0 %v4486
    %v4531 = vpop.f32.mrf.mxu0
    %v4532 = vadd.f32 0.0, %v4531
    %v4533 = vpop.f32.mrf.mxu0
    %v4534 = vpop.f32.mrf.mxu0
    %v4535 = vadd.f32 0.0, %v4534
    %v4536 = vpop.f32.mrf.mxu0
    %4537 = vmatprep.mubr.bf16.mxu0 0
    %4538 = vmatmul.mubr.bf16.gmra.mxu0 %v4489
    %v4539 = vpop.f32.mrf.mxu0
    %v4540 = vadd.f32 0.0, %v4539
    %v4541 = vpop.f32.mrf.mxu0
    %v4542 = vpop.f32.mrf.mxu0
    %v4543 = vadd.f32 0.0, %v4542
    %v4544 = vpop.f32.mrf.mxu0
    %4545 = vmatprep.mubr.bf16.mxu0 0
    %4546 = vmatmul.mubr.bf16.gmra.mxu0 %v4492
    %v4547 = vpop.f32.mrf.mxu0
    %v4548 = vadd.f32 0.0, %v4547
    %v4549 = vpop.f32.mrf.mxu0
    %v4550 = vpop.f32.mrf.mxu0
    %v4551 = vadd.f32 0.0, %v4550
    %v4552 = vpop.f32.mrf.mxu0
    %4553 = vmatprep.mubr.bf16.mxu0 0
    %4554 = vmatmul.mubr.bf16.gmra.mxu0 %v4495
    %v4555 = vpop.f32.mrf.mxu0
    %v4556 = vadd.f32 0.0, %v4555
    %v4557 = vpop.f32.mrf.mxu0
    %v4558 = vpop.f32.mrf.mxu0
    %v4559 = vadd.f32 0.0, %v4558
    %v4560 = vpop.f32.mrf.mxu0
    %4561 = vdwg.mxu0
    %4562 = vrot.lane.b32.xlu0 %v1161, 64
    %v4563 = vpop.permute.xlu0 %4562
    %4564 = vrot.lane.b32.xlu0 %v1162, 64
    %v4565 = vpop.permute.xlu0 %4564
    %4566 = vrot.lane.b32.xlu0 %v1163, 64
    %v4567 = vpop.permute.xlu0 %4566
    %4568 = vrot.lane.b32.xlu0 %v1164, 64
    %v4569 = vpop.permute.xlu0 %4568
    %v4575 = vsel %vm1534, %v4376, 0
    %v4578 = vsel %vm1534, %v4377, 0
    %v4581 = vsel %vm1534, %v4378, 0
    %v4584 = vsel %vm1534, %v4379, 0
    %4586 = vmatprep.subr.bf16.mxu0 0
    %4587 = vmatpush1.bf16.msra.mxu0 0
    %4588 = vmatprep.subr.bf16.mxu0 0
    %4589 = vmatpush1.bf16.msra.mxu0 0
    %4590 = vmatprep.subr.bf16.mxu0 0
    %4591 = vmatpush1.bf16.msra.mxu0 0
    %4592 = vmatprep.subr.bf16.mxu0 0
    %4593 = vmatpush1.bf16.msra.mxu0 0
    %4594 = vmatprep.subr.bf16.mxu0 0
    %4595 = vmatpush1.bf16.msra.mxu0 %v4569
    %4596 = vmatprep.subr.bf16.mxu0 0
    %4597 = vmatpush1.bf16.msra.mxu0 %v4567
    %4598 = vmatprep.subr.bf16.mxu0 0
    %4599 = vmatpush1.bf16.msra.mxu0 %v4565
    %4600 = vmatprep.subr.bf16.mxu0 0
    %4601 = vmatpush1.bf16.msra.mxu0 %v4563
    %4602 = vmatprep.subr.bf16.mxu0 0
    %4603 = vmatpush2.bf16.msra.mxu0 0
    %4604 = vmatprep.subr.bf16.mxu0 0
    %4605 = vmatpush2.bf16.msra.mxu0 0
    %4606 = vmatprep.subr.bf16.mxu0 0
    %4607 = vmatpush2.bf16.msra.mxu0 0
    %4608 = vmatprep.subr.bf16.mxu0 0
    %4609 = vmatpush2.bf16.msra.mxu0 0
    %4610 = vmatprep.subr.bf16.mxu0 0
    %4611 = vmatpush2.bf16.msra.mxu0 0
    %4612 = vmatprep.subr.bf16.mxu0 0
    %4613 = vmatpush2.bf16.msra.mxu0 0
    %4614 = vmatprep.subr.bf16.mxu0 0
    %4615 = vmatpush2.bf16.msra.mxu0 0
    %4616 = vmatprep.subr.bf16.mxu0 0
    %4617 = vmatpush2.bf16.msra.mxu0 0
    %4618 = vmatprep.mubr.bf16.mxu0 0
    %4619 = vmatmul.mubr.bf16.gmra.mxu0 %v4575
    %v4620 = vpop.f32.mrf.mxu0
    %v4621 = vadd.f32 0.0, %v4620
    %v4622 = vpop.f32.mrf.mxu0
    %v4623 = vpop.f32.mrf.mxu0
    %v4624 = vadd.f32 0.0, %v4623
    %v4625 = vpop.f32.mrf.mxu0
    %4626 = vmatprep.mubr.bf16.mxu0 0
    %4627 = vmatmul.mubr.bf16.gmra.mxu0 %v4578
    %v4628 = vpop.f32.mrf.mxu0
    %v4629 = vadd.f32 0.0, %v4628
    %v4630 = vpop.f32.mrf.mxu0
    %v4631 = vpop.f32.mrf.mxu0
    %v4632 = vadd.f32 0.0, %v4631
    %v4633 = vpop.f32.mrf.mxu0
    %4634 = vmatprep.mubr.bf16.mxu0 0
    %4635 = vmatmul.mubr.bf16.gmra.mxu0 %v4581
    %v4636 = vpop.f32.mrf.mxu0
    %v4637 = vadd.f32 0.0, %v4636
    %v4638 = vpop.f32.mrf.mxu0
    %v4639 = vpop.f32.mrf.mxu0
    %v4640 = vadd.f32 0.0, %v4639
    %v4641 = vpop.f32.mrf.mxu0
    %4642 = vmatprep.mubr.bf16.mxu0 0
    %4643 = vmatmul.mubr.bf16.gmra.mxu0 %v4584
    %v4644 = vpop.f32.mrf.mxu0
    %v4645 = vadd.f32 0.0, %v4644
    %v4646 = vpop.f32.mrf.mxu0
    %v4647 = vpop.f32.mrf.mxu0
    %v4648 = vadd.f32 0.0, %v4647
    %v4649 = vpop.f32.mrf.mxu0
    %4650 = vdwg.mxu0
    %4651 = vrot.lane.b32.xlu0 %v1165, 64
    %v4652 = vpop.permute.xlu0 %4651
    %4653 = vrot.lane.b32.xlu0 %v1166, 64
    %v4654 = vpop.permute.xlu0 %4653
    %4655 = vrot.lane.b32.xlu0 %v1167, 64
    %v4656 = vpop.permute.xlu0 %4655
    %4657 = vrot.lane.b32.xlu0 %v1168, 64
    %v4658 = vpop.permute.xlu0 %4657
    %v4664 = vsel %vm1534, %v4380, 0
    %v4667 = vsel %vm1534, %v4381, 0
    %v4670 = vsel %vm1534, %v4382, 0
    %v4673 = vsel %vm1534, %v4383, 0
    %4675 = vmatprep.subr.bf16.mxu0 0
    %4676 = vmatpush1.bf16.msra.mxu0 0
    %4677 = vmatprep.subr.bf16.mxu0 0
    %4678 = vmatpush1.bf16.msra.mxu0 0
    %4679 = vmatprep.subr.bf16.mxu0 0
    %4680 = vmatpush1.bf16.msra.mxu0 0
    %4681 = vmatprep.subr.bf16.mxu0 0
    %4682 = vmatpush1.bf16.msra.mxu0 0
    %4683 = vmatprep.subr.bf16.mxu0 0
    %4684 = vmatpush1.bf16.msra.mxu0 %v4658
    %4685 = vmatprep.subr.bf16.mxu0 0
    %4686 = vmatpush1.bf16.msra.mxu0 %v4656
    %4687 = vmatprep.subr.bf16.mxu0 0
    %4688 = vmatpush1.bf16.msra.mxu0 %v4654
    %4689 = vmatprep.subr.bf16.mxu0 0
    %4690 = vmatpush1.bf16.msra.mxu0 %v4652
    %4691 = vmatprep.subr.bf16.mxu0 0
    %4692 = vmatpush2.bf16.msra.mxu0 0
    %4693 = vmatprep.subr.bf16.mxu0 0
    %4694 = vmatpush2.bf16.msra.mxu0 0
    %4695 = vmatprep.subr.bf16.mxu0 0
    %4696 = vmatpush2.bf16.msra.mxu0 0
    %4697 = vmatprep.subr.bf16.mxu0 0
    %4698 = vmatpush2.bf16.msra.mxu0 0
    %4699 = vmatprep.subr.bf16.mxu0 0
    %4700 = vmatpush2.bf16.msra.mxu0 0
    %4701 = vmatprep.subr.bf16.mxu0 0
    %4702 = vmatpush2.bf16.msra.mxu0 0
    %4703 = vmatprep.subr.bf16.mxu0 0
    %4704 = vmatpush2.bf16.msra.mxu0 0
    %4705 = vmatprep.subr.bf16.mxu0 0
    %4706 = vmatpush2.bf16.msra.mxu0 0
    %4707 = vmatprep.mubr.bf16.mxu0 0
    %4708 = vmatmul.mubr.bf16.gmra.mxu0 %v4664
    %v4709 = vpop.f32.mrf.mxu0
    %v4710 = vadd.f32 0.0, %v4709
    %v4711 = vpop.f32.mrf.mxu0
    %v4712 = vpop.f32.mrf.mxu0
    %v4713 = vadd.f32 0.0, %v4712
    %v4714 = vpop.f32.mrf.mxu0
    %4715 = vmatprep.mubr.bf16.mxu0 0
    %4716 = vmatmul.mubr.bf16.gmra.mxu0 %v4667
    %v4717 = vpop.f32.mrf.mxu0
    %v4718 = vadd.f32 0.0, %v4717
    %v4719 = vpop.f32.mrf.mxu0
    %v4720 = vpop.f32.mrf.mxu0
    %v4721 = vadd.f32 0.0, %v4720
    %v4722 = vpop.f32.mrf.mxu0
    %4723 = vmatprep.mubr.bf16.mxu0 0
    %4724 = vmatmul.mubr.bf16.gmra.mxu0 %v4670
    %v4725 = vpop.f32.mrf.mxu0
    %v4726 = vadd.f32 0.0, %v4725
    %v4727 = vpop.f32.mrf.mxu0
    %v4728 = vpop.f32.mrf.mxu0
    %v4729 = vadd.f32 0.0, %v4728
    %v4730 = vpop.f32.mrf.mxu0
    %4731 = vmatprep.mubr.bf16.mxu0 0
    %4732 = vmatmul.mubr.bf16.gmra.mxu0 %v4673
    %v4733 = vpop.f32.mrf.mxu0
    %v4734 = vadd.f32 0.0, %v4733
    %v4735 = vpop.f32.mrf.mxu0
    %v4736 = vpop.f32.mrf.mxu0
    %v4737 = vadd.f32 0.0, %v4736
    %v4738 = vpop.f32.mrf.mxu0
    %4739 = vdwg.mxu0
    %4772 = vrot.lane.b32.xlu0 %v4443, 64
    %v4773 = vpop.permute.xlu0 %4772
    %4774 = vrot.lane.b32.xlu0 %v4446, 64
    %v4775 = vpop.permute.xlu0 %4774
    %4776 = vrot.lane.b32.xlu0 %v4451, 64
    %v4777 = vpop.permute.xlu0 %4776
    %4778 = vrot.lane.b32.xlu0 %v4454, 64
    %v4779 = vpop.permute.xlu0 %4778
    %4780 = vrot.lane.b32.xlu0 %v4459, 64
    %v4781 = vpop.permute.xlu0 %4780
    %4782 = vrot.lane.b32.xlu0 %v4462, 64
    %v4783 = vpop.permute.xlu0 %4782
    %4784 = vrot.lane.b32.xlu0 %v4467, 64
    %v4785 = vpop.permute.xlu0 %4784
    %4786 = vrot.lane.b32.xlu0 %v4470, 64
    %v4787 = vpop.permute.xlu0 %4786
    %4788 = vrot.lane.b32.xlu0 %v4532, 64
    %v4789 = vpop.permute.xlu0 %4788
    %4790 = vrot.lane.b32.xlu0 %v4535, 64
    %v4791 = vpop.permute.xlu0 %4790
    %4792 = vrot.lane.b32.xlu0 %v4540, 64
    %v4793 = vpop.permute.xlu0 %4792
    %4794 = vrot.lane.b32.xlu0 %v4543, 64
    %v4795 = vpop.permute.xlu0 %4794
    %4796 = vrot.lane.b32.xlu0 %v4548, 64
    %v4797 = vpop.permute.xlu0 %4796
    %4798 = vrot.lane.b32.xlu0 %v4551, 64
    %v4799 = vpop.permute.xlu0 %4798
    %4800 = vrot.lane.b32.xlu0 %v4556, 64
    %v4801 = vpop.permute.xlu0 %4800
    %4802 = vrot.lane.b32.xlu0 %v4559, 64
    %v4803 = vpop.permute.xlu0 %4802
    %4804 = vrot.lane.b32.xlu0 %v4621, 64
    %v4805 = vpop.permute.xlu0 %4804
    %4806 = vrot.lane.b32.xlu0 %v4624, 64
    %v4807 = vpop.permute.xlu0 %4806
    %4808 = vrot.lane.b32.xlu0 %v4629, 64
    %v4809 = vpop.permute.xlu0 %4808
    %4810 = vrot.lane.b32.xlu0 %v4632, 64
    %v4811 = vpop.permute.xlu0 %4810
    %4812 = vrot.lane.b32.xlu0 %v4637, 64
    %v4813 = vpop.permute.xlu0 %4812
    %4814 = vrot.lane.b32.xlu0 %v4640, 64
    %v4815 = vpop.permute.xlu0 %4814
    %4816 = vrot.lane.b32.xlu0 %v4645, 64
    %v4817 = vpop.permute.xlu0 %4816
    %4818 = vrot.lane.b32.xlu0 %v4648, 64
    %v4819 = vpop.permute.xlu0 %4818
    %4820 = vrot.lane.b32.xlu0 %v4710, 64
    %v4821 = vpop.permute.xlu0 %4820
    %4822 = vrot.lane.b32.xlu0 %v4713, 64
    %v4823 = vpop.permute.xlu0 %4822
    %4824 = vrot.lane.b32.xlu0 %v4718, 64
    %v4825 = vpop.permute.xlu0 %4824
    %4826 = vrot.lane.b32.xlu0 %v4721, 64
    %v4827 = vpop.permute.xlu0 %4826
    %4828 = vrot.lane.b32.xlu0 %v4726, 64
    %v4829 = vpop.permute.xlu0 %4828
    %4830 = vrot.lane.b32.xlu0 %v4729, 64
    %v4831 = vpop.permute.xlu0 %4830
    %4832 = vrot.lane.b32.xlu0 %v4734, 64
    %v4833 = vpop.permute.xlu0 %4832
    %4834 = vrot.lane.b32.xlu0 %v4737, 64
    %v4835 = vpop.permute.xlu0 %4834
    %vm4868 = vcmask 785920
    %4869 = vst.msk [vmem:[#allocation2] sm:$0xff] %vm4868, %v4773
    %4870 = vst.msk [vmem:[#allocation2 + $0x8] sm:$0xff] %vm4868, %v4775
    %4871 = vst.msk [vmem:[#allocation2 + $0x10] sm:$0xff] %vm4868, %v4777
    %4872 = vst.msk [vmem:[#allocation2 + $0x18] sm:$0xff] %vm4868, %v4779
    %4873 = vst.msk [vmem:[#allocation2 + $0x20] sm:$0xff] %vm4868, %v4781
    %4874 = vst.msk [vmem:[#allocation2 + $0x28] sm:$0xff] %vm4868, %v4783
    %4875 = vst.msk [vmem:[#allocation2 + $0x30] sm:$0xff] %vm4868, %v4785
    %4876 = vst.msk [vmem:[#allocation2 + $0x38] sm:$0xff] %vm4868, %v4787
    %4877 = vst.msk [vmem:[#allocation2 + $0x40] sm:$0xff] %vm4868, %v4789
    %4878 = vst.msk [vmem:[#allocation2 + $0x48] sm:$0xff] %vm4868, %v4791
    %4879 = vst.msk [vmem:[#allocation2 + $0x50] sm:$0xff] %vm4868, %v4793
    %4880 = vst.msk [vmem:[#allocation2 + $0x58] sm:$0xff] %vm4868, %v4795
    %4881 = vst.msk [vmem:[#allocation2 + $0x60] sm:$0xff] %vm4868, %v4797
    %4882 = vst.msk [vmem:[#allocation2 + $0x68] sm:$0xff] %vm4868, %v4799
    %4883 = vst.msk [vmem:[#allocation2 + $0x70] sm:$0xff] %vm4868, %v4801
    %4884 = vst.msk [vmem:[#allocation2 + $0x78] sm:$0xff] %vm4868, %v4803
    %4885 = vst.msk [vmem:[#allocation2 + $0x80] sm:$0xff] %vm4868, %v4805
    %4886 = vst.msk [vmem:[#allocation2 + $0x88] sm:$0xff] %vm4868, %v4807
    %4887 = vst.msk [vmem:[#allocation2 + $0x90] sm:$0xff] %vm4868, %v4809
    %4888 = vst.msk [vmem:[#allocation2 + $0x98] sm:$0xff] %vm4868, %v4811
    %4889 = vst.msk [vmem:[#allocation2 + $0xa0] sm:$0xff] %vm4868, %v4813
    %4890 = vst.msk [vmem:[#allocation2 + $0xa8] sm:$0xff] %vm4868, %v4815
    %4891 = vst.msk [vmem:[#allocation2 + $0xb0] sm:$0xff] %vm4868, %v4817
    %4892 = vst.msk [vmem:[#allocation2 + $0xb8] sm:$0xff] %vm4868, %v4819
    %4893 = vst.msk [vmem:[#allocation2 + $0xc0] sm:$0xff] %vm4868, %v4821
    %4894 = vst.msk [vmem:[#allocation2 + $0xc8] sm:$0xff] %vm4868, %v4823
    %4895 = vst.msk [vmem:[#allocation2 + $0xd0] sm:$0xff] %vm4868, %v4825
    %4896 = vst.msk [vmem:[#allocation2 + $0xd8] sm:$0xff] %vm4868, %v4827
    %4897 = vst.msk [vmem:[#allocation2 + $0xe0] sm:$0xff] %vm4868, %v4829
    %4898 = vst.msk [vmem:[#allocation2 + $0xe8] sm:$0xff] %vm4868, %v4831
    %4899 = vst.msk [vmem:[#allocation2 + $0xf0] sm:$0xff] %vm4868, %v4833
    %4900 = vst.msk [vmem:[#allocation2 + $0xf8] sm:$0xff] %vm4868, %v4835
    %4901 = vrot.lane.b32.xlu0 %v1121, 32
    %v4902 = vpop.permute.xlu0 %4901
    %4903 = vrot.lane.b32.xlu0 %v1122, 32
    %v4904 = vpop.permute.xlu0 %4903
    %4905 = vrot.lane.b32.xlu0 %v1123, 32
    %v4906 = vpop.permute.xlu0 %4905
    %4907 = vrot.lane.b32.xlu0 %v1124, 32
    %v4908 = vpop.permute.xlu0 %4907
    %4909 = vrot.lane.b32.xlu0 %v1137, 32
    %v4910 = vpop.permute.xlu0 %4909
    %4911 = vrot.lane.b32.xlu0 %v1138, 32
    %v4912 = vpop.permute.xlu0 %4911
    %4913 = vrot.lane.b32.xlu0 %v1139, 32
    %v4914 = vpop.permute.xlu0 %4913
    %4915 = vrot.lane.b32.xlu0 %v1140, 32
    %v4916 = vpop.permute.xlu0 %4915
    %v4918 = vsel %vm1177, %v4902, 0
    %v4921 = vsel %vm1177, %v4904, 0
    %v4924 = vsel %vm1177, %v4906, 0
    %v4927 = vsel %vm1177, %v4908, 0
    %v4930 = vsel %vm1177, %v4910, 0
    %v4933 = vsel %vm1177, %v4912, 0
    %v4936 = vsel %vm1177, %v4914, 0
    %v4939 = vsel %vm1177, %v4916, 0
    %4941 = vmatprep.subr.bf16.mxu0 0
    %4942 = vmatpush1.bf16.xpose.msra.mxu0 0
    %4943 = vmatprep.subr.bf16.mxu0 0
    %4944 = vmatpush1.bf16.xpose.msra.mxu0 0
    %4945 = vmatprep.subr.bf16.mxu0 0
    %4946 = vmatpush1.bf16.xpose.msra.mxu0 0
    %4947 = vmatprep.subr.bf16.mxu0 0
    %4948 = vmatpush1.bf16.xpose.msra.mxu0 0
    %4949 = vmatprep.subr.bf16.mxu0 0
    %4950 = vmatpush1.bf16.xpose.msra.mxu0 %v4939
    %4951 = vmatprep.subr.bf16.mxu0 0
    %4952 = vmatpush1.bf16.xpose.msra.mxu0 %v4936
    %4953 = vmatprep.subr.bf16.mxu0 0
    %4954 = vmatpush1.bf16.xpose.msra.mxu0 %v4933
    %4955 = vmatprep.subr.bf16.mxu0 0
    %4956 = vmatpush1.bf16.xpose.msra.mxu0 %v4930
    %4957 = vmatprep.subr.bf16.mxu0 0
    %4958 = vmatpush2.bf16.xpose.msra.mxu0 0
    %4959 = vmatprep.subr.bf16.mxu0 0
    %4960 = vmatpush2.bf16.xpose.msra.mxu0 0
    %4961 = vmatprep.subr.bf16.mxu0 0
    %4962 = vmatpush2.bf16.xpose.msra.mxu0 0
    %4963 = vmatprep.subr.bf16.mxu0 0
    %4964 = vmatpush2.bf16.xpose.msra.mxu0 0
    %4965 = vmatprep.subr.bf16.mxu0 0
    %4966 = vmatpush2.bf16.xpose.msra.mxu0 0
    %4967 = vmatprep.subr.bf16.mxu0 0
    %4968 = vmatpush2.bf16.xpose.msra.mxu0 0
    %4969 = vmatprep.subr.bf16.mxu0 0
    %4970 = vmatpush2.bf16.xpose.msra.mxu0 0
    %4971 = vmatprep.subr.bf16.mxu0 0
    %4972 = vmatpush2.bf16.xpose.msra.mxu0 0
    %4973 = vmatprep.mubr.bf16.mxu0 0
    %4974 = vmatmul.mubr.bf16.gmra.mxu0 %v4918
    %v4975 = vpop.f32.mrf.mxu0
    %v4976 = vadd.f32 %v1169, %v4975
    %v4977 = vpop.f32.mrf.mxu0
    %v4978 = vpop.f32.mrf.mxu0
    %v4979 = vadd.f32 %v1170, %v4978
    %v4980 = vpop.f32.mrf.mxu0
    %4981 = vmatprep.mubr.bf16.mxu0 0
    %4982 = vmatmul.mubr.bf16.gmra.mxu0 %v4921
    %v4983 = vpop.f32.mrf.mxu0
    %v4984 = vadd.f32 %v1171, %v4983
    %v4985 = vpop.f32.mrf.mxu0
    %v4986 = vpop.f32.mrf.mxu0
    %v4987 = vadd.f32 %v1172, %v4986
    %v4988 = vpop.f32.mrf.mxu0
    %4989 = vmatprep.mubr.bf16.mxu0 0
    %4990 = vmatmul.mubr.bf16.gmra.mxu0 %v4924
    %v4991 = vpop.f32.mrf.mxu0
    %v4992 = vadd.f32 %v1173, %v4991
    %v4993 = vpop.f32.mrf.mxu0
    %v4994 = vpop.f32.mrf.mxu0
    %v4995 = vadd.f32 %v1174, %v4994
    %v4996 = vpop.f32.mrf.mxu0
    %4997 = vmatprep.mubr.bf16.mxu0 0
    %4998 = vmatmul.mubr.bf16.gmra.mxu0 %v4927
    %v4999 = vpop.f32.mrf.mxu0
    %v5000 = vadd.f32 %v1175, %v4999
    %v5001 = vpop.f32.mrf.mxu0
    %v5002 = vpop.f32.mrf.mxu0
    %v5003 = vadd.f32 %v1176, %v5002
    %v5004 = vpop.f32.mrf.mxu0
    %5005 = vdwg.mxu0
    %5006 = vrot.lane.b32.xlu0 %v1125, 32
    %v5007 = vpop.permute.xlu0 %5006
    %5008 = vrot.lane.b32.xlu0 %v1126, 32
    %v5009 = vpop.permute.xlu0 %5008
    %5010 = vrot.lane.b32.xlu0 %v1127, 32
    %v5011 = vpop.permute.xlu0 %5010
    %5012 = vrot.lane.b32.xlu0 %v1128, 32
    %v5013 = vpop.permute.xlu0 %5012
    %5014 = vrot.lane.b32.xlu0 %v1141, 32
    %v5015 = vpop.permute.xlu0 %5014
    %5016 = vrot.lane.b32.xlu0 %v1142, 32
    %v5017 = vpop.permute.xlu0 %5016
    %5018 = vrot.lane.b32.xlu0 %v1143, 32
    %v5019 = vpop.permute.xlu0 %5018
    %5020 = vrot.lane.b32.xlu0 %v1144, 32
    %v5021 = vpop.permute.xlu0 %5020
    %v5023 = vsel %vm1177, %v5007, 0
    %v5026 = vsel %vm1177, %v5009, 0
    %v5029 = vsel %vm1177, %v5011, 0
    %v5032 = vsel %vm1177, %v5013, 0
    %v5035 = vsel %vm1177, %v5015, 0
    %v5038 = vsel %vm1177, %v5017, 0
    %v5041 = vsel %vm1177, %v5019, 0
    %v5044 = vsel %vm1177, %v5021, 0
    %5046 = vmatprep.subr.bf16.mxu0 0
    %5047 = vmatpush1.bf16.xpose.msra.mxu0 0
    %5048 = vmatprep.subr.bf16.mxu0 0
    %5049 = vmatpush1.bf16.xpose.msra.mxu0 0
    %5050 = vmatprep.subr.bf16.mxu0 0
    %5051 = vmatpush1.bf16.xpose.msra.mxu0 0
    %5052 = vmatprep.subr.bf16.mxu0 0
    %5053 = vmatpush1.bf16.xpose.msra.mxu0 0
    %5054 = vmatprep.subr.bf16.mxu0 0
    %5055 = vmatpush1.bf16.xpose.msra.mxu0 %v5044
    %5056 = vmatprep.subr.bf16.mxu0 0
    %5057 = vmatpush1.bf16.xpose.msra.mxu0 %v5041
    %5058 = vmatprep.subr.bf16.mxu0 0
    %5059 = vmatpush1.bf16.xpose.msra.mxu0 %v5038
    %5060 = vmatprep.subr.bf16.mxu0 0
    %5061 = vmatpush1.bf16.xpose.msra.mxu0 %v5035
    %5062 = vmatprep.subr.bf16.mxu0 0
    %5063 = vmatpush2.bf16.xpose.msra.mxu0 0
    %5064 = vmatprep.subr.bf16.mxu0 0
    %5065 = vmatpush2.bf16.xpose.msra.mxu0 0
    %5066 = vmatprep.subr.bf16.mxu0 0
    %5067 = vmatpush2.bf16.xpose.msra.mxu0 0
    %5068 = vmatprep.subr.bf16.mxu0 0
    %5069 = vmatpush2.bf16.xpose.msra.mxu0 0
    %5070 = vmatprep.subr.bf16.mxu0 0
    %5071 = vmatpush2.bf16.xpose.msra.mxu0 0
    %5072 = vmatprep.subr.bf16.mxu0 0
    %5073 = vmatpush2.bf16.xpose.msra.mxu0 0
    %5074 = vmatprep.subr.bf16.mxu0 0
    %5075 = vmatpush2.bf16.xpose.msra.mxu0 0
    %5076 = vmatprep.subr.bf16.mxu0 0
    %5077 = vmatpush2.bf16.xpose.msra.mxu0 0
    %5078 = vmatprep.mubr.bf16.mxu0 0
    %5079 = vmatmul.mubr.bf16.gmra.mxu0 %v5023
    %v5080 = vpop.f32.mrf.mxu0
    %v5081 = vadd.f32 %v1169, %v5080
    %v5082 = vpop.f32.mrf.mxu0
    %v5083 = vpop.f32.mrf.mxu0
    %v5084 = vadd.f32 %v1170, %v5083
    %v5085 = vpop.f32.mrf.mxu0
    %5086 = vmatprep.mubr.bf16.mxu0 0
    %5087 = vmatmul.mubr.bf16.gmra.mxu0 %v5026
    %v5088 = vpop.f32.mrf.mxu0
    %v5089 = vadd.f32 %v1171, %v5088
    %v5090 = vpop.f32.mrf.mxu0
    %v5091 = vpop.f32.mrf.mxu0
    %v5092 = vadd.f32 %v1172, %v5091
    %v5093 = vpop.f32.mrf.mxu0
    %5094 = vmatprep.mubr.bf16.mxu0 0
    %5095 = vmatmul.mubr.bf16.gmra.mxu0 %v5029
    %v5096 = vpop.f32.mrf.mxu0
    %v5097 = vadd.f32 %v1173, %v5096
    %v5098 = vpop.f32.mrf.mxu0
    %v5099 = vpop.f32.mrf.mxu0
    %v5100 = vadd.f32 %v1174, %v5099
    %v5101 = vpop.f32.mrf.mxu0
    %5102 = vmatprep.mubr.bf16.mxu0 0
    %5103 = vmatmul.mubr.bf16.gmra.mxu0 %v5032
    %v5104 = vpop.f32.mrf.mxu0
    %v5105 = vadd.f32 %v1175, %v5104
    %v5106 = vpop.f32.mrf.mxu0
    %v5107 = vpop.f32.mrf.mxu0
    %v5108 = vadd.f32 %v1176, %v5107
    %v5109 = vpop.f32.mrf.mxu0
    %5110 = vdwg.mxu0
    %5111 = vrot.lane.b32.xlu0 %v1129, 32
    %v5112 = vpop.permute.xlu0 %5111
    %5113 = vrot.lane.b32.xlu0 %v1130, 32
    %v5114 = vpop.permute.xlu0 %5113
    %5115 = vrot.lane.b32.xlu0 %v1131, 32
    %v5116 = vpop.permute.xlu0 %5115
    %5117 = vrot.lane.b32.xlu0 %v1132, 32
    %v5118 = vpop.permute.xlu0 %5117
    %5119 = vrot.lane.b32.xlu0 %v1145, 32
    %v5120 = vpop.permute.xlu0 %5119
    %5121 = vrot.lane.b32.xlu0 %v1146, 32
    %v5122 = vpop.permute.xlu0 %5121
    %5123 = vrot.lane.b32.xlu0 %v1147, 32
    %v5124 = vpop.permute.xlu0 %5123
    %5125 = vrot.lane.b32.xlu0 %v1148, 32
    %v5126 = vpop.permute.xlu0 %5125
    %v5128 = vsel %vm1177, %v5112, 0
    %v5131 = vsel %vm1177, %v5114, 0
    %v5134 = vsel %vm1177, %v5116, 0
    %v5137 = vsel %vm1177, %v5118, 0
    %v5140 = vsel %vm1177, %v5120, 0
    %v5143 = vsel %vm1177, %v5122, 0
    %v5146 = vsel %vm1177, %v5124, 0
    %v5149 = vsel %vm1177, %v5126, 0
    %5151 = vmatprep.subr.bf16.mxu0 0
    %5152 = vmatpush1.bf16.xpose.msra.mxu0 0
    %5153 = vmatprep.subr.bf16.mxu0 0
    %5154 = vmatpush1.bf16.xpose.msra.mxu0 0
    %5155 = vmatprep.subr.bf16.mxu0 0
    %5156 = vmatpush1.bf16.xpose.msra.mxu0 0
    %5157 = vmatprep.subr.bf16.mxu0 0
    %5158 = vmatpush1.bf16.xpose.msra.mxu0 0
    %5159 = vmatprep.subr.bf16.mxu0 0
    %5160 = vmatpush1.bf16.xpose.msra.mxu0 %v5149
    %5161 = vmatprep.subr.bf16.mxu0 0
    %5162 = vmatpush1.bf16.xpose.msra.mxu0 %v5146
    %5163 = vmatprep.subr.bf16.mxu0 0
    %5164 = vmatpush1.bf16.xpose.msra.mxu0 %v5143
    %5165 = vmatprep.subr.bf16.mxu0 0
    %5166 = vmatpush1.bf16.xpose.msra.mxu0 %v5140
    %5167 = vmatprep.subr.bf16.mxu0 0
    %5168 = vmatpush2.bf16.xpose.msra.mxu0 0
    %5169 = vmatprep.subr.bf16.mxu0 0
    %5170 = vmatpush2.bf16.xpose.msra.mxu0 0
    %5171 = vmatprep.subr.bf16.mxu0 0
    %5172 = vmatpush2.bf16.xpose.msra.mxu0 0
    %5173 = vmatprep.subr.bf16.mxu0 0
    %5174 = vmatpush2.bf16.xpose.msra.mxu0 0
    %5175 = vmatprep.subr.bf16.mxu0 0
    %5176 = vmatpush2.bf16.xpose.msra.mxu0 0
    %5177 = vmatprep.subr.bf16.mxu0 0
    %5178 = vmatpush2.bf16.xpose.msra.mxu0 0
    %5179 = vmatprep.subr.bf16.mxu0 0
    %5180 = vmatpush2.bf16.xpose.msra.mxu0 0
    %5181 = vmatprep.subr.bf16.mxu0 0
    %5182 = vmatpush2.bf16.xpose.msra.mxu0 0
    %5183 = vmatprep.mubr.bf16.mxu0 0
    %5184 = vmatmul.mubr.bf16.gmra.mxu0 %v5128
    %v5185 = vpop.f32.mrf.mxu0
    %v5186 = vadd.f32 %v1169, %v5185
    %v5187 = vpop.f32.mrf.mxu0
    %v5188 = vpop.f32.mrf.mxu0
    %v5189 = vadd.f32 %v1170, %v5188
    %v5190 = vpop.f32.mrf.mxu0
    %5191 = vmatprep.mubr.bf16.mxu0 0
    %5192 = vmatmul.mubr.bf16.gmra.mxu0 %v5131
    %v5193 = vpop.f32.mrf.mxu0
    %v5194 = vadd.f32 %v1171, %v5193
    %v5195 = vpop.f32.mrf.mxu0
    %v5196 = vpop.f32.mrf.mxu0
    %v5197 = vadd.f32 %v1172, %v5196
    %v5198 = vpop.f32.mrf.mxu0
    %5199 = vmatprep.mubr.bf16.mxu0 0
    %5200 = vmatmul.mubr.bf16.gmra.mxu0 %v5134
    %v5201 = vpop.f32.mrf.mxu0
    %v5202 = vadd.f32 %v1173, %v5201
    %v5203 = vpop.f32.mrf.mxu0
    %v5204 = vpop.f32.mrf.mxu0
    %v5205 = vadd.f32 %v1174, %v5204
    %v5206 = vpop.f32.mrf.mxu0
    %5207 = vmatprep.mubr.bf16.mxu0 0
    %5208 = vmatmul.mubr.bf16.gmra.mxu0 %v5137
    %v5209 = vpop.f32.mrf.mxu0
    %v5210 = vadd.f32 %v1175, %v5209
    %v5211 = vpop.f32.mrf.mxu0
    %v5212 = vpop.f32.mrf.mxu0
    %v5213 = vadd.f32 %v1176, %v5212
    %v5214 = vpop.f32.mrf.mxu0
    %5215 = vdwg.mxu0
    %5216 = vrot.lane.b32.xlu0 %v1133, 32
    %v5217 = vpop.permute.xlu0 %5216
    %5218 = vrot.lane.b32.xlu0 %v1134, 32
    %v5219 = vpop.permute.xlu0 %5218
    %5220 = vrot.lane.b32.xlu0 %v1135, 32
    %v5221 = vpop.permute.xlu0 %5220
    %5222 = vrot.lane.b32.xlu0 %v1136, 32
    %v5223 = vpop.permute.xlu0 %5222
    %5224 = vrot.lane.b32.xlu0 %v1149, 32
    %v5225 = vpop.permute.xlu0 %5224
    %5226 = vrot.lane.b32.xlu0 %v1150, 32
    %v5227 = vpop.permute.xlu0 %5226
    %5228 = vrot.lane.b32.xlu0 %v1151, 32
    %v5229 = vpop.permute.xlu0 %5228
    %5230 = vrot.lane.b32.xlu0 %v1152, 32
    %v5231 = vpop.permute.xlu0 %5230
    %v5233 = vsel %vm1177, %v5217, 0
    %v5236 = vsel %vm1177, %v5219, 0
    %v5239 = vsel %vm1177, %v5221, 0
    %v5242 = vsel %vm1177, %v5223, 0
    %v5245 = vsel %vm1177, %v5225, 0
    %v5248 = vsel %vm1177, %v5227, 0
    %v5251 = vsel %vm1177, %v5229, 0
    %v5254 = vsel %vm1177, %v5231, 0
    %5256 = vmatprep.subr.bf16.mxu0 0
    %5257 = vmatpush1.bf16.xpose.msra.mxu0 0
    %5258 = vmatprep.subr.bf16.mxu0 0
    %5259 = vmatpush1.bf16.xpose.msra.mxu0 0
    %5260 = vmatprep.subr.bf16.mxu0 0
    %5261 = vmatpush1.bf16.xpose.msra.mxu0 0
    %5262 = vmatprep.subr.bf16.mxu0 0
    %5263 = vmatpush1.bf16.xpose.msra.mxu0 0
    %5264 = vmatprep.subr.bf16.mxu0 0
    %5265 = vmatpush1.bf16.xpose.msra.mxu0 %v5254
    %5266 = vmatprep.subr.bf16.mxu0 0
    %5267 = vmatpush1.bf16.xpose.msra.mxu0 %v5251
    %5268 = vmatprep.subr.bf16.mxu0 0
    %5269 = vmatpush1.bf16.xpose.msra.mxu0 %v5248
    %5270 = vmatprep.subr.bf16.mxu0 0
    %5271 = vmatpush1.bf16.xpose.msra.mxu0 %v5245
    %5272 = vmatprep.subr.bf16.mxu0 0
    %5273 = vmatpush2.bf16.xpose.msra.mxu0 0
    %5274 = vmatprep.subr.bf16.mxu0 0
    %5275 = vmatpush2.bf16.xpose.msra.mxu0 0
    %5276 = vmatprep.subr.bf16.mxu0 0
    %5277 = vmatpush2.bf16.xpose.msra.mxu0 0
    %5278 = vmatprep.subr.bf16.mxu0 0
    %5279 = vmatpush2.bf16.xpose.msra.mxu0 0
    %5280 = vmatprep.subr.bf16.mxu0 0
    %5281 = vmatpush2.bf16.xpose.msra.mxu0 0
    %5282 = vmatprep.subr.bf16.mxu0 0
    %5283 = vmatpush2.bf16.xpose.msra.mxu0 0
    %5284 = vmatprep.subr.bf16.mxu0 0
    %5285 = vmatpush2.bf16.xpose.msra.mxu0 0
    %5286 = vmatprep.subr.bf16.mxu0 0
    %5287 = vmatpush2.bf16.xpose.msra.mxu0 0
    %5288 = vmatprep.mubr.bf16.mxu0 0
    %5289 = vmatmul.mubr.bf16.gmra.mxu0 %v5233
    %v5290 = vpop.f32.mrf.mxu0
    %v5291 = vadd.f32 %v1169, %v5290
    %v5292 = vpop.f32.mrf.mxu0
    %v5293 = vpop.f32.mrf.mxu0
    %v5294 = vadd.f32 %v1170, %v5293
    %v5295 = vpop.f32.mrf.mxu0
    %5296 = vmatprep.mubr.bf16.mxu0 0
    %5297 = vmatmul.mubr.bf16.gmra.mxu0 %v5236
    %v5298 = vpop.f32.mrf.mxu0
    %v5299 = vadd.f32 %v1171, %v5298
    %v5300 = vpop.f32.mrf.mxu0
    %v5301 = vpop.f32.mrf.mxu0
    %v5302 = vadd.f32 %v1172, %v5301
    %v5303 = vpop.f32.mrf.mxu0
    %5304 = vmatprep.mubr.bf16.mxu0 0
    %5305 = vmatmul.mubr.bf16.gmra.mxu0 %v5239
    %v5306 = vpop.f32.mrf.mxu0
    %v5307 = vadd.f32 %v1173, %v5306
    %v5308 = vpop.f32.mrf.mxu0
    %v5309 = vpop.f32.mrf.mxu0
    %v5310 = vadd.f32 %v1174, %v5309
    %v5311 = vpop.f32.mrf.mxu0
    %5312 = vmatprep.mubr.bf16.mxu0 0
    %5313 = vmatmul.mubr.bf16.gmra.mxu0 %v5242
    %v5314 = vpop.f32.mrf.mxu0
    %v5315 = vadd.f32 %v1175, %v5314
    %v5316 = vpop.f32.mrf.mxu0
    %v5317 = vpop.f32.mrf.mxu0
    %v5318 = vadd.f32 %v1176, %v5317
    %v5319 = vpop.f32.mrf.mxu0
    %5320 = vdwg.mxu0
    %v5321 = vsel %vm1534, %v4976, -inf
    %5322 = vmax.xlane.f32.xlu0 %v5321
    %v5323 = vpop.xlane.xlu0 %5322
    %v5324 = vsel %vm1534, %v4979, -inf
    %5325 = vmax.xlane.f32.xlu0 %v5324
    %v5326 = vpop.xlane.xlu0 %5325
    %v5327 = vsel %vm1534, %v4984, -inf
    %5328 = vmax.xlane.f32.xlu0 %v5327
    %v5329 = vpop.xlane.xlu0 %5328
    %v5330 = vsel %vm1534, %v4987, -inf
    %5331 = vmax.xlane.f32.xlu0 %v5330
    %v5332 = vpop.xlane.xlu0 %5331
    %v5333 = vsel %vm1534, %v4992, -inf
    %5334 = vmax.xlane.f32.xlu0 %v5333
    %v5335 = vpop.xlane.xlu0 %5334
    %v5336 = vsel %vm1534, %v4995, -inf
    %5337 = vmax.xlane.f32.xlu0 %v5336
    %v5338 = vpop.xlane.xlu0 %5337
    %v5339 = vsel %vm1534, %v5000, -inf
    %5340 = vmax.xlane.f32.xlu0 %v5339
    %v5341 = vpop.xlane.xlu0 %5340
    %v5342 = vsel %vm1534, %v5003, -inf
    %5343 = vmax.xlane.f32.xlu0 %v5342
    %v5344 = vpop.xlane.xlu0 %5343
    %v5345 = vsel %vm1534, %v5081, -inf
    %5346 = vmax.xlane.f32.xlu0 %v5345
    %v5347 = vpop.xlane.xlu0 %5346
    %v5348 = vsel %vm1534, %v5084, -inf
    %5349 = vmax.xlane.f32.xlu0 %v5348
    %v5350 = vpop.xlane.xlu0 %5349
    %v5351 = vsel %vm1534, %v5089, -inf
    %5352 = vmax.xlane.f32.xlu0 %v5351
    %v5353 = vpop.xlane.xlu0 %5352
    %v5354 = vsel %vm1534, %v5092, -inf
    %5355 = vmax.xlane.f32.xlu0 %v5354
    %v5356 = vpop.xlane.xlu0 %5355
    %v5357 = vsel %vm1534, %v5097, -inf
    %5358 = vmax.xlane.f32.xlu0 %v5357
    %v5359 = vpop.xlane.xlu0 %5358
    %v5360 = vsel %vm1534, %v5100, -inf
    %5361 = vmax.xlane.f32.xlu0 %v5360
    %v5362 = vpop.xlane.xlu0 %5361
    %v5363 = vsel %vm1534, %v5105, -inf
    %5364 = vmax.xlane.f32.xlu0 %v5363
    %v5365 = vpop.xlane.xlu0 %5364
    %v5366 = vsel %vm1534, %v5108, -inf
    %5367 = vmax.xlane.f32.xlu0 %v5366
    %v5368 = vpop.xlane.xlu0 %5367
    %v5369 = vsel %vm1534, %v5186, -inf
    %5370 = vmax.xlane.f32.xlu0 %v5369
    %v5371 = vpop.xlane.xlu0 %5370
    %v5372 = vsel %vm1534, %v5189, -inf
    %5373 = vmax.xlane.f32.xlu0 %v5372
    %v5374 = vpop.xlane.xlu0 %5373
    %v5375 = vsel %vm1534, %v5194, -inf
    %5376 = vmax.xlane.f32.xlu0 %v5375
    %v5377 = vpop.xlane.xlu0 %5376
    %v5378 = vsel %vm1534, %v5197, -inf
    %5379 = vmax.xlane.f32.xlu0 %v5378
    %v5380 = vpop.xlane.xlu0 %5379
    %v5381 = vsel %vm1534, %v5202, -inf
    %5382 = vmax.xlane.f32.xlu0 %v5381
    %v5383 = vpop.xlane.xlu0 %5382
    %v5384 = vsel %vm1534, %v5205, -inf
    %5385 = vmax.xlane.f32.xlu0 %v5384
    %v5386 = vpop.xlane.xlu0 %5385
    %v5387 = vsel %vm1534, %v5210, -inf
    %5388 = vmax.xlane.f32.xlu0 %v5387
    %v5389 = vpop.xlane.xlu0 %5388
    %v5390 = vsel %vm1534, %v5213, -inf
    %5391 = vmax.xlane.f32.xlu0 %v5390
    %v5392 = vpop.xlane.xlu0 %5391
    %v5393 = vsel %vm1534, %v5291, -inf
    %5394 = vmax.xlane.f32.xlu0 %v5393
    %v5395 = vpop.xlane.xlu0 %5394
    %v5396 = vsel %vm1534, %v5294, -inf
    %5397 = vmax.xlane.f32.xlu0 %v5396
    %v5398 = vpop.xlane.xlu0 %5397
    %v5399 = vsel %vm1534, %v5299, -inf
    %5400 = vmax.xlane.f32.xlu0 %v5399
    %v5401 = vpop.xlane.xlu0 %5400
    %v5402 = vsel %vm1534, %v5302, -inf
    %5403 = vmax.xlane.f32.xlu0 %v5402
    %v5404 = vpop.xlane.xlu0 %5403
    %v5405 = vsel %vm1534, %v5307, -inf
    %5406 = vmax.xlane.f32.xlu0 %v5405
    %v5407 = vpop.xlane.xlu0 %5406
    %v5408 = vsel %vm1534, %v5310, -inf
    %5409 = vmax.xlane.f32.xlu0 %v5408
    %v5410 = vpop.xlane.xlu0 %5409
    %v5411 = vsel %vm1534, %v5315, -inf
    %5412 = vmax.xlane.f32.xlu0 %v5411
    %v5413 = vpop.xlane.xlu0 %5412
    %v5414 = vsel %vm1534, %v5318, -inf
    %5415 = vmax.xlane.f32.xlu0 %v5414
    %v5416 = vpop.xlane.xlu0 %5415
    %v5417 = vsub.f32 %v4976, %v5323
    %v5418 = vsub.f32 %v4979, %v5326
    %v5419 = vsub.f32 %v4984, %v5329
    %v5420 = vsub.f32 %v4987, %v5332
    %v5421 = vsub.f32 %v4992, %v5335
    %v5422 = vsub.f32 %v4995, %v5338
    %v5423 = vsub.f32 %v5000, %v5341
    %v5424 = vsub.f32 %v5003, %v5344
    %v5425 = vsub.f32 %v5081, %v5347
    %v5426 = vsub.f32 %v5084, %v5350
    %v5427 = vsub.f32 %v5089, %v5353
    %v5428 = vsub.f32 %v5092, %v5356
    %v5429 = vsub.f32 %v5097, %v5359
    %v5430 = vsub.f32 %v5100, %v5362
    %v5431 = vsub.f32 %v5105, %v5365
    %v5432 = vsub.f32 %v5108, %v5368
    %v5433 = vsub.f32 %v5186, %v5371
    %v5434 = vsub.f32 %v5189, %v5374
    %v5435 = vsub.f32 %v5194, %v5377
    %v5436 = vsub.f32 %v5197, %v5380
    %v5437 = vsub.f32 %v5202, %v5383
    %v5438 = vsub.f32 %v5205, %v5386
    %v5439 = vsub.f32 %v5210, %v5389
    %v5440 = vsub.f32 %v5213, %v5392
    %v5441 = vsub.f32 %v5291, %v5395
    %v5442 = vsub.f32 %v5294, %v5398
    %v5443 = vsub.f32 %v5299, %v5401
    %v5444 = vsub.f32 %v5302, %v5404
    %v5445 = vsub.f32 %v5307, %v5407
    %v5446 = vsub.f32 %v5310, %v5410
    %v5447 = vsub.f32 %v5315, %v5413
    %v5448 = vsub.f32 %v5318, %v5416
    %v5449 = vmul.f32 %v5417, 1.442695
    %v5450 = vpow.pop %v5449
    %v5451 = vmul.f32 %v5418, 1.442695
    %v5452 = vpow.pop %v5451
    %v5453 = vmul.f32 %v5419, 1.442695
    %v5454 = vpow.pop %v5453
    %v5455 = vmul.f32 %v5420, 1.442695
    %v5456 = vpow.pop %v5455
    %v5457 = vmul.f32 %v5421, 1.442695
    %v5458 = vpow.pop %v5457
    %v5459 = vmul.f32 %v5422, 1.442695
    %v5460 = vpow.pop %v5459
    %v5461 = vmul.f32 %v5423, 1.442695
    %v5462 = vpow.pop %v5461
    %v5463 = vmul.f32 %v5424, 1.442695
    %v5464 = vpow.pop %v5463
    %v5465 = vmul.f32 %v5425, 1.442695
    %v5466 = vpow.pop %v5465
    %v5467 = vmul.f32 %v5426, 1.442695
    %v5468 = vpow.pop %v5467
    %v5469 = vmul.f32 %v5427, 1.442695
    %v5470 = vpow.pop %v5469
    %v5471 = vmul.f32 %v5428, 1.442695
    %v5472 = vpow.pop %v5471
    %v5473 = vmul.f32 %v5429, 1.442695
    %v5474 = vpow.pop %v5473
    %v5475 = vmul.f32 %v5430, 1.442695
    %v5476 = vpow.pop %v5475
    %v5477 = vmul.f32 %v5431, 1.442695
    %v5478 = vpow.pop %v5477
    %v5479 = vmul.f32 %v5432, 1.442695
    %v5480 = vpow.pop %v5479
    %v5481 = vmul.f32 %v5433, 1.442695
    %v5482 = vpow.pop %v5481
    %v5483 = vmul.f32 %v5434, 1.442695
    %v5484 = vpow.pop %v5483
    %v5485 = vmul.f32 %v5435, 1.442695
    %v5486 = vpow.pop %v5485
    %v5487 = vmul.f32 %v5436, 1.442695
    %v5488 = vpow.pop %v5487
    %v5489 = vmul.f32 %v5437, 1.442695
    %v5490 = vpow.pop %v5489
    %v5491 = vmul.f32 %v5438, 1.442695
    %v5492 = vpow.pop %v5491
    %v5493 = vmul.f32 %v5439, 1.442695
    %v5494 = vpow.pop %v5493
    %v5495 = vmul.f32 %v5440, 1.442695
    %v5496 = vpow.pop %v5495
    %v5497 = vmul.f32 %v5441, 1.442695
    %v5498 = vpow.pop %v5497
    %v5499 = vmul.f32 %v5442, 1.442695
    %v5500 = vpow.pop %v5499
    %v5501 = vmul.f32 %v5443, 1.442695
    %v5502 = vpow.pop %v5501
    %v5503 = vmul.f32 %v5444, 1.442695
    %v5504 = vpow.pop %v5503
    %v5505 = vmul.f32 %v5445, 1.442695
    %v5506 = vpow.pop %v5505
    %v5507 = vmul.f32 %v5446, 1.442695
    %v5508 = vpow.pop %v5507
    %v5509 = vmul.f32 %v5447, 1.442695
    %v5510 = vpow.pop %v5509
    %v5511 = vmul.f32 %v5448, 1.442695
    %v5512 = vpow.pop %v5511
    %v5513 = vsel %vm1534, %v5450, 0.0
    %5514 = vadd.xlane.f32.xlu0 %v5513
    %v5515 = vpop.xlane.xlu0 %5514
    %v5516 = vsel %vm1534, %v5452, 0.0
    %5517 = vadd.xlane.f32.xlu0 %v5516
    %v5518 = vpop.xlane.xlu0 %5517
    %v5519 = vsel %vm1534, %v5454, 0.0
    %5520 = vadd.xlane.f32.xlu0 %v5519
    %v5521 = vpop.xlane.xlu0 %5520
    %v5522 = vsel %vm1534, %v5456, 0.0
    %5523 = vadd.xlane.f32.xlu0 %v5522
    %v5524 = vpop.xlane.xlu0 %5523
    %v5525 = vsel %vm1534, %v5458, 0.0
    %5526 = vadd.xlane.f32.xlu0 %v5525
    %v5527 = vpop.xlane.xlu0 %5526
    %v5528 = vsel %vm1534, %v5460, 0.0
    %5529 = vadd.xlane.f32.xlu0 %v5528
    %v5530 = vpop.xlane.xlu0 %5529
    %v5531 = vsel %vm1534, %v5462, 0.0
    %5532 = vadd.xlane.f32.xlu0 %v5531
    %v5533 = vpop.xlane.xlu0 %5532
    %v5534 = vsel %vm1534, %v5464, 0.0
    %5535 = vadd.xlane.f32.xlu0 %v5534
    %v5536 = vpop.xlane.xlu0 %5535
    %v5537 = vsel %vm1534, %v5466, 0.0
    %5538 = vadd.xlane.f32.xlu0 %v5537
    %v5539 = vpop.xlane.xlu0 %5538
    %v5540 = vsel %vm1534, %v5468, 0.0
    %5541 = vadd.xlane.f32.xlu0 %v5540
    %v5542 = vpop.xlane.xlu0 %5541
    %v5543 = vsel %vm1534, %v5470, 0.0
    %5544 = vadd.xlane.f32.xlu0 %v5543
    %v5545 = vpop.xlane.xlu0 %5544
    %v5546 = vsel %vm1534, %v5472, 0.0
    %5547 = vadd.xlane.f32.xlu0 %v5546
    %v5548 = vpop.xlane.xlu0 %5547
    %v5549 = vsel %vm1534, %v5474, 0.0
    %5550 = vadd.xlane.f32.xlu0 %v5549
    %v5551 = vpop.xlane.xlu0 %5550
    %v5552 = vsel %vm1534, %v5476, 0.0
    %5553 = vadd.xlane.f32.xlu0 %v5552
    %v5554 = vpop.xlane.xlu0 %5553
    %v5555 = vsel %vm1534, %v5478, 0.0
    %5556 = vadd.xlane.f32.xlu0 %v5555
    %v5557 = vpop.xlane.xlu0 %5556
    %v5558 = vsel %vm1534, %v5480, 0.0
    %5559 = vadd.xlane.f32.xlu0 %v5558
    %v5560 = vpop.xlane.xlu0 %5559
    %v5561 = vsel %vm1534, %v5482, 0.0
    %5562 = vadd.xlane.f32.xlu0 %v5561
    %v5563 = vpop.xlane.xlu0 %5562
    %v5564 = vsel %vm1534, %v5484, 0.0
    %5565 = vadd.xlane.f32.xlu0 %v5564
    %v5566 = vpop.xlane.xlu0 %5565
    %v5567 = vsel %vm1534, %v5486, 0.0
    %5568 = vadd.xlane.f32.xlu0 %v5567
    %v5569 = vpop.xlane.xlu0 %5568
    %v5570 = vsel %vm1534, %v5488, 0.0
    %5571 = vadd.xlane.f32.xlu0 %v5570
    %v5572 = vpop.xlane.xlu0 %5571
    %v5573 = vsel %vm1534, %v5490, 0.0
    %5574 = vadd.xlane.f32.xlu0 %v5573
    %v5575 = vpop.xlane.xlu0 %5574
    %v5576 = vsel %vm1534, %v5492, 0.0
    %5577 = vadd.xlane.f32.xlu0 %v5576
    %v5578 = vpop.xlane.xlu0 %5577
    %v5579 = vsel %vm1534, %v5494, 0.0
    %5580 = vadd.xlane.f32.xlu0 %v5579
    %v5581 = vpop.xlane.xlu0 %5580
    %v5582 = vsel %vm1534, %v5496, 0.0
    %5583 = vadd.xlane.f32.xlu0 %v5582
    %v5584 = vpop.xlane.xlu0 %5583
    %v5585 = vsel %vm1534, %v5498, 0.0
    %5586 = vadd.xlane.f32.xlu0 %v5585
    %v5587 = vpop.xlane.xlu0 %5586
    %v5588 = vsel %vm1534, %v5500, 0.0
    %5589 = vadd.xlane.f32.xlu0 %v5588
    %v5590 = vpop.xlane.xlu0 %5589
    %v5591 = vsel %vm1534, %v5502, 0.0
    %5592 = vadd.xlane.f32.xlu0 %v5591
    %v5593 = vpop.xlane.xlu0 %5592
    %v5594 = vsel %vm1534, %v5504, 0.0
    %5595 = vadd.xlane.f32.xlu0 %v5594
    %v5596 = vpop.xlane.xlu0 %5595
    %v5597 = vsel %vm1534, %v5506, 0.0
    %5598 = vadd.xlane.f32.xlu0 %v5597
    %v5599 = vpop.xlane.xlu0 %5598
    %v5600 = vsel %vm1534, %v5508, 0.0
    %5601 = vadd.xlane.f32.xlu0 %v5600
    %v5602 = vpop.xlane.xlu0 %5601
    %v5603 = vsel %vm1534, %v5510, 0.0
    %5604 = vadd.xlane.f32.xlu0 %v5603
    %v5605 = vpop.xlane.xlu0 %5604
    %v5606 = vsel %vm1534, %v5512, 0.0
    %5607 = vadd.xlane.f32.xlu0 %v5606
    %v5608 = vpop.xlane.xlu0 %5607
    %v5609 = vrcp.pop %v5515
    %v5610 = vrcp.pop %v5518
    %v5611 = vrcp.pop %v5521
    %v5612 = vrcp.pop %v5524
    %v5613 = vrcp.pop %v5527
    %v5614 = vrcp.pop %v5530
    %v5615 = vrcp.pop %v5533
    %v5616 = vrcp.pop %v5536
    %v5617 = vrcp.pop %v5539
    %v5618 = vrcp.pop %v5542
    %v5619 = vrcp.pop %v5545
    %v5620 = vrcp.pop %v5548
    %v5621 = vrcp.pop %v5551
    %v5622 = vrcp.pop %v5554
    %v5623 = vrcp.pop %v5557
    %v5624 = vrcp.pop %v5560
    %v5625 = vrcp.pop %v5563
    %v5626 = vrcp.pop %v5566
    %v5627 = vrcp.pop %v5569
    %v5628 = vrcp.pop %v5572
    %v5629 = vrcp.pop %v5575
    %v5630 = vrcp.pop %v5578
    %v5631 = vrcp.pop %v5581
    %v5632 = vrcp.pop %v5584
    %v5633 = vrcp.pop %v5587
    %v5634 = vrcp.pop %v5590
    %v5635 = vrcp.pop %v5593
    %v5636 = vrcp.pop %v5596
    %v5637 = vrcp.pop %v5599
    %v5638 = vrcp.pop %v5602
    %v5639 = vrcp.pop %v5605
    %v5640 = vrcp.pop %v5608
    %v5641 = vmul.f32 %v5450, %v5609
    %v5642 = vmul.f32 %v5452, %v5610
    %v5643 = vmul.f32 %v5454, %v5611
    %v5644 = vmul.f32 %v5456, %v5612
    %v5645 = vmul.f32 %v5458, %v5613
    %v5646 = vmul.f32 %v5460, %v5614
    %v5647 = vmul.f32 %v5462, %v5615
    %v5648 = vmul.f32 %v5464, %v5616
    %v5649 = vmul.f32 %v5466, %v5617
    %v5650 = vmul.f32 %v5468, %v5618
    %v5651 = vmul.f32 %v5470, %v5619
    %v5652 = vmul.f32 %v5472, %v5620
    %v5653 = vmul.f32 %v5474, %v5621
    %v5654 = vmul.f32 %v5476, %v5622
    %v5655 = vmul.f32 %v5478, %v5623
    %v5656 = vmul.f32 %v5480, %v5624
    %v5657 = vmul.f32 %v5482, %v5625
    %v5658 = vmul.f32 %v5484, %v5626
    %v5659 = vmul.f32 %v5486, %v5627
    %v5660 = vmul.f32 %v5488, %v5628
    %v5661 = vmul.f32 %v5490, %v5629
    %v5662 = vmul.f32 %v5492, %v5630
    %v5663 = vmul.f32 %v5494, %v5631
    %v5664 = vmul.f32 %v5496, %v5632
    %v5665 = vmul.f32 %v5498, %v5633
    %v5666 = vmul.f32 %v5500, %v5634
    %v5667 = vmul.f32 %v5502, %v5635
    %v5668 = vmul.f32 %v5504, %v5636
    %v5669 = vmul.f32 %v5506, %v5637
    %v5670 = vmul.f32 %v5508, %v5638
    %v5671 = vmul.f32 %v5510, %v5639
    %v5672 = vmul.f32 %v5512, %v5640
    %v5673 = vpack.c.bf16 %v5642, %v5641
    %v5674 = vpack.c.bf16 %v5644, %v5643
    %v5675 = vpack.c.bf16 %v5646, %v5645
    %v5676 = vpack.c.bf16 %v5648, %v5647
    %v5677 = vpack.c.bf16 %v5650, %v5649
    %v5678 = vpack.c.bf16 %v5652, %v5651
    %v5679 = vpack.c.bf16 %v5654, %v5653
    %v5680 = vpack.c.bf16 %v5656, %v5655
    %v5681 = vpack.c.bf16 %v5658, %v5657
    %v5682 = vpack.c.bf16 %v5660, %v5659
    %v5683 = vpack.c.bf16 %v5662, %v5661
    %v5684 = vpack.c.bf16 %v5664, %v5663
    %v5685 = vpack.c.bf16 %v5666, %v5665
    %v5686 = vpack.c.bf16 %v5668, %v5667
    %v5687 = vpack.c.bf16 %v5670, %v5669
    %v5688 = vpack.c.bf16 %v5672, %v5671
    %5689 = vrot.lane.b32.xlu0 %v1153, 32
    %v5690 = vpop.permute.xlu0 %5689
    %5691 = vrot.lane.b32.xlu0 %v1154, 32
    %v5692 = vpop.permute.xlu0 %5691
    %5693 = vrot.lane.b32.xlu0 %v1155, 32
    %v5694 = vpop.permute.xlu0 %5693
    %5695 = vrot.lane.b32.xlu0 %v1156, 32
    %v5696 = vpop.permute.xlu0 %5695
    %v5702 = vsel %vm1534, %v5673, 0
    %v5705 = vsel %vm1534, %v5674, 0
    %v5708 = vsel %vm1534, %v5675, 0
    %v5711 = vsel %vm1534, %v5676, 0
    %5713 = vmatprep.subr.bf16.mxu0 0
    %5714 = vmatpush1.bf16.msra.mxu0 0
    %5715 = vmatprep.subr.bf16.mxu0 0
    %5716 = vmatpush1.bf16.msra.mxu0 0
    %5717 = vmatprep.subr.bf16.mxu0 0
    %5718 = vmatpush1.bf16.msra.mxu0 0
    %5719 = vmatprep.subr.bf16.mxu0 0
    %5720 = vmatpush1.bf16.msra.mxu0 0
    %5721 = vmatprep.subr.bf16.mxu0 0
    %5722 = vmatpush1.bf16.msra.mxu0 %v5696
    %5723 = vmatprep.subr.bf16.mxu0 0
    %5724 = vmatpush1.bf16.msra.mxu0 %v5694
    %5725 = vmatprep.subr.bf16.mxu0 0
    %5726 = vmatpush1.bf16.msra.mxu0 %v5692
    %5727 = vmatprep.subr.bf16.mxu0 0
    %5728 = vmatpush1.bf16.msra.mxu0 %v5690
    %5729 = vmatprep.subr.bf16.mxu0 0
    %5730 = vmatpush2.bf16.msra.mxu0 0
    %5731 = vmatprep.subr.bf16.mxu0 0
    %5732 = vmatpush2.bf16.msra.mxu0 0
    %5733 = vmatprep.subr.bf16.mxu0 0
    %5734 = vmatpush2.bf16.msra.mxu0 0
    %5735 = vmatprep.subr.bf16.mxu0 0
    %5736 = vmatpush2.bf16.msra.mxu0 0
    %5737 = vmatprep.subr.bf16.mxu0 0
    %5738 = vmatpush2.bf16.msra.mxu0 0
    %5739 = vmatprep.subr.bf16.mxu0 0
    %5740 = vmatpush2.bf16.msra.mxu0 0
    %5741 = vmatprep.subr.bf16.mxu0 0
    %5742 = vmatpush2.bf16.msra.mxu0 0
    %5743 = vmatprep.subr.bf16.mxu0 0
    %5744 = vmatpush2.bf16.msra.mxu0 0
    %5745 = vmatprep.mubr.bf16.mxu0 0
    %5746 = vmatmul.mubr.bf16.gmra.mxu0 %v5702
    %v5747 = vpop.f32.mrf.mxu0
    %v5748 = vadd.f32 0.0, %v5747
    %v5749 = vpop.f32.mrf.mxu0
    %v5750 = vpop.f32.mrf.mxu0
    %v5751 = vadd.f32 0.0, %v5750
    %v5752 = vpop.f32.mrf.mxu0
    %5753 = vmatprep.mubr.bf16.mxu0 0
    %5754 = vmatmul.mubr.bf16.gmra.mxu0 %v5705
    %v5755 = vpop.f32.mrf.mxu0
    %v5756 = vadd.f32 0.0, %v5755
    %v5757 = vpop.f32.mrf.mxu0
    %v5758 = vpop.f32.mrf.mxu0
    %v5759 = vadd.f32 0.0, %v5758
    %v5760 = vpop.f32.mrf.mxu0
    %5761 = vmatprep.mubr.bf16.mxu0 0
    %5762 = vmatmul.mubr.bf16.gmra.mxu0 %v5708
    %v5763 = vpop.f32.mrf.mxu0
    %v5764 = vadd.f32 0.0, %v5763
    %v5765 = vpop.f32.mrf.mxu0
    %v5766 = vpop.f32.mrf.mxu0
    %v5767 = vadd.f32 0.0, %v5766
    %v5768 = vpop.f32.mrf.mxu0
    %5769 = vmatprep.mubr.bf16.mxu0 0
    %5770 = vmatmul.mubr.bf16.gmra.mxu0 %v5711
    %v5771 = vpop.f32.mrf.mxu0
    %v5772 = vadd.f32 0.0, %v5771
    %v5773 = vpop.f32.mrf.mxu0
    %v5774 = vpop.f32.mrf.mxu0
    %v5775 = vadd.f32 0.0, %v5774
    %v5776 = vpop.f32.mrf.mxu0
    %5777 = vdwg.mxu0
    %5778 = vrot.lane.b32.xlu0 %v1157, 32
    %v5779 = vpop.permute.xlu0 %5778
    %5780 = vrot.lane.b32.xlu0 %v1158, 32
    %v5781 = vpop.permute.xlu0 %5780
    %5782 = vrot.lane.b32.xlu0 %v1159, 32
    %v5783 = vpop.permute.xlu0 %5782
    %5784 = vrot.lane.b32.xlu0 %v1160, 32
    %v5785 = vpop.permute.xlu0 %5784
    %v5791 = vsel %vm1534, %v5677, 0
    %v5794 = vsel %vm1534, %v5678, 0
    %v5797 = vsel %vm1534, %v5679, 0
    %v5800 = vsel %vm1534, %v5680, 0
    %5802 = vmatprep.subr.bf16.mxu0 0
    %5803 = vmatpush1.bf16.msra.mxu0 0
    %5804 = vmatprep.subr.bf16.mxu0 0
    %5805 = vmatpush1.bf16.msra.mxu0 0
    %5806 = vmatprep.subr.bf16.mxu0 0
    %5807 = vmatpush1.bf16.msra.mxu0 0
    %5808 = vmatprep.subr.bf16.mxu0 0
    %5809 = vmatpush1.bf16.msra.mxu0 0
    %5810 = vmatprep.subr.bf16.mxu0 0
    %5811 = vmatpush1.bf16.msra.mxu0 %v5785
    %5812 = vmatprep.subr.bf16.mxu0 0
    %5813 = vmatpush1.bf16.msra.mxu0 %v5783
    %5814 = vmatprep.subr.bf16.mxu0 0
    %5815 = vmatpush1.bf16.msra.mxu0 %v5781
    %5816 = vmatprep.subr.bf16.mxu0 0
    %5817 = vmatpush1.bf16.msra.mxu0 %v5779
    %5818 = vmatprep.subr.bf16.mxu0 0
    %5819 = vmatpush2.bf16.msra.mxu0 0
    %5820 = vmatprep.subr.bf16.mxu0 0
    %5821 = vmatpush2.bf16.msra.mxu0 0
    %5822 = vmatprep.subr.bf16.mxu0 0
    %5823 = vmatpush2.bf16.msra.mxu0 0
    %5824 = vmatprep.subr.bf16.mxu0 0
    %5825 = vmatpush2.bf16.msra.mxu0 0
    %5826 = vmatprep.subr.bf16.mxu0 0
    %5827 = vmatpush2.bf16.msra.mxu0 0
    %5828 = vmatprep.subr.bf16.mxu0 0
    %5829 = vmatpush2.bf16.msra.mxu0 0
    %5830 = vmatprep.subr.bf16.mxu0 0
    %5831 = vmatpush2.bf16.msra.mxu0 0
    %5832 = vmatprep.subr.bf16.mxu0 0
    %5833 = vmatpush2.bf16.msra.mxu0 0
    %5834 = vmatprep.mubr.bf16.mxu0 0
    %5835 = vmatmul.mubr.bf16.gmra.mxu0 %v5791
    %v5836 = vpop.f32.mrf.mxu0
    %v5837 = vadd.f32 0.0, %v5836
    %v5838 = vpop.f32.mrf.mxu0
    %v5839 = vpop.f32.mrf.mxu0
    %v5840 = vadd.f32 0.0, %v5839
    %v5841 = vpop.f32.mrf.mxu0
    %5842 = vmatprep.mubr.bf16.mxu0 0
    %5843 = vmatmul.mubr.bf16.gmra.mxu0 %v5794
    %v5844 = vpop.f32.mrf.mxu0
    %v5845 = vadd.f32 0.0, %v5844
    %v5846 = vpop.f32.mrf.mxu0
    %v5847 = vpop.f32.mrf.mxu0
    %v5848 = vadd.f32 0.0, %v5847
    %v5849 = vpop.f32.mrf.mxu0
    %5850 = vmatprep.mubr.bf16.mxu0 0
    %5851 = vmatmul.mubr.bf16.gmra.mxu0 %v5797
    %v5852 = vpop.f32.mrf.mxu0
    %v5853 = vadd.f32 0.0, %v5852
    %v5854 = vpop.f32.mrf.mxu0
    %v5855 = vpop.f32.mrf.mxu0
    %v5856 = vadd.f32 0.0, %v5855
    %v5857 = vpop.f32.mrf.mxu0
    %5858 = vmatprep.mubr.bf16.mxu0 0
    %5859 = vmatmul.mubr.bf16.gmra.mxu0 %v5800
    %v5860 = vpop.f32.mrf.mxu0
    %v5861 = vadd.f32 0.0, %v5860
    %v5862 = vpop.f32.mrf.mxu0
    %v5863 = vpop.f32.mrf.mxu0
    %v5864 = vadd.f32 0.0, %v5863
    %v5865 = vpop.f32.mrf.mxu0
    %5866 = vdwg.mxu0
    %5867 = vrot.lane.b32.xlu0 %v1161, 32
    %v5868 = vpop.permute.xlu0 %5867
    %5869 = vrot.lane.b32.xlu0 %v1162, 32
    %v5870 = vpop.permute.xlu0 %5869
    %5871 = vrot.lane.b32.xlu0 %v1163, 32
    %v5872 = vpop.permute.xlu0 %5871
    %5873 = vrot.lane.b32.xlu0 %v1164, 32
    %v5874 = vpop.permute.xlu0 %5873
    %v5880 = vsel %vm1534, %v5681, 0
    %v5883 = vsel %vm1534, %v5682, 0
    %v5886 = vsel %vm1534, %v5683, 0
    %v5889 = vsel %vm1534, %v5684, 0
    %5891 = vmatprep.subr.bf16.mxu0 0
    %5892 = vmatpush1.bf16.msra.mxu0 0
    %5893 = vmatprep.subr.bf16.mxu0 0
    %5894 = vmatpush1.bf16.msra.mxu0 0
    %5895 = vmatprep.subr.bf16.mxu0 0
    %5896 = vmatpush1.bf16.msra.mxu0 0
    %5897 = vmatprep.subr.bf16.mxu0 0
    %5898 = vmatpush1.bf16.msra.mxu0 0
    %5899 = vmatprep.subr.bf16.mxu0 0
    %5900 = vmatpush1.bf16.msra.mxu0 %v5874
    %5901 = vmatprep.subr.bf16.mxu0 0
    %5902 = vmatpush1.bf16.msra.mxu0 %v5872
    %5903 = vmatprep.subr.bf16.mxu0 0
    %5904 = vmatpush1.bf16.msra.mxu0 %v5870
    %5905 = vmatprep.subr.bf16.mxu0 0
    %5906 = vmatpush1.bf16.msra.mxu0 %v5868
    %5907 = vmatprep.subr.bf16.mxu0 0
    %5908 = vmatpush2.bf16.msra.mxu0 0
    %5909 = vmatprep.subr.bf16.mxu0 0
    %5910 = vmatpush2.bf16.msra.mxu0 0
    %5911 = vmatprep.subr.bf16.mxu0 0
    %5912 = vmatpush2.bf16.msra.mxu0 0
    %5913 = vmatprep.subr.bf16.mxu0 0
    %5914 = vmatpush2.bf16.msra.mxu0 0
    %5915 = vmatprep.subr.bf16.mxu0 0
    %5916 = vmatpush2.bf16.msra.mxu0 0
    %5917 = vmatprep.subr.bf16.mxu0 0
    %5918 = vmatpush2.bf16.msra.mxu0 0
    %5919 = vmatprep.subr.bf16.mxu0 0
    %5920 = vmatpush2.bf16.msra.mxu0 0
    %5921 = vmatprep.subr.bf16.mxu0 0
    %5922 = vmatpush2.bf16.msra.mxu0 0
    %5923 = vmatprep.mubr.bf16.mxu0 0
    %5924 = vmatmul.mubr.bf16.gmra.mxu0 %v5880
    %v5925 = vpop.f32.mrf.mxu0
    %v5926 = vadd.f32 0.0, %v5925
    %v5927 = vpop.f32.mrf.mxu0
    %v5928 = vpop.f32.mrf.mxu0
    %v5929 = vadd.f32 0.0, %v5928
    %v5930 = vpop.f32.mrf.mxu0
    %5931 = vmatprep.mubr.bf16.mxu0 0
    %5932 = vmatmul.mubr.bf16.gmra.mxu0 %v5883
    %v5933 = vpop.f32.mrf.mxu0
    %v5934 = vadd.f32 0.0, %v5933
    %v5935 = vpop.f32.mrf.mxu0
    %v5936 = vpop.f32.mrf.mxu0
    %v5937 = vadd.f32 0.0, %v5936
    %v5938 = vpop.f32.mrf.mxu0
    %5939 = vmatprep.mubr.bf16.mxu0 0
    %5940 = vmatmul.mubr.bf16.gmra.mxu0 %v5886
    %v5941 = vpop.f32.mrf.mxu0
    %v5942 = vadd.f32 0.0, %v5941
    %v5943 = vpop.f32.mrf.mxu0
    %v5944 = vpop.f32.mrf.mxu0
    %v5945 = vadd.f32 0.0, %v5944
    %v5946 = vpop.f32.mrf.mxu0
    %5947 = vmatprep.mubr.bf16.mxu0 0
    %5948 = vmatmul.mubr.bf16.gmra.mxu0 %v5889
    %v5949 = vpop.f32.mrf.mxu0
    %v5950 = vadd.f32 0.0, %v5949
    %v5951 = vpop.f32.mrf.mxu0
    %v5952 = vpop.f32.mrf.mxu0
    %v5953 = vadd.f32 0.0, %v5952
    %v5954 = vpop.f32.mrf.mxu0
    %5955 = vdwg.mxu0
    %5956 = vrot.lane.b32.xlu0 %v1165, 32
    %v5957 = vpop.permute.xlu0 %5956
    %5958 = vrot.lane.b32.xlu0 %v1166, 32
    %v5959 = vpop.permute.xlu0 %5958
    %5960 = vrot.lane.b32.xlu0 %v1167, 32
    %v5961 = vpop.permute.xlu0 %5960
    %5962 = vrot.lane.b32.xlu0 %v1168, 32
    %v5963 = vpop.permute.xlu0 %5962
    %v5969 = vsel %vm1534, %v5685, 0
    %v5972 = vsel %vm1534, %v5686, 0
    %v5975 = vsel %vm1534, %v5687, 0
    %v5978 = vsel %vm1534, %v5688, 0
    %5980 = vmatprep.subr.bf16.mxu0 0
    %5981 = vmatpush1.bf16.msra.mxu0 0
    %5982 = vmatprep.subr.bf16.mxu0 0
    %5983 = vmatpush1.bf16.msra.mxu0 0
    %5984 = vmatprep.subr.bf16.mxu0 0
    %5985 = vmatpush1.bf16.msra.mxu0 0
    %5986 = vmatprep.subr.bf16.mxu0 0
    %5987 = vmatpush1.bf16.msra.mxu0 0
    %5988 = vmatprep.subr.bf16.mxu0 0
    %5989 = vmatpush1.bf16.msra.mxu0 %v5963
    %5990 = vmatprep.subr.bf16.mxu0 0
    %5991 = vmatpush1.bf16.msra.mxu0 %v5961
    %5992 = vmatprep.subr.bf16.mxu0 0
    %5993 = vmatpush1.bf16.msra.mxu0 %v5959
    %5994 = vmatprep.subr.bf16.mxu0 0
    %5995 = vmatpush1.bf16.msra.mxu0 %v5957
    %5996 = vmatprep.subr.bf16.mxu0 0
    %5997 = vmatpush2.bf16.msra.mxu0 0
    %5998 = vmatprep.subr.bf16.mxu0 0
    %5999 = vmatpush2.bf16.msra.mxu0 0
    %6000 = vmatprep.subr.bf16.mxu0 0
    %6001 = vmatpush2.bf16.msra.mxu0 0
    %6002 = vmatprep.subr.bf16.mxu0 0
    %6003 = vmatpush2.bf16.msra.mxu0 0
    %6004 = vmatprep.subr.bf16.mxu0 0
    %6005 = vmatpush2.bf16.msra.mxu0 0
    %6006 = vmatprep.subr.bf16.mxu0 0
    %6007 = vmatpush2.bf16.msra.mxu0 0
    %6008 = vmatprep.subr.bf16.mxu0 0
    %6009 = vmatpush2.bf16.msra.mxu0 0
    %6010 = vmatprep.subr.bf16.mxu0 0
    %6011 = vmatpush2.bf16.msra.mxu0 0
    %6012 = vmatprep.mubr.bf16.mxu0 0
    %6013 = vmatmul.mubr.bf16.gmra.mxu0 %v5969
    %v6014 = vpop.f32.mrf.mxu0
    %v6015 = vadd.f32 0.0, %v6014
    %v6016 = vpop.f32.mrf.mxu0
    %v6017 = vpop.f32.mrf.mxu0
    %v6018 = vadd.f32 0.0, %v6017
    %v6019 = vpop.f32.mrf.mxu0
    %6020 = vmatprep.mubr.bf16.mxu0 0
    %6021 = vmatmul.mubr.bf16.gmra.mxu0 %v5972
    %v6022 = vpop.f32.mrf.mxu0
    %v6023 = vadd.f32 0.0, %v6022
    %v6024 = vpop.f32.mrf.mxu0
    %v6025 = vpop.f32.mrf.mxu0
    %v6026 = vadd.f32 0.0, %v6025
    %v6027 = vpop.f32.mrf.mxu0
    %6028 = vmatprep.mubr.bf16.mxu0 0
    %6029 = vmatmul.mubr.bf16.gmra.mxu0 %v5975
    %v6030 = vpop.f32.mrf.mxu0
    %v6031 = vadd.f32 0.0, %v6030
    %v6032 = vpop.f32.mrf.mxu0
    %v6033 = vpop.f32.mrf.mxu0
    %v6034 = vadd.f32 0.0, %v6033
    %v6035 = vpop.f32.mrf.mxu0
    %6036 = vmatprep.mubr.bf16.mxu0 0
    %6037 = vmatmul.mubr.bf16.gmra.mxu0 %v5978
    %v6038 = vpop.f32.mrf.mxu0
    %v6039 = vadd.f32 0.0, %v6038
    %v6040 = vpop.f32.mrf.mxu0
    %v6041 = vpop.f32.mrf.mxu0
    %v6042 = vadd.f32 0.0, %v6041
    %v6043 = vpop.f32.mrf.mxu0
    %6044 = vdwg.mxu0
    %6077 = vrot.lane.b32.xlu0 %v5748, 96
    %v6078 = vpop.permute.xlu0 %6077
    %6079 = vrot.lane.b32.xlu0 %v5751, 96
    %v6080 = vpop.permute.xlu0 %6079
    %6081 = vrot.lane.b32.xlu0 %v5756, 96
    %v6082 = vpop.permute.xlu0 %6081
    %6083 = vrot.lane.b32.xlu0 %v5759, 96
    %v6084 = vpop.permute.xlu0 %6083
    %6085 = vrot.lane.b32.xlu0 %v5764, 96
    %v6086 = vpop.permute.xlu0 %6085
    %6087 = vrot.lane.b32.xlu0 %v5767, 96
    %v6088 = vpop.permute.xlu0 %6087
    %6089 = vrot.lane.b32.xlu0 %v5772, 96
    %v6090 = vpop.permute.xlu0 %6089
    %6091 = vrot.lane.b32.xlu0 %v5775, 96
    %v6092 = vpop.permute.xlu0 %6091
    %6093 = vrot.lane.b32.xlu0 %v5837, 96
    %v6094 = vpop.permute.xlu0 %6093
    %6095 = vrot.lane.b32.xlu0 %v5840, 96
    %v6096 = vpop.permute.xlu0 %6095
    %6097 = vrot.lane.b32.xlu0 %v5845, 96
    %v6098 = vpop.permute.xlu0 %6097
    %6099 = vrot.lane.b32.xlu0 %v5848, 96
    %v6100 = vpop.permute.xlu0 %6099
    %6101 = vrot.lane.b32.xlu0 %v5853, 96
    %v6102 = vpop.permute.xlu0 %6101
    %6103 = vrot.lane.b32.xlu0 %v5856, 96
    %v6104 = vpop.permute.xlu0 %6103
    %6105 = vrot.lane.b32.xlu0 %v5861, 96
    %v6106 = vpop.permute.xlu0 %6105
    %6107 = vrot.lane.b32.xlu0 %v5864, 96
    %v6108 = vpop.permute.xlu0 %6107
    %6109 = vrot.lane.b32.xlu0 %v5926, 96
    %v6110 = vpop.permute.xlu0 %6109
    %6111 = vrot.lane.b32.xlu0 %v5929, 96
    %v6112 = vpop.permute.xlu0 %6111
    %6113 = vrot.lane.b32.xlu0 %v5934, 96
    %v6114 = vpop.permute.xlu0 %6113
    %6115 = vrot.lane.b32.xlu0 %v5937, 96
    %v6116 = vpop.permute.xlu0 %6115
    %6117 = vrot.lane.b32.xlu0 %v5942, 96
    %v6118 = vpop.permute.xlu0 %6117
    %6119 = vrot.lane.b32.xlu0 %v5945, 96
    %v6120 = vpop.permute.xlu0 %6119
    %6121 = vrot.lane.b32.xlu0 %v5950, 96
    %v6122 = vpop.permute.xlu0 %6121
    %6123 = vrot.lane.b32.xlu0 %v5953, 96
    %v6124 = vpop.permute.xlu0 %6123
    %6125 = vrot.lane.b32.xlu0 %v6015, 96
    %v6126 = vpop.permute.xlu0 %6125
    %6127 = vrot.lane.b32.xlu0 %v6018, 96
    %v6128 = vpop.permute.xlu0 %6127
    %6129 = vrot.lane.b32.xlu0 %v6023, 96
    %v6130 = vpop.permute.xlu0 %6129
    %6131 = vrot.lane.b32.xlu0 %v6026, 96
    %v6132 = vpop.permute.xlu0 %6131
    %6133 = vrot.lane.b32.xlu0 %v6031, 96
    %v6134 = vpop.permute.xlu0 %6133
    %6135 = vrot.lane.b32.xlu0 %v6034, 96
    %v6136 = vpop.permute.xlu0 %6135
    %6137 = vrot.lane.b32.xlu0 %v6039, 96
    %v6138 = vpop.permute.xlu0 %6137
    %6139 = vrot.lane.b32.xlu0 %v6042, 96
    %v6140 = vpop.permute.xlu0 %6139
    %vm6173 = vcmask 1048320
    %6174 = vst.msk [vmem:[#allocation2] sm:$0xff] %vm6173, %v6078
    %6175 = vst.msk [vmem:[#allocation2 + $0x8] sm:$0xff] %vm6173, %v6080
    %6176 = vst.msk [vmem:[#allocation2 + $0x10] sm:$0xff] %vm6173, %v6082
    %6177 = vst.msk [vmem:[#allocation2 + $0x18] sm:$0xff] %vm6173, %v6084
    %6178 = vst.msk [vmem:[#allocation2 + $0x20] sm:$0xff] %vm6173, %v6086
    %6179 = vst.msk [vmem:[#allocation2 + $0x28] sm:$0xff] %vm6173, %v6088
    %6180 = vst.msk [vmem:[#allocation2 + $0x30] sm:$0xff] %vm6173, %v6090
    %6181 = vst.msk [vmem:[#allocation2 + $0x38] sm:$0xff] %vm6173, %v6092
    %6182 = vst.msk [vmem:[#allocation2 + $0x40] sm:$0xff] %vm6173, %v6094
    %6183 = vst.msk [vmem:[#allocation2 + $0x48] sm:$0xff] %vm6173, %v6096
    %6184 = vst.msk [vmem:[#allocation2 + $0x50] sm:$0xff] %vm6173, %v6098
    %6185 = vst.msk [vmem:[#allocation2 + $0x58] sm:$0xff] %vm6173, %v6100
    %6186 = vst.msk [vmem:[#allocation2 + $0x60] sm:$0xff] %vm6173, %v6102
    %6187 = vst.msk [vmem:[#allocation2 + $0x68] sm:$0xff] %vm6173, %v6104
    %6188 = vst.msk [vmem:[#allocation2 + $0x70] sm:$0xff] %vm6173, %v6106
    %6189 = vst.msk [vmem:[#allocation2 + $0x78] sm:$0xff] %vm6173, %v6108
    %6190 = vst.msk [vmem:[#allocation2 + $0x80] sm:$0xff] %vm6173, %v6110
    %6191 = vst.msk [vmem:[#allocation2 + $0x88] sm:$0xff] %vm6173, %v6112
    %6192 = vst.msk [vmem:[#allocation2 + $0x90] sm:$0xff] %vm6173, %v6114
    %6193 = vst.msk [vmem:[#allocation2 + $0x98] sm:$0xff] %vm6173, %v6116
    %6194 = vst.msk [vmem:[#allocation2 + $0xa0] sm:$0xff] %vm6173, %v6118
    %6195 = vst.msk [vmem:[#allocation2 + $0xa8] sm:$0xff] %vm6173, %v6120
    %6196 = vst.msk [vmem:[#allocation2 + $0xb0] sm:$0xff] %vm6173, %v6122
    %6197 = vst.msk [vmem:[#allocation2 + $0xb8] sm:$0xff] %vm6173, %v6124
    %6198 = vst.msk [vmem:[#allocation2 + $0xc0] sm:$0xff] %vm6173, %v6126
    %6199 = vst.msk [vmem:[#allocation2 + $0xc8] sm:$0xff] %vm6173, %v6128
    %6200 = vst.msk [vmem:[#allocation2 + $0xd0] sm:$0xff] %vm6173, %v6130
    %6201 = vst.msk [vmem:[#allocation2 + $0xd8] sm:$0xff] %vm6173, %v6132
    %6202 = vst.msk [vmem:[#allocation2 + $0xe0] sm:$0xff] %vm6173, %v6134
    %6203 = vst.msk [vmem:[#allocation2 + $0xe8] sm:$0xff] %vm6173, %v6136
    %6204 = vst.msk [vmem:[#allocation2 + $0xf0] sm:$0xff] %vm6173, %v6138
    %6205 = vst.msk [vmem:[#allocation2 + $0xf8] sm:$0xff] %vm6173, %v6140
    %v6206 = vld [vmem:[#allocation2] sm:$0xff]
    %v6207 = vld [vmem:[#allocation2 + $0x8] sm:$0xff]
    %v6208 = vld [vmem:[#allocation2 + $0x10] sm:$0xff]
    %v6209 = vld [vmem:[#allocation2 + $0x18] sm:$0xff]
    %v6210 = vld [vmem:[#allocation2 + $0x20] sm:$0xff]
    %v6211 = vld [vmem:[#allocation2 + $0x28] sm:$0xff]
    %v6212 = vld [vmem:[#allocation2 + $0x30] sm:$0xff]
    %v6213 = vld [vmem:[#allocation2 + $0x38] sm:$0xff]
    %v6214 = vld [vmem:[#allocation2 + $0x40] sm:$0xff]
    %v6215 = vld [vmem:[#allocation2 + $0x48] sm:$0xff]
    %v6216 = vld [vmem:[#allocation2 + $0x50] sm:$0xff]
    %v6217 = vld [vmem:[#allocation2 + $0x58] sm:$0xff]
    %v6218 = vld [vmem:[#allocation2 + $0x60] sm:$0xff]
    %v6219 = vld [vmem:[#allocation2 + $0x68] sm:$0xff]
    %v6220 = vld [vmem:[#allocation2 + $0x70] sm:$0xff]
    %v6221 = vld [vmem:[#allocation2 + $0x78] sm:$0xff]
    %v6222 = vld [vmem:[#allocation2 + $0x80] sm:$0xff]
    %v6223 = vld [vmem:[#allocation2 + $0x88] sm:$0xff]
    %v6224 = vld [vmem:[#allocation2 + $0x90] sm:$0xff]
    %v6225 = vld [vmem:[#allocation2 + $0x98] sm:$0xff]
    %v6226 = vld [vmem:[#allocation2 + $0xa0] sm:$0xff]
    %v6227 = vld [vmem:[#allocation2 + $0xa8] sm:$0xff]
    %v6228 = vld [vmem:[#allocation2 + $0xb0] sm:$0xff]
    %v6229 = vld [vmem:[#allocation2 + $0xb8] sm:$0xff]
    %v6230 = vld [vmem:[#allocation2 + $0xc0] sm:$0xff]
    %v6231 = vld [vmem:[#allocation2 + $0xc8] sm:$0xff]
    %v6232 = vld [vmem:[#allocation2 + $0xd0] sm:$0xff]
    %v6233 = vld [vmem:[#allocation2 + $0xd8] sm:$0xff]
    %v6234 = vld [vmem:[#allocation2 + $0xe0] sm:$0xff]
    %v6235 = vld [vmem:[#allocation2 + $0xe8] sm:$0xff]
    %v6236 = vld [vmem:[#allocation2 + $0xf0] sm:$0xff]
    %v6237 = vld [vmem:[#allocation2 + $0xf8] sm:$0xff]
    %v6238 = vpack.c.bf16 %v6207, %v6206
    %v6239 = vpack.c.bf16 %v6209, %v6208
    %v6240 = vpack.c.bf16 %v6211, %v6210
    %v6241 = vpack.c.bf16 %v6213, %v6212
    %v6242 = vpack.c.bf16 %v6215, %v6214
    %v6243 = vpack.c.bf16 %v6217, %v6216
    %v6244 = vpack.c.bf16 %v6219, %v6218
    %v6245 = vpack.c.bf16 %v6221, %v6220
    %v6246 = vpack.c.bf16 %v6223, %v6222
    %v6247 = vpack.c.bf16 %v6225, %v6224
    %v6248 = vpack.c.bf16 %v6227, %v6226
    %v6249 = vpack.c.bf16 %v6229, %v6228
    %v6250 = vpack.c.bf16 %v6231, %v6230
    %v6251 = vpack.c.bf16 %v6233, %v6232
    %v6252 = vpack.c.bf16 %v6235, %v6234
    %v6253 = vpack.c.bf16 %v6237, %v6236
    %v6254 = vld [vmem:[#allocation9] sm:$0xf]
    %v6255 = vld [vmem:[#allocation9 + $0x4] sm:$0xf]
    %v6256 = vld [vmem:[#allocation9 + $0x8] sm:$0xf]
    %v6257 = vld [vmem:[#allocation9 + $0xc] sm:$0xf]
    %v6258 = vld [vmem:[#allocation9 + $0x10] sm:$0xf]
    %v6259 = vld [vmem:[#allocation9 + $0x14] sm:$0xf]
    %v6260 = vld [vmem:[#allocation9 + $0x18] sm:$0xf]
    %v6261 = vld [vmem:[#allocation9 + $0x1c] sm:$0xf]
    %v6262 = vld [vmem:[#allocation9 + $0x20] sm:$0xf]
    %v6263 = vld [vmem:[#allocation9 + $0x24] sm:$0xf]
    %v6264 = vld [vmem:[#allocation9 + $0x28] sm:$0xf]
    %v6265 = vld [vmem:[#allocation9 + $0x2c] sm:$0xf]
    %v6266 = vld [vmem:[#allocation9 + $0x30] sm:$0xf]
    %v6267 = vld [vmem:[#allocation9 + $0x34] sm:$0xf]
    %v6268 = vld [vmem:[#allocation9 + $0x38] sm:$0xf]
    %v6269 = vld [vmem:[#allocation9 + $0x3c] sm:$0xf]
    %v6270 = vld [vmem:[%s6] sm:$0x1]
    %v6272 = vlaneseq
    %v6273 = vshrl.u32 %v6272, 7
    %v6274 = vsub.s32 0, %v6273
    %v6275 = vrot.slane %v6270, %v6274
    %v6293 = vunpack.c.l.b16 %v6254
    %v6294 = vunpack.c.l.b16 %v6255
    %v6295 = vunpack.c.l.b16 %v6256
    %v6296 = vunpack.c.l.b16 %v6257
    %v6297 = vunpack.c.l.b16 %v6258
    %v6298 = vunpack.c.l.b16 %v6259
    %v6299 = vunpack.c.l.b16 %v6260
    %v6300 = vunpack.c.l.b16 %v6261
    %v6301 = vunpack.c.l.b16 %v6262
    %v6302 = vunpack.c.l.b16 %v6263
    %v6303 = vunpack.c.l.b16 %v6264
    %v6304 = vunpack.c.l.b16 %v6265
    %v6305 = vunpack.c.l.b16 %v6266
    %v6306 = vunpack.c.l.b16 %v6267
    %v6307 = vunpack.c.l.b16 %v6268
    %v6308 = vunpack.c.l.b16 %v6269
    %v6309 = vpack.c.b16 %v6294, %v6293
    %v6310 = vpack.c.b16 %v6296, %v6295
    %v6311 = vpack.c.b16 %v6298, %v6297
    %v6312 = vpack.c.b16 %v6300, %v6299
    %v6313 = vpack.c.b16 %v6302, %v6301
    %v6314 = vpack.c.b16 %v6304, %v6303
    %v6315 = vpack.c.b16 %v6306, %v6305
    %v6316 = vpack.c.b16 %v6308, %v6307
    %6325 = vmatprep.subr.bf16.mxu0 0
    %6326 = vmatpush1.bf16.msra.mxu0 %v6316
    %6327 = vmatprep.subr.bf16.mxu0 0
    %6328 = vmatpush1.bf16.msra.mxu0 %v6315
    %6329 = vmatprep.subr.bf16.mxu0 0
    %6330 = vmatpush1.bf16.msra.mxu0 %v6314
    %6331 = vmatprep.subr.bf16.mxu0 0
    %6332 = vmatpush1.bf16.msra.mxu0 %v6313
    %6333 = vmatprep.subr.bf16.mxu0 0
    %6334 = vmatpush1.bf16.msra.mxu0 %v6312
    %6335 = vmatprep.subr.bf16.mxu0 0
    %6336 = vmatpush1.bf16.msra.mxu0 %v6311
    %6337 = vmatprep.subr.bf16.mxu0 0
    %6338 = vmatpush1.bf16.msra.mxu0 %v6310
    %6339 = vmatprep.subr.bf16.mxu0 0
    %6340 = vmatpush1.bf16.msra.mxu0 %v6309
    %6341 = vmatprep.subr.bf16.mxu0 0
    %6342 = vmatpush2.bf16.msra.mxu0 0
    %6343 = vmatprep.subr.bf16.mxu0 0
    %6344 = vmatpush2.bf16.msra.mxu0 0
    %6345 = vmatprep.subr.bf16.mxu0 0
    %6346 = vmatpush2.bf16.msra.mxu0 0
    %6347 = vmatprep.subr.bf16.mxu0 0
    %6348 = vmatpush2.bf16.msra.mxu0 0
    %6349 = vmatprep.subr.bf16.mxu0 0
    %6350 = vmatpush2.bf16.msra.mxu0 0
    %6351 = vmatprep.subr.bf16.mxu0 0
    %6352 = vmatpush2.bf16.msra.mxu0 0
    %6353 = vmatprep.subr.bf16.mxu0 0
    %6354 = vmatpush2.bf16.msra.mxu0 0
    %6355 = vmatprep.subr.bf16.mxu0 0
    %6356 = vmatpush2.bf16.msra.mxu0 0
    %6357 = vmatprep.mubr.bf16.mxu0 0
    %6358 = vmatmul.mubr.bf16.gmra.mxu0 %v6238
    %v6359 = vpop.f32.mrf.mxu0
    %v6360 = vadd.f32 %v6275, %v6359
    %v6361 = vpop.f32.mrf.mxu0
    %v6362 = vpop.f32.mrf.mxu0
    %v6363 = vadd.f32 %v6275, %v6362
    %v6364 = vpop.f32.mrf.mxu0
    %6365 = vmatprep.mubr.bf16.mxu0 0
    %6366 = vmatmul.mubr.bf16.gmra.mxu0 %v6239
    %v6367 = vpop.f32.mrf.mxu0
    %v6368 = vadd.f32 %v6275, %v6367
    %v6369 = vpop.f32.mrf.mxu0
    %v6370 = vpop.f32.mrf.mxu0
    %v6371 = vadd.f32 %v6275, %v6370
    %v6372 = vpop.f32.mrf.mxu0
    %6373 = vmatprep.mubr.bf16.mxu0 0
    %6374 = vmatmul.mubr.bf16.gmra.mxu0 %v6240
    %v6375 = vpop.f32.mrf.mxu0
    %v6376 = vadd.f32 %v6275, %v6375
    %v6377 = vpop.f32.mrf.mxu0
    %v6378 = vpop.f32.mrf.mxu0
    %v6379 = vadd.f32 %v6275, %v6378
    %v6380 = vpop.f32.mrf.mxu0
    %6381 = vmatprep.mubr.bf16.mxu0 0
    %6382 = vmatmul.mubr.bf16.gmra.mxu0 %v6241
    %v6383 = vpop.f32.mrf.mxu0
    %v6384 = vadd.f32 %v6275, %v6383
    %v6385 = vpop.f32.mrf.mxu0
    %v6386 = vpop.f32.mrf.mxu0
    %v6387 = vadd.f32 %v6275, %v6386
    %v6388 = vpop.f32.mrf.mxu0
    %6389 = vmatprep.mubr.bf16.mxu0 0
    %6390 = vmatmul.mubr.bf16.gmra.mxu0 %v6242
    %v6391 = vpop.f32.mrf.mxu0
    %v6392 = vadd.f32 %v6275, %v6391
    %v6393 = vpop.f32.mrf.mxu0
    %v6394 = vpop.f32.mrf.mxu0
    %v6395 = vadd.f32 %v6275, %v6394
    %v6396 = vpop.f32.mrf.mxu0
    %6397 = vmatprep.mubr.bf16.mxu0 0
    %6398 = vmatmul.mubr.bf16.gmra.mxu0 %v6243
    %v6399 = vpop.f32.mrf.mxu0
    %v6400 = vadd.f32 %v6275, %v6399
    %v6401 = vpop.f32.mrf.mxu0
    %v6402 = vpop.f32.mrf.mxu0
    %v6403 = vadd.f32 %v6275, %v6402
    %v6404 = vpop.f32.mrf.mxu0
    %6405 = vmatprep.mubr.bf16.mxu0 0
    %6406 = vmatmul.mubr.bf16.gmra.mxu0 %v6244
    %v6407 = vpop.f32.mrf.mxu0
    %v6408 = vadd.f32 %v6275, %v6407
    %v6409 = vpop.f32.mrf.mxu0
    %v6410 = vpop.f32.mrf.mxu0
    %v6411 = vadd.f32 %v6275, %v6410
    %v6412 = vpop.f32.mrf.mxu0
    %6413 = vmatprep.mubr.bf16.mxu0 0
    %6414 = vmatmul.mubr.bf16.gmra.mxu0 %v6245
    %v6415 = vpop.f32.mrf.mxu0
    %v6416 = vadd.f32 %v6275, %v6415
    %v6417 = vpop.f32.mrf.mxu0
    %v6418 = vpop.f32.mrf.mxu0
    %v6419 = vadd.f32 %v6275, %v6418
    %v6420 = vpop.f32.mrf.mxu0
    %6421 = vmatprep.mubr.bf16.mxu0 0
    %6422 = vmatmul.mubr.bf16.gmra.mxu0 %v6246
    %v6423 = vpop.f32.mrf.mxu0
    %v6424 = vadd.f32 %v6275, %v6423
    %v6425 = vpop.f32.mrf.mxu0
    %v6426 = vpop.f32.mrf.mxu0
    %v6427 = vadd.f32 %v6275, %v6426
    %v6428 = vpop.f32.mrf.mxu0
    %6429 = vmatprep.mubr.bf16.mxu0 0
    %6430 = vmatmul.mubr.bf16.gmra.mxu0 %v6247
    %v6431 = vpop.f32.mrf.mxu0
    %v6432 = vadd.f32 %v6275, %v6431
    %v6433 = vpop.f32.mrf.mxu0
    %v6434 = vpop.f32.mrf.mxu0
    %v6435 = vadd.f32 %v6275, %v6434
    %v6436 = vpop.f32.mrf.mxu0
    %6437 = vmatprep.mubr.bf16.mxu0 0
    %6438 = vmatmul.mubr.bf16.gmra.mxu0 %v6248
    %v6439 = vpop.f32.mrf.mxu0
    %v6440 = vadd.f32 %v6275, %v6439
    %v6441 = vpop.f32.mrf.mxu0
    %v6442 = vpop.f32.mrf.mxu0
    %v6443 = vadd.f32 %v6275, %v6442
    %v6444 = vpop.f32.mrf.mxu0
    %6445 = vmatprep.mubr.bf16.mxu0 0
    %6446 = vmatmul.mubr.bf16.gmra.mxu0 %v6249
    %v6447 = vpop.f32.mrf.mxu0
    %v6448 = vadd.f32 %v6275, %v6447
    %v6449 = vpop.f32.mrf.mxu0
    %v6450 = vpop.f32.mrf.mxu0
    %v6451 = vadd.f32 %v6275, %v6450
    %v6452 = vpop.f32.mrf.mxu0
    %6453 = vmatprep.mubr.bf16.mxu0 0
    %6454 = vmatmul.mubr.bf16.gmra.mxu0 %v6250
    %v6455 = vpop.f32.mrf.mxu0
    %v6456 = vadd.f32 %v6275, %v6455
    %v6457 = vpop.f32.mrf.mxu0
    %v6458 = vpop.f32.mrf.mxu0
    %v6459 = vadd.f32 %v6275, %v6458
    %v6460 = vpop.f32.mrf.mxu0
    %6461 = vmatprep.mubr.bf16.mxu0 0
    %6462 = vmatmul.mubr.bf16.gmra.mxu0 %v6251
    %v6463 = vpop.f32.mrf.mxu0
    %v6464 = vadd.f32 %v6275, %v6463
    %v6465 = vpop.f32.mrf.mxu0
    %v6466 = vpop.f32.mrf.mxu0
    %v6467 = vadd.f32 %v6275, %v6466
    %v6468 = vpop.f32.mrf.mxu0
    %6469 = vmatprep.mubr.bf16.mxu0 0
    %6470 = vmatmul.mubr.bf16.gmra.mxu0 %v6252
    %v6471 = vpop.f32.mrf.mxu0
    %v6472 = vadd.f32 %v6275, %v6471
    %v6473 = vpop.f32.mrf.mxu0
    %v6474 = vpop.f32.mrf.mxu0
    %v6475 = vadd.f32 %v6275, %v6474
    %v6476 = vpop.f32.mrf.mxu0
    %6477 = vmatprep.mubr.bf16.mxu0 0
    %6478 = vmatmul.mubr.bf16.gmra.mxu0 %v6253
    %v6479 = vpop.f32.mrf.mxu0
    %v6480 = vadd.f32 %v6275, %v6479
    %v6481 = vpop.f32.mrf.mxu0
    %v6482 = vpop.f32.mrf.mxu0
    %v6483 = vadd.f32 %v6275, %v6482
    %v6484 = vpop.f32.mrf.mxu0
    %6485 = vdwg.mxu0
    %v6486 = vadd.f32 %v128, %v6360
    %v6487 = vadd.f32 %v129, %v6363
    %v6488 = vadd.f32 %v130, %v6368
    %v6489 = vadd.f32 %v131, %v6371
    %v6490 = vadd.f32 %v132, %v6376
    %v6491 = vadd.f32 %v133, %v6379
    %v6492 = vadd.f32 %v134, %v6384
    %v6493 = vadd.f32 %v135, %v6387
    %v6494 = vadd.f32 %v136, %v6392
    %v6495 = vadd.f32 %v137, %v6395
    %v6496 = vadd.f32 %v138, %v6400
    %v6497 = vadd.f32 %v139, %v6403
    %v6498 = vadd.f32 %v140, %v6408
    %v6499 = vadd.f32 %v141, %v6411
    %v6500 = vadd.f32 %v142, %v6416
    %v6501 = vadd.f32 %v143, %v6419
    %v6502 = vadd.f32 %v144, %v6424
    %v6503 = vadd.f32 %v145, %v6427
    %v6504 = vadd.f32 %v146, %v6432
    %v6505 = vadd.f32 %v147, %v6435
    %v6506 = vadd.f32 %v148, %v6440
    %v6507 = vadd.f32 %v149, %v6443
    %v6508 = vadd.f32 %v150, %v6448
    %v6509 = vadd.f32 %v151, %v6451
    %v6510 = vadd.f32 %v152, %v6456
    %v6511 = vadd.f32 %v153, %v6459
    %v6512 = vadd.f32 %v154, %v6464
    %v6513 = vadd.f32 %v155, %v6467
    %v6514 = vadd.f32 %v156, %v6472
    %v6515 = vadd.f32 %v157, %v6475
    %v6516 = vadd.f32 %v158, %v6480
    %v6517 = vadd.f32 %v159, %v6483
    %v6518 = vld [vmem:[%s7] sm:$0x1]
    %v6519 = vld [vmem:[%s8] sm:$0x1]
    %6520 = vadd.xlane.f32.xlu0 %v6486
    %v6521 = vpop.xlane.xlu0 %6520
    %6522 = vadd.xlane.f32.xlu0 %v6487
    %v6523 = vpop.xlane.xlu0 %6522
    %6524 = vadd.xlane.f32.xlu0 %v6488
    %v6525 = vpop.xlane.xlu0 %6524
    %6526 = vadd.xlane.f32.xlu0 %v6489
    %v6527 = vpop.xlane.xlu0 %6526
    %6528 = vadd.xlane.f32.xlu0 %v6490
    %v6529 = vpop.xlane.xlu0 %6528
    %6530 = vadd.xlane.f32.xlu0 %v6491
    %v6531 = vpop.xlane.xlu0 %6530
    %6532 = vadd.xlane.f32.xlu0 %v6492
    %v6533 = vpop.xlane.xlu0 %6532
    %6534 = vadd.xlane.f32.xlu0 %v6493
    %v6535 = vpop.xlane.xlu0 %6534
    %6536 = vadd.xlane.f32.xlu0 %v6494
    %v6537 = vpop.xlane.xlu0 %6536
    %6538 = vadd.xlane.f32.xlu0 %v6495
    %v6539 = vpop.xlane.xlu0 %6538
    %6540 = vadd.xlane.f32.xlu0 %v6496
    %v6541 = vpop.xlane.xlu0 %6540
    %6542 = vadd.xlane.f32.xlu0 %v6497
    %v6543 = vpop.xlane.xlu0 %6542
    %6544 = vadd.xlane.f32.xlu0 %v6498
    %v6545 = vpop.xlane.xlu0 %6544
    %6546 = vadd.xlane.f32.xlu0 %v6499
    %v6547 = vpop.xlane.xlu0 %6546
    %6548 = vadd.xlane.f32.xlu0 %v6500
    %v6549 = vpop.xlane.xlu0 %6548
    %6550 = vadd.xlane.f32.xlu0 %v6501
    %v6551 = vpop.xlane.xlu0 %6550
    %6552 = vadd.xlane.f32.xlu0 %v6502
    %v6553 = vpop.xlane.xlu0 %6552
    %6554 = vadd.xlane.f32.xlu0 %v6503
    %v6555 = vpop.xlane.xlu0 %6554
    %6556 = vadd.xlane.f32.xlu0 %v6504
    %v6557 = vpop.xlane.xlu0 %6556
    %6558 = vadd.xlane.f32.xlu0 %v6505
    %v6559 = vpop.xlane.xlu0 %6558
    %6560 = vadd.xlane.f32.xlu0 %v6506
    %v6561 = vpop.xlane.xlu0 %6560
    %6562 = vadd.xlane.f32.xlu0 %v6507
    %v6563 = vpop.xlane.xlu0 %6562
    %6564 = vadd.xlane.f32.xlu0 %v6508
    %v6565 = vpop.xlane.xlu0 %6564
    %6566 = vadd.xlane.f32.xlu0 %v6509
    %v6567 = vpop.xlane.xlu0 %6566
    %6568 = vadd.xlane.f32.xlu0 %v6510
    %v6569 = vpop.xlane.xlu0 %6568
    %6570 = vadd.xlane.f32.xlu0 %v6511
    %v6571 = vpop.xlane.xlu0 %6570
    %6572 = vadd.xlane.f32.xlu0 %v6512
    %v6573 = vpop.xlane.xlu0 %6572
    %6574 = vadd.xlane.f32.xlu0 %v6513
    %v6575 = vpop.xlane.xlu0 %6574
    %6576 = vadd.xlane.f32.xlu0 %v6514
    %v6577 = vpop.xlane.xlu0 %6576
    %6578 = vadd.xlane.f32.xlu0 %v6515
    %v6579 = vpop.xlane.xlu0 %6578
    %6580 = vadd.xlane.f32.xlu0 %v6516
    %v6581 = vpop.xlane.xlu0 %6580
    %6582 = vadd.xlane.f32.xlu0 %v6517
    %v6583 = vpop.xlane.xlu0 %6582
    %v6584 = vmul.f32 %v6521, %v226
    %v6585 = vmul.f32 %v6523, %v226
    %v6586 = vmul.f32 %v6525, %v226
    %v6587 = vmul.f32 %v6527, %v226
    %v6588 = vmul.f32 %v6529, %v226
    %v6589 = vmul.f32 %v6531, %v226
    %v6590 = vmul.f32 %v6533, %v226
    %v6591 = vmul.f32 %v6535, %v226
    %v6592 = vmul.f32 %v6537, %v226
    %v6593 = vmul.f32 %v6539, %v226
    %v6594 = vmul.f32 %v6541, %v226
    %v6595 = vmul.f32 %v6543, %v226
    %v6596 = vmul.f32 %v6545, %v226
    %v6597 = vmul.f32 %v6547, %v226
    %v6598 = vmul.f32 %v6549, %v226
    %v6599 = vmul.f32 %v6551, %v226
    %v6600 = vmul.f32 %v6553, %v226
    %v6601 = vmul.f32 %v6555, %v226
    %v6602 = vmul.f32 %v6557, %v226
    %v6603 = vmul.f32 %v6559, %v226
    %v6604 = vmul.f32 %v6561, %v226
    %v6605 = vmul.f32 %v6563, %v226
    %v6606 = vmul.f32 %v6565, %v226
    %v6607 = vmul.f32 %v6567, %v226
    %v6608 = vmul.f32 %v6569, %v226
    %v6609 = vmul.f32 %v6571, %v226
    %v6610 = vmul.f32 %v6573, %v226
    %v6611 = vmul.f32 %v6575, %v226
    %v6612 = vmul.f32 %v6577, %v226
    %v6613 = vmul.f32 %v6579, %v226
    %v6614 = vmul.f32 %v6581, %v226
    %v6615 = vmul.f32 %v6583, %v226
    %v6616 = vsub.f32 %v6486, %v6584
    %v6617 = vsub.f32 %v6487, %v6585
    %v6618 = vsub.f32 %v6488, %v6586
    %v6619 = vsub.f32 %v6489, %v6587
    %v6620 = vsub.f32 %v6490, %v6588
    %v6621 = vsub.f32 %v6491, %v6589
    %v6622 = vsub.f32 %v6492, %v6590
    %v6623 = vsub.f32 %v6493, %v6591
    %v6624 = vsub.f32 %v6494, %v6592
    %v6625 = vsub.f32 %v6495, %v6593
    %v6626 = vsub.f32 %v6496, %v6594
    %v6627 = vsub.f32 %v6497, %v6595
    %v6628 = vsub.f32 %v6498, %v6596
    %v6629 = vsub.f32 %v6499, %v6597
    %v6630 = vsub.f32 %v6500, %v6598
    %v6631 = vsub.f32 %v6501, %v6599
    %v6632 = vsub.f32 %v6502, %v6600
    %v6633 = vsub.f32 %v6503, %v6601
    %v6634 = vsub.f32 %v6504, %v6602
    %v6635 = vsub.f32 %v6505, %v6603
    %v6636 = vsub.f32 %v6506, %v6604
    %v6637 = vsub.f32 %v6507, %v6605
    %v6638 = vsub.f32 %v6508, %v6606
    %v6639 = vsub.f32 %v6509, %v6607
    %v6640 = vsub.f32 %v6510, %v6608
    %v6641 = vsub.f32 %v6511, %v6609
    %v6642 = vsub.f32 %v6512, %v6610
    %v6643 = vsub.f32 %v6513, %v6611
    %v6644 = vsub.f32 %v6514, %v6612
    %v6645 = vsub.f32 %v6515, %v6613
    %v6646 = vsub.f32 %v6516, %v6614
    %v6647 = vsub.f32 %v6517, %v6615
    %v6648 = vmul.f32 %v6616, %v6616
    %v6649 = vmul.f32 %v6617, %v6617
    %v6650 = vmul.f32 %v6618, %v6618
    %v6651 = vmul.f32 %v6619, %v6619
    %v6652 = vmul.f32 %v6620, %v6620
    %v6653 = vmul.f32 %v6621, %v6621
    %v6654 = vmul.f32 %v6622, %v6622
    %v6655 = vmul.f32 %v6623, %v6623
    %v6656 = vmul.f32 %v6624, %v6624
    %v6657 = vmul.f32 %v6625, %v6625
    %v6658 = vmul.f32 %v6626, %v6626
    %v6659 = vmul.f32 %v6627, %v6627
    %v6660 = vmul.f32 %v6628, %v6628
    %v6661 = vmul.f32 %v6629, %v6629
    %v6662 = vmul.f32 %v6630, %v6630
    %v6663 = vmul.f32 %v6631, %v6631
    %v6664 = vmul.f32 %v6632, %v6632
    %v6665 = vmul.f32 %v6633, %v6633
    %v6666 = vmul.f32 %v6634, %v6634
    %v6667 = vmul.f32 %v6635, %v6635
    %v6668 = vmul.f32 %v6636, %v6636
    %v6669 = vmul.f32 %v6637, %v6637
    %v6670 = vmul.f32 %v6638, %v6638
    %v6671 = vmul.f32 %v6639, %v6639
    %v6672 = vmul.f32 %v6640, %v6640
    %v6673 = vmul.f32 %v6641, %v6641
    %v6674 = vmul.f32 %v6642, %v6642
    %v6675 = vmul.f32 %v6643, %v6643
    %v6676 = vmul.f32 %v6644, %v6644
    %v6677 = vmul.f32 %v6645, %v6645
    %v6678 = vmul.f32 %v6646, %v6646
    %v6679 = vmul.f32 %v6647, %v6647
    %6680 = vadd.xlane.f32.xlu0 %v6648
    %v6681 = vpop.xlane.xlu0 %6680
    %6682 = vadd.xlane.f32.xlu0 %v6649
    %v6683 = vpop.xlane.xlu0 %6682
    %6684 = vadd.xlane.f32.xlu0 %v6650
    %v6685 = vpop.xlane.xlu0 %6684
    %6686 = vadd.xlane.f32.xlu0 %v6651
    %v6687 = vpop.xlane.xlu0 %6686
    %6688 = vadd.xlane.f32.xlu0 %v6652
    %v6689 = vpop.xlane.xlu0 %6688
    %6690 = vadd.xlane.f32.xlu0 %v6653
    %v6691 = vpop.xlane.xlu0 %6690
    %6692 = vadd.xlane.f32.xlu0 %v6654
    %v6693 = vpop.xlane.xlu0 %6692
    %6694 = vadd.xlane.f32.xlu0 %v6655
    %v6695 = vpop.xlane.xlu0 %6694
    %6696 = vadd.xlane.f32.xlu0 %v6656
    %v6697 = vpop.xlane.xlu0 %6696
    %6698 = vadd.xlane.f32.xlu0 %v6657
    %v6699 = vpop.xlane.xlu0 %6698
    %6700 = vadd.xlane.f32.xlu0 %v6658
    %v6701 = vpop.xlane.xlu0 %6700
    %6702 = vadd.xlane.f32.xlu0 %v6659
    %v6703 = vpop.xlane.xlu0 %6702
    %6704 = vadd.xlane.f32.xlu0 %v6660
    %v6705 = vpop.xlane.xlu0 %6704
    %6706 = vadd.xlane.f32.xlu0 %v6661
    %v6707 = vpop.xlane.xlu0 %6706
    %6708 = vadd.xlane.f32.xlu0 %v6662
    %v6709 = vpop.xlane.xlu0 %6708
    %6710 = vadd.xlane.f32.xlu0 %v6663
    %v6711 = vpop.xlane.xlu0 %6710
    %6712 = vadd.xlane.f32.xlu0 %v6664
    %v6713 = vpop.xlane.xlu0 %6712
    %6714 = vadd.xlane.f32.xlu0 %v6665
    %v6715 = vpop.xlane.xlu0 %6714
    %6716 = vadd.xlane.f32.xlu0 %v6666
    %v6717 = vpop.xlane.xlu0 %6716
    %6718 = vadd.xlane.f32.xlu0 %v6667
    %v6719 = vpop.xlane.xlu0 %6718
    %6720 = vadd.xlane.f32.xlu0 %v6668
    %v6721 = vpop.xlane.xlu0 %6720
    %6722 = vadd.xlane.f32.xlu0 %v6669
    %v6723 = vpop.xlane.xlu0 %6722
    %6724 = vadd.xlane.f32.xlu0 %v6670
    %v6725 = vpop.xlane.xlu0 %6724
    %6726 = vadd.xlane.f32.xlu0 %v6671
    %v6727 = vpop.xlane.xlu0 %6726
    %6728 = vadd.xlane.f32.xlu0 %v6672
    %v6729 = vpop.xlane.xlu0 %6728
    %6730 = vadd.xlane.f32.xlu0 %v6673
    %v6731 = vpop.xlane.xlu0 %6730
    %6732 = vadd.xlane.f32.xlu0 %v6674
    %v6733 = vpop.xlane.xlu0 %6732
    %6734 = vadd.xlane.f32.xlu0 %v6675
    %v6735 = vpop.xlane.xlu0 %6734
    %6736 = vadd.xlane.f32.xlu0 %v6676
    %v6737 = vpop.xlane.xlu0 %6736
    %6738 = vadd.xlane.f32.xlu0 %v6677
    %v6739 = vpop.xlane.xlu0 %6738
    %6740 = vadd.xlane.f32.xlu0 %v6678
    %v6741 = vpop.xlane.xlu0 %6740
    %6742 = vadd.xlane.f32.xlu0 %v6679
    %v6743 = vpop.xlane.xlu0 %6742
    %v6744 = vmul.f32 %v6681, %v226
    %v6745 = vmul.f32 %v6683, %v226
    %v6746 = vmul.f32 %v6685, %v226
    %v6747 = vmul.f32 %v6687, %v226
    %v6748 = vmul.f32 %v6689, %v226
    %v6749 = vmul.f32 %v6691, %v226
    %v6750 = vmul.f32 %v6693, %v226
    %v6751 = vmul.f32 %v6695, %v226
    %v6752 = vmul.f32 %v6697, %v226
    %v6753 = vmul.f32 %v6699, %v226
    %v6754 = vmul.f32 %v6701, %v226
    %v6755 = vmul.f32 %v6703, %v226
    %v6756 = vmul.f32 %v6705, %v226
    %v6757 = vmul.f32 %v6707, %v226
    %v6758 = vmul.f32 %v6709, %v226
    %v6759 = vmul.f32 %v6711, %v226
    %v6760 = vmul.f32 %v6713, %v226
    %v6761 = vmul.f32 %v6715, %v226
    %v6762 = vmul.f32 %v6717, %v226
    %v6763 = vmul.f32 %v6719, %v226
    %v6764 = vmul.f32 %v6721, %v226
    %v6765 = vmul.f32 %v6723, %v226
    %v6766 = vmul.f32 %v6725, %v226
    %v6767 = vmul.f32 %v6727, %v226
    %v6768 = vmul.f32 %v6729, %v226
    %v6769 = vmul.f32 %v6731, %v226
    %v6770 = vmul.f32 %v6733, %v226
    %v6771 = vmul.f32 %v6735, %v226
    %v6772 = vmul.f32 %v6737, %v226
    %v6773 = vmul.f32 %v6739, %v226
    %v6774 = vmul.f32 %v6741, %v226
    %v6775 = vmul.f32 %v6743, %v226
    %v6776 = vadd.f32 %v6744, 1e-05
    %v6777 = vadd.f32 %v6745, 1e-05
    %v6778 = vadd.f32 %v6746, 1e-05
    %v6779 = vadd.f32 %v6747, 1e-05
    %v6780 = vadd.f32 %v6748, 1e-05
    %v6781 = vadd.f32 %v6749, 1e-05
    %v6782 = vadd.f32 %v6750, 1e-05
    %v6783 = vadd.f32 %v6751, 1e-05
    %v6784 = vadd.f32 %v6752, 1e-05
    %v6785 = vadd.f32 %v6753, 1e-05
    %v6786 = vadd.f32 %v6754, 1e-05
    %v6787 = vadd.f32 %v6755, 1e-05
    %v6788 = vadd.f32 %v6756, 1e-05
    %v6789 = vadd.f32 %v6757, 1e-05
    %v6790 = vadd.f32 %v6758, 1e-05
    %v6791 = vadd.f32 %v6759, 1e-05
    %v6792 = vadd.f32 %v6760, 1e-05
    %v6793 = vadd.f32 %v6761, 1e-05
    %v6794 = vadd.f32 %v6762, 1e-05
    %v6795 = vadd.f32 %v6763, 1e-05
    %v6796 = vadd.f32 %v6764, 1e-05
    %v6797 = vadd.f32 %v6765, 1e-05
    %v6798 = vadd.f32 %v6766, 1e-05
    %v6799 = vadd.f32 %v6767, 1e-05
    %v6800 = vadd.f32 %v6768, 1e-05
    %v6801 = vadd.f32 %v6769, 1e-05
    %v6802 = vadd.f32 %v6770, 1e-05
    %v6803 = vadd.f32 %v6771, 1e-05
    %v6804 = vadd.f32 %v6772, 1e-05
    %v6805 = vadd.f32 %v6773, 1e-05
    %v6806 = vadd.f32 %v6774, 1e-05
    %v6807 = vadd.f32 %v6775, 1e-05
    %v6808 = vrsqrt.pop %v6776
    %v6809 = vrsqrt.pop %v6777
    %v6810 = vrsqrt.pop %v6778
    %v6811 = vrsqrt.pop %v6779
    %v6812 = vrsqrt.pop %v6780
    %v6813 = vrsqrt.pop %v6781
    %v6814 = vrsqrt.pop %v6782
    %v6815 = vrsqrt.pop %v6783
    %v6816 = vrsqrt.pop %v6784
    %v6817 = vrsqrt.pop %v6785
    %v6818 = vrsqrt.pop %v6786
    %v6819 = vrsqrt.pop %v6787
    %v6820 = vrsqrt.pop %v6788
    %v6821 = vrsqrt.pop %v6789
    %v6822 = vrsqrt.pop %v6790
    %v6823 = vrsqrt.pop %v6791
    %v6824 = vrsqrt.pop %v6792
    %v6825 = vrsqrt.pop %v6793
    %v6826 = vrsqrt.pop %v6794
    %v6827 = vrsqrt.pop %v6795
    %v6828 = vrsqrt.pop %v6796
    %v6829 = vrsqrt.pop %v6797
    %v6830 = vrsqrt.pop %v6798
    %v6831 = vrsqrt.pop %v6799
    %v6832 = vrsqrt.pop %v6800
    %v6833 = vrsqrt.pop %v6801
    %v6834 = vrsqrt.pop %v6802
    %v6835 = vrsqrt.pop %v6803
    %v6836 = vrsqrt.pop %v6804
    %v6837 = vrsqrt.pop %v6805
    %v6838 = vrsqrt.pop %v6806
    %v6839 = vrsqrt.pop %v6807
    %v6840 = vmul.f32 %v6616, %v6808
    %v6841 = vmul.f32 %v6617, %v6809
    %v6842 = vmul.f32 %v6618, %v6810
    %v6843 = vmul.f32 %v6619, %v6811
    %v6844 = vmul.f32 %v6620, %v6812
    %v6845 = vmul.f32 %v6621, %v6813
    %v6846 = vmul.f32 %v6622, %v6814
    %v6847 = vmul.f32 %v6623, %v6815
    %v6848 = vmul.f32 %v6624, %v6816
    %v6849 = vmul.f32 %v6625, %v6817
    %v6850 = vmul.f32 %v6626, %v6818
    %v6851 = vmul.f32 %v6627, %v6819
    %v6852 = vmul.f32 %v6628, %v6820
    %v6853 = vmul.f32 %v6629, %v6821
    %v6854 = vmul.f32 %v6630, %v6822
    %v6855 = vmul.f32 %v6631, %v6823
    %v6856 = vmul.f32 %v6632, %v6824
    %v6857 = vmul.f32 %v6633, %v6825
    %v6858 = vmul.f32 %v6634, %v6826
    %v6859 = vmul.f32 %v6635, %v6827
    %v6860 = vmul.f32 %v6636, %v6828
    %v6861 = vmul.f32 %v6637, %v6829
    %v6862 = vmul.f32 %v6638, %v6830
    %v6863 = vmul.f32 %v6639, %v6831
    %v6864 = vmul.f32 %v6640, %v6832
    %v6865 = vmul.f32 %v6641, %v6833
    %v6866 = vmul.f32 %v6642, %v6834
    %v6867 = vmul.f32 %v6643, %v6835
    %v6868 = vmul.f32 %v6644, %v6836
    %v6869 = vmul.f32 %v6645, %v6837
    %v6870 = vmul.f32 %v6646, %v6838
    %v6871 = vmul.f32 %v6647, %v6839
    %v6873 = vlaneseq
    %v6874 = vshrl.u32 %v6873, 7
    %v6875 = vsub.s32 0, %v6874
    %v6876 = vrot.slane %v6518, %v6875
    %v6878 = vmul.f32 %v6840, %v6876
    %v6879 = vmul.f32 %v6841, %v6876
    %v6880 = vmul.f32 %v6842, %v6876
    %v6881 = vmul.f32 %v6843, %v6876
    %v6882 = vmul.f32 %v6844, %v6876
    %v6883 = vmul.f32 %v6845, %v6876
    %v6884 = vmul.f32 %v6846, %v6876
    %v6885 = vmul.f32 %v6847, %v6876
    %v6886 = vmul.f32 %v6848, %v6876
    %v6887 = vmul.f32 %v6849, %v6876
    %v6888 = vmul.f32 %v6850, %v6876
    %v6889 = vmul.f32 %v6851, %v6876
    %v6890 = vmul.f32 %v6852, %v6876
    %v6891 = vmul.f32 %v6853, %v6876
    %v6892 = vmul.f32 %v6854, %v6876
    %v6893 = vmul.f32 %v6855, %v6876
    %v6894 = vmul.f32 %v6856, %v6876
    %v6895 = vmul.f32 %v6857, %v6876
    %v6896 = vmul.f32 %v6858, %v6876
    %v6897 = vmul.f32 %v6859, %v6876
    %v6898 = vmul.f32 %v6860, %v6876
    %v6899 = vmul.f32 %v6861, %v6876
    %v6900 = vmul.f32 %v6862, %v6876
    %v6901 = vmul.f32 %v6863, %v6876
    %v6902 = vmul.f32 %v6864, %v6876
    %v6903 = vmul.f32 %v6865, %v6876
    %v6904 = vmul.f32 %v6866, %v6876
    %v6905 = vmul.f32 %v6867, %v6876
    %v6906 = vmul.f32 %v6868, %v6876
    %v6907 = vmul.f32 %v6869, %v6876
    %v6908 = vmul.f32 %v6870, %v6876
    %v6909 = vmul.f32 %v6871, %v6876
    %v6911 = vlaneseq
    %v6912 = vshrl.u32 %v6911, 7
    %v6913 = vsub.s32 0, %v6912
    %v6914 = vrot.slane %v6519, %v6913
    %v6916 = vadd.f32 %v6878, %v6914
    %v6917 = vadd.f32 %v6879, %v6914
    %v6918 = vadd.f32 %v6880, %v6914
    %v6919 = vadd.f32 %v6881, %v6914
    %v6920 = vadd.f32 %v6882, %v6914
    %v6921 = vadd.f32 %v6883, %v6914
    %v6922 = vadd.f32 %v6884, %v6914
    %v6923 = vadd.f32 %v6885, %v6914
    %v6924 = vadd.f32 %v6886, %v6914
    %v6925 = vadd.f32 %v6887, %v6914
    %v6926 = vadd.f32 %v6888, %v6914
    %v6927 = vadd.f32 %v6889, %v6914
    %v6928 = vadd.f32 %v6890, %v6914
    %v6929 = vadd.f32 %v6891, %v6914
    %v6930 = vadd.f32 %v6892, %v6914
    %v6931 = vadd.f32 %v6893, %v6914
    %v6932 = vadd.f32 %v6894, %v6914
    %v6933 = vadd.f32 %v6895, %v6914
    %v6934 = vadd.f32 %v6896, %v6914
    %v6935 = vadd.f32 %v6897, %v6914
    %v6936 = vadd.f32 %v6898, %v6914
    %v6937 = vadd.f32 %v6899, %v6914
    %v6938 = vadd.f32 %v6900, %v6914
    %v6939 = vadd.f32 %v6901, %v6914
    %v6940 = vadd.f32 %v6902, %v6914
    %v6941 = vadd.f32 %v6903, %v6914
    %v6942 = vadd.f32 %v6904, %v6914
    %v6943 = vadd.f32 %v6905, %v6914
    %v6944 = vadd.f32 %v6906, %v6914
    %v6945 = vadd.f32 %v6907, %v6914
    %v6946 = vadd.f32 %v6908, %v6914
    %v6947 = vadd.f32 %v6909, %v6914
    %v6948 = vpack.c.bf16 %v6917, %v6916
    %v6949 = vpack.c.bf16 %v6919, %v6918
    %v6950 = vpack.c.bf16 %v6921, %v6920
    %v6951 = vpack.c.bf16 %v6923, %v6922
    %v6952 = vpack.c.bf16 %v6925, %v6924
    %v6953 = vpack.c.bf16 %v6927, %v6926
    %v6954 = vpack.c.bf16 %v6929, %v6928
    %v6955 = vpack.c.bf16 %v6931, %v6930
    %v6956 = vpack.c.bf16 %v6933, %v6932
    %v6957 = vpack.c.bf16 %v6935, %v6934
    %v6958 = vpack.c.bf16 %v6937, %v6936
    %v6959 = vpack.c.bf16 %v6939, %v6938
    %v6960 = vpack.c.bf16 %v6941, %v6940
    %v6961 = vpack.c.bf16 %v6943, %v6942
    %v6962 = vpack.c.bf16 %v6945, %v6944
    %v6963 = vpack.c.bf16 %v6947, %v6946
    %v6964 = vld [vmem:[#allocation11] sm:$0xff]
    %v6965 = vld [vmem:[#allocation11 + $0x8] sm:$0xff]
    %v6966 = vld [vmem:[#allocation11 + $0x10] sm:$0xff]
    %v6967 = vld [vmem:[#allocation11 + $0x18] sm:$0xff]
    %v6968 = vld [vmem:[#allocation11 + $0x20] sm:$0xff]
    %v6969 = vld [vmem:[#allocation11 + $0x28] sm:$0xff]
    %v6970 = vld [vmem:[#allocation11 + $0x30] sm:$0xff]
    %v6971 = vld [vmem:[#allocation11 + $0x38] sm:$0xff]
    %v6972 = vld [vmem:[#allocation11 + $0x40] sm:$0xff]
    %v6973 = vld [vmem:[#allocation11 + $0x48] sm:$0xff]
    %v6974 = vld [vmem:[#allocation11 + $0x50] sm:$0xff]
    %v6975 = vld [vmem:[#allocation11 + $0x58] sm:$0xff]
    %v6976 = vld [vmem:[#allocation11 + $0x60] sm:$0xff]
    %v6977 = vld [vmem:[#allocation11 + $0x68] sm:$0xff]
    %v6978 = vld [vmem:[#allocation11 + $0x70] sm:$0xff]
    %v6979 = vld [vmem:[#allocation11 + $0x78] sm:$0xff]
    %v6980 = vld [vmem:[#allocation11 + $0x80] sm:$0xff]
    %v6981 = vld [vmem:[#allocation11 + $0x88] sm:$0xff]
    %v6982 = vld [vmem:[#allocation11 + $0x90] sm:$0xff]
    %v6983 = vld [vmem:[#allocation11 + $0x98] sm:$0xff]
    %v6984 = vld [vmem:[#allocation11 + $0xa0] sm:$0xff]
    %v6985 = vld [vmem:[#allocation11 + $0xa8] sm:$0xff]
    %v6986 = vld [vmem:[#allocation11 + $0xb0] sm:$0xff]
    %v6987 = vld [vmem:[#allocation11 + $0xb8] sm:$0xff]
    %v6988 = vld [vmem:[#allocation11 + $0xc0] sm:$0xff]
    %v6989 = vld [vmem:[#allocation11 + $0xc8] sm:$0xff]
    %v6990 = vld [vmem:[#allocation11 + $0xd0] sm:$0xff]
    %v6991 = vld [vmem:[#allocation11 + $0xd8] sm:$0xff]
    %v6992 = vld [vmem:[#allocation11 + $0xe0] sm:$0xff]
    %v6993 = vld [vmem:[#allocation11 + $0xe8] sm:$0xff]
    %v6994 = vld [vmem:[#allocation11 + $0xf0] sm:$0xff]
    %v6995 = vld [vmem:[#allocation11 + $0xf8] sm:$0xff]
    %v6996 = vld [vmem:[%s10] sm:$0xf]
    %v6998 = vlaneseq
    %v6999 = vshrl.u32 %v6998, 7
    %v7000 = vsub.s32 0, %v6999
    %v7001 = vrot.slane %v6996, %v7000
    %v7002 = vlaneseq
    %v7003 = vshrl.u32 %v7002, 7
    %v7004 = vsub.s32 1, %v7003
    %v7005 = vrot.slane %v6996, %v7004
    %v7006 = vlaneseq
    %v7007 = vshrl.u32 %v7006, 7
    %v7008 = vsub.s32 2, %v7007
    %v7009 = vrot.slane %v6996, %v7008
    %v7010 = vlaneseq
    %v7011 = vshrl.u32 %v7010, 7
    %v7012 = vsub.s32 3, %v7011
    %v7013 = vrot.slane %v6996, %v7012
    %v7050 = vunpack.c.l.b16 %v6964
    %v7051 = vunpack.c.h.b16 %v6964
    %v7052 = vunpack.c.l.b16 %v6965
    %v7053 = vunpack.c.h.b16 %v6965
    %v7054 = vunpack.c.l.b16 %v6966
    %v7055 = vunpack.c.h.b16 %v6966
    %v7056 = vunpack.c.l.b16 %v6967
    %v7057 = vunpack.c.h.b16 %v6967
    %v7058 = vunpack.c.l.b16 %v6968
    %v7059 = vunpack.c.h.b16 %v6968
    %v7060 = vunpack.c.l.b16 %v6969
    %v7061 = vunpack.c.h.b16 %v6969
    %v7062 = vunpack.c.l.b16 %v6970
    %v7063 = vunpack.c.h.b16 %v6970
    %v7064 = vunpack.c.l.b16 %v6971
    %v7065 = vunpack.c.h.b16 %v6971
    %v7066 = vunpack.c.l.b16 %v6972
    %v7067 = vunpack.c.h.b16 %v6972
    %v7068 = vunpack.c.l.b16 %v6973
    %v7069 = vunpack.c.h.b16 %v6973
    %v7070 = vunpack.c.l.b16 %v6974
    %v7071 = vunpack.c.h.b16 %v6974
    %v7072 = vunpack.c.l.b16 %v6975
    %v7073 = vunpack.c.h.b16 %v6975
    %v7074 = vunpack.c.l.b16 %v6976
    %v7075 = vunpack.c.h.b16 %v6976
    %v7076 = vunpack.c.l.b16 %v6977
    %v7077 = vunpack.c.h.b16 %v6977
    %v7078 = vunpack.c.l.b16 %v6978
    %v7079 = vunpack.c.h.b16 %v6978
    %v7080 = vunpack.c.l.b16 %v6979
    %v7081 = vunpack.c.h.b16 %v6979
    %v7082 = vunpack.c.l.b16 %v6980
    %v7083 = vunpack.c.h.b16 %v6980
    %v7084 = vunpack.c.l.b16 %v6981
    %v7085 = vunpack.c.h.b16 %v6981
    %v7086 = vunpack.c.l.b16 %v6982
    %v7087 = vunpack.c.h.b16 %v6982
    %v7088 = vunpack.c.l.b16 %v6983
    %v7089 = vunpack.c.h.b16 %v6983
    %v7090 = vunpack.c.l.b16 %v6984
    %v7091 = vunpack.c.h.b16 %v6984
    %v7092 = vunpack.c.l.b16 %v6985
    %v7093 = vunpack.c.h.b16 %v6985
    %v7094 = vunpack.c.l.b16 %v6986
    %v7095 = vunpack.c.h.b16 %v6986
    %v7096 = vunpack.c.l.b16 %v6987
    %v7097 = vunpack.c.h.b16 %v6987
    %v7098 = vunpack.c.l.b16 %v6988
    %v7099 = vunpack.c.h.b16 %v6988
    %v7100 = vunpack.c.l.b16 %v6989
    %v7101 = vunpack.c.h.b16 %v6989
    %v7102 = vunpack.c.l.b16 %v6990
    %v7103 = vunpack.c.h.b16 %v6990
    %v7104 = vunpack.c.l.b16 %v6991
    %v7105 = vunpack.c.h.b16 %v6991
    %v7106 = vunpack.c.l.b16 %v6992
    %v7107 = vunpack.c.h.b16 %v6992
    %v7108 = vunpack.c.l.b16 %v6993
    %v7109 = vunpack.c.h.b16 %v6993
    %v7110 = vunpack.c.l.b16 %v6994
    %v7111 = vunpack.c.h.b16 %v6994
    %v7112 = vunpack.c.l.b16 %v6995
    %v7113 = vunpack.c.h.b16 %v6995
    %v7114 = vpack.c.b16 %v7054, %v7050
    %v7115 = vpack.c.b16 %v7055, %v7051
    %v7116 = vpack.c.b16 %v7056, %v7052
    %v7117 = vpack.c.b16 %v7057, %v7053
    %v7118 = vpack.c.b16 %v7062, %v7058
    %v7119 = vpack.c.b16 %v7063, %v7059
    %v7120 = vpack.c.b16 %v7064, %v7060
    %v7121 = vpack.c.b16 %v7065, %v7061
    %v7122 = vpack.c.b16 %v7070, %v7066
    %v7123 = vpack.c.b16 %v7071, %v7067
    %v7124 = vpack.c.b16 %v7072, %v7068
    %v7125 = vpack.c.b16 %v7073, %v7069
    %v7126 = vpack.c.b16 %v7078, %v7074
    %v7127 = vpack.c.b16 %v7079, %v7075
    %v7128 = vpack.c.b16 %v7080, %v7076
    %v7129 = vpack.c.b16 %v7081, %v7077
    %v7130 = vpack.c.b16 %v7086, %v7082
    %v7131 = vpack.c.b16 %v7087, %v7083
    %v7132 = vpack.c.b16 %v7088, %v7084
    %v7133 = vpack.c.b16 %v7089, %v7085
    %v7134 = vpack.c.b16 %v7094, %v7090
    %v7135 = vpack.c.b16 %v7095, %v7091
    %v7136 = vpack.c.b16 %v7096, %v7092
    %v7137 = vpack.c.b16 %v7097, %v7093
    %v7138 = vpack.c.b16 %v7102, %v7098
    %v7139 = vpack.c.b16 %v7103, %v7099
    %v7140 = vpack.c.b16 %v7104, %v7100
    %v7141 = vpack.c.b16 %v7105, %v7101
    %v7142 = vpack.c.b16 %v7110, %v7106
    %v7143 = vpack.c.b16 %v7111, %v7107
    %v7144 = vpack.c.b16 %v7112, %v7108
    %v7145 = vpack.c.b16 %v7113, %v7109
    %7178 = vmatprep.subr.bf16.mxu0 %v7143
    %7179 = vmatpush1.bf16.msra.mxu0 %v7142
    %7180 = vmatprep.subr.bf16.mxu0 %v7139
    %7181 = vmatpush1.bf16.msra.mxu0 %v7138
    %7182 = vmatprep.subr.bf16.mxu0 %v7135
    %7183 = vmatpush1.bf16.msra.mxu0 %v7134
    %7184 = vmatprep.subr.bf16.mxu0 %v7131
    %7185 = vmatpush1.bf16.msra.mxu0 %v7130
    %7186 = vmatprep.subr.bf16.mxu0 %v7127
    %7187 = vmatpush1.bf16.msra.mxu0 %v7126
    %7188 = vmatprep.subr.bf16.mxu0 %v7123
    %7189 = vmatpush1.bf16.msra.mxu0 %v7122
    %7190 = vmatprep.subr.bf16.mxu0 %v7119
    %7191 = vmatpush1.bf16.msra.mxu0 %v7118
    %7192 = vmatprep.subr.bf16.mxu0 %v7115
    %7193 = vmatpush1.bf16.msra.mxu0 %v7114
    %7194 = vmatprep.subr.bf16.mxu0 0
    %7195 = vmatpush2.bf16.msra.mxu0 0
    %7196 = vmatprep.subr.bf16.mxu0 0
    %7197 = vmatpush2.bf16.msra.mxu0 0
    %7198 = vmatprep.subr.bf16.mxu0 0
    %7199 = vmatpush2.bf16.msra.mxu0 0
    %7200 = vmatprep.subr.bf16.mxu0 0
    %7201 = vmatpush2.bf16.msra.mxu0 0
    %7202 = vmatprep.subr.bf16.mxu0 0
    %7203 = vmatpush2.bf16.msra.mxu0 0
    %7204 = vmatprep.subr.bf16.mxu0 0
    %7205 = vmatpush2.bf16.msra.mxu0 0
    %7206 = vmatprep.subr.bf16.mxu0 0
    %7207 = vmatpush2.bf16.msra.mxu0 0
    %7208 = vmatprep.subr.bf16.mxu0 0
    %7209 = vmatpush2.bf16.msra.mxu0 0
    %7210 = vmatprep.mubr.bf16.mxu0 0
    %7211 = vmatmul.mubr.bf16.gmra.mxu0 %v6948
    %v7212 = vpop.f32.mrf.mxu0
    %v7213 = vadd.f32 %v7001, %v7212
    %v7214 = vpop.f32.mrf.mxu0
    %v7215 = vadd.f32 %v7005, %v7214
    %v7216 = vpop.f32.mrf.mxu0
    %v7217 = vadd.f32 %v7001, %v7216
    %v7218 = vpop.f32.mrf.mxu0
    %v7219 = vadd.f32 %v7005, %v7218
    %7220 = vmatprep.mubr.bf16.mxu0 0
    %7221 = vmatmul.mubr.bf16.gmra.mxu0 %v6949
    %v7222 = vpop.f32.mrf.mxu0
    %v7223 = vadd.f32 %v7001, %v7222
    %v7224 = vpop.f32.mrf.mxu0
    %v7225 = vadd.f32 %v7005, %v7224
    %v7226 = vpop.f32.mrf.mxu0
    %v7227 = vadd.f32 %v7001, %v7226
    %v7228 = vpop.f32.mrf.mxu0
    %v7229 = vadd.f32 %v7005, %v7228
    %7230 = vmatprep.mubr.bf16.mxu0 0
    %7231 = vmatmul.mubr.bf16.gmra.mxu0 %v6950
    %v7232 = vpop.f32.mrf.mxu0
    %v7233 = vadd.f32 %v7001, %v7232
    %v7234 = vpop.f32.mrf.mxu0
    %v7235 = vadd.f32 %v7005, %v7234
    %v7236 = vpop.f32.mrf.mxu0
    %v7237 = vadd.f32 %v7001, %v7236
    %v7238 = vpop.f32.mrf.mxu0
    %v7239 = vadd.f32 %v7005, %v7238
    %7240 = vmatprep.mubr.bf16.mxu0 0
    %7241 = vmatmul.mubr.bf16.gmra.mxu0 %v6951
    %v7242 = vpop.f32.mrf.mxu0
    %v7243 = vadd.f32 %v7001, %v7242
    %v7244 = vpop.f32.mrf.mxu0
    %v7245 = vadd.f32 %v7005, %v7244
    %v7246 = vpop.f32.mrf.mxu0
    %v7247 = vadd.f32 %v7001, %v7246
    %v7248 = vpop.f32.mrf.mxu0
    %v7249 = vadd.f32 %v7005, %v7248
    %7250 = vmatprep.mubr.bf16.mxu0 0
    %7251 = vmatmul.mubr.bf16.gmra.mxu0 %v6952
    %v7252 = vpop.f32.mrf.mxu0
    %v7253 = vadd.f32 %v7001, %v7252
    %v7254 = vpop.f32.mrf.mxu0
    %v7255 = vadd.f32 %v7005, %v7254
    %v7256 = vpop.f32.mrf.mxu0
    %v7257 = vadd.f32 %v7001, %v7256
    %v7258 = vpop.f32.mrf.mxu0
    %v7259 = vadd.f32 %v7005, %v7258
    %7260 = vmatprep.mubr.bf16.mxu0 0
    %7261 = vmatmul.mubr.bf16.gmra.mxu0 %v6953
    %v7262 = vpop.f32.mrf.mxu0
    %v7263 = vadd.f32 %v7001, %v7262
    %v7264 = vpop.f32.mrf.mxu0
    %v7265 = vadd.f32 %v7005, %v7264
    %v7266 = vpop.f32.mrf.mxu0
    %v7267 = vadd.f32 %v7001, %v7266
    %v7268 = vpop.f32.mrf.mxu0
    %v7269 = vadd.f32 %v7005, %v7268
    %7270 = vmatprep.mubr.bf16.mxu0 0
    %7271 = vmatmul.mubr.bf16.gmra.mxu0 %v6954
    %v7272 = vpop.f32.mrf.mxu0
    %v7273 = vadd.f32 %v7001, %v7272
    %v7274 = vpop.f32.mrf.mxu0
    %v7275 = vadd.f32 %v7005, %v7274
    %v7276 = vpop.f32.mrf.mxu0
    %v7277 = vadd.f32 %v7001, %v7276
    %v7278 = vpop.f32.mrf.mxu0
    %v7279 = vadd.f32 %v7005, %v7278
    %7280 = vmatprep.mubr.bf16.mxu0 0
    %7281 = vmatmul.mubr.bf16.gmra.mxu0 %v6955
    %v7282 = vpop.f32.mrf.mxu0
    %v7283 = vadd.f32 %v7001, %v7282
    %v7284 = vpop.f32.mrf.mxu0
    %v7285 = vadd.f32 %v7005, %v7284
    %v7286 = vpop.f32.mrf.mxu0
    %v7287 = vadd.f32 %v7001, %v7286
    %v7288 = vpop.f32.mrf.mxu0
    %v7289 = vadd.f32 %v7005, %v7288
    %7290 = vmatprep.mubr.bf16.mxu0 0
    %7291 = vmatmul.mubr.bf16.gmra.mxu0 %v6956
    %v7292 = vpop.f32.mrf.mxu0
    %v7293 = vadd.f32 %v7001, %v7292
    %v7294 = vpop.f32.mrf.mxu0
    %v7295 = vadd.f32 %v7005, %v7294
    %v7296 = vpop.f32.mrf.mxu0
    %v7297 = vadd.f32 %v7001, %v7296
    %v7298 = vpop.f32.mrf.mxu0
    %v7299 = vadd.f32 %v7005, %v7298
    %7300 = vmatprep.mubr.bf16.mxu0 0
    %7301 = vmatmul.mubr.bf16.gmra.mxu0 %v6957
    %v7302 = vpop.f32.mrf.mxu0
    %v7303 = vadd.f32 %v7001, %v7302
    %v7304 = vpop.f32.mrf.mxu0
    %v7305 = vadd.f32 %v7005, %v7304
    %v7306 = vpop.f32.mrf.mxu0
    %v7307 = vadd.f32 %v7001, %v7306
    %v7308 = vpop.f32.mrf.mxu0
    %v7309 = vadd.f32 %v7005, %v7308
    %7310 = vmatprep.mubr.bf16.mxu0 0
    %7311 = vmatmul.mubr.bf16.gmra.mxu0 %v6958
    %v7312 = vpop.f32.mrf.mxu0
    %v7313 = vadd.f32 %v7001, %v7312
    %v7314 = vpop.f32.mrf.mxu0
    %v7315 = vadd.f32 %v7005, %v7314
    %v7316 = vpop.f32.mrf.mxu0
    %v7317 = vadd.f32 %v7001, %v7316
    %v7318 = vpop.f32.mrf.mxu0
    %v7319 = vadd.f32 %v7005, %v7318
    %7320 = vmatprep.mubr.bf16.mxu0 0
    %7321 = vmatmul.mubr.bf16.gmra.mxu0 %v6959
    %v7322 = vpop.f32.mrf.mxu0
    %v7323 = vadd.f32 %v7001, %v7322
    %v7324 = vpop.f32.mrf.mxu0
    %v7325 = vadd.f32 %v7005, %v7324
    %v7326 = vpop.f32.mrf.mxu0
    %v7327 = vadd.f32 %v7001, %v7326
    %v7328 = vpop.f32.mrf.mxu0
    %v7329 = vadd.f32 %v7005, %v7328
    %7330 = vmatprep.mubr.bf16.mxu0 0
    %7331 = vmatmul.mubr.bf16.gmra.mxu0 %v6960
    %v7332 = vpop.f32.mrf.mxu0
    %v7333 = vadd.f32 %v7001, %v7332
    %v7334 = vpop.f32.mrf.mxu0
    %v7335 = vadd.f32 %v7005, %v7334
    %v7336 = vpop.f32.mrf.mxu0
    %v7337 = vadd.f32 %v7001, %v7336
    %v7338 = vpop.f32.mrf.mxu0
    %v7339 = vadd.f32 %v7005, %v7338
    %7340 = vmatprep.mubr.bf16.mxu0 0
    %7341 = vmatmul.mubr.bf16.gmra.mxu0 %v6961
    %v7342 = vpop.f32.mrf.mxu0
    %v7343 = vadd.f32 %v7001, %v7342
    %v7344 = vpop.f32.mrf.mxu0
    %v7345 = vadd.f32 %v7005, %v7344
    %v7346 = vpop.f32.mrf.mxu0
    %v7347 = vadd.f32 %v7001, %v7346
    %v7348 = vpop.f32.mrf.mxu0
    %v7349 = vadd.f32 %v7005, %v7348
    %7350 = vmatprep.mubr.bf16.mxu0 0
    %7351 = vmatmul.mubr.bf16.gmra.mxu0 %v6962
    %v7352 = vpop.f32.mrf.mxu0
    %v7353 = vadd.f32 %v7001, %v7352
    %v7354 = vpop.f32.mrf.mxu0
    %v7355 = vadd.f32 %v7005, %v7354
    %v7356 = vpop.f32.mrf.mxu0
    %v7357 = vadd.f32 %v7001, %v7356
    %v7358 = vpop.f32.mrf.mxu0
    %v7359 = vadd.f32 %v7005, %v7358
    %7360 = vmatprep.mubr.bf16.mxu0 0
    %7361 = vmatmul.mubr.bf16.gmra.mxu0 %v6963
    %v7362 = vpop.f32.mrf.mxu0
    %v7363 = vadd.f32 %v7001, %v7362
    %v7364 = vpop.f32.mrf.mxu0
    %v7365 = vadd.f32 %v7005, %v7364
    %v7366 = vpop.f32.mrf.mxu0
    %v7367 = vadd.f32 %v7001, %v7366
    %v7368 = vpop.f32.mrf.mxu0
    %v7369 = vadd.f32 %v7005, %v7368
    %7370 = vdwg.mxu0
    %7371 = vmatprep.subr.bf16.mxu0 %v7145
    %7372 = vmatpush1.bf16.msra.mxu0 %v7144
    %7373 = vmatprep.subr.bf16.mxu0 %v7141
    %7374 = vmatpush1.bf16.msra.mxu0 %v7140
    %7375 = vmatprep.subr.bf16.mxu0 %v7137
    %7376 = vmatpush1.bf16.msra.mxu0 %v7136
    %7377 = vmatprep.subr.bf16.mxu0 %v7133
    %7378 = vmatpush1.bf16.msra.mxu0 %v7132
    %7379 = vmatprep.subr.bf16.mxu0 %v7129
    %7380 = vmatpush1.bf16.msra.mxu0 %v7128
    %7381 = vmatprep.subr.bf16.mxu0 %v7125
    %7382 = vmatpush1.bf16.msra.mxu0 %v7124
    %7383 = vmatprep.subr.bf16.mxu0 %v7121
    %7384 = vmatpush1.bf16.msra.mxu0 %v7120
    %7385 = vmatprep.subr.bf16.mxu0 %v7117
    %7386 = vmatpush1.bf16.msra.mxu0 %v7116
    %7387 = vmatprep.subr.bf16.mxu0 0
    %7388 = vmatpush2.bf16.msra.mxu0 0
    %7389 = vmatprep.subr.bf16.mxu0 0
    %7390 = vmatpush2.bf16.msra.mxu0 0
    %7391 = vmatprep.subr.bf16.mxu0 0
    %7392 = vmatpush2.bf16.msra.mxu0 0
    %7393 = vmatprep.subr.bf16.mxu0 0
    %7394 = vmatpush2.bf16.msra.mxu0 0
    %7395 = vmatprep.subr.bf16.mxu0 0
    %7396 = vmatpush2.bf16.msra.mxu0 0
    %7397 = vmatprep.subr.bf16.mxu0 0
    %7398 = vmatpush2.bf16.msra.mxu0 0
    %7399 = vmatprep.subr.bf16.mxu0 0
    %7400 = vmatpush2.bf16.msra.mxu0 0
    %7401 = vmatprep.subr.bf16.mxu0 0
    %7402 = vmatpush2.bf16.msra.mxu0 0
    %7403 = vmatprep.mubr.bf16.mxu0 0
    %7404 = vmatmul.mubr.bf16.gmra.mxu0 %v6948
    %v7405 = vpop.f32.mrf.mxu0
    %v7406 = vadd.f32 %v7009, %v7405
    %v7407 = vpop.f32.mrf.mxu0
    %v7408 = vadd.f32 %v7013, %v7407
    %v7409 = vpop.f32.mrf.mxu0
    %v7410 = vadd.f32 %v7009, %v7409
    %v7411 = vpop.f32.mrf.mxu0
    %v7412 = vadd.f32 %v7013, %v7411
    %7413 = vmatprep.mubr.bf16.mxu0 0
    %7414 = vmatmul.mubr.bf16.gmra.mxu0 %v6949
    %v7415 = vpop.f32.mrf.mxu0
    %v7416 = vadd.f32 %v7009, %v7415
    %v7417 = vpop.f32.mrf.mxu0
    %v7418 = vadd.f32 %v7013, %v7417
    %v7419 = vpop.f32.mrf.mxu0
    %v7420 = vadd.f32 %v7009, %v7419
    %v7421 = vpop.f32.mrf.mxu0
    %v7422 = vadd.f32 %v7013, %v7421
    %7423 = vmatprep.mubr.bf16.mxu0 0
    %7424 = vmatmul.mubr.bf16.gmra.mxu0 %v6950
    %v7425 = vpop.f32.mrf.mxu0
    %v7426 = vadd.f32 %v7009, %v7425
    %v7427 = vpop.f32.mrf.mxu0
    %v7428 = vadd.f32 %v7013, %v7427
    %v7429 = vpop.f32.mrf.mxu0
    %v7430 = vadd.f32 %v7009, %v7429
    %v7431 = vpop.f32.mrf.mxu0
    %v7432 = vadd.f32 %v7013, %v7431
    %7433 = vmatprep.mubr.bf16.mxu0 0
    %7434 = vmatmul.mubr.bf16.gmra.mxu0 %v6951
    %v7435 = vpop.f32.mrf.mxu0
    %v7436 = vadd.f32 %v7009, %v7435
    %v7437 = vpop.f32.mrf.mxu0
    %v7438 = vadd.f32 %v7013, %v7437
    %v7439 = vpop.f32.mrf.mxu0
    %v7440 = vadd.f32 %v7009, %v7439
    %v7441 = vpop.f32.mrf.mxu0
    %v7442 = vadd.f32 %v7013, %v7441
    %7443 = vmatprep.mubr.bf16.mxu0 0
    %7444 = vmatmul.mubr.bf16.gmra.mxu0 %v6952
    %v7445 = vpop.f32.mrf.mxu0
    %v7446 = vadd.f32 %v7009, %v7445
    %v7447 = vpop.f32.mrf.mxu0
    %v7448 = vadd.f32 %v7013, %v7447
    %v7449 = vpop.f32.mrf.mxu0
    %v7450 = vadd.f32 %v7009, %v7449
    %v7451 = vpop.f32.mrf.mxu0
    %v7452 = vadd.f32 %v7013, %v7451
    %7453 = vmatprep.mubr.bf16.mxu0 0
    %7454 = vmatmul.mubr.bf16.gmra.mxu0 %v6953
    %v7455 = vpop.f32.mrf.mxu0
    %v7456 = vadd.f32 %v7009, %v7455
    %v7457 = vpop.f32.mrf.mxu0
    %v7458 = vadd.f32 %v7013, %v7457
    %v7459 = vpop.f32.mrf.mxu0
    %v7460 = vadd.f32 %v7009, %v7459
    %v7461 = vpop.f32.mrf.mxu0
    %v7462 = vadd.f32 %v7013, %v7461
    %7463 = vmatprep.mubr.bf16.mxu0 0
    %7464 = vmatmul.mubr.bf16.gmra.mxu0 %v6954
    %v7465 = vpop.f32.mrf.mxu0
    %v7466 = vadd.f32 %v7009, %v7465
    %v7467 = vpop.f32.mrf.mxu0
    %v7468 = vadd.f32 %v7013, %v7467
    %v7469 = vpop.f32.mrf.mxu0
    %v7470 = vadd.f32 %v7009, %v7469
    %v7471 = vpop.f32.mrf.mxu0
    %v7472 = vadd.f32 %v7013, %v7471
    %7473 = vmatprep.mubr.bf16.mxu0 0
    %7474 = vmatmul.mubr.bf16.gmra.mxu0 %v6955
    %v7475 = vpop.f32.mrf.mxu0
    %v7476 = vadd.f32 %v7009, %v7475
    %v7477 = vpop.f32.mrf.mxu0
    %v7478 = vadd.f32 %v7013, %v7477
    %v7479 = vpop.f32.mrf.mxu0
    %v7480 = vadd.f32 %v7009, %v7479
    %v7481 = vpop.f32.mrf.mxu0
    %v7482 = vadd.f32 %v7013, %v7481
    %7483 = vmatprep.mubr.bf16.mxu0 0
    %7484 = vmatmul.mubr.bf16.gmra.mxu0 %v6956
    %v7485 = vpop.f32.mrf.mxu0
    %v7486 = vadd.f32 %v7009, %v7485
    %v7487 = vpop.f32.mrf.mxu0
    %v7488 = vadd.f32 %v7013, %v7487
    %v7489 = vpop.f32.mrf.mxu0
    %v7490 = vadd.f32 %v7009, %v7489
    %v7491 = vpop.f32.mrf.mxu0
    %v7492 = vadd.f32 %v7013, %v7491
    %7493 = vmatprep.mubr.bf16.mxu0 0
    %7494 = vmatmul.mubr.bf16.gmra.mxu0 %v6957
    %v7495 = vpop.f32.mrf.mxu0
    %v7496 = vadd.f32 %v7009, %v7495
    %v7497 = vpop.f32.mrf.mxu0
    %v7498 = vadd.f32 %v7013, %v7497
    %v7499 = vpop.f32.mrf.mxu0
    %v7500 = vadd.f32 %v7009, %v7499
    %v7501 = vpop.f32.mrf.mxu0
    %v7502 = vadd.f32 %v7013, %v7501
    %7503 = vmatprep.mubr.bf16.mxu0 0
    %7504 = vmatmul.mubr.bf16.gmra.mxu0 %v6958
    %v7505 = vpop.f32.mrf.mxu0
    %v7506 = vadd.f32 %v7009, %v7505
    %v7507 = vpop.f32.mrf.mxu0
    %v7508 = vadd.f32 %v7013, %v7507
    %v7509 = vpop.f32.mrf.mxu0
    %v7510 = vadd.f32 %v7009, %v7509
    %v7511 = vpop.f32.mrf.mxu0
    %v7512 = vadd.f32 %v7013, %v7511
    %7513 = vmatprep.mubr.bf16.mxu0 0
    %7514 = vmatmul.mubr.bf16.gmra.mxu0 %v6959
    %v7515 = vpop.f32.mrf.mxu0
    %v7516 = vadd.f32 %v7009, %v7515
    %v7517 = vpop.f32.mrf.mxu0
    %v7518 = vadd.f32 %v7013, %v7517
    %v7519 = vpop.f32.mrf.mxu0
    %v7520 = vadd.f32 %v7009, %v7519
    %v7521 = vpop.f32.mrf.mxu0
    %v7522 = vadd.f32 %v7013, %v7521
    %7523 = vmatprep.mubr.bf16.mxu0 0
    %7524 = vmatmul.mubr.bf16.gmra.mxu0 %v6960
    %v7525 = vpop.f32.mrf.mxu0
    %v7526 = vadd.f32 %v7009, %v7525
    %v7527 = vpop.f32.mrf.mxu0
    %v7528 = vadd.f32 %v7013, %v7527
    %v7529 = vpop.f32.mrf.mxu0
    %v7530 = vadd.f32 %v7009, %v7529
    %v7531 = vpop.f32.mrf.mxu0
    %v7532 = vadd.f32 %v7013, %v7531
    %7533 = vmatprep.mubr.bf16.mxu0 0
    %7534 = vmatmul.mubr.bf16.gmra.mxu0 %v6961
    %v7535 = vpop.f32.mrf.mxu0
    %v7536 = vadd.f32 %v7009, %v7535
    %v7537 = vpop.f32.mrf.mxu0
    %v7538 = vadd.f32 %v7013, %v7537
    %v7539 = vpop.f32.mrf.mxu0
    %v7540 = vadd.f32 %v7009, %v7539
    %v7541 = vpop.f32.mrf.mxu0
    %v7542 = vadd.f32 %v7013, %v7541
    %7543 = vmatprep.mubr.bf16.mxu0 0
    %7544 = vmatmul.mubr.bf16.gmra.mxu0 %v6962
    %v7545 = vpop.f32.mrf.mxu0
    %v7546 = vadd.f32 %v7009, %v7545
    %v7547 = vpop.f32.mrf.mxu0
    %v7548 = vadd.f32 %v7013, %v7547
    %v7549 = vpop.f32.mrf.mxu0
    %v7550 = vadd.f32 %v7009, %v7549
    %v7551 = vpop.f32.mrf.mxu0
    %v7552 = vadd.f32 %v7013, %v7551
    %7553 = vmatprep.mubr.bf16.mxu0 0
    %7554 = vmatmul.mubr.bf16.gmra.mxu0 %v6963
    %v7555 = vpop.f32.mrf.mxu0
    %v7556 = vadd.f32 %v7009, %v7555
    %v7557 = vpop.f32.mrf.mxu0
    %v7558 = vadd.f32 %v7013, %v7557
    %v7559 = vpop.f32.mrf.mxu0
    %v7560 = vadd.f32 %v7009, %v7559
    %v7561 = vpop.f32.mrf.mxu0
    %v7562 = vadd.f32 %v7013, %v7561
    %7563 = vdwg.mxu0
    %v7564 = vmax.f32 %v7213, 0.0
    %v7565 = vmax.f32 %v7215, 0.0
    %v7566 = vmax.f32 %v7406, 0.0
    %v7567 = vmax.f32 %v7408, 0.0
    %v7568 = vmax.f32 %v7217, 0.0
    %v7569 = vmax.f32 %v7219, 0.0
    %v7570 = vmax.f32 %v7410, 0.0
    %v7571 = vmax.f32 %v7412, 0.0
    %v7572 = vmax.f32 %v7223, 0.0
    %v7573 = vmax.f32 %v7225, 0.0
    %v7574 = vmax.f32 %v7416, 0.0
    %v7575 = vmax.f32 %v7418, 0.0
    %v7576 = vmax.f32 %v7227, 0.0
    %v7577 = vmax.f32 %v7229, 0.0
    %v7578 = vmax.f32 %v7420, 0.0
    %v7579 = vmax.f32 %v7422, 0.0
    %v7580 = vmax.f32 %v7233, 0.0
    %v7581 = vmax.f32 %v7235, 0.0
    %v7582 = vmax.f32 %v7426, 0.0
    %v7583 = vmax.f32 %v7428, 0.0
    %v7584 = vmax.f32 %v7237, 0.0
    %v7585 = vmax.f32 %v7239, 0.0
    %v7586 = vmax.f32 %v7430, 0.0
    %v7587 = vmax.f32 %v7432, 0.0
    %v7588 = vmax.f32 %v7243, 0.0
    %v7589 = vmax.f32 %v7245, 0.0
    %v7590 = vmax.f32 %v7436, 0.0
    %v7591 = vmax.f32 %v7438, 0.0
    %v7592 = vmax.f32 %v7247, 0.0
    %v7593 = vmax.f32 %v7249, 0.0
    %v7594 = vmax.f32 %v7440, 0.0
    %v7595 = vmax.f32 %v7442, 0.0
    %v7596 = vmax.f32 %v7253, 0.0
    %v7597 = vmax.f32 %v7255, 0.0
    %v7598 = vmax.f32 %v7446, 0.0
    %v7599 = vmax.f32 %v7448, 0.0
    %v7600 = vmax.f32 %v7257, 0.0
    %v7601 = vmax.f32 %v7259, 0.0
    %v7602 = vmax.f32 %v7450, 0.0
    %v7603 = vmax.f32 %v7452, 0.0
    %v7604 = vmax.f32 %v7263, 0.0
    %v7605 = vmax.f32 %v7265, 0.0
    %v7606 = vmax.f32 %v7456, 0.0
    %v7607 = vmax.f32 %v7458, 0.0
    %v7608 = vmax.f32 %v7267, 0.0
    %v7609 = vmax.f32 %v7269, 0.0
    %v7610 = vmax.f32 %v7460, 0.0
    %v7611 = vmax.f32 %v7462, 0.0
    %v7612 = vmax.f32 %v7273, 0.0
    %v7613 = vmax.f32 %v7275, 0.0
    %v7614 = vmax.f32 %v7466, 0.0
    %v7615 = vmax.f32 %v7468, 0.0
    %v7616 = vmax.f32 %v7277, 0.0
    %v7617 = vmax.f32 %v7279, 0.0
    %v7618 = vmax.f32 %v7470, 0.0
    %v7619 = vmax.f32 %v7472, 0.0
    %v7620 = vmax.f32 %v7283, 0.0
    %v7621 = vmax.f32 %v7285, 0.0
    %v7622 = vmax.f32 %v7476, 0.0
    %v7623 = vmax.f32 %v7478, 0.0
    %v7624 = vmax.f32 %v7287, 0.0
    %v7625 = vmax.f32 %v7289, 0.0
    %v7626 = vmax.f32 %v7480, 0.0
    %v7627 = vmax.f32 %v7482, 0.0
    %v7628 = vmax.f32 %v7293, 0.0
    %v7629 = vmax.f32 %v7295, 0.0
    %v7630 = vmax.f32 %v7486, 0.0
    %v7631 = vmax.f32 %v7488, 0.0
    %v7632 = vmax.f32 %v7297, 0.0
    %v7633 = vmax.f32 %v7299, 0.0
    %v7634 = vmax.f32 %v7490, 0.0
    %v7635 = vmax.f32 %v7492, 0.0
    %v7636 = vmax.f32 %v7303, 0.0
    %v7637 = vmax.f32 %v7305, 0.0
    %v7638 = vmax.f32 %v7496, 0.0
    %v7639 = vmax.f32 %v7498, 0.0
    %v7640 = vmax.f32 %v7307, 0.0
    %v7641 = vmax.f32 %v7309, 0.0
    %v7642 = vmax.f32 %v7500, 0.0
    %v7643 = vmax.f32 %v7502, 0.0
    %v7644 = vmax.f32 %v7313, 0.0
    %v7645 = vmax.f32 %v7315, 0.0
    %v7646 = vmax.f32 %v7506, 0.0
    %v7647 = vmax.f32 %v7508, 0.0
    %v7648 = vmax.f32 %v7317, 0.0
    %v7649 = vmax.f32 %v7319, 0.0
    %v7650 = vmax.f32 %v7510, 0.0
    %v7651 = vmax.f32 %v7512, 0.0
    %v7652 = vmax.f32 %v7323, 0.0
    %v7653 = vmax.f32 %v7325, 0.0
    %v7654 = vmax.f32 %v7516, 0.0
    %v7655 = vmax.f32 %v7518, 0.0
    %v7656 = vmax.f32 %v7327, 0.0
    %v7657 = vmax.f32 %v7329, 0.0
    %v7658 = vmax.f32 %v7520, 0.0
    %v7659 = vmax.f32 %v7522, 0.0
    %v7660 = vmax.f32 %v7333, 0.0
    %v7661 = vmax.f32 %v7335, 0.0
    %v7662 = vmax.f32 %v7526, 0.0
    %v7663 = vmax.f32 %v7528, 0.0
    %v7664 = vmax.f32 %v7337, 0.0
    %v7665 = vmax.f32 %v7339, 0.0
    %v7666 = vmax.f32 %v7530, 0.0
    %v7667 = vmax.f32 %v7532, 0.0
    %v7668 = vmax.f32 %v7343, 0.0
    %v7669 = vmax.f32 %v7345, 0.0
    %v7670 = vmax.f32 %v7536, 0.0
    %v7671 = vmax.f32 %v7538, 0.0
    %v7672 = vmax.f32 %v7347, 0.0
    %v7673 = vmax.f32 %v7349, 0.0
    %v7674 = vmax.f32 %v7540, 0.0
    %v7675 = vmax.f32 %v7542, 0.0
    %v7676 = vmax.f32 %v7353, 0.0
    %v7677 = vmax.f32 %v7355, 0.0
    %v7678 = vmax.f32 %v7546, 0.0
    %v7679 = vmax.f32 %v7548, 0.0
    %v7680 = vmax.f32 %v7357, 0.0
    %v7681 = vmax.f32 %v7359, 0.0
    %v7682 = vmax.f32 %v7550, 0.0
    %v7683 = vmax.f32 %v7552, 0.0
    %v7684 = vmax.f32 %v7363, 0.0
    %v7685 = vmax.f32 %v7365, 0.0
    %v7686 = vmax.f32 %v7556, 0.0
    %v7687 = vmax.f32 %v7558, 0.0
    %v7688 = vmax.f32 %v7367, 0.0
    %v7689 = vmax.f32 %v7369, 0.0
    %v7690 = vmax.f32 %v7560, 0.0
    %v7691 = vmax.f32 %v7562, 0.0
    %v7692 = vpack.c.bf16 %v7568, %v7564
    %v7693 = vpack.c.bf16 %v7569, %v7565
    %v7694 = vpack.c.bf16 %v7570, %v7566
    %v7695 = vpack.c.bf16 %v7571, %v7567
    %v7696 = vpack.c.bf16 %v7576, %v7572
    %v7697 = vpack.c.bf16 %v7577, %v7573
    %v7698 = vpack.c.bf16 %v7578, %v7574
    %v7699 = vpack.c.bf16 %v7579, %v7575
    %v7700 = vpack.c.bf16 %v7584, %v7580
    %v7701 = vpack.c.bf16 %v7585, %v7581
    %v7702 = vpack.c.bf16 %v7586, %v7582
    %v7703 = vpack.c.bf16 %v7587, %v7583
    %v7704 = vpack.c.bf16 %v7592, %v7588
    %v7705 = vpack.c.bf16 %v7593, %v7589
    %v7706 = vpack.c.bf16 %v7594, %v7590
    %v7707 = vpack.c.bf16 %v7595, %v7591
    %v7708 = vpack.c.bf16 %v7600, %v7596
    %v7709 = vpack.c.bf16 %v7601, %v7597
    %v7710 = vpack.c.bf16 %v7602, %v7598
    %v7711 = vpack.c.bf16 %v7603, %v7599
    %v7712 = vpack.c.bf16 %v7608, %v7604
    %v7713 = vpack.c.bf16 %v7609, %v7605
    %v7714 = vpack.c.bf16 %v7610, %v7606
    %v7715 = vpack.c.bf16 %v7611, %v7607
    %v7716 = vpack.c.bf16 %v7616, %v7612
    %v7717 = vpack.c.bf16 %v7617, %v7613
    %v7718 = vpack.c.bf16 %v7618, %v7614
    %v7719 = vpack.c.bf16 %v7619, %v7615
    %v7720 = vpack.c.bf16 %v7624, %v7620
    %v7721 = vpack.c.bf16 %v7625, %v7621
    %v7722 = vpack.c.bf16 %v7626, %v7622
    %v7723 = vpack.c.bf16 %v7627, %v7623
    %v7724 = vpack.c.bf16 %v7632, %v7628
    %v7725 = vpack.c.bf16 %v7633, %v7629
    %v7726 = vpack.c.bf16 %v7634, %v7630
    %v7727 = vpack.c.bf16 %v7635, %v7631
    %v7728 = vpack.c.bf16 %v7640, %v7636
    %v7729 = vpack.c.bf16 %v7641, %v7637
    %v7730 = vpack.c.bf16 %v7642, %v7638
    %v7731 = vpack.c.bf16 %v7643, %v7639
    %v7732 = vpack.c.bf16 %v7648, %v7644
    %v7733 = vpack.c.bf16 %v7649, %v7645
    %v7734 = vpack.c.bf16 %v7650, %v7646
    %v7735 = vpack.c.bf16 %v7651, %v7647
    %v7736 = vpack.c.bf16 %v7656, %v7652
    %v7737 = vpack.c.bf16 %v7657, %v7653
    %v7738 = vpack.c.bf16 %v7658, %v7654
    %v7739 = vpack.c.bf16 %v7659, %v7655
    %v7740 = vpack.c.bf16 %v7664, %v7660
    %v7741 = vpack.c.bf16 %v7665, %v7661
    %v7742 = vpack.c.bf16 %v7666, %v7662
    %v7743 = vpack.c.bf16 %v7667, %v7663
    %v7744 = vpack.c.bf16 %v7672, %v7668
    %v7745 = vpack.c.bf16 %v7673, %v7669
    %v7746 = vpack.c.bf16 %v7674, %v7670
    %v7747 = vpack.c.bf16 %v7675, %v7671
    %v7748 = vpack.c.bf16 %v7680, %v7676
    %v7749 = vpack.c.bf16 %v7681, %v7677
    %v7750 = vpack.c.bf16 %v7682, %v7678
    %v7751 = vpack.c.bf16 %v7683, %v7679
    %v7752 = vpack.c.bf16 %v7688, %v7684
    %v7753 = vpack.c.bf16 %v7689, %v7685
    %v7754 = vpack.c.bf16 %v7690, %v7686
    %v7755 = vpack.c.bf16 %v7691, %v7687
    %v7756 = vld [vmem:[#allocation12] sm:$0xf]
    %v7757 = vld [vmem:[#allocation12 + $0x4] sm:$0xf]
    %v7758 = vld [vmem:[#allocation12 + $0x8] sm:$0xf]
    %v7759 = vld [vmem:[#allocation12 + $0xc] sm:$0xf]
    %v7760 = vld [vmem:[#allocation12 + $0x10] sm:$0xf]
    %v7761 = vld [vmem:[#allocation12 + $0x14] sm:$0xf]
    %v7762 = vld [vmem:[#allocation12 + $0x18] sm:$0xf]
    %v7763 = vld [vmem:[#allocation12 + $0x1c] sm:$0xf]
    %v7764 = vld [vmem:[#allocation12 + $0x20] sm:$0xf]
    %v7765 = vld [vmem:[#allocation12 + $0x24] sm:$0xf]
    %v7766 = vld [vmem:[#allocation12 + $0x28] sm:$0xf]
    %v7767 = vld [vmem:[#allocation12 + $0x2c] sm:$0xf]
    %v7768 = vld [vmem:[#allocation12 + $0x30] sm:$0xf]
    %v7769 = vld [vmem:[#allocation12 + $0x34] sm:$0xf]
    %v7770 = vld [vmem:[#allocation12 + $0x38] sm:$0xf]
    %v7771 = vld [vmem:[#allocation12 + $0x3c] sm:$0xf]
    %v7772 = vld [vmem:[#allocation12 + $0x40] sm:$0xf]
    %v7773 = vld [vmem:[#allocation12 + $0x44] sm:$0xf]
    %v7774 = vld [vmem:[#allocation12 + $0x48] sm:$0xf]
    %v7775 = vld [vmem:[#allocation12 + $0x4c] sm:$0xf]
    %v7776 = vld [vmem:[#allocation12 + $0x50] sm:$0xf]
    %v7777 = vld [vmem:[#allocation12 + $0x54] sm:$0xf]
    %v7778 = vld [vmem:[#allocation12 + $0x58] sm:$0xf]
    %v7779 = vld [vmem:[#allocation12 + $0x5c] sm:$0xf]
    %v7780 = vld [vmem:[#allocation12 + $0x60] sm:$0xf]
    %v7781 = vld [vmem:[#allocation12 + $0x64] sm:$0xf]
    %v7782 = vld [vmem:[#allocation12 + $0x68] sm:$0xf]
    %v7783 = vld [vmem:[#allocation12 + $0x6c] sm:$0xf]
    %v7784 = vld [vmem:[#allocation12 + $0x70] sm:$0xf]
    %v7785 = vld [vmem:[#allocation12 + $0x74] sm:$0xf]
    %v7786 = vld [vmem:[#allocation12 + $0x78] sm:$0xf]
    %v7787 = vld [vmem:[#allocation12 + $0x7c] sm:$0xf]
    %v7788 = vld [vmem:[#allocation12 + $0x80] sm:$0xf]
    %v7789 = vld [vmem:[#allocation12 + $0x84] sm:$0xf]
    %v7790 = vld [vmem:[#allocation12 + $0x88] sm:$0xf]
    %v7791 = vld [vmem:[#allocation12 + $0x8c] sm:$0xf]
    %v7792 = vld [vmem:[#allocation12 + $0x90] sm:$0xf]
    %v7793 = vld [vmem:[#allocation12 + $0x94] sm:$0xf]
    %v7794 = vld [vmem:[#allocation12 + $0x98] sm:$0xf]
    %v7795 = vld [vmem:[#allocation12 + $0x9c] sm:$0xf]
    %v7796 = vld [vmem:[#allocation12 + $0xa0] sm:$0xf]
    %v7797 = vld [vmem:[#allocation12 + $0xa4] sm:$0xf]
    %v7798 = vld [vmem:[#allocation12 + $0xa8] sm:$0xf]
    %v7799 = vld [vmem:[#allocation12 + $0xac] sm:$0xf]
    %v7800 = vld [vmem:[#allocation12 + $0xb0] sm:$0xf]
    %v7801 = vld [vmem:[#allocation12 + $0xb4] sm:$0xf]
    %v7802 = vld [vmem:[#allocation12 + $0xb8] sm:$0xf]
    %v7803 = vld [vmem:[#allocation12 + $0xbc] sm:$0xf]
    %v7804 = vld [vmem:[#allocation12 + $0xc0] sm:$0xf]
    %v7805 = vld [vmem:[#allocation12 + $0xc4] sm:$0xf]
    %v7806 = vld [vmem:[#allocation12 + $0xc8] sm:$0xf]
    %v7807 = vld [vmem:[#allocation12 + $0xcc] sm:$0xf]
    %v7808 = vld [vmem:[#allocation12 + $0xd0] sm:$0xf]
    %v7809 = vld [vmem:[#allocation12 + $0xd4] sm:$0xf]
    %v7810 = vld [vmem:[#allocation12 + $0xd8] sm:$0xf]
    %v7811 = vld [vmem:[#allocation12 + $0xdc] sm:$0xf]
    %v7812 = vld [vmem:[#allocation12 + $0xe0] sm:$0xf]
    %v7813 = vld [vmem:[#allocation12 + $0xe4] sm:$0xf]
    %v7814 = vld [vmem:[#allocation12 + $0xe8] sm:$0xf]
    %v7815 = vld [vmem:[#allocation12 + $0xec] sm:$0xf]
    %v7816 = vld [vmem:[#allocation12 + $0xf0] sm:$0xf]
    %v7817 = vld [vmem:[#allocation12 + $0xf4] sm:$0xf]
    %v7818 = vld [vmem:[#allocation12 + $0xf8] sm:$0xf]
    %v7819 = vld [vmem:[#allocation12 + $0xfc] sm:$0xf]
    %v7820 = vld [vmem:[%s12] sm:$0x1]
    %v7822 = vlaneseq
    %v7823 = vshrl.u32 %v7822, 7
    %v7824 = vsub.s32 0, %v7823
    %v7825 = vrot.slane %v7820, %v7824
    %v7891 = vunpack.c.l.b16 %v7756
    %v7892 = vunpack.c.l.b16 %v7757
    %v7893 = vunpack.c.l.b16 %v7758
    %v7894 = vunpack.c.l.b16 %v7759
    %v7895 = vunpack.c.l.b16 %v7760
    %v7896 = vunpack.c.l.b16 %v7761
    %v7897 = vunpack.c.l.b16 %v7762
    %v7898 = vunpack.c.l.b16 %v7763
    %v7899 = vunpack.c.l.b16 %v7764
    %v7900 = vunpack.c.l.b16 %v7765
    %v7901 = vunpack.c.l.b16 %v7766
    %v7902 = vunpack.c.l.b16 %v7767
    %v7903 = vunpack.c.l.b16 %v7768
    %v7904 = vunpack.c.l.b16 %v7769
    %v7905 = vunpack.c.l.b16 %v7770
    %v7906 = vunpack.c.l.b16 %v7771
    %v7907 = vunpack.c.l.b16 %v7772
    %v7908 = vunpack.c.l.b16 %v7773
    %v7909 = vunpack.c.l.b16 %v7774
    %v7910 = vunpack.c.l.b16 %v7775
    %v7911 = vunpack.c.l.b16 %v7776
    %v7912 = vunpack.c.l.b16 %v7777
    %v7913 = vunpack.c.l.b16 %v7778
    %v7914 = vunpack.c.l.b16 %v7779
    %v7915 = vunpack.c.l.b16 %v7780
    %v7916 = vunpack.c.l.b16 %v7781
    %v7917 = vunpack.c.l.b16 %v7782
    %v7918 = vunpack.c.l.b16 %v7783
    %v7919 = vunpack.c.l.b16 %v7784
    %v7920 = vunpack.c.l.b16 %v7785
    %v7921 = vunpack.c.l.b16 %v7786
    %v7922 = vunpack.c.l.b16 %v7787
    %v7923 = vunpack.c.l.b16 %v7788
    %v7924 = vunpack.c.l.b16 %v7789
    %v7925 = vunpack.c.l.b16 %v7790
    %v7926 = vunpack.c.l.b16 %v7791
    %v7927 = vunpack.c.l.b16 %v7792
    %v7928 = vunpack.c.l.b16 %v7793
    %v7929 = vunpack.c.l.b16 %v7794
    %v7930 = vunpack.c.l.b16 %v7795
    %v7931 = vunpack.c.l.b16 %v7796
    %v7932 = vunpack.c.l.b16 %v7797
    %v7933 = vunpack.c.l.b16 %v7798
    %v7934 = vunpack.c.l.b16 %v7799
    %v7935 = vunpack.c.l.b16 %v7800
    %v7936 = vunpack.c.l.b16 %v7801
    %v7937 = vunpack.c.l.b16 %v7802
    %v7938 = vunpack.c.l.b16 %v7803
    %v7939 = vunpack.c.l.b16 %v7804
    %v7940 = vunpack.c.l.b16 %v7805
    %v7941 = vunpack.c.l.b16 %v7806
    %v7942 = vunpack.c.l.b16 %v7807
    %v7943 = vunpack.c.l.b16 %v7808
    %v7944 = vunpack.c.l.b16 %v7809
    %v7945 = vunpack.c.l.b16 %v7810
    %v7946 = vunpack.c.l.b16 %v7811
    %v7947 = vunpack.c.l.b16 %v7812
    %v7948 = vunpack.c.l.b16 %v7813
    %v7949 = vunpack.c.l.b16 %v7814
    %v7950 = vunpack.c.l.b16 %v7815
    %v7951 = vunpack.c.l.b16 %v7816
    %v7952 = vunpack.c.l.b16 %v7817
    %v7953 = vunpack.c.l.b16 %v7818
    %v7954 = vunpack.c.l.b16 %v7819
    %v7955 = vpack.c.b16 %v7892, %v7891
    %v7956 = vpack.c.b16 %v7894, %v7893
    %v7957 = vpack.c.b16 %v7896, %v7895
    %v7958 = vpack.c.b16 %v7898, %v7897
    %v7959 = vpack.c.b16 %v7900, %v7899
    %v7960 = vpack.c.b16 %v7902, %v7901
    %v7961 = vpack.c.b16 %v7904, %v7903
    %v7962 = vpack.c.b16 %v7906, %v7905
    %v7963 = vpack.c.b16 %v7908, %v7907
    %v7964 = vpack.c.b16 %v7910, %v7909
    %v7965 = vpack.c.b16 %v7912, %v7911
    %v7966 = vpack.c.b16 %v7914, %v7913
    %v7967 = vpack.c.b16 %v7916, %v7915
    %v7968 = vpack.c.b16 %v7918, %v7917
    %v7969 = vpack.c.b16 %v7920, %v7919
    %v7970 = vpack.c.b16 %v7922, %v7921
    %v7971 = vpack.c.b16 %v7924, %v7923
    %v7972 = vpack.c.b16 %v7926, %v7925
    %v7973 = vpack.c.b16 %v7928, %v7927
    %v7974 = vpack.c.b16 %v7930, %v7929
    %v7975 = vpack.c.b16 %v7932, %v7931
    %v7976 = vpack.c.b16 %v7934, %v7933
    %v7977 = vpack.c.b16 %v7936, %v7935
    %v7978 = vpack.c.b16 %v7938, %v7937
    %v7979 = vpack.c.b16 %v7940, %v7939
    %v7980 = vpack.c.b16 %v7942, %v7941
    %v7981 = vpack.c.b16 %v7944, %v7943
    %v7982 = vpack.c.b16 %v7946, %v7945
    %v7983 = vpack.c.b16 %v7948, %v7947
    %v7984 = vpack.c.b16 %v7950, %v7949
    %v7985 = vpack.c.b16 %v7952, %v7951
    %v7986 = vpack.c.b16 %v7954, %v7953
    %8019 = vmatprep.subr.bf16.mxu0 0
    %8020 = vmatpush1.bf16.msra.mxu0 %v7962
    %8021 = vmatprep.subr.bf16.mxu0 0
    %8022 = vmatpush1.bf16.msra.mxu0 %v7961
    %8023 = vmatprep.subr.bf16.mxu0 0
    %8024 = vmatpush1.bf16.msra.mxu0 %v7960
    %8025 = vmatprep.subr.bf16.mxu0 0
    %8026 = vmatpush1.bf16.msra.mxu0 %v7959
    %8027 = vmatprep.subr.bf16.mxu0 0
    %8028 = vmatpush1.bf16.msra.mxu0 %v7958
    %8029 = vmatprep.subr.bf16.mxu0 0
    %8030 = vmatpush1.bf16.msra.mxu0 %v7957
    %8031 = vmatprep.subr.bf16.mxu0 0
    %8032 = vmatpush1.bf16.msra.mxu0 %v7956
    %8033 = vmatprep.subr.bf16.mxu0 0
    %8034 = vmatpush1.bf16.msra.mxu0 %v7955
    %8035 = vmatprep.subr.bf16.mxu0 0
    %8036 = vmatpush2.bf16.msra.mxu0 %v7970
    %8037 = vmatprep.subr.bf16.mxu0 0
    %8038 = vmatpush2.bf16.msra.mxu0 %v7969
    %8039 = vmatprep.subr.bf16.mxu0 0
    %8040 = vmatpush2.bf16.msra.mxu0 %v7968
    %8041 = vmatprep.subr.bf16.mxu0 0
    %8042 = vmatpush2.bf16.msra.mxu0 %v7967
    %8043 = vmatprep.subr.bf16.mxu0 0
    %8044 = vmatpush2.bf16.msra.mxu0 %v7966
    %8045 = vmatprep.subr.bf16.mxu0 0
    %8046 = vmatpush2.bf16.msra.mxu0 %v7965
    %8047 = vmatprep.subr.bf16.mxu0 0
    %8048 = vmatpush2.bf16.msra.mxu0 %v7964
    %8049 = vmatprep.subr.bf16.mxu0 0
    %8050 = vmatpush2.bf16.msra.mxu0 %v7963
    %8051 = vmatprep.mubr.bf16.mxu0 %v7693
    %8052 = vmatmul.mubr.bf16.gmra.mxu0 %v7692
    %v8053 = vpop.f32.mrf.mxu0
    %v8054 = vadd.f32 %v7825, %v8053
    %v8055 = vpop.f32.mrf.mxu0
    %v8056 = vpop.f32.mrf.mxu0
    %v8057 = vadd.f32 %v7825, %v8056
    %v8058 = vpop.f32.mrf.mxu0
    %8059 = vmatprep.mubr.bf16.mxu0 %v7697
    %8060 = vmatmul.mubr.bf16.gmra.mxu0 %v7696
    %v8061 = vpop.f32.mrf.mxu0
    %v8062 = vadd.f32 %v7825, %v8061
    %v8063 = vpop.f32.mrf.mxu0
    %v8064 = vpop.f32.mrf.mxu0
    %v8065 = vadd.f32 %v7825, %v8064
    %v8066 = vpop.f32.mrf.mxu0
    %8067 = vmatprep.mubr.bf16.mxu0 %v7701
    %8068 = vmatmul.mubr.bf16.gmra.mxu0 %v7700
    %v8069 = vpop.f32.mrf.mxu0
    %v8070 = vadd.f32 %v7825, %v8069
    %v8071 = vpop.f32.mrf.mxu0
    %v8072 = vpop.f32.mrf.mxu0
    %v8073 = vadd.f32 %v7825, %v8072
    %v8074 = vpop.f32.mrf.mxu0
    %8075 = vmatprep.mubr.bf16.mxu0 %v7705
    %8076 = vmatmul.mubr.bf16.gmra.mxu0 %v7704
    %v8077 = vpop.f32.mrf.mxu0
    %v8078 = vadd.f32 %v7825, %v8077
    %v8079 = vpop.f32.mrf.mxu0
    %v8080 = vpop.f32.mrf.mxu0
    %v8081 = vadd.f32 %v7825, %v8080
    %v8082 = vpop.f32.mrf.mxu0
    %8083 = vmatprep.mubr.bf16.mxu0 %v7709
    %8084 = vmatmul.mubr.bf16.gmra.mxu0 %v7708
    %v8085 = vpop.f32.mrf.mxu0
    %v8086 = vadd.f32 %v7825, %v8085
    %v8087 = vpop.f32.mrf.mxu0
    %v8088 = vpop.f32.mrf.mxu0
    %v8089 = vadd.f32 %v7825, %v8088
    %v8090 = vpop.f32.mrf.mxu0
    %8091 = vmatprep.mubr.bf16.mxu0 %v7713
    %8092 = vmatmul.mubr.bf16.gmra.mxu0 %v7712
    %v8093 = vpop.f32.mrf.mxu0
    %v8094 = vadd.f32 %v7825, %v8093
    %v8095 = vpop.f32.mrf.mxu0
    %v8096 = vpop.f32.mrf.mxu0
    %v8097 = vadd.f32 %v7825, %v8096
    %v8098 = vpop.f32.mrf.mxu0
    %8099 = vmatprep.mubr.bf16.mxu0 %v7717
    %8100 = vmatmul.mubr.bf16.gmra.mxu0 %v7716
    %v8101 = vpop.f32.mrf.mxu0
    %v8102 = vadd.f32 %v7825, %v8101
    %v8103 = vpop.f32.mrf.mxu0
    %v8104 = vpop.f32.mrf.mxu0
    %v8105 = vadd.f32 %v7825, %v8104
    %v8106 = vpop.f32.mrf.mxu0
    %8107 = vmatprep.mubr.bf16.mxu0 %v7721
    %8108 = vmatmul.mubr.bf16.gmra.mxu0 %v7720
    %v8109 = vpop.f32.mrf.mxu0
    %v8110 = vadd.f32 %v7825, %v8109
    %v8111 = vpop.f32.mrf.mxu0
    %v8112 = vpop.f32.mrf.mxu0
    %v8113 = vadd.f32 %v7825, %v8112
    %v8114 = vpop.f32.mrf.mxu0
    %8115 = vmatprep.mubr.bf16.mxu0 %v7725
    %8116 = vmatmul.mubr.bf16.gmra.mxu0 %v7724
    %v8117 = vpop.f32.mrf.mxu0
    %v8118 = vadd.f32 %v7825, %v8117
    %v8119 = vpop.f32.mrf.mxu0
    %v8120 = vpop.f32.mrf.mxu0
    %v8121 = vadd.f32 %v7825, %v8120
    %v8122 = vpop.f32.mrf.mxu0
    %8123 = vmatprep.mubr.bf16.mxu0 %v7729
    %8124 = vmatmul.mubr.bf16.gmra.mxu0 %v7728
    %v8125 = vpop.f32.mrf.mxu0
    %v8126 = vadd.f32 %v7825, %v8125
    %v8127 = vpop.f32.mrf.mxu0
    %v8128 = vpop.f32.mrf.mxu0
    %v8129 = vadd.f32 %v7825, %v8128
    %v8130 = vpop.f32.mrf.mxu0
    %8131 = vmatprep.mubr.bf16.mxu0 %v7733
    %8132 = vmatmul.mubr.bf16.gmra.mxu0 %v7732
    %v8133 = vpop.f32.mrf.mxu0
    %v8134 = vadd.f32 %v7825, %v8133
    %v8135 = vpop.f32.mrf.mxu0
    %v8136 = vpop.f32.mrf.mxu0
    %v8137 = vadd.f32 %v7825, %v8136
    %v8138 = vpop.f32.mrf.mxu0
    %8139 = vmatprep.mubr.bf16.mxu0 %v7737
    %8140 = vmatmul.mubr.bf16.gmra.mxu0 %v7736
    %v8141 = vpop.f32.mrf.mxu0
    %v8142 = vadd.f32 %v7825, %v8141
    %v8143 = vpop.f32.mrf.mxu0
    %v8144 = vpop.f32.mrf.mxu0
    %v8145 = vadd.f32 %v7825, %v8144
    %v8146 = vpop.f32.mrf.mxu0
    %8147 = vmatprep.mubr.bf16.mxu0 %v7741
    %8148 = vmatmul.mubr.bf16.gmra.mxu0 %v7740
    %v8149 = vpop.f32.mrf.mxu0
    %v8150 = vadd.f32 %v7825, %v8149
    %v8151 = vpop.f32.mrf.mxu0
    %v8152 = vpop.f32.mrf.mxu0
    %v8153 = vadd.f32 %v7825, %v8152
    %v8154 = vpop.f32.mrf.mxu0
    %8155 = vmatprep.mubr.bf16.mxu0 %v7745
    %8156 = vmatmul.mubr.bf16.gmra.mxu0 %v7744
    %v8157 = vpop.f32.mrf.mxu0
    %v8158 = vadd.f32 %v7825, %v8157
    %v8159 = vpop.f32.mrf.mxu0
    %v8160 = vpop.f32.mrf.mxu0
    %v8161 = vadd.f32 %v7825, %v8160
    %v8162 = vpop.f32.mrf.mxu0
    %8163 = vmatprep.mubr.bf16.mxu0 %v7749
    %8164 = vmatmul.mubr.bf16.gmra.mxu0 %v7748
    %v8165 = vpop.f32.mrf.mxu0
    %v8166 = vadd.f32 %v7825, %v8165
    %v8167 = vpop.f32.mrf.mxu0
    %v8168 = vpop.f32.mrf.mxu0
    %v8169 = vadd.f32 %v7825, %v8168
    %v8170 = vpop.f32.mrf.mxu0
    %8171 = vmatprep.mubr.bf16.mxu0 %v7753
    %8172 = vmatmul.mubr.bf16.gmra.mxu0 %v7752
    %v8173 = vpop.f32.mrf.mxu0
    %v8174 = vadd.f32 %v7825, %v8173
    %v8175 = vpop.f32.mrf.mxu0
    %v8176 = vpop.f32.mrf.mxu0
    %v8177 = vadd.f32 %v7825, %v8176
    %v8178 = vpop.f32.mrf.mxu0
    %8179 = vdwg.mxu0
    %8180 = vmatprep.subr.bf16.mxu0 0
    %8181 = vmatpush1.bf16.msra.mxu0 %v7978
    %8182 = vmatprep.subr.bf16.mxu0 0
    %8183 = vmatpush1.bf16.msra.mxu0 %v7977
    %8184 = vmatprep.subr.bf16.mxu0 0
    %8185 = vmatpush1.bf16.msra.mxu0 %v7976
    %8186 = vmatprep.subr.bf16.mxu0 0
    %8187 = vmatpush1.bf16.msra.mxu0 %v7975
    %8188 = vmatprep.subr.bf16.mxu0 0
    %8189 = vmatpush1.bf16.msra.mxu0 %v7974
    %8190 = vmatprep.subr.bf16.mxu0 0
    %8191 = vmatpush1.bf16.msra.mxu0 %v7973
    %8192 = vmatprep.subr.bf16.mxu0 0
    %8193 = vmatpush1.bf16.msra.mxu0 %v7972
    %8194 = vmatprep.subr.bf16.mxu0 0
    %8195 = vmatpush1.bf16.msra.mxu0 %v7971
    %8196 = vmatprep.subr.bf16.mxu0 0
    %8197 = vmatpush2.bf16.msra.mxu0 %v7986
    %8198 = vmatprep.subr.bf16.mxu0 0
    %8199 = vmatpush2.bf16.msra.mxu0 %v7985
    %8200 = vmatprep.subr.bf16.mxu0 0
    %8201 = vmatpush2.bf16.msra.mxu0 %v7984
    %8202 = vmatprep.subr.bf16.mxu0 0
    %8203 = vmatpush2.bf16.msra.mxu0 %v7983
    %8204 = vmatprep.subr.bf16.mxu0 0
    %8205 = vmatpush2.bf16.msra.mxu0 %v7982
    %8206 = vmatprep.subr.bf16.mxu0 0
    %8207 = vmatpush2.bf16.msra.mxu0 %v7981
    %8208 = vmatprep.subr.bf16.mxu0 0
    %8209 = vmatpush2.bf16.msra.mxu0 %v7980
    %8210 = vmatprep.subr.bf16.mxu0 0
    %8211 = vmatpush2.bf16.msra.mxu0 %v7979
    %8212 = vmatprep.mubr.bf16.mxu0 %v7695
    %8213 = vmatmul.mubr.bf16.gmra.mxu0 %v7694
    %v8214 = vpop.f32.mrf.mxu0
    %v8215 = vadd.f32 %v8054, %v8214
    %v8216 = vpop.f32.mrf.mxu0
    %v8217 = vpop.f32.mrf.mxu0
    %v8218 = vadd.f32 %v8057, %v8217
    %v8219 = vpop.f32.mrf.mxu0
    %8220 = vmatprep.mubr.bf16.mxu0 %v7699
    %8221 = vmatmul.mubr.bf16.gmra.mxu0 %v7698
    %v8222 = vpop.f32.mrf.mxu0
    %v8223 = vadd.f32 %v8062, %v8222
    %v8224 = vpop.f32.mrf.mxu0
    %v8225 = vpop.f32.mrf.mxu0
    %v8226 = vadd.f32 %v8065, %v8225
    %v8227 = vpop.f32.mrf.mxu0
    %8228 = vmatprep.mubr.bf16.mxu0 %v7703
    %8229 = vmatmul.mubr.bf16.gmra.mxu0 %v7702
    %v8230 = vpop.f32.mrf.mxu0
    %v8231 = vadd.f32 %v8070, %v8230
    %v8232 = vpop.f32.mrf.mxu0
    %v8233 = vpop.f32.mrf.mxu0
    %v8234 = vadd.f32 %v8073, %v8233
    %v8235 = vpop.f32.mrf.mxu0
    %8236 = vmatprep.mubr.bf16.mxu0 %v7707
    %8237 = vmatmul.mubr.bf16.gmra.mxu0 %v7706
    %v8238 = vpop.f32.mrf.mxu0
    %v8239 = vadd.f32 %v8078, %v8238
    %v8240 = vpop.f32.mrf.mxu0
    %v8241 = vpop.f32.mrf.mxu0
    %v8242 = vadd.f32 %v8081, %v8241
    %v8243 = vpop.f32.mrf.mxu0
    %8244 = vmatprep.mubr.bf16.mxu0 %v7711
    %8245 = vmatmul.mubr.bf16.gmra.mxu0 %v7710
    %v8246 = vpop.f32.mrf.mxu0
    %v8247 = vadd.f32 %v8086, %v8246
    %v8248 = vpop.f32.mrf.mxu0
    %v8249 = vpop.f32.mrf.mxu0
    %v8250 = vadd.f32 %v8089, %v8249
    %v8251 = vpop.f32.mrf.mxu0
    %8252 = vmatprep.mubr.bf16.mxu0 %v7715
    %8253 = vmatmul.mubr.bf16.gmra.mxu0 %v7714
    %v8254 = vpop.f32.mrf.mxu0
    %v8255 = vadd.f32 %v8094, %v8254
    %v8256 = vpop.f32.mrf.mxu0
    %v8257 = vpop.f32.mrf.mxu0
    %v8258 = vadd.f32 %v8097, %v8257
    %v8259 = vpop.f32.mrf.mxu0
    %8260 = vmatprep.mubr.bf16.mxu0 %v7719
    %8261 = vmatmul.mubr.bf16.gmra.mxu0 %v7718
    %v8262 = vpop.f32.mrf.mxu0
    %v8263 = vadd.f32 %v8102, %v8262
    %v8264 = vpop.f32.mrf.mxu0
    %v8265 = vpop.f32.mrf.mxu0
    %v8266 = vadd.f32 %v8105, %v8265
    %v8267 = vpop.f32.mrf.mxu0
    %8268 = vmatprep.mubr.bf16.mxu0 %v7723
    %8269 = vmatmul.mubr.bf16.gmra.mxu0 %v7722
    %v8270 = vpop.f32.mrf.mxu0
    %v8271 = vadd.f32 %v8110, %v8270
    %v8272 = vpop.f32.mrf.mxu0
    %v8273 = vpop.f32.mrf.mxu0
    %v8274 = vadd.f32 %v8113, %v8273
    %v8275 = vpop.f32.mrf.mxu0
    %8276 = vmatprep.mubr.bf16.mxu0 %v7727
    %8277 = vmatmul.mubr.bf16.gmra.mxu0 %v7726
    %v8278 = vpop.f32.mrf.mxu0
    %v8279 = vadd.f32 %v8118, %v8278
    %v8280 = vpop.f32.mrf.mxu0
    %v8281 = vpop.f32.mrf.mxu0
    %v8282 = vadd.f32 %v8121, %v8281
    %v8283 = vpop.f32.mrf.mxu0
    %8284 = vmatprep.mubr.bf16.mxu0 %v7731
    %8285 = vmatmul.mubr.bf16.gmra.mxu0 %v7730
    %v8286 = vpop.f32.mrf.mxu0
    %v8287 = vadd.f32 %v8126, %v8286
    %v8288 = vpop.f32.mrf.mxu0
    %v8289 = vpop.f32.mrf.mxu0
    %v8290 = vadd.f32 %v8129, %v8289
    %v8291 = vpop.f32.mrf.mxu0
    %8292 = vmatprep.mubr.bf16.mxu0 %v7735
    %8293 = vmatmul.mubr.bf16.gmra.mxu0 %v7734
    %v8294 = vpop.f32.mrf.mxu0
    %v8295 = vadd.f32 %v8134, %v8294
    %v8296 = vpop.f32.mrf.mxu0
    %v8297 = vpop.f32.mrf.mxu0
    %v8298 = vadd.f32 %v8137, %v8297
    %v8299 = vpop.f32.mrf.mxu0
    %8300 = vmatprep.mubr.bf16.mxu0 %v7739
    %8301 = vmatmul.mubr.bf16.gmra.mxu0 %v7738
    %v8302 = vpop.f32.mrf.mxu0
    %v8303 = vadd.f32 %v8142, %v8302
    %v8304 = vpop.f32.mrf.mxu0
    %v8305 = vpop.f32.mrf.mxu0
    %v8306 = vadd.f32 %v8145, %v8305
    %v8307 = vpop.f32.mrf.mxu0
    %8308 = vmatprep.mubr.bf16.mxu0 %v7743
    %8309 = vmatmul.mubr.bf16.gmra.mxu0 %v7742
    %v8310 = vpop.f32.mrf.mxu0
    %v8311 = vadd.f32 %v8150, %v8310
    %v8312 = vpop.f32.mrf.mxu0
    %v8313 = vpop.f32.mrf.mxu0
    %v8314 = vadd.f32 %v8153, %v8313
    %v8315 = vpop.f32.mrf.mxu0
    %8316 = vmatprep.mubr.bf16.mxu0 %v7747
    %8317 = vmatmul.mubr.bf16.gmra.mxu0 %v7746
    %v8318 = vpop.f32.mrf.mxu0
    %v8319 = vadd.f32 %v8158, %v8318
    %v8320 = vpop.f32.mrf.mxu0
    %v8321 = vpop.f32.mrf.mxu0
    %v8322 = vadd.f32 %v8161, %v8321
    %v8323 = vpop.f32.mrf.mxu0
    %8324 = vmatprep.mubr.bf16.mxu0 %v7751
    %8325 = vmatmul.mubr.bf16.gmra.mxu0 %v7750
    %v8326 = vpop.f32.mrf.mxu0
    %v8327 = vadd.f32 %v8166, %v8326
    %v8328 = vpop.f32.mrf.mxu0
    %v8329 = vpop.f32.mrf.mxu0
    %v8330 = vadd.f32 %v8169, %v8329
    %v8331 = vpop.f32.mrf.mxu0
    %8332 = vmatprep.mubr.bf16.mxu0 %v7755
    %8333 = vmatmul.mubr.bf16.gmra.mxu0 %v7754
    %v8334 = vpop.f32.mrf.mxu0
    %v8335 = vadd.f32 %v8174, %v8334
    %v8336 = vpop.f32.mrf.mxu0
    %v8337 = vpop.f32.mrf.mxu0
    %v8338 = vadd.f32 %v8177, %v8337
    %v8339 = vpop.f32.mrf.mxu0
    %8340 = vdwg.mxu0
    %v8341 = vadd.f32 %v6486, %v8215
    %v8342 = vadd.f32 %v6487, %v8218
    %v8343 = vadd.f32 %v6488, %v8223
    %v8344 = vadd.f32 %v6489, %v8226
    %v8345 = vadd.f32 %v6490, %v8231
    %v8346 = vadd.f32 %v6491, %v8234
    %v8347 = vadd.f32 %v6492, %v8239
    %v8348 = vadd.f32 %v6493, %v8242
    %v8349 = vadd.f32 %v6494, %v8247
    %v8350 = vadd.f32 %v6495, %v8250
    %v8351 = vadd.f32 %v6496, %v8255
    %v8352 = vadd.f32 %v6497, %v8258
    %v8353 = vadd.f32 %v6498, %v8263
    %v8354 = vadd.f32 %v6499, %v8266
    %v8355 = vadd.f32 %v6500, %v8271
    %v8356 = vadd.f32 %v6501, %v8274
    %v8357 = vadd.f32 %v6502, %v8279
    %v8358 = vadd.f32 %v6503, %v8282
    %v8359 = vadd.f32 %v6504, %v8287
    %v8360 = vadd.f32 %v6505, %v8290
    %v8361 = vadd.f32 %v6506, %v8295
    %v8362 = vadd.f32 %v6507, %v8298
    %v8363 = vadd.f32 %v6508, %v8303
    %v8364 = vadd.f32 %v6509, %v8306
    %v8365 = vadd.f32 %v6510, %v8311
    %v8366 = vadd.f32 %v6511, %v8314
    %v8367 = vadd.f32 %v6512, %v8319
    %v8368 = vadd.f32 %v6513, %v8322
    %v8369 = vadd.f32 %v6514, %v8327
    %v8370 = vadd.f32 %v6515, %v8330
    %v8371 = vadd.f32 %v6516, %v8335
    %v8372 = vadd.f32 %v6517, %v8338
    %8373 = vst [vmem:[#allocation14] sm:$0xff] %v8341
    %8374 = vst [vmem:[#allocation14 + $0x8] sm:$0xff] %v8342
    %8375 = vst [vmem:[#allocation14 + $0x10] sm:$0xff] %v8343
    %8376 = vst [vmem:[#allocation14 + $0x18] sm:$0xff] %v8344
    %8377 = vst [vmem:[#allocation14 + $0x20] sm:$0xff] %v8345
    %8378 = vst [vmem:[#allocation14 + $0x28] sm:$0xff] %v8346
    %8379 = vst [vmem:[#allocation14 + $0x30] sm:$0xff] %v8347
    %8380 = vst [vmem:[#allocation14 + $0x38] sm:$0xff] %v8348
    %8381 = vst [vmem:[#allocation14 + $0x40] sm:$0xff] %v8349
    %8382 = vst [vmem:[#allocation14 + $0x48] sm:$0xff] %v8350
    %8383 = vst [vmem:[#allocation14 + $0x50] sm:$0xff] %v8351
    %8384 = vst [vmem:[#allocation14 + $0x58] sm:$0xff] %v8352
    %8385 = vst [vmem:[#allocation14 + $0x60] sm:$0xff] %v8353
    %8386 = vst [vmem:[#allocation14 + $0x68] sm:$0xff] %v8354
    %8387 = vst [vmem:[#allocation14 + $0x70] sm:$0xff] %v8355
    %8388 = vst [vmem:[#allocation14 + $0x78] sm:$0xff] %v8356
    %8389 = vst [vmem:[#allocation14 + $0x80] sm:$0xff] %v8357
    %8390 = vst [vmem:[#allocation14 + $0x88] sm:$0xff] %v8358
    %8391 = vst [vmem:[#allocation14 + $0x90] sm:$0xff] %v8359
    %8392 = vst [vmem:[#allocation14 + $0x98] sm:$0xff] %v8360
    %8393 = vst [vmem:[#allocation14 + $0xa0] sm:$0xff] %v8361
    %8394 = vst [vmem:[#allocation14 + $0xa8] sm:$0xff] %v8362
    %8395 = vst [vmem:[#allocation14 + $0xb0] sm:$0xff] %v8363
    %8396 = vst [vmem:[#allocation14 + $0xb8] sm:$0xff] %v8364
    %8397 = vst [vmem:[#allocation14 + $0xc0] sm:$0xff] %v8365
    %8398 = vst [vmem:[#allocation14 + $0xc8] sm:$0xff] %v8366
    %8399 = vst [vmem:[#allocation14 + $0xd0] sm:$0xff] %v8367
    %8400 = vst [vmem:[#allocation14 + $0xd8] sm:$0xff] %v8368
    %8401 = vst [vmem:[#allocation14 + $0xe0] sm:$0xff] %v8369
    %8402 = vst [vmem:[#allocation14 + $0xe8] sm:$0xff] %v8370
    %8403 = vst [vmem:[#allocation14 + $0xf0] sm:$0xff] %v8371
    %8404 = vst [vmem:[#allocation14 + $0xf8] sm:$0xff] %v8372
    // Predicated region
    $region78: #{tpu_custom_call.1} parent=1 // pred_check
      _
    $region79: #{tpu_custom_call.1} parent=1 // pred_check_branch
      %8406 = sbr.rel (0) target = $region81
    $region80: #{tpu_custom_call.1} parent=1 // pred_region
      %s8408 = ssub.s32 4096, 4096
      %8409 = vsyncadd [#allocation5], %s8408
      %s8410 = sshll.u32 [#allocation14], 4
      %s8411 = int_to_ptr.vmem [resolvable:$true] %s8410
      %8416 = dma.vmem_to_hbm [thread:$0]  %s8411, 4096, %s13, [#allocation5], 128, 128, 8
    $region81: #{tpu_custom_call.1} parent=1 // pred_fallthru
      _
    // Predicated region
    $region82: #{tpu_custom_call.1} parent=1 // pred_check
      _
    $region83: #{tpu_custom_call.1} parent=1 // pred_check_branch
      %8418 = sbr.rel (0) target = $region85
    $region84: #{tpu_custom_call.1} parent=1 // pred_region
      %8419 = dma.done [#allocation5], 4096
    $region85: #{tpu_custom_call.1} parent=1 // pred_fallthru
      _
    %8420 = vsyncpa [#allocation4], 1
    %8421 = vsyncpa [#allocation7], 1
    %8422 = vsyncpa [#allocation10], 1
    %8423 = vsyncpa [#allocation13], 1
    %8424 = vsyncpa [#allocation5], 1

</llo_original>
